<compile_context>
chip_gen: v7x
topology: tpu7x:2x2x1
jax: 0.10.0
libtpu: 0.0.40
codegen_flags: <defaults>
</compile_context>

<pallas_src>
import functools

import jax
import jax.numpy as jnp
from jax import lax
from jax.experimental import pallas as pl
from jax.experimental.pallas import tpu as pltpu

K = 8        # conv kernel size
STRIDE = 4
PAD = 2
BN_EPS = 1e-5


def _round_up(x, m):
    return ((x + m - 1) // m) * m


# ---------------------------------------------------------------------------
# Generic fused multi-tap matmul kernel:  out = [relu](sum_i x_i@w_i + b) [+skip]
# ---------------------------------------------------------------------------
def _fused_mm_kernel(*refs, n_taps, has_skip, relu):
    xs = refs[:n_taps]
    ws = refs[n_taps:2 * n_taps]
    b_ref = refs[2 * n_taps]
    skip_ref = refs[2 * n_taps + 1] if has_skip else None
    o_ref = refs[-1]
    acc = jnp.dot(xs[0][...], ws[0][...], preferred_element_type=jnp.float32)
    for x_ref, w_ref in zip(xs[1:], ws[1:]):
        acc = acc + jnp.dot(x_ref[...], w_ref[...],
                            preferred_element_type=jnp.float32)
    acc = acc + b_ref[...]
    if relu:
        acc = jnp.maximum(acc, 0.0)
    if has_skip:
        acc = acc + skip_ref[...]
    o_ref[...] = acc


def fused_matmul(xs, ws, bias, skip=None, relu=False, tm=256, tn=256):
    """Tiled, pipelined  out = act(sum_i xs[i] @ ws[i] + bias) [+ skip].

    xs[i]: (M, K_i); ws[i]: (K_i, N); bias: (N,); skip: (M, N).
    K is kept whole per block (K <= a few thousand in Demucs); M and N are tiled
    so the BlockSpec pipeline double-buffers HBM traffic and both grid axes are
    'parallel' (megacore on v7x).  Operands feed the MXU in bf16 with f32
    accumulation; bias/ReLU/skip run in the f32 epilogue of the same kernel.
    """
    m = xs[0].shape[0]
    n_out = ws[0].shape[1]

    mp = _round_up(m, 8)
    tm = mp if mp <= tm else tm
    mp = _round_up(mp, tm)

    if n_out <= max(tn, 128):
        tn, np_ = n_out, n_out        # full (possibly lane-sparse) width
        # TODO(synk): outputs narrower than 128 lanes still use masked stores.
    else:
        np_ = _round_up(n_out, tn)

    def pad_rows(a):
        return a if a.shape[0] == mp else jnp.pad(a, ((0, mp - a.shape[0]), (0, 0)))

    def pad_cols(a):
        return a if a.shape[1] == np_ else jnp.pad(a, ((0, 0), (0, np_ - a.shape[1])))

    xs = [pad_rows(x).astype(jnp.bfloat16) for x in xs]
    ws = [pad_cols(w).astype(jnp.bfloat16) for w in ws]
    args = xs + ws + [pad_cols(bias.reshape(1, n_out).astype(jnp.float32))]
    in_specs = ([pl.BlockSpec((tm, x.shape[1]), lambda i, j: (i, 0)) for x in xs]
                + [pl.BlockSpec((w.shape[0], tn), lambda i, j: (0, j)) for w in ws]
                + [pl.BlockSpec((1, tn), lambda i, j: (0, j))])
    if skip is not None:
        args.append(pad_cols(pad_rows(skip.astype(jnp.float32))))
        in_specs.append(pl.BlockSpec((tm, tn), lambda i, j: (i, j)))

    out = pl.pallas_call(
        functools.partial(_fused_mm_kernel, n_taps=len(xs),
                          has_skip=skip is not None, relu=relu),
        grid=(mp // tm, np_ // tn),
        in_specs=in_specs,
        out_specs=pl.BlockSpec((tm, tn), lambda i, j: (i, j)),
        out_shape=jax.ShapeDtypeStruct((mp, np_), jnp.float32),
        compiler_params=pltpu.CompilerParams(
            dimension_semantics=("parallel", "parallel")),
    )(*args)
    if (mp, np_) != (m, n_out):
        out = out[:m, :n_out]
    return out


# ---------------------------------------------------------------------------
# Bidirectional LSTM recurrence (input projection already hoisted out).
# ---------------------------------------------------------------------------
def _bilstm_kernel(gxf_ref, gxb_ref, whhf_ref, whhb_ref, of_ref, ob_ref,
                   hf, cf, hb, cb, *, tc):
    @pl.when(pl.program_id(0) == 0)
    def _():
        for r in (hf, cf, hb, cb):
            r[...] = jnp.zeros_like(r)

    h_dim = hf.shape[1]
    whhf = whhf_ref[...]
    whhb = whhb_ref[...]

    def lstm_cell(g, c_prev):
        # PyTorch gate order: i, f, g, o (H = 128 keeps slices lane-aligned).
        i = jax.nn.sigmoid(g[:, 0:h_dim])
        f = jax.nn.sigmoid(g[:, h_dim:2 * h_dim])
        gg = jnp.tanh(g[:, 2 * h_dim:3 * h_dim])
        o = jax.nn.sigmoid(g[:, 3 * h_dim:4 * h_dim])
        c = f * c_prev + i * gg
        return c, o * jnp.tanh(c)

    # Chunk of tc timesteps per grid step, fully unrolled with static indices.
    for s in range(tc):
        # forward direction: natural time order within the chunk
        gf = gxf_ref[s] + jnp.dot(hf[...], whhf, preferred_element_type=jnp.float32)
        c_new, h_new = lstm_cell(gf, cf[...])
        cf[...] = c_new
        hf[...] = h_new
        of_ref[s] = h_new
        # backward direction: this chunk is traversed in reverse time order
        sb = tc - 1 - s
        gb = gxb_ref[sb] + jnp.dot(hb[...], whhb, preferred_element_type=jnp.float32)
        c_new, h_new = lstm_cell(gb, cb[...])
        cb[...] = c_new
        hb[...] = h_new
        ob_ref[sb] = h_new


def bilstm_layer(gxf, gxb, whhf, whhb):
    """Both LSTM directions in one sequential-grid Pallas call.

    gxf/gxb: (T, B, 4H) precomputed x @ W_ih^T + (b_ih + b_hh) for fwd / bwd
    weights.  The backward direction is fed/written in reverse time purely via
    the BlockSpec index_map (no XLA reverse copies); h/c live in VMEM scratch
    and tc timesteps are processed per grid step to amortize per-step overhead.
    """
    t_len, b, g = gxf.shape
    h = g // 4
    tc = next(c for c in (8, 4, 2, 1) if t_len % c == 0)
    nt = t_len // tc
    fwd = lambda t: (t, 0, 0)
    rev = lambda t: (nt - 1 - t, 0, 0)
    of, ob = pl.pallas_call(
        functools.partial(_bilstm_kernel, tc=tc),
        grid=(nt,),
        in_specs=[
            pl.BlockSpec((tc, b, g), fwd),
            pl.BlockSpec((tc, b, g), rev),
            pl.BlockSpec((h, g), lambda t: (0, 0)),
            pl.BlockSpec((h, g), lambda t: (0, 0)),
        ],
        out_specs=[
            pl.BlockSpec((tc, b, h), fwd),
            pl.BlockSpec((tc, b, h), rev),
        ],
        out_shape=[jax.ShapeDtypeStruct((t_len, b, h), jnp.float32),
                   jax.ShapeDtypeStruct((t_len, b, h), jnp.float32)],
        scratch_shapes=[pltpu.VMEM((b, h), jnp.float32) for _ in range(4)],
        compiler_params=pltpu.CompilerParams(dimension_semantics=("arbitrary",)),
    )(gxf, gxb, whhf, whhb)
    return of, ob


# ------------------------------ conv wrappers -------------------------------
def conv1d_bn_relu(x_nlc, enc_p):
    """Conv1d(k=8, s=4, p=2) + folded BN + ReLU as two shifted stride-4 taps."""
    n, l, cin = x_nlc.shape
    l_out = (l + 2 * PAD - K) // STRIDE + 1
    x_pad = jnp.pad(x_nlc, ((0, 0), (PAD, PAD), (0, 0)))
    # Stride-4 view: row t holds x_pad[4t:4t+4] (taps 0..3); row t+1 = taps 4..7.
    a = x_pad[:, :(l_out + 1) * STRIDE, :].reshape(n, l_out + 1, STRIDE * cin)
    xa = a[:, :l_out].reshape(n * l_out, STRIDE * cin)
    xb = a[:, 1:l_out + 1].reshape(n * l_out, STRIDE * cin)
    c_out = enc_p["wa"].shape[1]
    y = fused_matmul([xa, xb], [enc_p["wa"], enc_p["wb"]], enc_p["b"], relu=True)
    return y.reshape(n, l_out, c_out)


def conv_transpose1d(x_nlc, p, skip=None, relu=False):
    """ConvTranspose1d(k=8, s=4, p=2) (+folded BN, +ReLU, +skip), fully fused.

    Output group y[4j:4j+4] = x[j-1]@Wp + x[j]@Wc + x[j+1]@Wn (+bias, ReLU, skip),
    so overlap-add / bias / activation / skip all run in one kernel pass.
    """
    n, l, cin = x_nlc.shape
    c_out = p["wc"].shape[1] // STRIDE
    l_out = STRIDE * l
    x_prev = jnp.pad(x_nlc, ((0, 0), (1, 0), (0, 0)))[:, :l]
    x_next = jnp.pad(x_nlc, ((0, 0), (0, 1), (0, 0)))[:, 1:]
    xs = [x_nlc.reshape(n * l, cin),
          x_prev.reshape(n * l, cin),
          x_next.reshape(n * l, cin)]
    skip2d = None
    if skip is not None:
        # Reference forward crops to the shorter length; the transposed-conv
        # output (4*l) never exceeds the skip length here, so crop the skip.
        skip2d = skip[:, :l_out].reshape(n * l, STRIDE * c_out)
    y = fused_matmul(xs, [p["wc"], p["wp"], p["wn"]], p["b4"],
                     skip=skip2d, relu=relu)
    return y.reshape(n, l_out, c_out)


# ------------------------------ full forward --------------------------------
@functools.partial(jax.jit, static_argnames=("instruments",))
def demucs_forward(x_ncl, params, instruments):
    x = jnp.transpose(x_ncl, (0, 2, 1))                   # (N, L, 1) channels-last
    skips = []
    for enc_p in params["encoder"]:
        x = conv1d_bn_relu(x, enc_p)
        skips.append(x)
    z = skips.pop()                                       # (N, T, H) == permute(0,2,1)

    n, t_len, h = z.shape
    inp = z
    for lp in params["lstm"]:
        x_tbd = jnp.transpose(inp, (1, 0, 2))             # time-major (T, N, Din)
        x2d = x_tbd.reshape(t_len * n, x_tbd.shape[-1])
        # Input projection + biases hoisted out of the recurrence (tiled matmul).
        gxf = fused_matmul([x2d], [lp["fwd_wih"]], lp["fwd_b"]).reshape(t_len, n, 4 * h)
        gxb = fused_matmul([x2d], [lp["bwd_wih"]], lp["bwd_b"]).reshape(t_len, n, 4 * h)
        of, ob = bilstm_layer(gxf, gxb, lp["fwd_whh"], lp["bwd_whh"])
        inp = jnp.transpose(jnp.concatenate([of, ob], axis=-1), (1, 0, 2))
    z = inp                                               # (N, T, 2H)

    wl, bl = params["linear"]
    z = fused_matmul([z.reshape(n * t_len, 2 * h)], [wl], bl).reshape(n, t_len, h)

    for dec_p in params["decoder"]:
        z = conv_transpose1d(z, dec_p, skip=skips.pop(), relu=True)

    # All instrument heads stacked into one transposed conv (lane-denser output).
    y = conv_transpose1d(z, params["output"], skip=None, relu=False)  # (N, L, n_inst)
    out = {}
    for c, inst in enumerate(instruments):
        out[inst] = jnp.transpose(y[:, :, c:c + 1], (0, 2, 1))        # (N, 1, L)
    return out


# ------------------------------ parameters ----------------------------------
def fold_bn(w, b, gamma, beta, mean, var, cout_axis):
    """Fold eval-mode BatchNorm1d into a (transposed-)conv weight and bias."""
    a = gamma / jnp.sqrt(var + BN_EPS)
    shape = [1] * w.ndim
    shape[cout_axis] = -1
    return w * a.reshape(shape), a * (b - mean) + beta


def pack_conv(w, b):
    """PyTorch Conv1d weight (Cout, Cin, K) -> two stride-4 tap matrices."""
    c_out, c_in, _ = w.shape
    w_t = jnp.transpose(w, (2, 1, 0))                     # (K, Cin, Cout)
    return {"wa": w_t[:STRIDE].reshape(STRIDE * c_in, c_out),
            "wb": w_t[STRIDE:].reshape(STRIDE * c_in, c_out),
            "b": b}


def pack_conv_transpose(w, b):
    """PyTorch ConvTranspose1d weight (Cin, Cout, K) -> 3-tap matmul form."""
    c_in, c_out, _ = w.shape
    w_t = jnp.transpose(w, (0, 2, 1))                     # (Cin, K, Cout)
    zeros2 = jnp.zeros((c_in, 2 * c_out), w.dtype)
    wc = w_t[:, 2:6, :].reshape(c_in, 4 * c_out)          # taps 2..5 -> phases 0..3
    wp = jnp.concatenate([w_t[:, 6:8, :].reshape(c_in, 2 * c_out), zeros2], axis=1)
    wn = jnp.concatenate([zeros2, w_t[:, 0:2, :].reshape(c_in, 2 * c_out)], axis=1)
    return {"wc": wc, "wp": wp, "wn": wn, "b4": jnp.tile(b, STRIDE)}


def init_params(key, hidden=16, n_instruments=4):
    params = {"encoder": [], "lstm": [], "decoder": []}
    keys = iter(jax.random.split(key, 128))

    def nrm(shape, s=0.05):
        return jax.random.normal(next(keys), shape, jnp.float32) * s

    # Encoder convs (+ fresh eval-mode BN folded in).
    for i in range(4):
        cin = 1 if i == 0 else hidden * 2 ** (i - 1)
        cout = hidden * 2 ** i
        w, b = nrm((cout, cin, K)), nrm((cout,))
        w, b = fold_bn(w, b, jnp.ones((cout,)), jnp.zeros((cout,)),
                       jnp.zeros((cout,)), jnp.ones((cout,)), cout_axis=0)
        params["encoder"].append(pack_conv(w, b))

    h = hidden * 2 ** 3
    for layer in range(2):
        din = h if layer == 0 else 2 * h
        lp = {}
        for name in ("fwd", "bwd"):
            w_ih, w_hh = nrm((4 * h, din)), nrm((4 * h, h))
            b_ih, b_hh = nrm((4 * h,)), nrm((4 * h,))
            lp[name + "_wih"] = jnp.transpose(w_ih)       # (Din, 4H)
            lp[name + "_whh"] = jnp.transpose(w_hh)       # (H, 4H)
            lp[name + "_b"] = b_ih + b_hh
        params["lstm"].append(lp)

    params["linear"] = (jnp.transpose(nrm((h, 2 * h))), nrm((h,)))

    for i in reversed(range(3)):
        cin, cout = hidden * 2 ** (i + 1), hidden * 2 ** i
        w, b = nrm((cin, cout, K)), nrm((cout,))
        w, b = fold_bn(w, b, jnp.ones((cout,)), jnp.zeros((cout,)),
                       jnp.zeros((cout,)), jnp.ones((cout,)), cout_axis=1)
        params["decoder"].append(pack_conv_transpose(w, b))

    # Per-instrument output heads stacked into a single transposed conv.
    w_heads = jnp.concatenate([nrm((hidden, 1, K)) for _ in range(n_instruments)],
                              axis=1)                     # (hidden, n_inst, K)
    b_heads = jnp.concatenate([nrm((1,)) for _ in range(n_instruments)])
    params["output"] = pack_conv_transpose(w_heads, b_heads)
    return params


if __name__ == "__main__":
    key = jax.random.PRNGKey(0)
    k_p, k_x = jax.random.split(key)

    hidden = 16           # small stand-in for the module's default 64 (H = 128)
    instruments = ("vocals", "drums", "bass", "other")
    n, l = 2, 1024        # length divisible by 4**4 so lengths round-trip exactly

    params = init_params(k_p, hidden=hidden, n_instruments=len(instruments))
    x = jax.random.normal(k_x, (n, 1, l), jnp.float32)    # PyTorch-style (N, C=1, L)

    out = demucs_forward(x, params, instruments=instruments)
    out = jax.tree_util.tree_map(jax.block_until_ready, out)

    assert set(out.keys()) == set(instruments)
    assert all(v.shape == (n, 1, l) for v in out.values())
    assert all(bool(jnp.all(jnp.isfinite(v))) for v in out.values())
    print("KERNEL_OK")
</pallas_src>

<mosaic_0001>
module attributes {stable_mosaic.version = 11 : i64} {
  func.func @_fused_mm_kernel(%arg0: i32, %arg1: i32, %arg2: memref<256x4xbf16, #tpu.memory_space<vmem>>, %arg3: memref<256x4xbf16, #tpu.memory_space<vmem>>, %arg4: memref<4x16xbf16, #tpu.memory_space<vmem>>, %arg5: memref<4x16xbf16, #tpu.memory_space<vmem>>, %arg6: memref<1x16xf32, #tpu.memory_space<vmem>>, %arg7: memref<256x16xf32, #tpu.memory_space<vmem>>) attributes {dimension_semantics = [#tpu.dimension_semantics<parallel>, #tpu.dimension_semantics<parallel>], iteration_bounds = array<i64: 2, 1>, scalar_prefetch = 0 : i64, scratch_operands = 0 : i64, tpu.core_type = #tpu.core_type<tc>, window_params = [{transform_indices = @transform_0, window_bounds = array<i64: 256, 4>}, {transform_indices = @transform_1, window_bounds = array<i64: 256, 4>}, {transform_indices = @transform_2, window_bounds = array<i64: 4, 16>}, {transform_indices = @transform_3, window_bounds = array<i64: 4, 16>}, {transform_indices = @transform_4, window_bounds = array<i64: 1, 16>}, {transform_indices = @transform_5, window_bounds = array<i64: 256, 16>}]} {
    %c0 = arith.constant 0 : index
    %c0_0 = arith.constant 0 : index
    %0 = vector.load %arg2[%c0, %c0_0] : memref<256x4xbf16, #tpu.memory_space<vmem>>, vector<256x4xbf16>
    %c0_1 = arith.constant 0 : index
    %c0_2 = arith.constant 0 : index
    %1 = vector.load %arg4[%c0_1, %c0_2] : memref<4x16xbf16, #tpu.memory_space<vmem>>, vector<4x16xbf16>
    %cst = arith.constant dense<0.000000e+00> : vector<256x16xf32>
    %2 = tpu.matmul %0, %1, %cst {dimension_numbers = #tpu.dot_dimension_numbers<[1], [0], [0], [1], [0, 0, 1, 1], [], []>} : vector<256x4xbf16>, vector<4x16xbf16>, vector<256x16xf32> -> vector<256x16xf32>
    %c0_3 = arith.constant 0 : index
    %c0_4 = arith.constant 0 : index
    %3 = vector.load %arg3[%c0_3, %c0_4] : memref<256x4xbf16, #tpu.memory_space<vmem>>, vector<256x4xbf16>
    %c0_5 = arith.constant 0 : index
    %c0_6 = arith.constant 0 : index
    %4 = vector.load %arg5[%c0_5, %c0_6] : memref<4x16xbf16, #tpu.memory_space<vmem>>, vector<4x16xbf16>
    %cst_7 = arith.constant dense<0.000000e+00> : vector<256x16xf32>
    %5 = tpu.matmul %3, %4, %cst_7 {dimension_numbers = #tpu.dot_dimension_numbers<[1], [0], [0], [1], [0, 0, 1, 1], [], []>} : vector<256x4xbf16>, vector<4x16xbf16>, vector<256x16xf32> -> vector<256x16xf32>
    %6 = arith.addf %2, %5 : vector<256x16xf32>
    %c0_8 = arith.constant 0 : index
    %c0_9 = arith.constant 0 : index
    %7 = vector.load %arg6[%c0_8, %c0_9] : memref<1x16xf32, #tpu.memory_space<vmem>>, vector<1x16xf32>
    %8 = vector.broadcast %7 : vector<1x16xf32> to vector<256x16xf32>
    %9 = arith.addf %6, %8 : vector<256x16xf32>
    %cst_10 = arith.constant 0.000000e+00 : f32
    %10 = vector.broadcast %cst_10 : f32 to vector<256x16xf32>
    %11 = arith.maximumf %9, %10 : vector<256x16xf32>
    %c0_11 = arith.constant 0 : index
    %c0_12 = arith.constant 0 : index
    %12 = vector.load %arg7[%c0_11, %c0_12] : memref<256x16xf32, #tpu.memory_space<vmem>>, vector<256x16xf32>
    tpu.vector_store %arg7[%c0_11, %c0_12], %11 {strides = array<i32>} : memref<256x16xf32, #tpu.memory_space<vmem>>, vector<256x16xf32>,
    return
  }
  func.func @transform_0(%arg0: i32, %arg1: i32) -> (i32, i32) {
    %c0_i32 = arith.constant 0 : i32
    %c0_i32_0 = arith.constant 0 : i32
    return %arg0, %c0_i32 : i32, i32
  }
  func.func @transform_1(%arg0: i32, %arg1: i32) -> (i32, i32) {
    %c0_i32 = arith.constant 0 : i32
    %c0_i32_0 = arith.constant 0 : i32
    return %arg0, %c0_i32 : i32, i32
  }
  func.func @transform_2(%arg0: i32, %arg1: i32) -> (i32, i32) {
    %c0_i32 = arith.constant 0 : i32
    %c0_i32_0 = arith.constant 0 : i32
    return %c0_i32, %arg1 : i32, i32
  }
  func.func @transform_3(%arg0: i32, %arg1: i32) -> (i32, i32) {
    %c0_i32 = arith.constant 0 : i32
    %c0_i32_0 = arith.constant 0 : i32
    return %c0_i32, %arg1 : i32, i32
  }
  func.func @transform_4(%arg0: i32, %arg1: i32) -> (i32, i32) {
    %c0_i32 = arith.constant 0 : i32
    %c0_i32_0 = arith.constant 0 : i32
    return %c0_i32, %arg1 : i32, i32
  }
  func.func @transform_5(%arg0: i32, %arg1: i32) -> (i32, i32) {
    %c0_i32 = arith.constant 0 : i32
    return %arg0, %arg1 : i32, i32
  }
}

module attributes {stable_mosaic.version = 11 : i64} {
  func.func @_fused_mm_kernel(%arg0: i32, %arg1: i32, %arg2: memref<128x64xbf16, #tpu.memory_space<vmem>>, %arg3: memref<128x64xbf16, #tpu.memory_space<vmem>>, %arg4: memref<64x32xbf16, #tpu.memory_space<vmem>>, %arg5: memref<64x32xbf16, #tpu.memory_space<vmem>>, %arg6: memref<1x32xf32, #tpu.memory_space<vmem>>, %arg7: memref<128x32xf32, #tpu.memory_space<vmem>>) attributes {dimension_semantics = [#tpu.dimension_semantics<parallel>, #tpu.dimension_semantics<parallel>], iteration_bounds = array<i64: 1, 1>, scalar_prefetch = 0 : i64, scratch_operands = 0 : i64, tpu.core_type = #tpu.core_type<tc>, window_params = [{transform_indices = @transform_0, window_bounds = array<i64: 128, 64>}, {transform_indices = @transform_1, window_bounds = array<i64: 128, 64>}, {transform_indices = @transform_2, window_bounds = array<i64: 64, 32>}, {transform_indices = @transform_3, window_bounds = array<i64: 64, 32>}, {transform_indices = @transform_4, window_bounds = array<i64: 1, 32>}, {transform_indices = @transform_5, window_bounds = array<i64: 128, 32>}]} {
    %c0 = arith.constant 0 : index
    %c0_0 = arith.constant 0 : index
    %0 = vector.load %arg2[%c0, %c0_0] : memref<128x64xbf16, #tpu.memory_space<vmem>>, vector<128x64xbf16>
    %c0_1 = arith.constant 0 : index
    %c0_2 = arith.constant 0 : index
    %1 = vector.load %arg4[%c0_1, %c0_2] : memref<64x32xbf16, #tpu.memory_space<vmem>>, vector<64x32xbf16>
    %cst = arith.constant dense<0.000000e+00> : vector<128x32xf32>
    %2 = tpu.matmul %0, %1, %cst {dimension_numbers = #tpu.dot_dimension_numbers<[1], [0], [0], [1], [0, 0, 1, 1], [], []>} : vector<128x64xbf16>, vector<64x32xbf16>, vector<128x32xf32> -> vector<128x32xf32>
    %c0_3 = arith.constant 0 : index
    %c0_4 = arith.constant 0 : index
    %3 = vector.load %arg3[%c0_3, %c0_4] : memref<128x64xbf16, #tpu.memory_space<vmem>>, vector<128x64xbf16>
    %c0_5 = arith.constant 0 : index
    %c0_6 = arith.constant 0 : index
    %4 = vector.load %arg5[%c0_5, %c0_6] : memref<64x32xbf16, #tpu.memory_space<vmem>>, vector<64x32xbf16>
    %cst_7 = arith.constant dense<0.000000e+00> : vector<128x32xf32>
    %5 = tpu.matmul %3, %4, %cst_7 {dimension_numbers = #tpu.dot_dimension_numbers<[1], [0], [0], [1], [0, 0, 1, 1], [], []>} : vector<128x64xbf16>, vector<64x32xbf16>, vector<128x32xf32> -> vector<128x32xf32>
    %6 = arith.addf %2, %5 : vector<128x32xf32>
    %c0_8 = arith.constant 0 : index
    %c0_9 = arith.constant 0 : index
    %7 = vector.load %arg6[%c0_8, %c0_9] : memref<1x32xf32, #tpu.memory_space<vmem>>, vector<1x32xf32>
    %8 = vector.broadcast %7 : vector<1x32xf32> to vector<128x32xf32>
    %9 = arith.addf %6, %8 : vector<128x32xf32>
    %cst_10 = arith.constant 0.000000e+00 : f32
    %10 = vector.broadcast %cst_10 : f32 to vector<128x32xf32>
    %11 = arith.maximumf %9, %10 : vector<128x32xf32>
    %c0_11 = arith.constant 0 : index
    %c0_12 = arith.constant 0 : index
    %12 = vector.load %arg7[%c0_11, %c0_12] : memref<128x32xf32, #tpu.memory_space<vmem>>, vector<128x32xf32>
    tpu.vector_store %arg7[%c0_11, %c0_12], %11 {strides = array<i32>} : memref<128x32xf32, #tpu.memory_space<vmem>>, vector<128x32xf32>,
    return
  }
  func.func @transform_0(%arg0: i32, %arg1: i32) -> (i32, i32) {
    %c0_i32 = arith.constant 0 : i32
    %c0_i32_0 = arith.constant 0 : i32
    return %arg0, %c0_i32 : i32, i32
  }
  func.func @transform_1(%arg0: i32, %arg1: i32) -> (i32, i32) {
    %c0_i32 = arith.constant 0 : i32
    %c0_i32_0 = arith.constant 0 : i32
    return %arg0, %c0_i32 : i32, i32
  }
  func.func @transform_2(%arg0: i32, %arg1: i32) -> (i32, i32) {
    %c0_i32 = arith.constant 0 : i32
    %c0_i32_0 = arith.constant 0 : i32
    return %c0_i32, %arg1 : i32, i32
  }
  func.func @transform_3(%arg0: i32, %arg1: i32) -> (i32, i32) {
    %c0_i32 = arith.constant 0 : i32
    %c0_i32_0 = arith.constant 0 : i32
    return %c0_i32, %arg1 : i32, i32
  }
  func.func @transform_4(%arg0: i32, %arg1: i32) -> (i32, i32) {
    %c0_i32 = arith.constant 0 : i32
    %c0_i32_0 = arith.constant 0 : i32
    return %c0_i32, %arg1 : i32, i32
  }
  func.func @transform_5(%arg0: i32, %arg1: i32) -> (i32, i32) {
    %c0_i32 = arith.constant 0 : i32
    return %arg0, %arg1 : i32, i32
  }
}

module attributes {stable_mosaic.version = 11 : i64} {
  func.func @_fused_mm_kernel(%arg0: i32, %arg1: i32, %arg2: memref<32x128xbf16, #tpu.memory_space<vmem>>, %arg3: memref<32x128xbf16, #tpu.memory_space<vmem>>, %arg4: memref<128x64xbf16, #tpu.memory_space<vmem>>, %arg5: memref<128x64xbf16, #tpu.memory_space<vmem>>, %arg6: memref<1x64xf32, #tpu.memory_space<vmem>>, %arg7: memref<32x64xf32, #tpu.memory_space<vmem>>) attributes {dimension_semantics = [#tpu.dimension_semantics<parallel>, #tpu.dimension_semantics<parallel>], iteration_bounds = array<i64: 1, 1>, scalar_prefetch = 0 : i64, scratch_operands = 0 : i64, tpu.core_type = #tpu.core_type<tc>, window_params = [{transform_indices = @transform_0, window_bounds = array<i64: 32, 128>}, {transform_indices = @transform_1, window_bounds = array<i64: 32, 128>}, {transform_indices = @transform_2, window_bounds = array<i64: 128, 64>}, {transform_indices = @transform_3, window_bounds = array<i64: 128, 64>}, {transform_indices = @transform_4, window_bounds = array<i64: 1, 64>}, {transform_indices = @transform_5, window_bounds = array<i64: 32, 64>}]} {
    %c0 = arith.constant 0 : index
    %c0_0 = arith.constant 0 : index
    %0 = vector.load %arg2[%c0, %c0_0] : memref<32x128xbf16, #tpu.memory_space<vmem>>, vector<32x128xbf16>
    %c0_1 = arith.constant 0 : index
    %c0_2 = arith.constant 0 : index
    %1 = vector.load %arg4[%c0_1, %c0_2] : memref<128x64xbf16, #tpu.memory_space<vmem>>, vector<128x64xbf16>
    %cst = arith.constant dense<0.000000e+00> : vector<32x64xf32>
    %2 = tpu.matmul %0, %1, %cst {dimension_numbers = #tpu.dot_dimension_numbers<[1], [0], [0], [1], [0, 0, 1, 1], [], []>} : vector<32x128xbf16>, vector<128x64xbf16>, vector<32x64xf32> -> vector<32x64xf32>
    %c0_3 = arith.constant 0 : index
    %c0_4 = arith.constant 0 : index
    %3 = vector.load %arg3[%c0_3, %c0_4] : memref<32x128xbf16, #tpu.memory_space<vmem>>, vector<32x128xbf16>
    %c0_5 = arith.constant 0 : index
    %c0_6 = arith.constant 0 : index
    %4 = vector.load %arg5[%c0_5, %c0_6] : memref<128x64xbf16, #tpu.memory_space<vmem>>, vector<128x64xbf16>
    %cst_7 = arith.constant dense<0.000000e+00> : vector<32x64xf32>
    %5 = tpu.matmul %3, %4, %cst_7 {dimension_numbers = #tpu.dot_dimension_numbers<[1], [0], [0], [1], [0, 0, 1, 1], [], []>} : vector<32x128xbf16>, vector<128x64xbf16>, vector<32x64xf32> -> vector<32x64xf32>
    %6 = arith.addf %2, %5 : vector<32x64xf32>
    %c0_8 = arith.constant 0 : index
    %c0_9 = arith.constant 0 : index
    %7 = vector.load %arg6[%c0_8, %c0_9] : memref<1x64xf32, #tpu.memory_space<vmem>>, vector<1x64xf32>
    %8 = vector.broadcast %7 : vector<1x64xf32> to vector<32x64xf32>
    %9 = arith.addf %6, %8 : vector<32x64xf32>
    %cst_10 = arith.constant 0.000000e+00 : f32
    %10 = vector.broadcast %cst_10 : f32 to vector<32x64xf32>
    %11 = arith.maximumf %9, %10 : vector<32x64xf32>
    %c0_11 = arith.constant 0 : index
    %c0_12 = arith.constant 0 : index
    %12 = vector.load %arg7[%c0_11, %c0_12] : memref<32x64xf32, #tpu.memory_space<vmem>>, vector<32x64xf32>
    tpu.vector_store %arg7[%c0_11, %c0_12], %11 {strides = array<i32>} : memref<32x64xf32, #tpu.memory_space<vmem>>, vector<32x64xf32>,
    return
  }
  func.func @transform_0(%arg0: i32, %arg1: i32) -> (i32, i32) {
    %c0_i32 = arith.constant 0 : i32
    %c0_i32_0 = arith.constant 0 : i32
    return %arg0, %c0_i32 : i32, i32
  }
  func.func @transform_1(%arg0: i32, %arg1: i32) -> (i32, i32) {
    %c0_i32 = arith.constant 0 : i32
    %c0_i32_0 = arith.constant 0 : i32
    return %arg0, %c0_i32 : i32, i32
  }
  func.func @transform_2(%arg0: i32, %arg1: i32) -> (i32, i32) {
    %c0_i32 = arith.constant 0 : i32
    %c0_i32_0 = arith.constant 0 : i32
    return %c0_i32, %arg1 : i32, i32
  }
  func.func @transform_3(%arg0: i32, %arg1: i32) -> (i32, i32) {
    %c0_i32 = arith.constant 0 : i32
    %c0_i32_0 = arith.constant 0 : i32
    return %c0_i32, %arg1 : i32, i32
  }
  func.func @transform_4(%arg0: i32, %arg1: i32) -> (i32, i32) {
    %c0_i32 = arith.constant 0 : i32
    %c0_i32_0 = arith.constant 0 : i32
    return %c0_i32, %arg1 : i32, i32
  }
  func.func @transform_5(%arg0: i32, %arg1: i32) -> (i32, i32) {
    %c0_i32 = arith.constant 0 : i32
    return %arg0, %arg1 : i32, i32
  }
}

module attributes {stable_mosaic.version = 11 : i64} {
  func.func @_fused_mm_kernel(%arg0: i32, %arg1: i32, %arg2: memref<8x256xbf16, #tpu.memory_space<vmem>>, %arg3: memref<8x256xbf16, #tpu.memory_space<vmem>>, %arg4: memref<256x128xbf16, #tpu.memory_space<vmem>>, %arg5: memref<256x128xbf16, #tpu.memory_space<vmem>>, %arg6: memref<1x128xf32, #tpu.memory_space<vmem>>, %arg7: memref<8x128xf32, #tpu.memory_space<vmem>>) attributes {dimension_semantics = [#tpu.dimension_semantics<parallel>, #tpu.dimension_semantics<parallel>], iteration_bounds = array<i64: 1, 1>, scalar_prefetch = 0 : i64, scratch_operands = 0 : i64, tpu.core_type = #tpu.core_type<tc>, window_params = [{transform_indices = @transform_0, window_bounds = array<i64: 8, 256>}, {transform_indices = @transform_1, window_bounds = array<i64: 8, 256>}, {transform_indices = @transform_2, window_bounds = array<i64: 256, 128>}, {transform_indices = @transform_3, window_bounds = array<i64: 256, 128>}, {transform_indices = @transform_4, window_bounds = array<i64: 1, 128>}, {transform_indices = @transform_5, window_bounds = array<i64: 8, 128>}]} {
    %c0 = arith.constant 0 : index
    %c0_0 = arith.constant 0 : index
    %0 = vector.load %arg2[%c0, %c0_0] : memref<8x256xbf16, #tpu.memory_space<vmem>>, vector<8x256xbf16>
    %c0_1 = arith.constant 0 : index
    %c0_2 = arith.constant 0 : index
    %1 = vector.load %arg4[%c0_1, %c0_2] : memref<256x128xbf16, #tpu.memory_space<vmem>>, vector<256x128xbf16>
    %cst = arith.constant dense<0.000000e+00> : vector<8x128xf32>
    %2 = tpu.matmul %0, %1, %cst {dimension_numbers = #tpu.dot_dimension_numbers<[1], [0], [0], [1], [0, 0, 1, 1], [], []>} : vector<8x256xbf16>, vector<256x128xbf16>, vector<8x128xf32> -> vector<8x128xf32>
    %c0_3 = arith.constant 0 : index
    %c0_4 = arith.constant 0 : index
    %3 = vector.load %arg3[%c0_3, %c0_4] : memref<8x256xbf16, #tpu.memory_space<vmem>>, vector<8x256xbf16>
    %c0_5 = arith.constant 0 : index
    %c0_6 = arith.constant 0 : index
    %4 = vector.load %arg5[%c0_5, %c0_6] : memref<256x128xbf16, #tpu.memory_space<vmem>>, vector<256x128xbf16>
    %cst_7 = arith.constant dense<0.000000e+00> : vector<8x128xf32>
    %5 = tpu.matmul %3, %4, %cst_7 {dimension_numbers = #tpu.dot_dimension_numbers<[1], [0], [0], [1], [0, 0, 1, 1], [], []>} : vector<8x256xbf16>, vector<256x128xbf16>, vector<8x128xf32> -> vector<8x128xf32>
    %6 = arith.addf %2, %5 : vector<8x128xf32>
    %c0_8 = arith.constant 0 : index
    %c0_9 = arith.constant 0 : index
    %7 = vector.load %arg6[%c0_8, %c0_9] : memref<1x128xf32, #tpu.memory_space<vmem>>, vector<1x128xf32>
    %8 = vector.broadcast %7 : vector<1x128xf32> to vector<8x128xf32>
    %9 = arith.addf %6, %8 : vector<8x128xf32>
    %cst_10 = arith.constant 0.000000e+00 : f32
    %10 = vector.broadcast %cst_10 : f32 to vector<8x128xf32>
    %11 = arith.maximumf %9, %10 : vector<8x128xf32>
    %c0_11 = arith.constant 0 : index
    %c0_12 = arith.constant 0 : index
    %12 = vector.load %arg7[%c0_11, %c0_12] : memref<8x128xf32, #tpu.memory_space<vmem>>, vector<8x128xf32>
    tpu.vector_store %arg7[%c0_11, %c0_12], %11 {strides = array<i32>} : memref<8x128xf32, #tpu.memory_space<vmem>>, vector<8x128xf32>,
    return
  }
  func.func @transform_0(%arg0: i32, %arg1: i32) -> (i32, i32) {
    %c0_i32 = arith.constant 0 : i32
    %c0_i32_0 = arith.constant 0 : i32
    return %arg0, %c0_i32 : i32, i32
  }
  func.func @transform_1(%arg0: i32, %arg1: i32) -> (i32, i32) {
    %c0_i32 = arith.constant 0 : i32
    %c0_i32_0 = arith.constant 0 : i32
    return %arg0, %c0_i32 : i32, i32
  }
  func.func @transform_2(%arg0: i32, %arg1: i32) -> (i32, i32) {
    %c0_i32 = arith.constant 0 : i32
    %c0_i32_0 = arith.constant 0 : i32
    return %c0_i32, %arg1 : i32, i32
  }
  func.func @transform_3(%arg0: i32, %arg1: i32) -> (i32, i32) {
    %c0_i32 = arith.constant 0 : i32
    %c0_i32_0 = arith.constant 0 : i32
    return %c0_i32, %arg1 : i32, i32
  }
  func.func @transform_4(%arg0: i32, %arg1: i32) -> (i32, i32) {
    %c0_i32 = arith.constant 0 : i32
    %c0_i32_0 = arith.constant 0 : i32
    return %c0_i32, %arg1 : i32, i32
  }
  func.func @transform_5(%arg0: i32, %arg1: i32) -> (i32, i32) {
    %c0_i32 = arith.constant 0 : i32
    return %arg0, %arg1 : i32, i32
  }
}

module attributes {stable_mosaic.version = 11 : i64} {
  func.func @_bilstm_kernel(%arg0: i32, %arg1: memref<4x2x512xf32, #tpu.memory_space<vmem>>, %arg2: memref<4x2x512xf32, #tpu.memory_space<vmem>>, %arg3: memref<128x512xf32, #tpu.memory_space<vmem>>, %arg4: memref<128x512xf32, #tpu.memory_space<vmem>>, %arg5: memref<4x2x128xf32, #tpu.memory_space<vmem>>, %arg6: memref<4x2x128xf32, #tpu.memory_space<vmem>>, %arg7: memref<2x128xf32, #tpu.memory_space<vmem>>, %arg8: memref<2x128xf32, #tpu.memory_space<vmem>>, %arg9: memref<2x128xf32, #tpu.memory_space<vmem>>, %arg10: memref<2x128xf32, #tpu.memory_space<vmem>>) attributes {dimension_semantics = [#tpu.dimension_semantics<arbitrary>], iteration_bounds = array<i64: 1>, scalar_prefetch = 0 : i64, scratch_operands = 4 : i64, tpu.core_type = #tpu.core_type<tc>, window_params = [{transform_indices = @transform_0, window_bounds = array<i64: 4, 2, 512>}, {transform_indices = @transform_1, window_bounds = array<i64: 4, 2, 512>}, {pipeline_mode = #tpu.pipeline_mode<synchronous>, transform_indices = @transform_2, window_bounds = array<i64: 128, 512>}, {pipeline_mode = #tpu.pipeline_mode<synchronous>, transform_indices = @transform_3, window_bounds = array<i64: 128, 512>}, {transform_indices = @transform_4, window_bounds = array<i64: 4, 2, 128>}, {transform_indices = @transform_5, window_bounds = array<i64: 4, 2, 128>}]} {
    %c0_i32 = arith.constant 0 : i32
    %0 = arith.cmpi eq, %arg0, %c0_i32 : i32
    %1 = arith.extui %0 : i1 to i32
    %c0_i32_0 = arith.constant 0 : i32
    %2 = arith.cmpi ne, %1, %c0_i32_0 : i32
    scf.if %2 {
      %cst_144 = arith.constant 0.000000e+00 : f32
      %293 = vector.broadcast %cst_144 : f32 to vector<2x128xf32>
      %c0_145 = arith.constant 0 : index
      %c0_146 = arith.constant 0 : index
      %294 = vector.load %arg7[%c0_145, %c0_146] : memref<2x128xf32, #tpu.memory_space<vmem>>, vector<2x128xf32>
      tpu.vector_store %arg7[%c0_145, %c0_146], %293 {strides = array<i32>} : memref<2x128xf32, #tpu.memory_space<vmem>>, vector<2x128xf32>,
      %cst_147 = arith.constant 0.000000e+00 : f32
      %295 = vector.broadcast %cst_147 : f32 to vector<2x128xf32>
      %c0_148 = arith.constant 0 : index
      %c0_149 = arith.constant 0 : index
      %296 = vector.load %arg8[%c0_148, %c0_149] : memref<2x128xf32, #tpu.memory_space<vmem>>, vector<2x128xf32>
      tpu.vector_store %arg8[%c0_148, %c0_149], %295 {strides = array<i32>} : memref<2x128xf32, #tpu.memory_space<vmem>>, vector<2x128xf32>,
      %cst_150 = arith.constant 0.000000e+00 : f32
      %297 = vector.broadcast %cst_150 : f32 to vector<2x128xf32>
      %c0_151 = arith.constant 0 : index
      %c0_152 = arith.constant 0 : index
      %298 = vector.load %arg9[%c0_151, %c0_152] : memref<2x128xf32, #tpu.memory_space<vmem>>, vector<2x128xf32>
      tpu.vector_store %arg9[%c0_151, %c0_152], %297 {strides = array<i32>} : memref<2x128xf32, #tpu.memory_space<vmem>>, vector<2x128xf32>,
      %cst_153 = arith.constant 0.000000e+00 : f32
      %299 = vector.broadcast %cst_153 : f32 to vector<2x128xf32>
      %c0_154 = arith.constant 0 : index
      %c0_155 = arith.constant 0 : index
      %300 = vector.load %arg10[%c0_154, %c0_155] : memref<2x128xf32, #tpu.memory_space<vmem>>, vector<2x128xf32>
      tpu.vector_store %arg10[%c0_154, %c0_155], %299 {strides = array<i32>} : memref<2x128xf32, #tpu.memory_space<vmem>>, vector<2x128xf32>,
    } else {
    }
    %c0 = arith.constant 0 : index
    %c0_1 = arith.constant 0 : index
    %3 = vector.load %arg3[%c0, %c0_1] : memref<128x512xf32, #tpu.memory_space<vmem>>, vector<128x512xf32>
    %c0_2 = arith.constant 0 : index
    %c0_3 = arith.constant 0 : index
    %4 = vector.load %arg4[%c0_2, %c0_3] : memref<128x512xf32, #tpu.memory_space<vmem>>, vector<128x512xf32>
    %c0_4 = arith.constant 0 : index
    %c0_5 = arith.constant 0 : index
    %c0_6 = arith.constant 0 : index
    %5 = vector.load %arg1[%c0_4, %c0_5, %c0_6] : memref<4x2x512xf32, #tpu.memory_space<vmem>>, vector<1x2x512xf32>
    %6 = vector.shape_cast %5 : vector<1x2x512xf32> to vector<2x512xf32>
    %c0_7 = arith.constant 0 : index
    %c0_8 = arith.constant 0 : index
    %7 = vector.load %arg7[%c0_7, %c0_8] : memref<2x128xf32, #tpu.memory_space<vmem>>, vector<2x128xf32>
    %cst = arith.constant dense<0.000000e+00> : vector<2x512xf32>
    %8 = tpu.matmul %7, %3, %cst {dimension_numbers = #tpu.dot_dimension_numbers<[1], [0], [0], [1], [0, 0, 1, 1], [], []>} : vector<2x128xf32>, vector<128x512xf32>, vector<2x512xf32> -> vector<2x512xf32>
    %9 = arith.addf %6, %8 : vector<2x512xf32>
    %c0_9 = arith.constant 0 : index
    %c0_10 = arith.constant 0 : index
    %10 = vector.load %arg8[%c0_9, %c0_10] : memref<2x128xf32, #tpu.memory_space<vmem>>, vector<2x128xf32>
    %11 = vector.extract_strided_slice %9 {offsets = [0, 0], sizes = [2, 128], strides = [1, 1]} : vector<2x512xf32> to vector<2x128xf32>
    %12 = arith.negf %11 : vector<2x128xf32>
    %13 = math.exp %12 : vector<2x128xf32>
    %cst_11 = arith.constant 1.000000e+00 : f32
    %14 = vector.broadcast %cst_11 : f32 to vector<2x128xf32>
    %15 = arith.addf %14, %13 : vector<2x128xf32>
    %16 = arith.divf %14, %15 : vector<2x128xf32>
    %17 = vector.extract_strided_slice %9 {offsets = [0, 128], sizes = [2, 128], strides = [1, 1]} : vector<2x512xf32> to vector<2x128xf32>
    %18 = arith.negf %17 : vector<2x128xf32>
    %19 = math.exp %18 : vector<2x128xf32>
    %cst_12 = arith.constant 1.000000e+00 : f32
    %20 = vector.broadcast %cst_12 : f32 to vector<2x128xf32>
    %21 = arith.addf %20, %19 : vector<2x128xf32>
    %22 = arith.divf %20, %21 : vector<2x128xf32>
    %23 = vector.extract_strided_slice %9 {offsets = [0, 256], sizes = [2, 128], strides = [1, 1]} : vector<2x512xf32> to vector<2x128xf32>
    %24 = math.tanh %23 : vector<2x128xf32>
    %25 = vector.extract_strided_slice %9 {offsets = [0, 384], sizes = [2, 128], strides = [1, 1]} : vector<2x512xf32> to vector<2x128xf32>
    %26 = arith.negf %25 : vector<2x128xf32>
    %27 = math.exp %26 : vector<2x128xf32>
    %cst_13 = arith.constant 1.000000e+00 : f32
    %28 = vector.broadcast %cst_13 : f32 to vector<2x128xf32>
    %29 = arith.addf %28, %27 : vector<2x128xf32>
    %30 = arith.divf %28, %29 : vector<2x128xf32>
    %31 = arith.mulf %22, %10 : vector<2x128xf32>
    %32 = arith.mulf %16, %24 : vector<2x128xf32>
    %33 = arith.addf %31, %32 : vector<2x128xf32>
    %34 = math.tanh %33 : vector<2x128xf32>
    %35 = arith.mulf %30, %34 : vector<2x128xf32>
    %c0_14 = arith.constant 0 : index
    %c0_15 = arith.constant 0 : index
    %36 = vector.load %arg8[%c0_14, %c0_15] : memref<2x128xf32, #tpu.memory_space<vmem>>, vector<2x128xf32>
    tpu.vector_store %arg8[%c0_14, %c0_15], %33 {strides = array<i32>} : memref<2x128xf32, #tpu.memory_space<vmem>>, vector<2x128xf32>,
    %c0_16 = arith.constant 0 : index
    %c0_17 = arith.constant 0 : index
    %37 = vector.load %arg7[%c0_16, %c0_17] : memref<2x128xf32, #tpu.memory_space<vmem>>, vector<2x128xf32>
    tpu.vector_store %arg7[%c0_16, %c0_17], %35 {strides = array<i32>} : memref<2x128xf32, #tpu.memory_space<vmem>>, vector<2x128xf32>,
    %c0_18 = arith.constant 0 : index
    %c0_19 = arith.constant 0 : index
    %c0_20 = arith.constant 0 : index
    %38 = vector.load %arg5[%c0_18, %c0_19, %c0_20] : memref<4x2x128xf32, #tpu.memory_space<vmem>>, vector<1x2x128xf32>
    %39 = vector.shape_cast %38 : vector<1x2x128xf32> to vector<2x128xf32>
    %40 = vector.shape_cast %35 : vector<2x128xf32> to vector<1x2x128xf32>
    tpu.vector_store %arg5[%c0_18, %c0_19, %c0_20], %40 {strides = array<i32>} : memref<4x2x128xf32, #tpu.memory_space<vmem>>, vector<1x2x128xf32>,
    %c3 = arith.constant 3 : index
    %c0_21 = arith.constant 0 : index
    %c0_22 = arith.constant 0 : index
    %41 = vector.load %arg2[%c3, %c0_21, %c0_22] : memref<4x2x512xf32, #tpu.memory_space<vmem>>, vector<1x2x512xf32>
    %42 = vector.shape_cast %41 : vector<1x2x512xf32> to vector<2x512xf32>
    %c0_23 = arith.constant 0 : index
    %c0_24 = arith.constant 0 : index
    %43 = vector.load %arg9[%c0_23, %c0_24] : memref<2x128xf32, #tpu.memory_space<vmem>>, vector<2x128xf32>
    %cst_25 = arith.constant dense<0.000000e+00> : vector<2x512xf32>
    %44 = tpu.matmul %43, %4, %cst_25 {dimension_numbers = #tpu.dot_dimension_numbers<[1], [0], [0], [1], [0, 0, 1, 1], [], []>} : vector<2x128xf32>, vector<128x512xf32>, vector<2x512xf32> -> vector<2x512xf32>
    %45 = arith.addf %42, %44 : vector<2x512xf32>
    %c0_26 = arith.constant 0 : index
    %c0_27 = arith.constant 0 : index
    %46 = vector.load %arg10[%c0_26, %c0_27] : memref<2x128xf32, #tpu.memory_space<vmem>>, vector<2x128xf32>
    %47 = vector.extract_strided_slice %45 {offsets = [0, 0], sizes = [2, 128], strides = [1, 1]} : vector<2x512xf32> to vector<2x128xf32>
    %48 = arith.negf %47 : vector<2x128xf32>
    %49 = math.exp %48 : vector<2x128xf32>
    %cst_28 = arith.constant 1.000000e+00 : f32
    %50 = vector.broadcast %cst_28 : f32 to vector<2x128xf32>
    %51 = arith.addf %50, %49 : vector<2x128xf32>
    %52 = arith.divf %50, %51 : vector<2x128xf32>
    %53 = vector.extract_strided_slice %45 {offsets = [0, 128], sizes = [2, 128], strides = [1, 1]} : vector<2x512xf32> to vector<2x128xf32>
    %54 = arith.negf %53 : vector<2x128xf32>
    %55 = math.exp %54 : vector<2x128xf32>
    %cst_29 = arith.constant 1.000000e+00 : f32
    %56 = vector.broadcast %cst_29 : f32 to vector<2x128xf32>
    %57 = arith.addf %56, %55 : vector<2x128xf32>
    %58 = arith.divf %56, %57 : vector<2x128xf32>
    %59 = vector.extract_strided_slice %45 {offsets = [0, 256], sizes = [2, 128], strides = [1, 1]} : vector<2x512xf32> to vector<2x128xf32>
    %60 = math.tanh %59 : vector<2x128xf32>
    %61 = vector.extract_strided_slice %45 {offsets = [0, 384], sizes = [2, 128], strides = [1, 1]} : vector<2x512xf32> to vector<2x128xf32>
    %62 = arith.negf %61 : vector<2x128xf32>
    %63 = math.exp %62 : vector<2x128xf32>
    %cst_30 = arith.constant 1.000000e+00 : f32
    %64 = vector.broadcast %cst_30 : f32 to vector<2x128xf32>
    %65 = arith.addf %64, %63 : vector<2x128xf32>
    %66 = arith.divf %64, %65 : vector<2x128xf32>
    %67 = arith.mulf %58, %46 : vector<2x128xf32>
    %68 = arith.mulf %52, %60 : vector<2x128xf32>
    %69 = arith.addf %67, %68 : vector<2x128xf32>
    %70 = math.tanh %69 : vector<2x128xf32>
    %71 = arith.mulf %66, %70 : vector<2x128xf32>
    %c0_31 = arith.constant 0 : index
    %c0_32 = arith.constant 0 : index
    %72 = vector.load %arg10[%c0_31, %c0_32] : memref<2x128xf32, #tpu.memory_space<vmem>>, vector<2x128xf32>
    tpu.vector_store %arg10[%c0_31, %c0_32], %69 {strides = array<i32>} : memref<2x128xf32, #tpu.memory_space<vmem>>, vector<2x128xf32>,
    %c0_33 = arith.constant 0 : index
    %c0_34 = arith.constant 0 : index
    %73 = vector.load %arg9[%c0_33, %c0_34] : memref<2x128xf32, #tpu.memory_space<vmem>>, vector<2x128xf32>
    tpu.vector_store %arg9[%c0_33, %c0_34], %71 {strides = array<i32>} : memref<2x128xf32, #tpu.memory_space<vmem>>, vector<2x128xf32>,
    %c3_35 = arith.constant 3 : index
    %c0_36 = arith.constant 0 : index
    %c0_37 = arith.constant 0 : index
    %74 = vector.load %arg6[%c3_35, %c0_36, %c0_37] : memref<4x2x128xf32, #tpu.memory_space<vmem>>, vector<1x2x128xf32>
    %75 = vector.shape_cast %74 : vector<1x2x128xf32> to vector<2x128xf32>
    %76 = vector.shape_cast %71 : vector<2x128xf32> to vector<1x2x128xf32>
    tpu.vector_store %arg6[%c3_35, %c0_36, %c0_37], %76 {strides = array<i32>} : memref<4x2x128xf32, #tpu.memory_space<vmem>>, vector<1x2x128xf32>,
    %c1 = arith.constant 1 : index
    %c0_38 = arith.constant 0 : index
    %c0_39 = arith.constant 0 : index
    %77 = vector.load %arg1[%c1, %c0_38, %c0_39] : memref<4x2x512xf32, #tpu.memory_space<vmem>>, vector<1x2x512xf32>
    %78 = vector.shape_cast %77 : vector<1x2x512xf32> to vector<2x512xf32>
    %c0_40 = arith.constant 0 : index
    %c0_41 = arith.constant 0 : index
    %79 = vector.load %arg7[%c0_40, %c0_41] : memref<2x128xf32, #tpu.memory_space<vmem>>, vector<2x128xf32>
    %cst_42 = arith.constant dense<0.000000e+00> : vector<2x512xf32>
    %80 = tpu.matmul %79, %3, %cst_42 {dimension_numbers = #tpu.dot_dimension_numbers<[1], [0], [0], [1], [0, 0, 1, 1], [], []>} : vector<2x128xf32>, vector<128x512xf32>, vector<2x512xf32> -> vector<2x512xf32>
    %81 = arith.addf %78, %80 : vector<2x512xf32>
    %c0_43 = arith.constant 0 : index
    %c0_44 = arith.constant 0 : index
    %82 = vector.load %arg8[%c0_43, %c0_44] : memref<2x128xf32, #tpu.memory_space<vmem>>, vector<2x128xf32>
    %83 = vector.extract_strided_slice %81 {offsets = [0, 0], sizes = [2, 128], strides = [1, 1]} : vector<2x512xf32> to vector<2x128xf32>
    %84 = arith.negf %83 : vector<2x128xf32>
    %85 = math.exp %84 : vector<2x128xf32>
    %cst_45 = arith.constant 1.000000e+00 : f32
    %86 = vector.broadcast %cst_45 : f32 to vector<2x128xf32>
    %87 = arith.addf %86, %85 : vector<2x128xf32>
    %88 = arith.divf %86, %87 : vector<2x128xf32>
    %89 = vector.extract_strided_slice %81 {offsets = [0, 128], sizes = [2, 128], strides = [1, 1]} : vector<2x512xf32> to vector<2x128xf32>
    %90 = arith.negf %89 : vector<2x128xf32>
    %91 = math.exp %90 : vector<2x128xf32>
    %cst_46 = arith.constant 1.000000e+00 : f32
    %92 = vector.broadcast %cst_46 : f32 to vector<2x128xf32>
    %93 = arith.addf %92, %91 : vector<2x128xf32>
    %94 = arith.divf %92, %93 : vector<2x128xf32>
    %95 = vector.extract_strided_slice %81 {offsets = [0, 256], sizes = [2, 128], strides = [1, 1]} : vector<2x512xf32> to vector<2x128xf32>
    %96 = math.tanh %95 : vector<2x128xf32>
    %97 = vector.extract_strided_slice %81 {offsets = [0, 384], sizes = [2, 128], strides = [1, 1]} : vector<2x512xf32> to vector<2x128xf32>
    %98 = arith.negf %97 : vector<2x128xf32>
    %99 = math.exp %98 : vector<2x128xf32>
    %cst_47 = arith.constant 1.000000e+00 : f32
    %100 = vector.broadcast %cst_47 : f32 to vector<2x128xf32>
    %101 = arith.addf %100, %99 : vector<2x128xf32>
    %102 = arith.divf %100, %101 : vector<2x128xf32>
    %103 = arith.mulf %94, %82 : vector<2x128xf32>
    %104 = arith.mulf %88, %96 : vector<2x128xf32>
    %105 = arith.addf %103, %104 : vector<2x128xf32>
    %106 = math.tanh %105 : vector<2x128xf32>
    %107 = arith.mulf %102, %106 : vector<2x128xf32>
    %c0_48 = arith.constant 0 : index
    %c0_49 = arith.constant 0 : index
    %108 = vector.load %arg8[%c0_48, %c0_49] : memref<2x128xf32, #tpu.memory_space<vmem>>, vector<2x128xf32>
    tpu.vector_store %arg8[%c0_48, %c0_49], %105 {strides = array<i32>} : memref<2x128xf32, #tpu.memory_space<vmem>>, vector<2x128xf32>,
    %c0_50 = arith.constant 0 : index
    %c0_51 = arith.constant 0 : index
    %109 = vector.load %arg7[%c0_50, %c0_51] : memref<2x128xf32, #tpu.memory_space<vmem>>, vector<2x128xf32>
    tpu.vector_store %arg7[%c0_50, %c0_51], %107 {strides = array<i32>} : memref<2x128xf32, #tpu.memory_space<vmem>>, vector<2x128xf32>,
    %c1_52 = arith.constant 1 : index
    %c0_53 = arith.constant 0 : index
    %c0_54 = arith.constant 0 : index
    %110 = vector.load %arg5[%c1_52, %c0_53, %c0_54] : memref<4x2x128xf32, #tpu.memory_space<vmem>>, vector<1x2x128xf32>
    %111 = vector.shape_cast %110 : vector<1x2x128xf32> to vector<2x128xf32>
    %112 = vector.shape_cast %107 : vector<2x128xf32> to vector<1x2x128xf32>
    tpu.vector_store %arg5[%c1_52, %c0_53, %c0_54], %112 {strides = array<i32>} : memref<4x2x128xf32, #tpu.memory_space<vmem>>, vector<1x2x128xf32>,
    %c2 = arith.constant 2 : index
    %c0_55 = arith.constant 0 : index
    %c0_56 = arith.constant 0 : index
    %113 = vector.load %arg2[%c2, %c0_55, %c0_56] : memref<4x2x512xf32, #tpu.memory_space<vmem>>, vector<1x2x512xf32>
    %114 = vector.shape_cast %113 : vector<1x2x512xf32> to vector<2x512xf32>
    %c0_57 = arith.constant 0 : index
    %c0_58 = arith.constant 0 : index
    %115 = vector.load %arg9[%c0_57, %c0_58] : memref<2x128xf32, #tpu.memory_space<vmem>>, vector<2x128xf32>
    %cst_59 = arith.constant dense<0.000000e+00> : vector<2x512xf32>
    %116 = tpu.matmul %115, %4, %cst_59 {dimension_numbers = #tpu.dot_dimension_numbers<[1], [0], [0], [1], [0, 0, 1, 1], [], []>} : vector<2x128xf32>, vector<128x512xf32>, vector<2x512xf32> -> vector<2x512xf32>
    %117 = arith.addf %114, %116 : vector<2x512xf32>
    %c0_60 = arith.constant 0 : index
    %c0_61 = arith.constant 0 : index
    %118 = vector.load %arg10[%c0_60, %c0_61] : memref<2x128xf32, #tpu.memory_space<vmem>>, vector<2x128xf32>
    %119 = vector.extract_strided_slice %117 {offsets = [0, 0], sizes = [2, 128], strides = [1, 1]} : vector<2x512xf32> to vector<2x128xf32>
    %120 = arith.negf %119 : vector<2x128xf32>
    %121 = math.exp %120 : vector<2x128xf32>
    %cst_62 = arith.constant 1.000000e+00 : f32
    %122 = vector.broadcast %cst_62 : f32 to vector<2x128xf32>
    %123 = arith.addf %122, %121 : vector<2x128xf32>
    %124 = arith.divf %122, %123 : vector<2x128xf32>
    %125 = vector.extract_strided_slice %117 {offsets = [0, 128], sizes = [2, 128], strides = [1, 1]} : vector<2x512xf32> to vector<2x128xf32>
    %126 = arith.negf %125 : vector<2x128xf32>
    %127 = math.exp %126 : vector<2x128xf32>
    %cst_63 = arith.constant 1.000000e+00 : f32
    %128 = vector.broadcast %cst_63 : f32 to vector<2x128xf32>
    %129 = arith.addf %128, %127 : vector<2x128xf32>
    %130 = arith.divf %128, %129 : vector<2x128xf32>
    %131 = vector.extract_strided_slice %117 {offsets = [0, 256], sizes = [2, 128], strides = [1, 1]} : vector<2x512xf32> to vector<2x128xf32>
    %132 = math.tanh %131 : vector<2x128xf32>
    %133 = vector.extract_strided_slice %117 {offsets = [0, 384], sizes = [2, 128], strides = [1, 1]} : vector<2x512xf32> to vector<2x128xf32>
    %134 = arith.negf %133 : vector<2x128xf32>
    %135 = math.exp %134 : vector<2x128xf32>
    %cst_64 = arith.constant 1.000000e+00 : f32
    %136 = vector.broadcast %cst_64 : f32 to vector<2x128xf32>
    %137 = arith.addf %136, %135 : vector<2x128xf32>
    %138 = arith.divf %136, %137 : vector<2x128xf32>
    %139 = arith.mulf %130, %118 : vector<2x128xf32>
    %140 = arith.mulf %124, %132 : vector<2x128xf32>
    %141 = arith.addf %139, %140 : vector<2x128xf32>
    %142 = math.tanh %141 : vector<2x128xf32>
    %143 = arith.mulf %138, %142 : vector<2x128xf32>
    %c0_65 = arith.constant 0 : index
    %c0_66 = arith.constant 0 : index
    %144 = vector.load %arg10[%c0_65, %c0_66] : memref<2x128xf32, #tpu.memory_space<vmem>>, vector<2x128xf32>
    tpu.vector_store %arg10[%c0_65, %c0_66], %141 {strides = array<i32>} : memref<2x128xf32, #tpu.memory_space<vmem>>, vector<2x128xf32>,
    %c0_67 = arith.constant 0 : index
    %c0_68 = arith.constant 0 : index
    %145 = vector.load %arg9[%c0_67, %c0_68] : memref<2x128xf32, #tpu.memory_space<vmem>>, vector<2x128xf32>
    tpu.vector_store %arg9[%c0_67, %c0_68], %143 {strides = array<i32>} : memref<2x128xf32, #tpu.memory_space<vmem>>, vector<2x128xf32>,
    %c2_69 = arith.constant 2 : index
    %c0_70 = arith.constant 0 : index
    %c0_71 = arith.constant 0 : index
    %146 = vector.load %arg6[%c2_69, %c0_70, %c0_71] : memref<4x2x128xf32, #tpu.memory_space<vmem>>, vector<1x2x128xf32>
    %147 = vector.shape_cast %146 : vector<1x2x128xf32> to vector<2x128xf32>
    %148 = vector.shape_cast %143 : vector<2x128xf32> to vector<1x2x128xf32>
    tpu.vector_store %arg6[%c2_69, %c0_70, %c0_71], %148 {strides = array<i32>} : memref<4x2x128xf32, #tpu.memory_space<vmem>>, vector<1x2x128xf32>,
    %c2_72 = arith.constant 2 : index
    %c0_73 = arith.constant 0 : index
    %c0_74 = arith.constant 0 : index
    %149 = vector.load %arg1[%c2_72, %c0_73, %c0_74] : memref<4x2x512xf32, #tpu.memory_space<vmem>>, vector<1x2x512xf32>
    %150 = vector.shape_cast %149 : vector<1x2x512xf32> to vector<2x512xf32>
    %c0_75 = arith.constant 0 : index
    %c0_76 = arith.constant 0 : index
    %151 = vector.load %arg7[%c0_75, %c0_76] : memref<2x128xf32, #tpu.memory_space<vmem>>, vector<2x128xf32>
    %cst_77 = arith.constant dense<0.000000e+00> : vector<2x512xf32>
    %152 = tpu.matmul %151, %3, %cst_77 {dimension_numbers = #tpu.dot_dimension_numbers<[1], [0], [0], [1], [0, 0, 1, 1], [], []>} : vector<2x128xf32>, vector<128x512xf32>, vector<2x512xf32> -> vector<2x512xf32>
    %153 = arith.addf %150, %152 : vector<2x512xf32>
    %c0_78 = arith.constant 0 : index
    %c0_79 = arith.constant 0 : index
    %154 = vector.load %arg8[%c0_78, %c0_79] : memref<2x128xf32, #tpu.memory_space<vmem>>, vector<2x128xf32>
    %155 = vector.extract_strided_slice %153 {offsets = [0, 0], sizes = [2, 128], strides = [1, 1]} : vector<2x512xf32> to vector<2x128xf32>
    %156 = arith.negf %155 : vector<2x128xf32>
    %157 = math.exp %156 : vector<2x128xf32>
    %cst_80 = arith.constant 1.000000e+00 : f32
    %158 = vector.broadcast %cst_80 : f32 to vector<2x128xf32>
    %159 = arith.addf %158, %157 : vector<2x128xf32>
    %160 = arith.divf %158, %159 : vector<2x128xf32>
    %161 = vector.extract_strided_slice %153 {offsets = [0, 128], sizes = [2, 128], strides = [1, 1]} : vector<2x512xf32> to vector<2x128xf32>
    %162 = arith.negf %161 : vector<2x128xf32>
    %163 = math.exp %162 : vector<2x128xf32>
    %cst_81 = arith.constant 1.000000e+00 : f32
    %164 = vector.broadcast %cst_81 : f32 to vector<2x128xf32>
    %165 = arith.addf %164, %163 : vector<2x128xf32>
    %166 = arith.divf %164, %165 : vector<2x128xf32>
    %167 = vector.extract_strided_slice %153 {offsets = [0, 256], sizes = [2, 128], strides = [1, 1]} : vector<2x512xf32> to vector<2x128xf32>
    %168 = math.tanh %167 : vector<2x128xf32>
    %169 = vector.extract_strided_slice %153 {offsets = [0, 384], sizes = [2, 128], strides = [1, 1]} : vector<2x512xf32> to vector<2x128xf32>
    %170 = arith.negf %169 : vector<2x128xf32>
    %171 = math.exp %170 : vector<2x128xf32>
    %cst_82 = arith.constant 1.000000e+00 : f32
    %172 = vector.broadcast %cst_82 : f32 to vector<2x128xf32>
    %173 = arith.addf %172, %171 : vector<2x128xf32>
    %174 = arith.divf %172, %173 : vector<2x128xf32>
    %175 = arith.mulf %166, %154 : vector<2x128xf32>
    %176 = arith.mulf %160, %168 : vector<2x128xf32>
    %177 = arith.addf %175, %176 : vector<2x128xf32>
    %178 = math.tanh %177 : vector<2x128xf32>
    %179 = arith.mulf %174, %178 : vector<2x128xf32>
    %c0_83 = arith.constant 0 : index
    %c0_84 = arith.constant 0 : index
    %180 = vector.load %arg8[%c0_83, %c0_84] : memref<2x128xf32, #tpu.memory_space<vmem>>, vector<2x128xf32>
    tpu.vector_store %arg8[%c0_83, %c0_84], %177 {strides = array<i32>} : memref<2x128xf32, #tpu.memory_space<vmem>>, vector<2x128xf32>,
    %c0_85 = arith.constant 0 : index
    %c0_86 = arith.constant 0 : index
    %181 = vector.load %arg7[%c0_85, %c0_86] : memref<2x128xf32, #tpu.memory_space<vmem>>, vector<2x128xf32>
    tpu.vector_store %arg7[%c0_85, %c0_86], %179 {strides = array<i32>} : memref<2x128xf32, #tpu.memory_space<vmem>>, vector<2x128xf32>,
    %c2_87 = arith.constant 2 : index
    %c0_88 = arith.constant 0 : index
    %c0_89 = arith.constant 0 : index
    %182 = vector.load %arg5[%c2_87, %c0_88, %c0_89] : memref<4x2x128xf32, #tpu.memory_space<vmem>>, vector<1x2x128xf32>
    %183 = vector.shape_cast %182 : vector<1x2x128xf32> to vector<2x128xf32>
    %184 = vector.shape_cast %179 : vector<2x128xf32> to vector<1x2x128xf32>
    tpu.vector_store %arg5[%c2_87, %c0_88, %c0_89], %184 {strides = array<i32>} : memref<4x2x128xf32, #tpu.memory_space<vmem>>, vector<1x2x128xf32>,
    %c1_90 = arith.constant 1 : index
    %c0_91 = arith.constant 0 : index
    %c0_92 = arith.constant 0 : index
    %185 = vector.load %arg2[%c1_90, %c0_91, %c0_92] : memref<4x2x512xf32, #tpu.memory_space<vmem>>, vector<1x2x512xf32>
    %186 = vector.shape_cast %185 : vector<1x2x512xf32> to vector<2x512xf32>
    %c0_93 = arith.constant 0 : index
    %c0_94 = arith.constant 0 : index
    %187 = vector.load %arg9[%c0_93, %c0_94] : memref<2x128xf32, #tpu.memory_space<vmem>>, vector<2x128xf32>
    %cst_95 = arith.constant dense<0.000000e+00> : vector<2x512xf32>
    %188 = tpu.matmul %187, %4, %cst_95 {dimension_numbers = #tpu.dot_dimension_numbers<[1], [0], [0], [1], [0, 0, 1, 1], [], []>} : vector<2x128xf32>, vector<128x512xf32>, vector<2x512xf32> -> vector<2x512xf32>
    %189 = arith.addf %186, %188 : vector<2x512xf32>
    %c0_96 = arith.constant 0 : index
    %c0_97 = arith.constant 0 : index
    %190 = vector.load %arg10[%c0_96, %c0_97] : memref<2x128xf32, #tpu.memory_space<vmem>>, vector<2x128xf32>
    %191 = vector.extract_strided_slice %189 {offsets = [0, 0], sizes = [2, 128], strides = [1, 1]} : vector<2x512xf32> to vector<2x128xf32>
    %192 = arith.negf %191 : vector<2x128xf32>
    %193 = math.exp %192 : vector<2x128xf32>
    %cst_98 = arith.constant 1.000000e+00 : f32
    %194 = vector.broadcast %cst_98 : f32 to vector<2x128xf32>
    %195 = arith.addf %194, %193 : vector<2x128xf32>
    %196 = arith.divf %194, %195 : vector<2x128xf32>
    %197 = vector.extract_strided_slice %189 {offsets = [0, 128], sizes = [2, 128], strides = [1, 1]} : vector<2x512xf32> to vector<2x128xf32>
    %198 = arith.negf %197 : vector<2x128xf32>
    %199 = math.exp %198 : vector<2x128xf32>
    %cst_99 = arith.constant 1.000000e+00 : f32
    %200 = vector.broadcast %cst_99 : f32 to vector<2x128xf32>
    %201 = arith.addf %200, %199 : vector<2x128xf32>
    %202 = arith.divf %200, %201 : vector<2x128xf32>
    %203 = vector.extract_strided_slice %189 {offsets = [0, 256], sizes = [2, 128], strides = [1, 1]} : vector<2x512xf32> to vector<2x128xf32>
    %204 = math.tanh %203 : vector<2x128xf32>
    %205 = vector.extract_strided_slice %189 {offsets = [0, 384], sizes = [2, 128], strides = [1, 1]} : vector<2x512xf32> to vector<2x128xf32>
    %206 = arith.negf %205 : vector<2x128xf32>
    %207 = math.exp %206 : vector<2x128xf32>
    %cst_100 = arith.constant 1.000000e+00 : f32
    %208 = vector.broadcast %cst_100 : f32 to vector<2x128xf32>
    %209 = arith.addf %208, %207 : vector<2x128xf32>
    %210 = arith.divf %208, %209 : vector<2x128xf32>
    %211 = arith.mulf %202, %190 : vector<2x128xf32>
    %212 = arith.mulf %196, %204 : vector<2x128xf32>
    %213 = arith.addf %211, %212 : vector<2x128xf32>
    %214 = math.tanh %213 : vector<2x128xf32>
    %215 = arith.mulf %210, %214 : vector<2x128xf32>
    %c0_101 = arith.constant 0 : index
    %c0_102 = arith.constant 0 : index
    %216 = vector.load %arg10[%c0_101, %c0_102] : memref<2x128xf32, #tpu.memory_space<vmem>>, vector<2x128xf32>
    tpu.vector_store %arg10[%c0_101, %c0_102], %213 {strides = array<i32>} : memref<2x128xf32, #tpu.memory_space<vmem>>, vector<2x128xf32>,
    %c0_103 = arith.constant 0 : index
    %c0_104 = arith.constant 0 : index
    %217 = vector.load %arg9[%c0_103, %c0_104] : memref<2x128xf32, #tpu.memory_space<vmem>>, vector<2x128xf32>
    tpu.vector_store %arg9[%c0_103, %c0_104], %215 {strides = array<i32>} : memref<2x128xf32, #tpu.memory_space<vmem>>, vector<2x128xf32>,
    %c1_105 = arith.constant 1 : index
    %c0_106 = arith.constant 0 : index
    %c0_107 = arith.constant 0 : index
    %218 = vector.load %arg6[%c1_105, %c0_106, %c0_107] : memref<4x2x128xf32, #tpu.memory_space<vmem>>, vector<1x2x128xf32>
    %219 = vector.shape_cast %218 : vector<1x2x128xf32> to vector<2x128xf32>
    %220 = vector.shape_cast %215 : vector<2x128xf32> to vector<1x2x128xf32>
    tpu.vector_store %arg6[%c1_105, %c0_106, %c0_107], %220 {strides = array<i32>} : memref<4x2x128xf32, #tpu.memory_space<vmem>>, vector<1x2x128xf32>,
    %c3_108 = arith.constant 3 : index
    %c0_109 = arith.constant 0 : index
    %c0_110 = arith.constant 0 : index
    %221 = vector.load %arg1[%c3_108, %c0_109, %c0_110] : memref<4x2x512xf32, #tpu.memory_space<vmem>>, vector<1x2x512xf32>
    %222 = vector.shape_cast %221 : vector<1x2x512xf32> to vector<2x512xf32>
    %c0_111 = arith.constant 0 : index
    %c0_112 = arith.constant 0 : index
    %223 = vector.load %arg7[%c0_111, %c0_112] : memref<2x128xf32, #tpu.memory_space<vmem>>, vector<2x128xf32>
    %cst_113 = arith.constant dense<0.000000e+00> : vector<2x512xf32>
    %224 = tpu.matmul %223, %3, %cst_113 {dimension_numbers = #tpu.dot_dimension_numbers<[1], [0], [0], [1], [0, 0, 1, 1], [], []>} : vector<2x128xf32>, vector<128x512xf32>, vector<2x512xf32> -> vector<2x512xf32>
    %225 = arith.addf %222, %224 : vector<2x512xf32>
    %c0_114 = arith.constant 0 : index
    %c0_115 = arith.constant 0 : index
    %226 = vector.load %arg8[%c0_114, %c0_115] : memref<2x128xf32, #tpu.memory_space<vmem>>, vector<2x128xf32>
    %227 = vector.extract_strided_slice %225 {offsets = [0, 0], sizes = [2, 128], strides = [1, 1]} : vector<2x512xf32> to vector<2x128xf32>
    %228 = arith.negf %227 : vector<2x128xf32>
    %229 = math.exp %228 : vector<2x128xf32>
    %cst_116 = arith.constant 1.000000e+00 : f32
    %230 = vector.broadcast %cst_116 : f32 to vector<2x128xf32>
    %231 = arith.addf %230, %229 : vector<2x128xf32>
    %232 = arith.divf %230, %231 : vector<2x128xf32>
    %233 = vector.extract_strided_slice %225 {offsets = [0, 128], sizes = [2, 128], strides = [1, 1]} : vector<2x512xf32> to vector<2x128xf32>
    %234 = arith.negf %233 : vector<2x128xf32>
    %235 = math.exp %234 : vector<2x128xf32>
    %cst_117 = arith.constant 1.000000e+00 : f32
    %236 = vector.broadcast %cst_117 : f32 to vector<2x128xf32>
    %237 = arith.addf %236, %235 : vector<2x128xf32>
    %238 = arith.divf %236, %237 : vector<2x128xf32>
    %239 = vector.extract_strided_slice %225 {offsets = [0, 256], sizes = [2, 128], strides = [1, 1]} : vector<2x512xf32> to vector<2x128xf32>
    %240 = math.tanh %239 : vector<2x128xf32>
    %241 = vector.extract_strided_slice %225 {offsets = [0, 384], sizes = [2, 128], strides = [1, 1]} : vector<2x512xf32> to vector<2x128xf32>
    %242 = arith.negf %241 : vector<2x128xf32>
    %243 = math.exp %242 : vector<2x128xf32>
    %cst_118 = arith.constant 1.000000e+00 : f32
    %244 = vector.broadcast %cst_118 : f32 to vector<2x128xf32>
    %245 = arith.addf %244, %243 : vector<2x128xf32>
    %246 = arith.divf %244, %245 : vector<2x128xf32>
    %247 = arith.mulf %238, %226 : vector<2x128xf32>
    %248 = arith.mulf %232, %240 : vector<2x128xf32>
    %249 = arith.addf %247, %248 : vector<2x128xf32>
    %250 = math.tanh %249 : vector<2x128xf32>
    %251 = arith.mulf %246, %250 : vector<2x128xf32>
    %c0_119 = arith.constant 0 : index
    %c0_120 = arith.constant 0 : index
    %252 = vector.load %arg8[%c0_119, %c0_120] : memref<2x128xf32, #tpu.memory_space<vmem>>, vector<2x128xf32>
    tpu.vector_store %arg8[%c0_119, %c0_120], %249 {strides = array<i32>} : memref<2x128xf32, #tpu.memory_space<vmem>>, vector<2x128xf32>,
    %c0_121 = arith.constant 0 : index
    %c0_122 = arith.constant 0 : index
    %253 = vector.load %arg7[%c0_121, %c0_122] : memref<2x128xf32, #tpu.memory_space<vmem>>, vector<2x128xf32>
    tpu.vector_store %arg7[%c0_121, %c0_122], %251 {strides = array<i32>} : memref<2x128xf32, #tpu.memory_space<vmem>>, vector<2x128xf32>,
    %c3_123 = arith.constant 3 : index
    %c0_124 = arith.constant 0 : index
    %c0_125 = arith.constant 0 : index
    %254 = vector.load %arg5[%c3_123, %c0_124, %c0_125] : memref<4x2x128xf32, #tpu.memory_space<vmem>>, vector<1x2x128xf32>
    %255 = vector.shape_cast %254 : vector<1x2x128xf32> to vector<2x128xf32>
    %256 = vector.shape_cast %251 : vector<2x128xf32> to vector<1x2x128xf32>
    tpu.vector_store %arg5[%c3_123, %c0_124, %c0_125], %256 {strides = array<i32>} : memref<4x2x128xf32, #tpu.memory_space<vmem>>, vector<1x2x128xf32>,
    %c0_126 = arith.constant 0 : index
    %c0_127 = arith.constant 0 : index
    %c0_128 = arith.constant 0 : index
    %257 = vector.load %arg2[%c0_126, %c0_127, %c0_128] : memref<4x2x512xf32, #tpu.memory_space<vmem>>, vector<1x2x512xf32>
    %258 = vector.shape_cast %257 : vector<1x2x512xf32> to vector<2x512xf32>
    %c0_129 = arith.constant 0 : index
    %c0_130 = arith.constant 0 : index
    %259 = vector.load %arg9[%c0_129, %c0_130] : memref<2x128xf32, #tpu.memory_space<vmem>>, vector<2x128xf32>
    %cst_131 = arith.constant dense<0.000000e+00> : vector<2x512xf32>
    %260 = tpu.matmul %259, %4, %cst_131 {dimension_numbers = #tpu.dot_dimension_numbers<[1], [0], [0], [1], [0, 0, 1, 1], [], []>} : vector<2x128xf32>, vector<128x512xf32>, vector<2x512xf32> -> vector<2x512xf32>
    %261 = arith.addf %258, %260 : vector<2x512xf32>
    %c0_132 = arith.constant 0 : index
    %c0_133 = arith.constant 0 : index
    %262 = vector.load %arg10[%c0_132, %c0_133] : memref<2x128xf32, #tpu.memory_space<vmem>>, vector<2x128xf32>
    %263 = vector.extract_strided_slice %261 {offsets = [0, 0], sizes = [2, 128], strides = [1, 1]} : vector<2x512xf32> to vector<2x128xf32>
    %264 = arith.negf %263 : vector<2x128xf32>
    %265 = math.exp %264 : vector<2x128xf32>
    %cst_134 = arith.constant 1.000000e+00 : f32
    %266 = vector.broadcast %cst_134 : f32 to vector<2x128xf32>
    %267 = arith.addf %266, %265 : vector<2x128xf32>
    %268 = arith.divf %266, %267 : vector<2x128xf32>
    %269 = vector.extract_strided_slice %261 {offsets = [0, 128], sizes = [2, 128], strides = [1, 1]} : vector<2x512xf32> to vector<2x128xf32>
    %270 = arith.negf %269 : vector<2x128xf32>
    %271 = math.exp %270 : vector<2x128xf32>
    %cst_135 = arith.constant 1.000000e+00 : f32
    %272 = vector.broadcast %cst_135 : f32 to vector<2x128xf32>
    %273 = arith.addf %272, %271 : vector<2x128xf32>
    %274 = arith.divf %272, %273 : vector<2x128xf32>
    %275 = vector.extract_strided_slice %261 {offsets = [0, 256], sizes = [2, 128], strides = [1, 1]} : vector<2x512xf32> to vector<2x128xf32>
    %276 = math.tanh %275 : vector<2x128xf32>
    %277 = vector.extract_strided_slice %261 {offsets = [0, 384], sizes = [2, 128], strides = [1, 1]} : vector<2x512xf32> to vector<2x128xf32>
    %278 = arith.negf %277 : vector<2x128xf32>
    %279 = math.exp %278 : vector<2x128xf32>
    %cst_136 = arith.constant 1.000000e+00 : f32
    %280 = vector.broadcast %cst_136 : f32 to vector<2x128xf32>
    %281 = arith.addf %280, %279 : vector<2x128xf32>
    %282 = arith.divf %280, %281 : vector<2x128xf32>
    %283 = arith.mulf %274, %262 : vector<2x128xf32>
    %284 = arith.mulf %268, %276 : vector<2x128xf32>
    %285 = arith.addf %283, %284 : vector<2x128xf32>
    %286 = math.tanh %285 : vector<2x128xf32>
    %287 = arith.mulf %282, %286 : vector<2x128xf32>
    %c0_137 = arith.constant 0 : index
    %c0_138 = arith.constant 0 : index
    %288 = vector.load %arg10[%c0_137, %c0_138] : memref<2x128xf32, #tpu.memory_space<vmem>>, vector<2x128xf32>
    tpu.vector_store %arg10[%c0_137, %c0_138], %285 {strides = array<i32>} : memref<2x128xf32, #tpu.memory_space<vmem>>, vector<2x128xf32>,
    %c0_139 = arith.constant 0 : index
    %c0_140 = arith.constant 0 : index
    %289 = vector.load %arg9[%c0_139, %c0_140] : memref<2x128xf32, #tpu.memory_space<vmem>>, vector<2x128xf32>
    tpu.vector_store %arg9[%c0_139, %c0_140], %287 {strides = array<i32>} : memref<2x128xf32, #tpu.memory_space<vmem>>, vector<2x128xf32>,
    %c0_141 = arith.constant 0 : index
    %c0_142 = arith.constant 0 : index
    %c0_143 = arith.constant 0 : index
    %290 = vector.load %arg6[%c0_141, %c0_142, %c0_143] : memref<4x2x128xf32, #tpu.memory_space<vmem>>, vector<1x2x128xf32>
    %291 = vector.shape_cast %290 : vector<1x2x128xf32> to vector<2x128xf32>
    %292 = vector.shape_cast %287 : vector<2x128xf32> to vector<1x2x128xf32>
    tpu.vector_store %arg6[%c0_141, %c0_142, %c0_143], %292 {strides = array<i32>} : memref<4x2x128xf32, #tpu.memory_space<vmem>>, vector<1x2x128xf32>,
    return
  }
  func.func @transform_0(%arg0: i32) -> (i32, i32, i32) {
    %c0_i32 = arith.constant 0 : i32
    %c0_i32_0 = arith.constant 0 : i32
    %c0_i32_1 = arith.constant 0 : i32
    return %arg0, %c0_i32, %c0_i32_0 : i32, i32, i32
  }
  func.func @transform_1(%arg0: i32) -> (i32, i32, i32) {
    %c0_i32 = arith.constant 0 : i32
    %0 = arith.subi %c0_i32, %arg0 : i32
    %c0_i32_0 = arith.constant 0 : i32
    %c0_i32_1 = arith.constant 0 : i32
    %c0_i32_2 = arith.constant 0 : i32
    return %0, %c0_i32_0, %c0_i32_1 : i32, i32, i32
  }
  func.func @transform_2(%arg0: i32) -> (i32, i32) {
    %c0_i32 = arith.constant 0 : i32
    %c0_i32_0 = arith.constant 0 : i32
    %c0_i32_1 = arith.constant 0 : i32
    return %c0_i32, %c0_i32_0 : i32, i32
  }
  func.func @transform_3(%arg0: i32) -> (i32, i32) {
    %c0_i32 = arith.constant 0 : i32
    %c0_i32_0 = arith.constant 0 : i32
    %c0_i32_1 = arith.constant 0 : i32
    return %c0_i32, %c0_i32_0 : i32, i32
  }
  func.func @transform_4(%arg0: i32) -> (i32, i32, i32) {
    %c0_i32 = arith.constant 0 : i32
    %c0_i32_0 = arith.constant 0 : i32
    %c0_i32_1 = arith.constant 0 : i32
    return %arg0, %c0_i32, %c0_i32_0 : i32, i32, i32
  }
  func.func @transform_5(%arg0: i32) -> (i32, i32, i32) {
    %c0_i32 = arith.constant 0 : i32
    %0 = arith.subi %c0_i32, %arg0 : i32
    %c0_i32_0 = arith.constant 0 : i32
    %c0_i32_1 = arith.constant 0 : i32
    %c0_i32_2 = arith.constant 0 : i32
    return %0, %c0_i32_0, %c0_i32_1 : i32, i32, i32
  }
}

module attributes {stable_mosaic.version = 11 : i64} {
  func.func @_fused_mm_kernel(%arg0: i32, %arg1: i32, %arg2: memref<8x128xbf16, #tpu.memory_space<vmem>>, %arg3: memref<128x256xbf16, #tpu.memory_space<vmem>>, %arg4: memref<1x256xf32, #tpu.memory_space<vmem>>, %arg5: memref<8x256xf32, #tpu.memory_space<vmem>>) attributes {dimension_semantics = [#tpu.dimension_semantics<parallel>, #tpu.dimension_semantics<parallel>], iteration_bounds = array<i64: 1, 2>, scalar_prefetch = 0 : i64, scratch_operands = 0 : i64, tpu.core_type = #tpu.core_type<tc>, window_params = [{transform_indices = @transform_0, window_bounds = array<i64: 8, 128>}, {transform_indices = @transform_1, window_bounds = array<i64: 128, 256>}, {transform_indices = @transform_2, window_bounds = array<i64: 1, 256>}, {transform_indices = @transform_3, window_bounds = array<i64: 8, 256>}]} {
    %c0 = arith.constant 0 : index
    %c0_0 = arith.constant 0 : index
    %0 = vector.load %arg2[%c0, %c0_0] : memref<8x128xbf16, #tpu.memory_space<vmem>>, vector<8x128xbf16>
    %c0_1 = arith.constant 0 : index
    %c0_2 = arith.constant 0 : index
    %1 = vector.load %arg3[%c0_1, %c0_2] : memref<128x256xbf16, #tpu.memory_space<vmem>>, vector<128x256xbf16>
    %cst = arith.constant dense<0.000000e+00> : vector<8x256xf32>
    %2 = tpu.matmul %0, %1, %cst {dimension_numbers = #tpu.dot_dimension_numbers<[1], [0], [0], [1], [0, 0, 1, 1], [], []>} : vector<8x128xbf16>, vector<128x256xbf16>, vector<8x256xf32> -> vector<8x256xf32>
    %c0_3 = arith.constant 0 : index
    %c0_4 = arith.constant 0 : index
    %3 = vector.load %arg4[%c0_3, %c0_4] : memref<1x256xf32, #tpu.memory_space<vmem>>, vector<1x256xf32>
    %4 = vector.broadcast %3 : vector<1x256xf32> to vector<8x256xf32>
    %5 = arith.addf %2, %4 : vector<8x256xf32>
    %c0_5 = arith.constant 0 : index
    %c0_6 = arith.constant 0 : index
    %6 = vector.load %arg5[%c0_5, %c0_6] : memref<8x256xf32, #tpu.memory_space<vmem>>, vector<8x256xf32>
    tpu.vector_store %arg5[%c0_5, %c0_6], %5 {strides = array<i32>} : memref<8x256xf32, #tpu.memory_space<vmem>>, vector<8x256xf32>,
    return
  }
  func.func @transform_0(%arg0: i32, %arg1: i32) -> (i32, i32) {
    %c0_i32 = arith.constant 0 : i32
    %c0_i32_0 = arith.constant 0 : i32
    return %arg0, %c0_i32 : i32, i32
  }
  func.func @transform_1(%arg0: i32, %arg1: i32) -> (i32, i32) {
    %c0_i32 = arith.constant 0 : i32
    %c0_i32_0 = arith.constant 0 : i32
    return %c0_i32, %arg1 : i32, i32
  }
  func.func @transform_2(%arg0: i32, %arg1: i32) -> (i32, i32) {
    %c0_i32 = arith.constant 0 : i32
    %c0_i32_0 = arith.constant 0 : i32
    return %c0_i32, %arg1 : i32, i32
  }
  func.func @transform_3(%arg0: i32, %arg1: i32) -> (i32, i32) {
    %c0_i32 = arith.constant 0 : i32
    return %arg0, %arg1 : i32, i32
  }
}

module attributes {stable_mosaic.version = 11 : i64} {
  func.func @_fused_mm_kernel(%arg0: i32, %arg1: i32, %arg2: memref<8x256xbf16, #tpu.memory_space<vmem>>, %arg3: memref<256x256xbf16, #tpu.memory_space<vmem>>, %arg4: memref<1x256xf32, #tpu.memory_space<vmem>>, %arg5: memref<8x256xf32, #tpu.memory_space<vmem>>) attributes {dimension_semantics = [#tpu.dimension_semantics<parallel>, #tpu.dimension_semantics<parallel>], iteration_bounds = array<i64: 1, 2>, scalar_prefetch = 0 : i64, scratch_operands = 0 : i64, tpu.core_type = #tpu.core_type<tc>, window_params = [{transform_indices = @transform_0, window_bounds = array<i64: 8, 256>}, {transform_indices = @transform_1, window_bounds = array<i64: 256, 256>}, {transform_indices = @transform_2, window_bounds = array<i64: 1, 256>}, {transform_indices = @transform_3, window_bounds = array<i64: 8, 256>}]} {
    %c0 = arith.constant 0 : index
    %c0_0 = arith.constant 0 : index
    %0 = vector.load %arg2[%c0, %c0_0] : memref<8x256xbf16, #tpu.memory_space<vmem>>, vector<8x256xbf16>
    %c0_1 = arith.constant 0 : index
    %c0_2 = arith.constant 0 : index
    %1 = vector.load %arg3[%c0_1, %c0_2] : memref<256x256xbf16, #tpu.memory_space<vmem>>, vector<256x256xbf16>
    %cst = arith.constant dense<0.000000e+00> : vector<8x256xf32>
    %2 = tpu.matmul %0, %1, %cst {dimension_numbers = #tpu.dot_dimension_numbers<[1], [0], [0], [1], [0, 0, 1, 1], [], []>} : vector<8x256xbf16>, vector<256x256xbf16>, vector<8x256xf32> -> vector<8x256xf32>
    %c0_3 = arith.constant 0 : index
    %c0_4 = arith.constant 0 : index
    %3 = vector.load %arg4[%c0_3, %c0_4] : memref<1x256xf32, #tpu.memory_space<vmem>>, vector<1x256xf32>
    %4 = vector.broadcast %3 : vector<1x256xf32> to vector<8x256xf32>
    %5 = arith.addf %2, %4 : vector<8x256xf32>
    %c0_5 = arith.constant 0 : index
    %c0_6 = arith.constant 0 : index
    %6 = vector.load %arg5[%c0_5, %c0_6] : memref<8x256xf32, #tpu.memory_space<vmem>>, vector<8x256xf32>
    tpu.vector_store %arg5[%c0_5, %c0_6], %5 {strides = array<i32>} : memref<8x256xf32, #tpu.memory_space<vmem>>, vector<8x256xf32>,
    return
  }
  func.func @transform_0(%arg0: i32, %arg1: i32) -> (i32, i32) {
    %c0_i32 = arith.constant 0 : i32
    %c0_i32_0 = arith.constant 0 : i32
    return %arg0, %c0_i32 : i32, i32
  }
  func.func @transform_1(%arg0: i32, %arg1: i32) -> (i32, i32) {
    %c0_i32 = arith.constant 0 : i32
    %c0_i32_0 = arith.constant 0 : i32
    return %c0_i32, %arg1 : i32, i32
  }
  func.func @transform_2(%arg0: i32, %arg1: i32) -> (i32, i32) {
    %c0_i32 = arith.constant 0 : i32
    %c0_i32_0 = arith.constant 0 : i32
    return %c0_i32, %arg1 : i32, i32
  }
  func.func @transform_3(%arg0: i32, %arg1: i32) -> (i32, i32) {
    %c0_i32 = arith.constant 0 : i32
    return %arg0, %arg1 : i32, i32
  }
}

module attributes {stable_mosaic.version = 11 : i64} {
  func.func @_fused_mm_kernel(%arg0: i32, %arg1: i32, %arg2: memref<8x256xbf16, #tpu.memory_space<vmem>>, %arg3: memref<256x128xbf16, #tpu.memory_space<vmem>>, %arg4: memref<1x128xf32, #tpu.memory_space<vmem>>, %arg5: memref<8x128xf32, #tpu.memory_space<vmem>>) attributes {dimension_semantics = [#tpu.dimension_semantics<parallel>, #tpu.dimension_semantics<parallel>], iteration_bounds = array<i64: 1, 1>, scalar_prefetch = 0 : i64, scratch_operands = 0 : i64, tpu.core_type = #tpu.core_type<tc>, window_params = [{transform_indices = @transform_0, window_bounds = array<i64: 8, 256>}, {transform_indices = @transform_1, window_bounds = array<i64: 256, 128>}, {transform_indices = @transform_2, window_bounds = array<i64: 1, 128>}, {transform_indices = @transform_3, window_bounds = array<i64: 8, 128>}]} {
    %c0 = arith.constant 0 : index
    %c0_0 = arith.constant 0 : index
    %0 = vector.load %arg2[%c0, %c0_0] : memref<8x256xbf16, #tpu.memory_space<vmem>>, vector<8x256xbf16>
    %c0_1 = arith.constant 0 : index
    %c0_2 = arith.constant 0 : index
    %1 = vector.load %arg3[%c0_1, %c0_2] : memref<256x128xbf16, #tpu.memory_space<vmem>>, vector<256x128xbf16>
    %cst = arith.constant dense<0.000000e+00> : vector<8x128xf32>
    %2 = tpu.matmul %0, %1, %cst {dimension_numbers = #tpu.dot_dimension_numbers<[1], [0], [0], [1], [0, 0, 1, 1], [], []>} : vector<8x256xbf16>, vector<256x128xbf16>, vector<8x128xf32> -> vector<8x128xf32>
    %c0_3 = arith.constant 0 : index
    %c0_4 = arith.constant 0 : index
    %3 = vector.load %arg4[%c0_3, %c0_4] : memref<1x128xf32, #tpu.memory_space<vmem>>, vector<1x128xf32>
    %4 = vector.broadcast %3 : vector<1x128xf32> to vector<8x128xf32>
    %5 = arith.addf %2, %4 : vector<8x128xf32>
    %c0_5 = arith.constant 0 : index
    %c0_6 = arith.constant 0 : index
    %6 = vector.load %arg5[%c0_5, %c0_6] : memref<8x128xf32, #tpu.memory_space<vmem>>, vector<8x128xf32>
    tpu.vector_store %arg5[%c0_5, %c0_6], %5 {strides = array<i32>} : memref<8x128xf32, #tpu.memory_space<vmem>>, vector<8x128xf32>,
    return
  }
  func.func @transform_0(%arg0: i32, %arg1: i32) -> (i32, i32) {
    %c0_i32 = arith.constant 0 : i32
    %c0_i32_0 = arith.constant 0 : i32
    return %arg0, %c0_i32 : i32, i32
  }
  func.func @transform_1(%arg0: i32, %arg1: i32) -> (i32, i32) {
    %c0_i32 = arith.constant 0 : i32
    %c0_i32_0 = arith.constant 0 : i32
    return %c0_i32, %arg1 : i32, i32
  }
  func.func @transform_2(%arg0: i32, %arg1: i32) -> (i32, i32) {
    %c0_i32 = arith.constant 0 : i32
    %c0_i32_0 = arith.constant 0 : i32
    return %c0_i32, %arg1 : i32, i32
  }
  func.func @transform_3(%arg0: i32, %arg1: i32) -> (i32, i32) {
    %c0_i32 = arith.constant 0 : i32
    return %arg0, %arg1 : i32, i32
  }
}

module attributes {stable_mosaic.version = 11 : i64} {
  func.func @_fused_mm_kernel(%arg0: i32, %arg1: i32, %arg2: memref<8x128xbf16, #tpu.memory_space<vmem>>, %arg3: memref<8x128xbf16, #tpu.memory_space<vmem>>, %arg4: memref<8x128xbf16, #tpu.memory_space<vmem>>, %arg5: memref<128x256xbf16, #tpu.memory_space<vmem>>, %arg6: memref<128x256xbf16, #tpu.memory_space<vmem>>, %arg7: memref<128x256xbf16, #tpu.memory_space<vmem>>, %arg8: memref<1x256xf32, #tpu.memory_space<vmem>>, %arg9: memref<8x256xf32, #tpu.memory_space<vmem>>, %arg10: memref<8x256xf32, #tpu.memory_space<vmem>>) attributes {dimension_semantics = [#tpu.dimension_semantics<parallel>, #tpu.dimension_semantics<parallel>], iteration_bounds = array<i64: 1, 1>, scalar_prefetch = 0 : i64, scratch_operands = 0 : i64, tpu.core_type = #tpu.core_type<tc>, window_params = [{transform_indices = @transform_0, window_bounds = array<i64: 8, 128>}, {transform_indices = @transform_1, window_bounds = array<i64: 8, 128>}, {transform_indices = @transform_2, window_bounds = array<i64: 8, 128>}, {transform_indices = @transform_3, window_bounds = array<i64: 128, 256>}, {transform_indices = @transform_4, window_bounds = array<i64: 128, 256>}, {transform_indices = @transform_5, window_bounds = array<i64: 128, 256>}, {transform_indices = @transform_6, window_bounds = array<i64: 1, 256>}, {transform_indices = @transform_7, window_bounds = array<i64: 8, 256>}, {transform_indices = @transform_8, window_bounds = array<i64: 8, 256>}]} {
    %c0 = arith.constant 0 : index
    %c0_0 = arith.constant 0 : index
    %0 = vector.load %arg2[%c0, %c0_0] : memref<8x128xbf16, #tpu.memory_space<vmem>>, vector<8x128xbf16>
    %c0_1 = arith.constant 0 : index
    %c0_2 = arith.constant 0 : index
    %1 = vector.load %arg5[%c0_1, %c0_2] : memref<128x256xbf16, #tpu.memory_space<vmem>>, vector<128x256xbf16>
    %cst = arith.constant dense<0.000000e+00> : vector<8x256xf32>
    %2 = tpu.matmul %0, %1, %cst {dimension_numbers = #tpu.dot_dimension_numbers<[1], [0], [0], [1], [0, 0, 1, 1], [], []>} : vector<8x128xbf16>, vector<128x256xbf16>, vector<8x256xf32> -> vector<8x256xf32>
    %c0_3 = arith.constant 0 : index
    %c0_4 = arith.constant 0 : index
    %3 = vector.load %arg3[%c0_3, %c0_4] : memref<8x128xbf16, #tpu.memory_space<vmem>>, vector<8x128xbf16>
    %c0_5 = arith.constant 0 : index
    %c0_6 = arith.constant 0 : index
    %4 = vector.load %arg6[%c0_5, %c0_6] : memref<128x256xbf16, #tpu.memory_space<vmem>>, vector<128x256xbf16>
    %cst_7 = arith.constant dense<0.000000e+00> : vector<8x256xf32>
    %5 = tpu.matmul %3, %4, %cst_7 {dimension_numbers = #tpu.dot_dimension_numbers<[1], [0], [0], [1], [0, 0, 1, 1], [], []>} : vector<8x128xbf16>, vector<128x256xbf16>, vector<8x256xf32> -> vector<8x256xf32>
    %6 = arith.addf %2, %5 : vector<8x256xf32>
    %c0_8 = arith.constant 0 : index
    %c0_9 = arith.constant 0 : index
    %7 = vector.load %arg4[%c0_8, %c0_9] : memref<8x128xbf16, #tpu.memory_space<vmem>>, vector<8x128xbf16>
    %c0_10 = arith.constant 0 : index
    %c0_11 = arith.constant 0 : index
    %8 = vector.load %arg7[%c0_10, %c0_11] : memref<128x256xbf16, #tpu.memory_space<vmem>>, vector<128x256xbf16>
    %cst_12 = arith.constant dense<0.000000e+00> : vector<8x256xf32>
    %9 = tpu.matmul %7, %8, %cst_12 {dimension_numbers = #tpu.dot_dimension_numbers<[1], [0], [0], [1], [0, 0, 1, 1], [], []>} : vector<8x128xbf16>, vector<128x256xbf16>, vector<8x256xf32> -> vector<8x256xf32>
    %10 = arith.addf %6, %9 : vector<8x256xf32>
    %c0_13 = arith.constant 0 : index
    %c0_14 = arith.constant 0 : index
    %11 = vector.load %arg8[%c0_13, %c0_14] : memref<1x256xf32, #tpu.memory_space<vmem>>, vector<1x256xf32>
    %12 = vector.broadcast %11 : vector<1x256xf32> to vector<8x256xf32>
    %13 = arith.addf %10, %12 : vector<8x256xf32>
    %cst_15 = arith.constant 0.000000e+00 : f32
    %14 = vector.broadcast %cst_15 : f32 to vector<8x256xf32>
    %15 = arith.maximumf %13, %14 : vector<8x256xf32>
    %c0_16 = arith.constant 0 : index
    %c0_17 = arith.constant 0 : index
    %16 = vector.load %arg9[%c0_16, %c0_17] : memref<8x256xf32, #tpu.memory_space<vmem>>, vector<8x256xf32>
    %17 = arith.addf %15, %16 : vector<8x256xf32>
    %c0_18 = arith.constant 0 : index
    %c0_19 = arith.constant 0 : index
    %18 = vector.load %arg10[%c0_18, %c0_19] : memref<8x256xf32, #tpu.memory_space<vmem>>, vector<8x256xf32>
    tpu.vector_store %arg10[%c0_18, %c0_19], %17 {strides = array<i32>} : memref<8x256xf32, #tpu.memory_space<vmem>>, vector<8x256xf32>,
    return
  }
  func.func @transform_0(%arg0: i32, %arg1: i32) -> (i32, i32) {
    %c0_i32 = arith.constant 0 : i32
    %c0_i32_0 = arith.constant 0 : i32
    return %arg0, %c0_i32 : i32, i32
  }
  func.func @transform_1(%arg0: i32, %arg1: i32) -> (i32, i32) {
    %c0_i32 = arith.constant 0 : i32
    %c0_i32_0 = arith.constant 0 : i32
    return %arg0, %c0_i32 : i32, i32
  }
  func.func @transform_2(%arg0: i32, %arg1: i32) -> (i32, i32) {
    %c0_i32 = arith.constant 0 : i32
    %c0_i32_0 = arith.constant 0 : i32
    return %arg0, %c0_i32 : i32, i32
  }
  func.func @transform_3(%arg0: i32, %arg1: i32) -> (i32, i32) {
    %c0_i32 = arith.constant 0 : i32
    %c0_i32_0 = arith.constant 0 : i32
    return %c0_i32, %arg1 : i32, i32
  }
  func.func @transform_4(%arg0: i32, %arg1: i32) -> (i32, i32) {
    %c0_i32 = arith.constant 0 : i32
    %c0_i32_0 = arith.constant 0 : i32
    return %c0_i32, %arg1 : i32, i32
  }
  func.func @transform_5(%arg0: i32, %arg1: i32) -> (i32, i32) {
    %c0_i32 = arith.constant 0 : i32
    %c0_i32_0 = arith.constant 0 : i32
    return %c0_i32, %arg1 : i32, i32
  }
  func.func @transform_6(%arg0: i32, %arg1: i32) -> (i32, i32) {
    %c0_i32 = arith.constant 0 : i32
    %c0_i32_0 = arith.constant 0 : i32
    return %c0_i32, %arg1 : i32, i32
  }
  func.func @transform_7(%arg0: i32, %arg1: i32) -> (i32, i32) {
    %c0_i32 = arith.constant 0 : i32
    return %arg0, %arg1 : i32, i32
  }
  func.func @transform_8(%arg0: i32, %arg1: i32) -> (i32, i32) {
    %c0_i32 = arith.constant 0 : i32
    return %arg0, %arg1 : i32, i32
  }
}

module attributes {stable_mosaic.version = 11 : i64} {
  func.func @_fused_mm_kernel(%arg0: i32, %arg1: i32, %arg2: memref<32x64xbf16, #tpu.memory_space<vmem>>, %arg3: memref<32x64xbf16, #tpu.memory_space<vmem>>, %arg4: memref<32x64xbf16, #tpu.memory_space<vmem>>, %arg5: memref<64x128xbf16, #tpu.memory_space<vmem>>, %arg6: memref<64x128xbf16, #tpu.memory_space<vmem>>, %arg7: memref<64x128xbf16, #tpu.memory_space<vmem>>, %arg8: memref<1x128xf32, #tpu.memory_space<vmem>>, %arg9: memref<32x128xf32, #tpu.memory_space<vmem>>, %arg10: memref<32x128xf32, #tpu.memory_space<vmem>>) attributes {dimension_semantics = [#tpu.dimension_semantics<parallel>, #tpu.dimension_semantics<parallel>], iteration_bounds = array<i64: 1, 1>, scalar_prefetch = 0 : i64, scratch_operands = 0 : i64, tpu.core_type = #tpu.core_type<tc>, window_params = [{transform_indices = @transform_0, window_bounds = array<i64: 32, 64>}, {transform_indices = @transform_1, window_bounds = array<i64: 32, 64>}, {transform_indices = @transform_2, window_bounds = array<i64: 32, 64>}, {transform_indices = @transform_3, window_bounds = array<i64: 64, 128>}, {transform_indices = @transform_4, window_bounds = array<i64: 64, 128>}, {transform_indices = @transform_5, window_bounds = array<i64: 64, 128>}, {transform_indices = @transform_6, window_bounds = array<i64: 1, 128>}, {transform_indices = @transform_7, window_bounds = array<i64: 32, 128>}, {transform_indices = @transform_8, window_bounds = array<i64: 32, 128>}]} {
    %c0 = arith.constant 0 : index
    %c0_0 = arith.constant 0 : index
    %0 = vector.load %arg2[%c0, %c0_0] : memref<32x64xbf16, #tpu.memory_space<vmem>>, vector<32x64xbf16>
    %c0_1 = arith.constant 0 : index
    %c0_2 = arith.constant 0 : index
    %1 = vector.load %arg5[%c0_1, %c0_2] : memref<64x128xbf16, #tpu.memory_space<vmem>>, vector<64x128xbf16>
    %cst = arith.constant dense<0.000000e+00> : vector<32x128xf32>
    %2 = tpu.matmul %0, %1, %cst {dimension_numbers = #tpu.dot_dimension_numbers<[1], [0], [0], [1], [0, 0, 1, 1], [], []>} : vector<32x64xbf16>, vector<64x128xbf16>, vector<32x128xf32> -> vector<32x128xf32>
    %c0_3 = arith.constant 0 : index
    %c0_4 = arith.constant 0 : index
    %3 = vector.load %arg3[%c0_3, %c0_4] : memref<32x64xbf16, #tpu.memory_space<vmem>>, vector<32x64xbf16>
    %c0_5 = arith.constant 0 : index
    %c0_6 = arith.constant 0 : index
    %4 = vector.load %arg6[%c0_5, %c0_6] : memref<64x128xbf16, #tpu.memory_space<vmem>>, vector<64x128xbf16>
    %cst_7 = arith.constant dense<0.000000e+00> : vector<32x128xf32>
    %5 = tpu.matmul %3, %4, %cst_7 {dimension_numbers = #tpu.dot_dimension_numbers<[1], [0], [0], [1], [0, 0, 1, 1], [], []>} : vector<32x64xbf16>, vector<64x128xbf16>, vector<32x128xf32> -> vector<32x128xf32>
    %6 = arith.addf %2, %5 : vector<32x128xf32>
    %c0_8 = arith.constant 0 : index
    %c0_9 = arith.constant 0 : index
    %7 = vector.load %arg4[%c0_8, %c0_9] : memref<32x64xbf16, #tpu.memory_space<vmem>>, vector<32x64xbf16>
    %c0_10 = arith.constant 0 : index
    %c0_11 = arith.constant 0 : index
    %8 = vector.load %arg7[%c0_10, %c0_11] : memref<64x128xbf16, #tpu.memory_space<vmem>>, vector<64x128xbf16>
    %cst_12 = arith.constant dense<0.000000e+00> : vector<32x128xf32>
    %9 = tpu.matmul %7, %8, %cst_12 {dimension_numbers = #tpu.dot_dimension_numbers<[1], [0], [0], [1], [0, 0, 1, 1], [], []>} : vector<32x64xbf16>, vector<64x128xbf16>, vector<32x128xf32> -> vector<32x128xf32>
    %10 = arith.addf %6, %9 : vector<32x128xf32>
    %c0_13 = arith.constant 0 : index
    %c0_14 = arith.constant 0 : index
    %11 = vector.load %arg8[%c0_13, %c0_14] : memref<1x128xf32, #tpu.memory_space<vmem>>, vector<1x128xf32>
    %12 = vector.broadcast %11 : vector<1x128xf32> to vector<32x128xf32>
    %13 = arith.addf %10, %12 : vector<32x128xf32>
    %cst_15 = arith.constant 0.000000e+00 : f32
    %14 = vector.broadcast %cst_15 : f32 to vector<32x128xf32>
    %15 = arith.maximumf %13, %14 : vector<32x128xf32>
    %c0_16 = arith.constant 0 : index
    %c0_17 = arith.constant 0 : index
    %16 = vector.load %arg9[%c0_16, %c0_17] : memref<32x128xf32, #tpu.memory_space<vmem>>, vector<32x128xf32>
    %17 = arith.addf %15, %16 : vector<32x128xf32>
    %c0_18 = arith.constant 0 : index
    %c0_19 = arith.constant 0 : index
    %18 = vector.load %arg10[%c0_18, %c0_19] : memref<32x128xf32, #tpu.memory_space<vmem>>, vector<32x128xf32>
    tpu.vector_store %arg10[%c0_18, %c0_19], %17 {strides = array<i32>} : memref<32x128xf32, #tpu.memory_space<vmem>>, vector<32x128xf32>,
    return
  }
  func.func @transform_0(%arg0: i32, %arg1: i32) -> (i32, i32) {
    %c0_i32 = arith.constant 0 : i32
    %c0_i32_0 = arith.constant 0 : i32
    return %arg0, %c0_i32 : i32, i32
  }
  func.func @transform_1(%arg0: i32, %arg1: i32) -> (i32, i32) {
    %c0_i32 = arith.constant 0 : i32
    %c0_i32_0 = arith.constant 0 : i32
    return %arg0, %c0_i32 : i32, i32
  }
  func.func @transform_2(%arg0: i32, %arg1: i32) -> (i32, i32) {
    %c0_i32 = arith.constant 0 : i32
    %c0_i32_0 = arith.constant 0 : i32
    return %arg0, %c0_i32 : i32, i32
  }
  func.func @transform_3(%arg0: i32, %arg1: i32) -> (i32, i32) {
    %c0_i32 = arith.constant 0 : i32
    %c0_i32_0 = arith.constant 0 : i32
    return %c0_i32, %arg1 : i32, i32
  }
  func.func @transform_4(%arg0: i32, %arg1: i32) -> (i32, i32) {
    %c0_i32 = arith.constant 0 : i32
    %c0_i32_0 = arith.constant 0 : i32
    return %c0_i32, %arg1 : i32, i32
  }
  func.func @transform_5(%arg0: i32, %arg1: i32) -> (i32, i32) {
    %c0_i32 = arith.constant 0 : i32
    %c0_i32_0 = arith.constant 0 : i32
    return %c0_i32, %arg1 : i32, i32
  }
  func.func @transform_6(%arg0: i32, %arg1: i32) -> (i32, i32) {
    %c0_i32 = arith.constant 0 : i32
    %c0_i32_0 = arith.constant 0 : i32
    return %c0_i32, %arg1 : i32, i32
  }
  func.func @transform_7(%arg0: i32, %arg1: i32) -> (i32, i32) {
    %c0_i32 = arith.constant 0 : i32
    return %arg0, %arg1 : i32, i32
  }
  func.func @transform_8(%arg0: i32, %arg1: i32) -> (i32, i32) {
    %c0_i32 = arith.constant 0 : i32
    return %arg0, %arg1 : i32, i32
  }
}

module attributes {stable_mosaic.version = 11 : i64} {
  func.func @_fused_mm_kernel(%arg0: i32, %arg1: i32, %arg2: memref<128x32xbf16, #tpu.memory_space<vmem>>, %arg3: memref<128x32xbf16, #tpu.memory_space<vmem>>, %arg4: memref<128x32xbf16, #tpu.memory_space<vmem>>, %arg5: memref<32x64xbf16, #tpu.memory_space<vmem>>, %arg6: memref<32x64xbf16, #tpu.memory_space<vmem>>, %arg7: memref<32x64xbf16, #tpu.memory_space<vmem>>, %arg8: memref<1x64xf32, #tpu.memory_space<vmem>>, %arg9: memref<128x64xf32, #tpu.memory_space<vmem>>, %arg10: memref<128x64xf32, #tpu.memory_space<vmem>>) attributes {dimension_semantics = [#tpu.dimension_semantics<parallel>, #tpu.dimension_semantics<parallel>], iteration_bounds = array<i64: 1, 1>, scalar_prefetch = 0 : i64, scratch_operands = 0 : i64, tpu.core_type = #tpu.core_type<tc>, window_params = [{transform_indices = @transform_0, window_bounds = array<i64: 128, 32>}, {transform_indices = @transform_1, window_bounds = array<i64: 128, 32>}, {transform_indices = @transform_2, window_bounds = array<i64: 128, 32>}, {transform_indices = @transform_3, window_bounds = array<i64: 32, 64>}, {transform_indices = @transform_4, window_bounds = array<i64: 32, 64>}, {transform_indices = @transform_5, window_bounds = array<i64: 32, 64>}, {transform_indices = @transform_6, window_bounds = array<i64: 1, 64>}, {transform_indices = @transform_7, window_bounds = array<i64: 128, 64>}, {transform_indices = @transform_8, window_bounds = array<i64: 128, 64>}]} {
    %c0 = arith.constant 0 : index
    %c0_0 = arith.constant 0 : index
    %0 = vector.load %arg2[%c0, %c0_0] : memref<128x32xbf16, #tpu.memory_space<vmem>>, vector<128x32xbf16>
    %c0_1 = arith.constant 0 : index
    %c0_2 = arith.constant 0 : index
    %1 = vector.load %arg5[%c0_1, %c0_2] : memref<32x64xbf16, #tpu.memory_space<vmem>>, vector<32x64xbf16>
    %cst = arith.constant dense<0.000000e+00> : vector<128x64xf32>
    %2 = tpu.matmul %0, %1, %cst {dimension_numbers = #tpu.dot_dimension_numbers<[1], [0], [0], [1], [0, 0, 1, 1], [], []>} : vector<128x32xbf16>, vector<32x64xbf16>, vector<128x64xf32> -> vector<128x64xf32>
    %c0_3 = arith.constant 0 : index
    %c0_4 = arith.constant 0 : index
    %3 = vector.load %arg3[%c0_3, %c0_4] : memref<128x32xbf16, #tpu.memory_space<vmem>>, vector<128x32xbf16>
    %c0_5 = arith.constant 0 : index
    %c0_6 = arith.constant 0 : index
    %4 = vector.load %arg6[%c0_5, %c0_6] : memref<32x64xbf16, #tpu.memory_space<vmem>>, vector<32x64xbf16>
    %cst_7 = arith.constant dense<0.000000e+00> : vector<128x64xf32>
    %5 = tpu.matmul %3, %4, %cst_7 {dimension_numbers = #tpu.dot_dimension_numbers<[1], [0], [0], [1], [0, 0, 1, 1], [], []>} : vector<128x32xbf16>, vector<32x64xbf16>, vector<128x64xf32> -> vector<128x64xf32>
    %6 = arith.addf %2, %5 : vector<128x64xf32>
    %c0_8 = arith.constant 0 : index
    %c0_9 = arith.constant 0 : index
    %7 = vector.load %arg4[%c0_8, %c0_9] : memref<128x32xbf16, #tpu.memory_space<vmem>>, vector<128x32xbf16>
    %c0_10 = arith.constant 0 : index
    %c0_11 = arith.constant 0 : index
    %8 = vector.load %arg7[%c0_10, %c0_11] : memref<32x64xbf16, #tpu.memory_space<vmem>>, vector<32x64xbf16>
    %cst_12 = arith.constant dense<0.000000e+00> : vector<128x64xf32>
    %9 = tpu.matmul %7, %8, %cst_12 {dimension_numbers = #tpu.dot_dimension_numbers<[1], [0], [0], [1], [0, 0, 1, 1], [], []>} : vector<128x32xbf16>, vector<32x64xbf16>, vector<128x64xf32> -> vector<128x64xf32>
    %10 = arith.addf %6, %9 : vector<128x64xf32>
    %c0_13 = arith.constant 0 : index
    %c0_14 = arith.constant 0 : index
    %11 = vector.load %arg8[%c0_13, %c0_14] : memref<1x64xf32, #tpu.memory_space<vmem>>, vector<1x64xf32>
    %12 = vector.broadcast %11 : vector<1x64xf32> to vector<128x64xf32>
    %13 = arith.addf %10, %12 : vector<128x64xf32>
    %cst_15 = arith.constant 0.000000e+00 : f32
    %14 = vector.broadcast %cst_15 : f32 to vector<128x64xf32>
    %15 = arith.maximumf %13, %14 : vector<128x64xf32>
    %c0_16 = arith.constant 0 : index
    %c0_17 = arith.constant 0 : index
    %16 = vector.load %arg9[%c0_16, %c0_17] : memref<128x64xf32, #tpu.memory_space<vmem>>, vector<128x64xf32>
    %17 = arith.addf %15, %16 : vector<128x64xf32>
    %c0_18 = arith.constant 0 : index
    %c0_19 = arith.constant 0 : index
    %18 = vector.load %arg10[%c0_18, %c0_19] : memref<128x64xf32, #tpu.memory_space<vmem>>, vector<128x64xf32>
    tpu.vector_store %arg10[%c0_18, %c0_19], %17 {strides = array<i32>} : memref<128x64xf32, #tpu.memory_space<vmem>>, vector<128x64xf32>,
    return
  }
  func.func @transform_0(%arg0: i32, %arg1: i32) -> (i32, i32) {
    %c0_i32 = arith.constant 0 : i32
    %c0_i32_0 = arith.constant 0 : i32
    return %arg0, %c0_i32 : i32, i32
  }
  func.func @transform_1(%arg0: i32, %arg1: i32) -> (i32, i32) {
    %c0_i32 = arith.constant 0 : i32
    %c0_i32_0 = arith.constant 0 : i32
    return %arg0, %c0_i32 : i32, i32
  }
  func.func @transform_2(%arg0: i32, %arg1: i32) -> (i32, i32) {
    %c0_i32 = arith.constant 0 : i32
    %c0_i32_0 = arith.constant 0 : i32
    return %arg0, %c0_i32 : i32, i32
  }
  func.func @transform_3(%arg0: i32, %arg1: i32) -> (i32, i32) {
    %c0_i32 = arith.constant 0 : i32
    %c0_i32_0 = arith.constant 0 : i32
    return %c0_i32, %arg1 : i32, i32
  }
  func.func @transform_4(%arg0: i32, %arg1: i32) -> (i32, i32) {
    %c0_i32 = arith.constant 0 : i32
    %c0_i32_0 = arith.constant 0 : i32
    return %c0_i32, %arg1 : i32, i32
  }
  func.func @transform_5(%arg0: i32, %arg1: i32) -> (i32, i32) {
    %c0_i32 = arith.constant 0 : i32
    %c0_i32_0 = arith.constant 0 : i32
    return %c0_i32, %arg1 : i32, i32
  }
  func.func @transform_6(%arg0: i32, %arg1: i32) -> (i32, i32) {
    %c0_i32 = arith.constant 0 : i32
    %c0_i32_0 = arith.constant 0 : i32
    return %c0_i32, %arg1 : i32, i32
  }
  func.func @transform_7(%arg0: i32, %arg1: i32) -> (i32, i32) {
    %c0_i32 = arith.constant 0 : i32
    return %arg0, %arg1 : i32, i32
  }
  func.func @transform_8(%arg0: i32, %arg1: i32) -> (i32, i32) {
    %c0_i32 = arith.constant 0 : i32
    return %arg0, %arg1 : i32, i32
  }
}

module attributes {stable_mosaic.version = 11 : i64} {
  func.func @_fused_mm_kernel(%arg0: i32, %arg1: i32, %arg2: memref<256x16xbf16, #tpu.memory_space<vmem>>, %arg3: memref<256x16xbf16, #tpu.memory_space<vmem>>, %arg4: memref<256x16xbf16, #tpu.memory_space<vmem>>, %arg5: memref<16x16xbf16, #tpu.memory_space<vmem>>, %arg6: memref<16x16xbf16, #tpu.memory_space<vmem>>, %arg7: memref<16x16xbf16, #tpu.memory_space<vmem>>, %arg8: memref<1x16xf32, #tpu.memory_space<vmem>>, %arg9: memref<256x16xf32, #tpu.memory_space<vmem>>) attributes {dimension_semantics = [#tpu.dimension_semantics<parallel>, #tpu.dimension_semantics<parallel>], iteration_bounds = array<i64: 2, 1>, scalar_prefetch = 0 : i64, scratch_operands = 0 : i64, tpu.core_type = #tpu.core_type<tc>, window_params = [{transform_indices = @transform_0, window_bounds = array<i64: 256, 16>}, {transform_indices = @transform_1, window_bounds = array<i64: 256, 16>}, {transform_indices = @transform_2, window_bounds = array<i64: 256, 16>}, {transform_indices = @transform_3, window_bounds = array<i64: 16, 16>}, {transform_indices = @transform_4, window_bounds = array<i64: 16, 16>}, {transform_indices = @transform_5, window_bounds = array<i64: 16, 16>}, {transform_indices = @transform_6, window_bounds = array<i64: 1, 16>}, {transform_indices = @transform_7, window_bounds = array<i64: 256, 16>}]} {
    %c0 = arith.constant 0 : index
    %c0_0 = arith.constant 0 : index
    %0 = vector.load %arg2[%c0, %c0_0] : memref<256x16xbf16, #tpu.memory_space<vmem>>, vector<256x16xbf16>
    %c0_1 = arith.constant 0 : index
    %c0_2 = arith.constant 0 : index
    %1 = vector.load %arg5[%c0_1, %c0_2] : memref<16x16xbf16, #tpu.memory_space<vmem>>, vector<16x16xbf16>
    %cst = arith.constant dense<0.000000e+00> : vector<256x16xf32>
    %2 = tpu.matmul %0, %1, %cst {dimension_numbers = #tpu.dot_dimension_numbers<[1], [0], [0], [1], [0, 0, 1, 1], [], []>} : vector<256x16xbf16>, vector<16x16xbf16>, vector<256x16xf32> -> vector<256x16xf32>
    %c0_3 = arith.constant 0 : index
    %c0_4 = arith.constant 0 : index
    %3 = vector.load %arg3[%c0_3, %c0_4] : memref<256x16xbf16, #tpu.memory_space<vmem>>, vector<256x16xbf16>
    %c0_5 = arith.constant 0 : index
    %c0_6 = arith.constant 0 : index
    %4 = vector.load %arg6[%c0_5, %c0_6] : memref<16x16xbf16, #tpu.memory_space<vmem>>, vector<16x16xbf16>
    %cst_7 = arith.constant dense<0.000000e+00> : vector<256x16xf32>
    %5 = tpu.matmul %3, %4, %cst_7 {dimension_numbers = #tpu.dot_dimension_numbers<[1], [0], [0], [1], [0, 0, 1, 1], [], []>} : vector<256x16xbf16>, vector<16x16xbf16>, vector<256x16xf32> -> vector<256x16xf32>
    %6 = arith.addf %2, %5 : vector<256x16xf32>
    %c0_8 = arith.constant 0 : index
    %c0_9 = arith.constant 0 : index
    %7 = vector.load %arg4[%c0_8, %c0_9] : memref<256x16xbf16, #tpu.memory_space<vmem>>, vector<256x16xbf16>
    %c0_10 = arith.constant 0 : index
    %c0_11 = arith.constant 0 : index
    %8 = vector.load %arg7[%c0_10, %c0_11] : memref<16x16xbf16, #tpu.memory_space<vmem>>, vector<16x16xbf16>
    %cst_12 = arith.constant dense<0.000000e+00> : vector<256x16xf32>
    %9 = tpu.matmul %7, %8, %cst_12 {dimension_numbers = #tpu.dot_dimension_numbers<[1], [0], [0], [1], [0, 0, 1, 1], [], []>} : vector<256x16xbf16>, vector<16x16xbf16>, vector<256x16xf32> -> vector<256x16xf32>
    %10 = arith.addf %6, %9 : vector<256x16xf32>
    %c0_13 = arith.constant 0 : index
    %c0_14 = arith.constant 0 : index
    %11 = vector.load %arg8[%c0_13, %c0_14] : memref<1x16xf32, #tpu.memory_space<vmem>>, vector<1x16xf32>
    %12 = vector.broadcast %11 : vector<1x16xf32> to vector<256x16xf32>
    %13 = arith.addf %10, %12 : vector<256x16xf32>
    %c0_15 = arith.constant 0 : index
    %c0_16 = arith.constant 0 : index
    %14 = vector.load %arg9[%c0_15, %c0_16] : memref<256x16xf32, #tpu.memory_space<vmem>>, vector<256x16xf32>
    tpu.vector_store %arg9[%c0_15, %c0_16], %13 {strides = array<i32>} : memref<256x16xf32, #tpu.memory_space<vmem>>, vector<256x16xf32>,
    return
  }
  func.func @transform_0(%arg0: i32, %arg1: i32) -> (i32, i32) {
    %c0_i32 = arith.constant 0 : i32
    %c0_i32_0 = arith.constant 0 : i32
    return %arg0, %c0_i32 : i32, i32
  }
  func.func @transform_1(%arg0: i32, %arg1: i32) -> (i32, i32) {
    %c0_i32 = arith.constant 0 : i32
    %c0_i32_0 = arith.constant 0 : i32
    return %arg0, %c0_i32 : i32, i32
  }
  func.func @transform_2(%arg0: i32, %arg1: i32) -> (i32, i32) {
    %c0_i32 = arith.constant 0 : i32
    %c0_i32_0 = arith.constant 0 : i32
    return %arg0, %c0_i32 : i32, i32
  }
  func.func @transform_3(%arg0: i32, %arg1: i32) -> (i32, i32) {
    %c0_i32 = arith.constant 0 : i32
    %c0_i32_0 = arith.constant 0 : i32
    return %c0_i32, %arg1 : i32, i32
  }
  func.func @transform_4(%arg0: i32, %arg1: i32) -> (i32, i32) {
    %c0_i32 = arith.constant 0 : i32
    %c0_i32_0 = arith.constant 0 : i32
    return %c0_i32, %arg1 : i32, i32
  }
  func.func @transform_5(%arg0: i32, %arg1: i32) -> (i32, i32) {
    %c0_i32 = arith.constant 0 : i32
    %c0_i32_0 = arith.constant 0 : i32
    return %c0_i32, %arg1 : i32, i32
  }
  func.func @transform_6(%arg0: i32, %arg1: i32) -> (i32, i32) {
    %c0_i32 = arith.constant 0 : i32
    %c0_i32_0 = arith.constant 0 : i32
    return %c0_i32, %arg1 : i32, i32
  }
  func.func @transform_7(%arg0: i32, %arg1: i32) -> (i32, i32) {
    %c0_i32 = arith.constant 0 : i32
    return %arg0, %arg1 : i32, i32
  }
}

</mosaic_0001>

<llo_original>
// kernel: demucs_forward.15
$region0: #{demucs_forward.15}
  #allocation0 [shape = 'u32[]', space=smem, size = 0x4, offset = 0x4, fixed_abs, tag = 'smem constant byte address 0x4 - core index']
  #allocation1 [shape = 'u32[144,128]{1,0:T(1,128)}', space=vmem, size = 0x12000, scoped, tag = 'internal scratch']
  %s0 = inlined_call_operand.vmem [shape: bf16[512,4], index: 0, kind: input, shape index: {}]
  %s1 = inlined_call_operand.vmem [shape: bf16[512,4], index: 1, kind: input, shape index: {}]
  %s2 = inlined_call_operand.vmem [shape: bf16[4,16], index: 2, kind: input, shape index: {}]
  %s3 = inlined_call_operand.vmem [shape: bf16[4,16], index: 3, kind: input, shape index: {}]
  %s4 = inlined_call_operand.vmem [shape: f32[1,16], index: 4, kind: input, shape index: {}]
  %s5 = inlined_call_operand.vmem [shape: f32[512,16], index: 5, kind: output, shape index: {}]
  %s6 = sld [smem:[#allocation0]]
  $region53: #{demucs_forward.15} parent=0
    _
  %s8 = ssub.s32 1, %s6
  %s9 = scalar_select 0, %s8, %s6
  loop: start=0, step=1, limit=4
  $region2: #{demucs_forward.15} parent=0 // loop_pre_header
    _
  $region3: #{demucs_forward.15} parent=0 // loop_header
    %s11 = sphi 0, %s15
    %p12 = scmp.ge.s32.totalorder %s11, 4
    %s18 = sphi 0, %s30
    %s19 = sphi 0, %s26
    %s20 = sphi 0, %s18
    %s21 = sphi 0, %s19
    %s22 = sphi 0, %s20
    %s23 = sphi 0, %s21
    %s33 = sphi 0, %s35
    %s36 = sphi 0, %s33
    %s37 = sphi 0, %s36
    %s53 = sphi 0, %s37
    %s59 = sphi 0, %s61
    %s62 = sphi 0, %s59
    %s63 = sphi 0, %s62
    %s79 = sphi 0, %s63
    %s85 = sphi 0, %s87
    %s88 = sphi 0, %s85
    %s89 = sphi 0, %s88
    %s105 = sphi 0, %s89
    %s111 = sphi 0, %s113
    %s114 = sphi 0, %s111
    %s115 = sphi 0, %s114
    %s131 = sphi 0, %s115
    %s137 = sphi 0, %s139
    %s140 = sphi 0, %s137
    %s141 = sphi 0, %s140
    %s157 = sphi 0, %s141
    %s165 = sphi 0, %s167
    %s168 = sphi 0, %s165
    %s169 = sphi 0, %s168
    %s185 = sphi 0, %s169
  $region4: #{demucs_forward.15} parent=0 // loop_header_branch
    %14 = sbr.rel (%p12) target = $region8
  $region5: #{demucs_forward.15} parent=0 // loop_body
    %s16 = ssub.s32 %s11, 1
    %s17 = ssub.s32 %s11, 2
    %s24 = sadd.s32 1, %s19
    %p25 = scmp.ge.s32.totalorder %s24, 1
    %s26 = scalar_select %p25, 0, %s24
    %s27 = sadd.s32 1, %s18
    %s28 = scalar_select %p25, %s27, %s18
    %p29 = scmp.ge.s32.totalorder %s28, 2
    %s30 = scalar_select %p29, 0, %s28
    %s31 = ssub.s32 %s18, %s30
    %p32 = scmp.eq.s32.totalorder %s31, 0
    %s34 = sadd.s32 %s33, 1
    %s35 = scalar_select %p32, %s33, %s34
    %p38 = pneg %p32
    %p39 = scmp.eq.s32.totalorder %s11, 1
    %p40 = por %p38, %p39
    %p41 = scmp.ne.s32.totalorder %s33, %s36
    %p42 = scmp.eq.s32.totalorder %s11, 0
    %p43 = por %p41, %p42
    %p44 = scmp.ne.s32.totalorder %s33, %s36
    %p45 = scmp.eq.s32.totalorder %s16, 1
    %p46 = por %p44, %p45
    %p47 = scmp.ne.s32.totalorder %s36, %s37
    %p48 = scmp.eq.s32.totalorder %s16, 0
    %p49 = por %p47, %p48
    %p50 = scmp.ne.s32.totalorder %s36, %s37
    %p51 = scmp.eq.s32.totalorder %s17, 1
    %p52 = por %p50, %p51
    %p54 = scmp.ne.s32.totalorder %s37, %s53
    %p55 = scmp.eq.s32.totalorder %s17, 0
    %p56 = por %p54, %p55
    %s57 = ssub.s32 %s18, %s30
    %p58 = scmp.eq.s32.totalorder %s57, 0
    %s60 = sadd.s32 %s59, 1
    %s61 = scalar_select %p58, %s59, %s60
    %p64 = pneg %p58
    %p65 = scmp.eq.s32.totalorder %s11, 1
    %p66 = por %p64, %p65
    %p67 = scmp.ne.s32.totalorder %s59, %s62
    %p68 = scmp.eq.s32.totalorder %s11, 0
    %p69 = por %p67, %p68
    %p70 = scmp.ne.s32.totalorder %s59, %s62
    %p71 = scmp.eq.s32.totalorder %s16, 1
    %p72 = por %p70, %p71
    %p73 = scmp.ne.s32.totalorder %s62, %s63
    %p74 = scmp.eq.s32.totalorder %s16, 0
    %p75 = por %p73, %p74
    %p76 = scmp.ne.s32.totalorder %s62, %s63
    %p77 = scmp.eq.s32.totalorder %s17, 1
    %p78 = por %p76, %p77
    %p80 = scmp.ne.s32.totalorder %s63, %s79
    %p81 = scmp.eq.s32.totalorder %s17, 0
    %p82 = por %p80, %p81
    %s83 = ssub.s32 %s19, %s26
    %p84 = scmp.eq.s32.totalorder %s83, 0
    %s86 = sadd.s32 %s85, 1
    %s87 = scalar_select %p84, %s85, %s86
    %p90 = pneg %p84
    %p91 = scmp.eq.s32.totalorder %s11, 1
    %p92 = por %p90, %p91
    %p93 = scmp.ne.s32.totalorder %s85, %s88
    %p94 = scmp.eq.s32.totalorder %s11, 0
    %p95 = por %p93, %p94
    %p96 = scmp.ne.s32.totalorder %s85, %s88
    %p97 = scmp.eq.s32.totalorder %s16, 1
    %p98 = por %p96, %p97
    %p99 = scmp.ne.s32.totalorder %s88, %s89
    %p100 = scmp.eq.s32.totalorder %s16, 0
    %p101 = por %p99, %p100
    %p102 = scmp.ne.s32.totalorder %s88, %s89
    %p103 = scmp.eq.s32.totalorder %s17, 1
    %p104 = por %p102, %p103
    %p106 = scmp.ne.s32.totalorder %s89, %s105
    %p107 = scmp.eq.s32.totalorder %s17, 0
    %p108 = por %p106, %p107
    %s109 = ssub.s32 %s19, %s26
    %p110 = scmp.eq.s32.totalorder %s109, 0
    %s112 = sadd.s32 %s111, 1
    %s113 = scalar_select %p110, %s111, %s112
    %p116 = pneg %p110
    %p117 = scmp.eq.s32.totalorder %s11, 1
    %p118 = por %p116, %p117
    %p119 = scmp.ne.s32.totalorder %s111, %s114
    %p120 = scmp.eq.s32.totalorder %s11, 0
    %p121 = por %p119, %p120
    %p122 = scmp.ne.s32.totalorder %s111, %s114
    %p123 = scmp.eq.s32.totalorder %s16, 1
    %p124 = por %p122, %p123
    %p125 = scmp.ne.s32.totalorder %s114, %s115
    %p126 = scmp.eq.s32.totalorder %s16, 0
    %p127 = por %p125, %p126
    %p128 = scmp.ne.s32.totalorder %s114, %s115
    %p129 = scmp.eq.s32.totalorder %s17, 1
    %p130 = por %p128, %p129
    %p132 = scmp.ne.s32.totalorder %s115, %s131
    %p133 = scmp.eq.s32.totalorder %s17, 0
    %p134 = por %p132, %p133
    %s135 = ssub.s32 %s19, %s26
    %p136 = scmp.eq.s32.totalorder %s135, 0
    %s138 = sadd.s32 %s137, 1
    %s139 = scalar_select %p136, %s137, %s138
    %p142 = pneg %p136
    %p143 = scmp.eq.s32.totalorder %s11, 1
    %p144 = por %p142, %p143
    %p145 = scmp.ne.s32.totalorder %s137, %s140
    %p146 = scmp.eq.s32.totalorder %s11, 0
    %p147 = por %p145, %p146
    %p148 = scmp.ne.s32.totalorder %s137, %s140
    %p149 = scmp.eq.s32.totalorder %s16, 1
    %p150 = por %p148, %p149
    %p151 = scmp.ne.s32.totalorder %s140, %s141
    %p152 = scmp.eq.s32.totalorder %s16, 0
    %p153 = por %p151, %p152
    %p154 = scmp.ne.s32.totalorder %s140, %s141
    %p155 = scmp.eq.s32.totalorder %s17, 1
    %p156 = por %p154, %p155
    %p158 = scmp.ne.s32.totalorder %s141, %s157
    %p159 = scmp.eq.s32.totalorder %s17, 0
    %p160 = por %p158, %p159
    %s161 = ssub.s32 %s18, %s30
    %s162 = ssub.s32 %s19, %s26
    %s163 = sor.u32 %s161, %s162
    %p164 = scmp.eq.s32.totalorder %s163, 0
    %s166 = sadd.s32 %s165, 1
    %s167 = scalar_select %p164, %s165, %s166
    %p170 = pneg %p164
    %p171 = scmp.eq.s32.totalorder %s11, 1
    %p172 = por %p170, %p171
    %p173 = scmp.ne.s32.totalorder %s165, %s168
    %p174 = scmp.eq.s32.totalorder %s11, 0
    %p175 = por %p173, %p174
    %p176 = scmp.ne.s32.totalorder %s165, %s168
    %p177 = scmp.eq.s32.totalorder %s16, 1
    %p178 = por %p176, %p177
    %p179 = scmp.ne.s32.totalorder %s168, %s169
    %p180 = scmp.eq.s32.totalorder %s16, 0
    %p181 = por %p179, %p180
    %p182 = scmp.ne.s32.totalorder %s168, %s169
    %p183 = scmp.eq.s32.totalorder %s17, 1
    %p184 = por %p182, %p183
    %p186 = scmp.ne.s32.totalorder %s169, %s185
    %p187 = scmp.eq.s32.totalorder %s17, 0
    %p188 = por %p186, %p187
    %p189 = scmp.le.s32.totalorder 1, %s11
    %p190 = scmp.lt.s32.totalorder %s11, 3
    %p191 = pnand %p189, %p190
    %p192 = pneg %p191
    // Predicated region
    $region9: #{demucs_forward.15} parent=5 // pred_check
      _
    $region10: #{demucs_forward.15} parent=5 // pred_check_branch
      %194 = sbr.rel (%p191) target = $region12
    $region11: #{demucs_forward.15} parent=5 // pred_region
      %s195 = ssub.s32 %s11, 1
      // Predicated region
      $region13: #{demucs_forward.15} parent=11 // pred_check
        %p196 = pneg %p101
      $region14: #{demucs_forward.15} parent=11 // pred_check_branch
        %198 = sbr.rel (%p196) target = $region16
      $region15: #{demucs_forward.15} parent=11 // pred_region
        %p199 = scmp.lt.s32.totalorder %s21, 0
        %s200 = scalar_select %p199, %s21, 0
        %s201 = smul.addr %s200, 2
        %s202 = scalar_lea.vmem %s2, %s201
      $region16: #{demucs_forward.15} parent=11 // pred_fallthru
        _
      // Predicated region
      $region17: #{demucs_forward.15} parent=11 // pred_check
        %p203 = pneg %p127
      $region18: #{demucs_forward.15} parent=11 // pred_check_branch
        %205 = sbr.rel (%p203) target = $region20
      $region19: #{demucs_forward.15} parent=11 // pred_region
        %p206 = scmp.lt.s32.totalorder %s21, 0
        %s207 = scalar_select %p206, %s21, 0
        %s208 = smul.addr %s207, 2
        %s209 = scalar_lea.vmem %s3, %s208
      $region20: #{demucs_forward.15} parent=11 // pred_fallthru
        _
      // Predicated region
      $region21: #{demucs_forward.15} parent=11 // pred_check
        %p210 = pneg %p153
      $region22: #{demucs_forward.15} parent=11 // pred_check_branch
        %212 = sbr.rel (%p210) target = $region24
      $region23: #{demucs_forward.15} parent=11 // pred_region
        %p213 = scmp.lt.s32.totalorder %s21, 0
        %s214 = scalar_select %p213, %s21, 0
        %s215 = scalar_lea.vmem %s4, %s214
      $region24: #{demucs_forward.15} parent=11 // pred_fallthru
        _
    $region12: #{demucs_forward.15} parent=5 // pred_fallthru
      _
    %p216 = scmp.lt.s32.totalorder %s11, 2
    // Predicated region
    $region25: #{demucs_forward.15} parent=5 // pred_check
      %p217 = pneg %p216
    $region26: #{demucs_forward.15} parent=5 // pred_check_branch
      %219 = sbr.rel (%p217) target = $region28
    $region27: #{demucs_forward.15} parent=5 // pred_region
      // Predicated region
      $region29: #{demucs_forward.15} parent=27 // pred_check
        %p220 = pneg %p43
      $region30: #{demucs_forward.15} parent=27 // pred_check_branch
        %222 = sbr.rel (%p220) target = $region32
      $region31: #{demucs_forward.15} parent=27 // pred_region
        %s223 = smul.u32 32, %s18
        %p224 = scmp.lt.s32.totalorder %s223, 63
        %s225 = scalar_select %p224, %s223, 63
        %s226 = smul.addr %s225, 4
        %s227 = scalar_lea.vmem %s0, %s226
        %s228 = smul.u32 32, %s18
      $region32: #{demucs_forward.15} parent=27 // pred_fallthru
        _
      // Predicated region
      $region33: #{demucs_forward.15} parent=27 // pred_check
        %p229 = pneg %p69
      $region34: #{demucs_forward.15} parent=27 // pred_check_branch
        %231 = sbr.rel (%p229) target = $region36
      $region35: #{demucs_forward.15} parent=27 // pred_region
        %s232 = smul.u32 32, %s18
        %p233 = scmp.lt.s32.totalorder %s232, 63
        %s234 = scalar_select %p233, %s232, 63
        %s235 = smul.addr %s234, 4
        %s236 = scalar_lea.vmem %s1, %s235
        %s237 = smul.u32 32, %s18
      $region36: #{demucs_forward.15} parent=27 // pred_fallthru
        _
    $region28: #{demucs_forward.15} parent=5 // pred_fallthru
      _
    %p238 = scmp.le.s32.totalorder 1, %s11
    %p239 = scmp.lt.s32.totalorder %s11, 3
    %p240 = pnand %p238, %p239
    %p241 = pneg %p240
    // Predicated region
    $region37: #{demucs_forward.15} parent=5 // pred_check
      _
    $region38: #{demucs_forward.15} parent=5 // pred_check_branch
      %243 = sbr.rel (%p240) target = $region40
    $region39: #{demucs_forward.15} parent=5 // pred_region
      %s244 = ssub.s32 %s11, 1
      %s245 = smul.u32 32, %s20
      %p246 = scmp.lt.s32.totalorder %s245, 63
      %s247 = scalar_select %p246, %s245, 63
      %s248 = smul.addr %s247, 4
      %s249 = scalar_lea.vmem %s0, %s248
      %p250 = pneg %p49
      %p251 = pneg %p46
      %s252 = smul.u32 32, %s20
      %p253 = scmp.lt.s32.totalorder %s252, 63
      %s254 = scalar_select %p253, %s252, 63
      %s255 = smul.addr %s254, 4
      %s256 = scalar_lea.vmem %s1, %s255
      %p257 = pneg %p75
      %p258 = pneg %p72
      %p259 = scmp.lt.s32.totalorder %s21, 0
      %s260 = scalar_select %p259, %s21, 0
      %s261 = smul.addr %s260, 2
      %s262 = scalar_lea.vmem %s2, %s261
      %p263 = pneg %p101
      %p264 = pneg %p98
      %p265 = scmp.lt.s32.totalorder %s21, 0
      %s266 = scalar_select %p265, %s21, 0
      %s267 = smul.addr %s266, 2
      %s268 = scalar_lea.vmem %s3, %s267
      %p269 = pneg %p127
      %p270 = pneg %p124
      %p271 = scmp.lt.s32.totalorder %s21, 0
      %s272 = scalar_select %p271, %s21, 0
      %s273 = scalar_lea.vmem %s4, %s272
      %p274 = pneg %p153
      %p275 = pneg %p150
      %p276 = pneg %p181
      %p277 = pneg %p178
      %s278 = smul.u32 32, %s20
      %p279 = scmp.lt.s32.totalorder %s278, 63
      %s280 = scalar_select %p279, %s278, 63
      %p281 = scmp.lt.s32.totalorder %s21, 0
      %s282 = scalar_select %p281, %s21, 0
      %s283 = sadd.s32 %s282, %s280
      %s284 = smul.addr %s283, 8
      %s285 = scalar_lea.vmem %s5, %s284
      %s286 = smul.u32 32, %s20
      %p287 = scmp.lt.s32.totalorder %s286, 63
      %s288 = scalar_select %p287, %s286, 63
      %s289 = smul.addr %s288, 4
      %s290 = scalar_lea.vmem %s0, %s289
      %s291 = smul.u32 32, %s20
      %s292 = smul.u32 32, %s20
      %p293 = scmp.lt.s32.totalorder %s292, 63
      %s294 = scalar_select %p293, %s292, 63
      %s295 = smul.addr %s294, 4
      %s296 = scalar_lea.vmem %s1, %s295
      %s297 = smul.u32 32, %s20
      %p298 = scmp.lt.s32.totalorder %s21, 0
      %s299 = scalar_select %p298, %s21, 0
      %s300 = smul.addr %s299, 2
      %s301 = scalar_lea.vmem %s2, %s300
      %p302 = scmp.lt.s32.totalorder %s21, 0
      %s303 = scalar_select %p302, %s21, 0
      %s304 = smul.addr %s303, 2
      %s305 = scalar_lea.vmem %s3, %s304
      %p306 = scmp.lt.s32.totalorder %s21, 0
      %s307 = scalar_select %p306, %s21, 0
      %s308 = scalar_lea.vmem %s4, %s307
      %s309 = smul.u32 32, %s20
      %p310 = scmp.lt.s32.totalorder %s309, 63
      %s311 = scalar_select %p310, %s309, 63
      %p312 = scmp.lt.s32.totalorder %s21, 0
      %s313 = scalar_select %p312, %s21, 0
      %s314 = sadd.s32 %s313, %s311
      %s315 = smul.addr %s314, 8
      %s316 = scalar_lea.vmem %s5, %s315
      %s317 = smul.u32 32, %s20
      %v319 = vld [vmem:[%s290] sm:$0xf]
      %v320 = vld [vmem:[%s290 + $0x4] sm:$0xf]
      %v321 = vld [vmem:[%s290 + $0x8] sm:$0xf]
      %v322 = vld [vmem:[%s290 + $0xc] sm:$0xf]
      %v323 = vld [vmem:[%s290 + $0x10] sm:$0xf]
      %v324 = vld [vmem:[%s290 + $0x14] sm:$0xf]
      %v325 = vld [vmem:[%s290 + $0x18] sm:$0xf]
      %v326 = vld [vmem:[%s290 + $0x1c] sm:$0xf]
      %v327 = vld [vmem:[%s290 + $0x20] sm:$0xf]
      %v328 = vld [vmem:[%s290 + $0x24] sm:$0xf]
      %v329 = vld [vmem:[%s290 + $0x28] sm:$0xf]
      %v330 = vld [vmem:[%s290 + $0x2c] sm:$0xf]
      %v331 = vld [vmem:[%s290 + $0x30] sm:$0xf]
      %v332 = vld [vmem:[%s290 + $0x34] sm:$0xf]
      %v333 = vld [vmem:[%s290 + $0x38] sm:$0xf]
      %v334 = vld [vmem:[%s290 + $0x3c] sm:$0xf]
      %v335 = vld [vmem:[%s290 + $0x40] sm:$0xf]
      %v336 = vld [vmem:[%s290 + $0x44] sm:$0xf]
      %v337 = vld [vmem:[%s290 + $0x48] sm:$0xf]
      %v338 = vld [vmem:[%s290 + $0x4c] sm:$0xf]
      %v339 = vld [vmem:[%s290 + $0x50] sm:$0xf]
      %v340 = vld [vmem:[%s290 + $0x54] sm:$0xf]
      %v341 = vld [vmem:[%s290 + $0x58] sm:$0xf]
      %v342 = vld [vmem:[%s290 + $0x5c] sm:$0xf]
      %v343 = vld [vmem:[%s290 + $0x60] sm:$0xf]
      %v344 = vld [vmem:[%s290 + $0x64] sm:$0xf]
      %v345 = vld [vmem:[%s290 + $0x68] sm:$0xf]
      %v346 = vld [vmem:[%s290 + $0x6c] sm:$0xf]
      %v347 = vld [vmem:[%s290 + $0x70] sm:$0xf]
      %v348 = vld [vmem:[%s290 + $0x74] sm:$0xf]
      %v349 = vld [vmem:[%s290 + $0x78] sm:$0xf]
      %v350 = vld [vmem:[%s290 + $0x7c] sm:$0xf]
      %v351 = vld [vmem:[%s301] sm:$0x3]
      %v352 = vld [vmem:[%s296] sm:$0xf]
      %v353 = vld [vmem:[%s296 + $0x4] sm:$0xf]
      %v354 = vld [vmem:[%s296 + $0x8] sm:$0xf]
      %v355 = vld [vmem:[%s296 + $0xc] sm:$0xf]
      %v356 = vld [vmem:[%s296 + $0x10] sm:$0xf]
      %v357 = vld [vmem:[%s296 + $0x14] sm:$0xf]
      %v358 = vld [vmem:[%s296 + $0x18] sm:$0xf]
      %v359 = vld [vmem:[%s296 + $0x1c] sm:$0xf]
      %v360 = vld [vmem:[%s296 + $0x20] sm:$0xf]
      %v361 = vld [vmem:[%s296 + $0x24] sm:$0xf]
      %v362 = vld [vmem:[%s296 + $0x28] sm:$0xf]
      %v363 = vld [vmem:[%s296 + $0x2c] sm:$0xf]
      %v364 = vld [vmem:[%s296 + $0x30] sm:$0xf]
      %v365 = vld [vmem:[%s296 + $0x34] sm:$0xf]
      %v366 = vld [vmem:[%s296 + $0x38] sm:$0xf]
      %v367 = vld [vmem:[%s296 + $0x3c] sm:$0xf]
      %v368 = vld [vmem:[%s296 + $0x40] sm:$0xf]
      %v369 = vld [vmem:[%s296 + $0x44] sm:$0xf]
      %v370 = vld [vmem:[%s296 + $0x48] sm:$0xf]
      %v371 = vld [vmem:[%s296 + $0x4c] sm:$0xf]
      %v372 = vld [vmem:[%s296 + $0x50] sm:$0xf]
      %v373 = vld [vmem:[%s296 + $0x54] sm:$0xf]
      %v374 = vld [vmem:[%s296 + $0x58] sm:$0xf]
      %v375 = vld [vmem:[%s296 + $0x5c] sm:$0xf]
      %v376 = vld [vmem:[%s296 + $0x60] sm:$0xf]
      %v377 = vld [vmem:[%s296 + $0x64] sm:$0xf]
      %v378 = vld [vmem:[%s296 + $0x68] sm:$0xf]
      %v379 = vld [vmem:[%s296 + $0x6c] sm:$0xf]
      %v380 = vld [vmem:[%s296 + $0x70] sm:$0xf]
      %v381 = vld [vmem:[%s296 + $0x74] sm:$0xf]
      %v382 = vld [vmem:[%s296 + $0x78] sm:$0xf]
      %v383 = vld [vmem:[%s296 + $0x7c] sm:$0xf]
      %v384 = vld [vmem:[%s305] sm:$0x3]
      %v417 = vunpack.c.l.b16 %v352
      %v418 = vunpack.c.l.b16 %v353
      %v419 = vunpack.c.l.b16 %v354
      %v420 = vunpack.c.l.b16 %v355
      %v421 = vunpack.c.l.b16 %v356
      %v422 = vunpack.c.l.b16 %v357
      %v423 = vunpack.c.l.b16 %v358
      %v424 = vunpack.c.l.b16 %v359
      %v425 = vunpack.c.l.b16 %v360
      %v426 = vunpack.c.l.b16 %v361
      %v427 = vunpack.c.l.b16 %v362
      %v428 = vunpack.c.l.b16 %v363
      %v429 = vunpack.c.l.b16 %v364
      %v430 = vunpack.c.l.b16 %v365
      %v431 = vunpack.c.l.b16 %v366
      %v432 = vunpack.c.l.b16 %v367
      %v433 = vunpack.c.l.b16 %v368
      %v434 = vunpack.c.l.b16 %v369
      %v435 = vunpack.c.l.b16 %v370
      %v436 = vunpack.c.l.b16 %v371
      %v437 = vunpack.c.l.b16 %v372
      %v438 = vunpack.c.l.b16 %v373
      %v439 = vunpack.c.l.b16 %v374
      %v440 = vunpack.c.l.b16 %v375
      %v441 = vunpack.c.l.b16 %v376
      %v442 = vunpack.c.l.b16 %v377
      %v443 = vunpack.c.l.b16 %v378
      %v444 = vunpack.c.l.b16 %v379
      %v445 = vunpack.c.l.b16 %v380
      %v446 = vunpack.c.l.b16 %v381
      %v447 = vunpack.c.l.b16 %v382
      %v448 = vunpack.c.l.b16 %v383
      %v449 = vpack.c.b16 %v418, %v417
      %v450 = vpack.c.b16 %v420, %v419
      %v451 = vpack.c.b16 %v422, %v421
      %v452 = vpack.c.b16 %v424, %v423
      %v453 = vpack.c.b16 %v426, %v425
      %v454 = vpack.c.b16 %v428, %v427
      %v455 = vpack.c.b16 %v430, %v429
      %v456 = vpack.c.b16 %v432, %v431
      %v457 = vpack.c.b16 %v434, %v433
      %v458 = vpack.c.b16 %v436, %v435
      %v459 = vpack.c.b16 %v438, %v437
      %v460 = vpack.c.b16 %v440, %v439
      %v461 = vpack.c.b16 %v442, %v441
      %v462 = vpack.c.b16 %v444, %v443
      %v463 = vpack.c.b16 %v446, %v445
      %v464 = vpack.c.b16 %v448, %v447
      %vm465 = vcmask 31744
      %v467 = vsel %vm465, %v449, 0
      %v470 = vsel %vm465, %v450, 0
      %v473 = vsel %vm465, %v451, 0
      %v476 = vsel %vm465, %v452, 0
      %v479 = vsel %vm465, %v453, 0
      %v482 = vsel %vm465, %v454, 0
      %v485 = vsel %vm465, %v455, 0
      %v488 = vsel %vm465, %v456, 0
      %v491 = vsel %vm465, %v457, 0
      %v494 = vsel %vm465, %v458, 0
      %v497 = vsel %vm465, %v459, 0
      %v500 = vsel %vm465, %v460, 0
      %v503 = vsel %vm465, %v461, 0
      %v506 = vsel %vm465, %v462, 0
      %v509 = vsel %vm465, %v463, 0
      %v512 = vsel %vm465, %v464, 0
      %vm514 = vcmask 1041408
      %v516 = vsel %vm514, %v384, 0
      %518 = vmatprep.subr.bf16.mxu0 0
      %519 = vmatpush1.bf16.msra.mxu0 %v516
      %520 = vmatprep.subr.bf16.mxu0 0
      %521 = vmatpush1.bf16.msra.mxu0 0
      %522 = vmatprep.subr.bf16.mxu0 0
      %523 = vmatpush1.bf16.msra.mxu0 0
      %524 = vmatprep.subr.bf16.mxu0 0
      %525 = vmatpush1.bf16.msra.mxu0 0
      %526 = vmatprep.subr.bf16.mxu0 0
      %527 = vmatpush1.bf16.msra.mxu0 0
      %528 = vmatprep.subr.bf16.mxu0 0
      %529 = vmatpush1.bf16.msra.mxu0 0
      %530 = vmatprep.subr.bf16.mxu0 0
      %531 = vmatpush1.bf16.msra.mxu0 0
      %532 = vmatprep.subr.bf16.mxu0 0
      %533 = vmatpush1.bf16.msra.mxu0 0
      %534 = vmatprep.subr.bf16.mxu0 0
      %535 = vmatpush1.bf16.msra.mxu0 0
      %536 = vmatprep.subr.bf16.mxu0 0
      %537 = vmatpush1.bf16.msra.mxu0 0
      %538 = vmatprep.subr.bf16.mxu0 0
      %539 = vmatpush1.bf16.msra.mxu0 0
      %540 = vmatprep.subr.bf16.mxu0 0
      %541 = vmatpush1.bf16.msra.mxu0 0
      %542 = vmatprep.subr.bf16.mxu0 0
      %543 = vmatpush1.bf16.msra.mxu0 0
      %544 = vmatprep.subr.bf16.mxu0 0
      %545 = vmatpush1.bf16.msra.mxu0 0
      %546 = vmatprep.subr.bf16.mxu0 0
      %547 = vmatpush1.bf16.msra.mxu0 0
      %548 = vmatprep.subr.bf16.mxu0 0
      %549 = vmatpush1.bf16.msra.mxu0 0
      %550 = vmatprep.mubr.bf16.mxu0 0
      %551 = vmatmul.mubr.bf16.gmra.mrb[0].mxu0 %v467
      %v552 = vpop.f32.mrb[0].mxu0
      %v553 = vadd.f32 0.0, %v552
      %v554 = vpop.f32.mrb[0].mxu0
      %v555 = vpop.f32.mrb[0].mxu0
      %v556 = vadd.f32 0.0, %v555
      %v557 = vpop.f32.mrb[0].mxu0
      %558 = vmatprep.mubr.bf16.mxu0 0
      %559 = vmatmul.mubr.bf16.gmra.mrb[0].mxu0 %v470
      %v560 = vpop.f32.mrb[0].mxu0
      %v561 = vadd.f32 0.0, %v560
      %v562 = vpop.f32.mrb[0].mxu0
      %v563 = vpop.f32.mrb[0].mxu0
      %v564 = vadd.f32 0.0, %v563
      %v565 = vpop.f32.mrb[0].mxu0
      %566 = vmatprep.mubr.bf16.mxu0 0
      %567 = vmatmul.mubr.bf16.gmra.mrb[0].mxu0 %v473
      %v568 = vpop.f32.mrb[0].mxu0
      %v569 = vadd.f32 0.0, %v568
      %v570 = vpop.f32.mrb[0].mxu0
      %v571 = vpop.f32.mrb[0].mxu0
      %v572 = vadd.f32 0.0, %v571
      %v573 = vpop.f32.mrb[0].mxu0
      %574 = vmatprep.mubr.bf16.mxu0 0
      %575 = vmatmul.mubr.bf16.gmra.mrb[0].mxu0 %v476
      %v576 = vpop.f32.mrb[0].mxu0
      %v577 = vadd.f32 0.0, %v576
      %v578 = vpop.f32.mrb[0].mxu0
      %v579 = vpop.f32.mrb[0].mxu0
      %v580 = vadd.f32 0.0, %v579
      %v581 = vpop.f32.mrb[0].mxu0
      %582 = vmatprep.mubr.bf16.mxu0 0
      %583 = vmatmul.mubr.bf16.gmra.mrb[0].mxu0 %v479
      %v584 = vpop.f32.mrb[0].mxu0
      %v585 = vadd.f32 0.0, %v584
      %v586 = vpop.f32.mrb[0].mxu0
      %v587 = vpop.f32.mrb[0].mxu0
      %v588 = vadd.f32 0.0, %v587
      %v589 = vpop.f32.mrb[0].mxu0
      %590 = vmatprep.mubr.bf16.mxu0 0
      %591 = vmatmul.mubr.bf16.gmra.mrb[0].mxu0 %v482
      %v592 = vpop.f32.mrb[0].mxu0
      %v593 = vadd.f32 0.0, %v592
      %v594 = vpop.f32.mrb[0].mxu0
      %v595 = vpop.f32.mrb[0].mxu0
      %v596 = vadd.f32 0.0, %v595
      %v597 = vpop.f32.mrb[0].mxu0
      %598 = vmatprep.mubr.bf16.mxu0 0
      %599 = vmatmul.mubr.bf16.gmra.mrb[0].mxu0 %v485
      %v600 = vpop.f32.mrb[0].mxu0
      %v601 = vadd.f32 0.0, %v600
      %v602 = vpop.f32.mrb[0].mxu0
      %v603 = vpop.f32.mrb[0].mxu0
      %v604 = vadd.f32 0.0, %v603
      %v605 = vpop.f32.mrb[0].mxu0
      %606 = vmatprep.mubr.bf16.mxu0 0
      %607 = vmatmul.mubr.bf16.gmra.mrb[0].mxu0 %v488
      %v608 = vpop.f32.mrb[0].mxu0
      %v609 = vadd.f32 0.0, %v608
      %v610 = vpop.f32.mrb[0].mxu0
      %v611 = vpop.f32.mrb[0].mxu0
      %v612 = vadd.f32 0.0, %v611
      %v613 = vpop.f32.mrb[0].mxu0
      %614 = vmatprep.mubr.bf16.mxu0 0
      %615 = vmatmul.mubr.bf16.gmra.mrb[0].mxu0 %v491
      %v616 = vpop.f32.mrb[0].mxu0
      %v617 = vadd.f32 0.0, %v616
      %v618 = vpop.f32.mrb[0].mxu0
      %v619 = vpop.f32.mrb[0].mxu0
      %v620 = vadd.f32 0.0, %v619
      %v621 = vpop.f32.mrb[0].mxu0
      %622 = vmatprep.mubr.bf16.mxu0 0
      %623 = vmatmul.mubr.bf16.gmra.mrb[0].mxu0 %v494
      %v624 = vpop.f32.mrb[0].mxu0
      %v625 = vadd.f32 0.0, %v624
      %v626 = vpop.f32.mrb[0].mxu0
      %v627 = vpop.f32.mrb[0].mxu0
      %v628 = vadd.f32 0.0, %v627
      %v629 = vpop.f32.mrb[0].mxu0
      %630 = vmatprep.mubr.bf16.mxu0 0
      %631 = vmatmul.mubr.bf16.gmra.mrb[0].mxu0 %v497
      %v632 = vpop.f32.mrb[0].mxu0
      %v633 = vadd.f32 0.0, %v632
      %v634 = vpop.f32.mrb[0].mxu0
      %v635 = vpop.f32.mrb[0].mxu0
      %v636 = vadd.f32 0.0, %v635
      %v637 = vpop.f32.mrb[0].mxu0
      %638 = vmatprep.mubr.bf16.mxu0 0
      %639 = vmatmul.mubr.bf16.gmra.mrb[0].mxu0 %v500
      %v640 = vpop.f32.mrb[0].mxu0
      %v641 = vadd.f32 0.0, %v640
      %v642 = vpop.f32.mrb[0].mxu0
      %v643 = vpop.f32.mrb[0].mxu0
      %v644 = vadd.f32 0.0, %v643
      %v645 = vpop.f32.mrb[0].mxu0
      %646 = vmatprep.mubr.bf16.mxu0 0
      %647 = vmatmul.mubr.bf16.gmra.mrb[0].mxu0 %v503
      %v648 = vpop.f32.mrb[0].mxu0
      %v649 = vadd.f32 0.0, %v648
      %v650 = vpop.f32.mrb[0].mxu0
      %v651 = vpop.f32.mrb[0].mxu0
      %v652 = vadd.f32 0.0, %v651
      %v653 = vpop.f32.mrb[0].mxu0
      %654 = vmatprep.mubr.bf16.mxu0 0
      %655 = vmatmul.mubr.bf16.gmra.mrb[0].mxu0 %v506
      %v656 = vpop.f32.mrb[0].mxu0
      %v657 = vadd.f32 0.0, %v656
      %v658 = vpop.f32.mrb[0].mxu0
      %v659 = vpop.f32.mrb[0].mxu0
      %v660 = vadd.f32 0.0, %v659
      %v661 = vpop.f32.mrb[0].mxu0
      %662 = vmatprep.mubr.bf16.mxu0 0
      %663 = vmatmul.mubr.bf16.gmra.mrb[0].mxu0 %v509
      %v664 = vpop.f32.mrb[0].mxu0
      %v665 = vadd.f32 0.0, %v664
      %v666 = vpop.f32.mrb[0].mxu0
      %v667 = vpop.f32.mrb[0].mxu0
      %v668 = vadd.f32 0.0, %v667
      %v669 = vpop.f32.mrb[0].mxu0
      %670 = vmatprep.mubr.bf16.mxu0 0
      %671 = vmatmul.mubr.bf16.gmra.mrb[0].mxu0 %v512
      %v672 = vpop.f32.mrb[0].mxu0
      %v673 = vadd.f32 0.0, %v672
      %v674 = vpop.f32.mrb[0].mxu0
      %v675 = vpop.f32.mrb[0].mxu0
      %v676 = vadd.f32 0.0, %v675
      %v677 = vpop.f32.mrb[0].mxu0
      %678 = vdwg.mxu0
      %v711 = vunpack.c.l.b16 %v319
      %v712 = vunpack.c.l.b16 %v320
      %v713 = vunpack.c.l.b16 %v321
      %v714 = vunpack.c.l.b16 %v322
      %v715 = vunpack.c.l.b16 %v323
      %v716 = vunpack.c.l.b16 %v324
      %v717 = vunpack.c.l.b16 %v325
      %v718 = vunpack.c.l.b16 %v326
      %v719 = vunpack.c.l.b16 %v327
      %v720 = vunpack.c.l.b16 %v328
      %v721 = vunpack.c.l.b16 %v329
      %v722 = vunpack.c.l.b16 %v330
      %v723 = vunpack.c.l.b16 %v331
      %v724 = vunpack.c.l.b16 %v332
      %v725 = vunpack.c.l.b16 %v333
      %v726 = vunpack.c.l.b16 %v334
      %v727 = vunpack.c.l.b16 %v335
      %v728 = vunpack.c.l.b16 %v336
      %v729 = vunpack.c.l.b16 %v337
      %v730 = vunpack.c.l.b16 %v338
      %v731 = vunpack.c.l.b16 %v339
      %v732 = vunpack.c.l.b16 %v340
      %v733 = vunpack.c.l.b16 %v341
      %v734 = vunpack.c.l.b16 %v342
      %v735 = vunpack.c.l.b16 %v343
      %v736 = vunpack.c.l.b16 %v344
      %v737 = vunpack.c.l.b16 %v345
      %v738 = vunpack.c.l.b16 %v346
      %v739 = vunpack.c.l.b16 %v347
      %v740 = vunpack.c.l.b16 %v348
      %v741 = vunpack.c.l.b16 %v349
      %v742 = vunpack.c.l.b16 %v350
      %v743 = vpack.c.b16 %v712, %v711
      %v744 = vpack.c.b16 %v714, %v713
      %v745 = vpack.c.b16 %v716, %v715
      %v746 = vpack.c.b16 %v718, %v717
      %v747 = vpack.c.b16 %v720, %v719
      %v748 = vpack.c.b16 %v722, %v721
      %v749 = vpack.c.b16 %v724, %v723
      %v750 = vpack.c.b16 %v726, %v725
      %v751 = vpack.c.b16 %v728, %v727
      %v752 = vpack.c.b16 %v730, %v729
      %v753 = vpack.c.b16 %v732, %v731
      %v754 = vpack.c.b16 %v734, %v733
      %v755 = vpack.c.b16 %v736, %v735
      %v756 = vpack.c.b16 %v738, %v737
      %v757 = vpack.c.b16 %v740, %v739
      %v758 = vpack.c.b16 %v742, %v741
      %v760 = vsel %vm465, %v743, 0
      %v763 = vsel %vm465, %v744, 0
      %v766 = vsel %vm465, %v745, 0
      %v769 = vsel %vm465, %v746, 0
      %v772 = vsel %vm465, %v747, 0
      %v775 = vsel %vm465, %v748, 0
      %v778 = vsel %vm465, %v749, 0
      %v781 = vsel %vm465, %v750, 0
      %v784 = vsel %vm465, %v751, 0
      %v787 = vsel %vm465, %v752, 0
      %v790 = vsel %vm465, %v753, 0
      %v793 = vsel %vm465, %v754, 0
      %v796 = vsel %vm465, %v755, 0
      %v799 = vsel %vm465, %v756, 0
      %v802 = vsel %vm465, %v757, 0
      %v805 = vsel %vm465, %v758, 0
      %v808 = vsel %vm514, %v351, 0
      %810 = vmatprep.subr.bf16.mxu0 0
      %811 = vmatpush1.bf16.msra.mxu0 %v808
      %812 = vmatprep.subr.bf16.mxu0 0
      %813 = vmatpush1.bf16.msra.mxu0 0
      %814 = vmatprep.subr.bf16.mxu0 0
      %815 = vmatpush1.bf16.msra.mxu0 0
      %816 = vmatprep.subr.bf16.mxu0 0
      %817 = vmatpush1.bf16.msra.mxu0 0
      %818 = vmatprep.subr.bf16.mxu0 0
      %819 = vmatpush1.bf16.msra.mxu0 0
      %820 = vmatprep.subr.bf16.mxu0 0
      %821 = vmatpush1.bf16.msra.mxu0 0
      %822 = vmatprep.subr.bf16.mxu0 0
      %823 = vmatpush1.bf16.msra.mxu0 0
      %824 = vmatprep.subr.bf16.mxu0 0
      %825 = vmatpush1.bf16.msra.mxu0 0
      %826 = vmatprep.subr.bf16.mxu0 0
      %827 = vmatpush1.bf16.msra.mxu0 0
      %828 = vmatprep.subr.bf16.mxu0 0
      %829 = vmatpush1.bf16.msra.mxu0 0
      %830 = vmatprep.subr.bf16.mxu0 0
      %831 = vmatpush1.bf16.msra.mxu0 0
      %832 = vmatprep.subr.bf16.mxu0 0
      %833 = vmatpush1.bf16.msra.mxu0 0
      %834 = vmatprep.subr.bf16.mxu0 0
      %835 = vmatpush1.bf16.msra.mxu0 0
      %836 = vmatprep.subr.bf16.mxu0 0
      %837 = vmatpush1.bf16.msra.mxu0 0
      %838 = vmatprep.subr.bf16.mxu0 0
      %839 = vmatpush1.bf16.msra.mxu0 0
      %840 = vmatprep.subr.bf16.mxu0 0
      %841 = vmatpush1.bf16.msra.mxu0 0
      %842 = vmatprep.mubr.bf16.mxu0 0
      %843 = vmatmul.mubr.bf16.gmra.mrb[0].mxu0 %v760
      %v844 = vpop.f32.mrb[0].mxu0
      %v845 = vadd.f32 %v553, %v844
      %v846 = vpop.f32.mrb[0].mxu0
      %v847 = vpop.f32.mrb[0].mxu0
      %v848 = vadd.f32 %v556, %v847
      %v849 = vpop.f32.mrb[0].mxu0
      %850 = vmatprep.mubr.bf16.mxu0 0
      %851 = vmatmul.mubr.bf16.gmra.mrb[0].mxu0 %v763
      %v852 = vpop.f32.mrb[0].mxu0
      %v853 = vadd.f32 %v561, %v852
      %v854 = vpop.f32.mrb[0].mxu0
      %v855 = vpop.f32.mrb[0].mxu0
      %v856 = vadd.f32 %v564, %v855
      %v857 = vpop.f32.mrb[0].mxu0
      %858 = vmatprep.mubr.bf16.mxu0 0
      %859 = vmatmul.mubr.bf16.gmra.mrb[0].mxu0 %v766
      %v860 = vpop.f32.mrb[0].mxu0
      %v861 = vadd.f32 %v569, %v860
      %v862 = vpop.f32.mrb[0].mxu0
      %v863 = vpop.f32.mrb[0].mxu0
      %v864 = vadd.f32 %v572, %v863
      %v865 = vpop.f32.mrb[0].mxu0
      %866 = vmatprep.mubr.bf16.mxu0 0
      %867 = vmatmul.mubr.bf16.gmra.mrb[0].mxu0 %v769
      %v868 = vpop.f32.mrb[0].mxu0
      %v869 = vadd.f32 %v577, %v868
      %v870 = vpop.f32.mrb[0].mxu0
      %v871 = vpop.f32.mrb[0].mxu0
      %v872 = vadd.f32 %v580, %v871
      %v873 = vpop.f32.mrb[0].mxu0
      %874 = vmatprep.mubr.bf16.mxu0 0
      %875 = vmatmul.mubr.bf16.gmra.mrb[0].mxu0 %v772
      %v876 = vpop.f32.mrb[0].mxu0
      %v877 = vadd.f32 %v585, %v876
      %v878 = vpop.f32.mrb[0].mxu0
      %v879 = vpop.f32.mrb[0].mxu0
      %v880 = vadd.f32 %v588, %v879
      %v881 = vpop.f32.mrb[0].mxu0
      %882 = vmatprep.mubr.bf16.mxu0 0
      %883 = vmatmul.mubr.bf16.gmra.mrb[0].mxu0 %v775
      %v884 = vpop.f32.mrb[0].mxu0
      %v885 = vadd.f32 %v593, %v884
      %v886 = vpop.f32.mrb[0].mxu0
      %v887 = vpop.f32.mrb[0].mxu0
      %v888 = vadd.f32 %v596, %v887
      %v889 = vpop.f32.mrb[0].mxu0
      %890 = vmatprep.mubr.bf16.mxu0 0
      %891 = vmatmul.mubr.bf16.gmra.mrb[0].mxu0 %v778
      %v892 = vpop.f32.mrb[0].mxu0
      %v893 = vadd.f32 %v601, %v892
      %v894 = vpop.f32.mrb[0].mxu0
      %v895 = vpop.f32.mrb[0].mxu0
      %v896 = vadd.f32 %v604, %v895
      %v897 = vpop.f32.mrb[0].mxu0
      %898 = vmatprep.mubr.bf16.mxu0 0
      %899 = vmatmul.mubr.bf16.gmra.mrb[0].mxu0 %v781
      %v900 = vpop.f32.mrb[0].mxu0
      %v901 = vadd.f32 %v609, %v900
      %v902 = vpop.f32.mrb[0].mxu0
      %v903 = vpop.f32.mrb[0].mxu0
      %v904 = vadd.f32 %v612, %v903
      %v905 = vpop.f32.mrb[0].mxu0
      %906 = vmatprep.mubr.bf16.mxu0 0
      %907 = vmatmul.mubr.bf16.gmra.mrb[0].mxu0 %v784
      %v908 = vpop.f32.mrb[0].mxu0
      %v909 = vadd.f32 %v617, %v908
      %v910 = vpop.f32.mrb[0].mxu0
      %v911 = vpop.f32.mrb[0].mxu0
      %v912 = vadd.f32 %v620, %v911
      %v913 = vpop.f32.mrb[0].mxu0
      %914 = vmatprep.mubr.bf16.mxu0 0
      %915 = vmatmul.mubr.bf16.gmra.mrb[0].mxu0 %v787
      %v916 = vpop.f32.mrb[0].mxu0
      %v917 = vadd.f32 %v625, %v916
      %v918 = vpop.f32.mrb[0].mxu0
      %v919 = vpop.f32.mrb[0].mxu0
      %v920 = vadd.f32 %v628, %v919
      %v921 = vpop.f32.mrb[0].mxu0
      %922 = vmatprep.mubr.bf16.mxu0 0
      %923 = vmatmul.mubr.bf16.gmra.mrb[0].mxu0 %v790
      %v924 = vpop.f32.mrb[0].mxu0
      %v925 = vadd.f32 %v633, %v924
      %v926 = vpop.f32.mrb[0].mxu0
      %v927 = vpop.f32.mrb[0].mxu0
      %v928 = vadd.f32 %v636, %v927
      %v929 = vpop.f32.mrb[0].mxu0
      %930 = vmatprep.mubr.bf16.mxu0 0
      %931 = vmatmul.mubr.bf16.gmra.mrb[0].mxu0 %v793
      %v932 = vpop.f32.mrb[0].mxu0
      %v933 = vadd.f32 %v641, %v932
      %v934 = vpop.f32.mrb[0].mxu0
      %v935 = vpop.f32.mrb[0].mxu0
      %v936 = vadd.f32 %v644, %v935
      %v937 = vpop.f32.mrb[0].mxu0
      %938 = vmatprep.mubr.bf16.mxu0 0
      %939 = vmatmul.mubr.bf16.gmra.mrb[0].mxu0 %v796
      %v940 = vpop.f32.mrb[0].mxu0
      %v941 = vadd.f32 %v649, %v940
      %v942 = vpop.f32.mrb[0].mxu0
      %v943 = vpop.f32.mrb[0].mxu0
      %v944 = vadd.f32 %v652, %v943
      %v945 = vpop.f32.mrb[0].mxu0
      %946 = vmatprep.mubr.bf16.mxu0 0
      %947 = vmatmul.mubr.bf16.gmra.mrb[0].mxu0 %v799
      %v948 = vpop.f32.mrb[0].mxu0
      %v949 = vadd.f32 %v657, %v948
      %v950 = vpop.f32.mrb[0].mxu0
      %v951 = vpop.f32.mrb[0].mxu0
      %v952 = vadd.f32 %v660, %v951
      %v953 = vpop.f32.mrb[0].mxu0
      %954 = vmatprep.mubr.bf16.mxu0 0
      %955 = vmatmul.mubr.bf16.gmra.mrb[0].mxu0 %v802
      %v956 = vpop.f32.mrb[0].mxu0
      %v957 = vadd.f32 %v665, %v956
      %v958 = vpop.f32.mrb[0].mxu0
      %v959 = vpop.f32.mrb[0].mxu0
      %v960 = vadd.f32 %v668, %v959
      %v961 = vpop.f32.mrb[0].mxu0
      %962 = vmatprep.mubr.bf16.mxu0 0
      %963 = vmatmul.mubr.bf16.gmra.mrb[0].mxu0 %v805
      %v964 = vpop.f32.mrb[0].mxu0
      %v965 = vadd.f32 %v673, %v964
      %v966 = vpop.f32.mrb[0].mxu0
      %v967 = vpop.f32.mrb[0].mxu0
      %v968 = vadd.f32 %v676, %v967
      %v969 = vpop.f32.mrb[0].mxu0
      %970 = vdwg.mxu0
      %v971 = vld [vmem:[%s308] sm:$0x1]
      %v973 = vlaneseq
      %v974 = vshrl.u32 %v973, 7
      %v975 = vsub.s32 0, %v974
      %v976 = vrot.slane %v971, %v975
      %v978 = vadd.f32 %v845, %v976
      %v979 = vadd.f32 %v848, %v976
      %v980 = vadd.f32 %v853, %v976
      %v981 = vadd.f32 %v856, %v976
      %v982 = vadd.f32 %v861, %v976
      %v983 = vadd.f32 %v864, %v976
      %v984 = vadd.f32 %v869, %v976
      %v985 = vadd.f32 %v872, %v976
      %v986 = vadd.f32 %v877, %v976
      %v987 = vadd.f32 %v880, %v976
      %v988 = vadd.f32 %v885, %v976
      %v989 = vadd.f32 %v888, %v976
      %v990 = vadd.f32 %v893, %v976
      %v991 = vadd.f32 %v896, %v976
      %v992 = vadd.f32 %v901, %v976
      %v993 = vadd.f32 %v904, %v976
      %v994 = vadd.f32 %v909, %v976
      %v995 = vadd.f32 %v912, %v976
      %v996 = vadd.f32 %v917, %v976
      %v997 = vadd.f32 %v920, %v976
      %v998 = vadd.f32 %v925, %v976
      %v999 = vadd.f32 %v928, %v976
      %v1000 = vadd.f32 %v933, %v976
      %v1001 = vadd.f32 %v936, %v976
      %v1002 = vadd.f32 %v941, %v976
      %v1003 = vadd.f32 %v944, %v976
      %v1004 = vadd.f32 %v949, %v976
      %v1005 = vadd.f32 %v952, %v976
      %v1006 = vadd.f32 %v957, %v976
      %v1007 = vadd.f32 %v960, %v976
      %v1008 = vadd.f32 %v965, %v976
      %v1009 = vadd.f32 %v968, %v976
      %v1010 = vmax.f32 %v978, 0.0
      %v1011 = vmax.f32 %v979, 0.0
      %v1012 = vmax.f32 %v980, 0.0
      %v1013 = vmax.f32 %v981, 0.0
      %v1014 = vmax.f32 %v982, 0.0
      %v1015 = vmax.f32 %v983, 0.0
      %v1016 = vmax.f32 %v984, 0.0
      %v1017 = vmax.f32 %v985, 0.0
      %v1018 = vmax.f32 %v986, 0.0
      %v1019 = vmax.f32 %v987, 0.0
      %v1020 = vmax.f32 %v988, 0.0
      %v1021 = vmax.f32 %v989, 0.0
      %v1022 = vmax.f32 %v990, 0.0
      %v1023 = vmax.f32 %v991, 0.0
      %v1024 = vmax.f32 %v992, 0.0
      %v1025 = vmax.f32 %v993, 0.0
      %v1026 = vmax.f32 %v994, 0.0
      %v1027 = vmax.f32 %v995, 0.0
      %v1028 = vmax.f32 %v996, 0.0
      %v1029 = vmax.f32 %v997, 0.0
      %v1030 = vmax.f32 %v998, 0.0
      %v1031 = vmax.f32 %v999, 0.0
      %v1032 = vmax.f32 %v1000, 0.0
      %v1033 = vmax.f32 %v1001, 0.0
      %v1034 = vmax.f32 %v1002, 0.0
      %v1035 = vmax.f32 %v1003, 0.0
      %v1036 = vmax.f32 %v1004, 0.0
      %v1037 = vmax.f32 %v1005, 0.0
      %v1038 = vmax.f32 %v1006, 0.0
      %v1039 = vmax.f32 %v1007, 0.0
      %v1040 = vmax.f32 %v1008, 0.0
      %v1041 = vmax.f32 %v1009, 0.0
      %vm1042 = vcmask 130048
      %1043 = vst.msk [vmem:[%s316] sm:$0xff] %vm1042, %v1010
      %1044 = vst.msk [vmem:[%s316 + $0x8] sm:$0xff] %vm1042, %v1011
      %1045 = vst.msk [vmem:[%s316 + $0x10] sm:$0xff] %vm1042, %v1012
      %1046 = vst.msk [vmem:[%s316 + $0x18] sm:$0xff] %vm1042, %v1013
      %1047 = vst.msk [vmem:[%s316 + $0x20] sm:$0xff] %vm1042, %v1014
      %1048 = vst.msk [vmem:[%s316 + $0x28] sm:$0xff] %vm1042, %v1015
      %1049 = vst.msk [vmem:[%s316 + $0x30] sm:$0xff] %vm1042, %v1016
      %1050 = vst.msk [vmem:[%s316 + $0x38] sm:$0xff] %vm1042, %v1017
      %1051 = vst.msk [vmem:[%s316 + $0x40] sm:$0xff] %vm1042, %v1018
      %1052 = vst.msk [vmem:[%s316 + $0x48] sm:$0xff] %vm1042, %v1019
      %1053 = vst.msk [vmem:[%s316 + $0x50] sm:$0xff] %vm1042, %v1020
      %1054 = vst.msk [vmem:[%s316 + $0x58] sm:$0xff] %vm1042, %v1021
      %1055 = vst.msk [vmem:[%s316 + $0x60] sm:$0xff] %vm1042, %v1022
      %1056 = vst.msk [vmem:[%s316 + $0x68] sm:$0xff] %vm1042, %v1023
      %1057 = vst.msk [vmem:[%s316 + $0x70] sm:$0xff] %vm1042, %v1024
      %1058 = vst.msk [vmem:[%s316 + $0x78] sm:$0xff] %vm1042, %v1025
      %1059 = vst.msk [vmem:[%s316 + $0x80] sm:$0xff] %vm1042, %v1026
      %1060 = vst.msk [vmem:[%s316 + $0x88] sm:$0xff] %vm1042, %v1027
      %1061 = vst.msk [vmem:[%s316 + $0x90] sm:$0xff] %vm1042, %v1028
      %1062 = vst.msk [vmem:[%s316 + $0x98] sm:$0xff] %vm1042, %v1029
      %1063 = vst.msk [vmem:[%s316 + $0xa0] sm:$0xff] %vm1042, %v1030
      %1064 = vst.msk [vmem:[%s316 + $0xa8] sm:$0xff] %vm1042, %v1031
      %1065 = vst.msk [vmem:[%s316 + $0xb0] sm:$0xff] %vm1042, %v1032
      %1066 = vst.msk [vmem:[%s316 + $0xb8] sm:$0xff] %vm1042, %v1033
      %1067 = vst.msk [vmem:[%s316 + $0xc0] sm:$0xff] %vm1042, %v1034
      %1068 = vst.msk [vmem:[%s316 + $0xc8] sm:$0xff] %vm1042, %v1035
      %1069 = vst.msk [vmem:[%s316 + $0xd0] sm:$0xff] %vm1042, %v1036
      %1070 = vst.msk [vmem:[%s316 + $0xd8] sm:$0xff] %vm1042, %v1037
      %1071 = vst.msk [vmem:[%s316 + $0xe0] sm:$0xff] %vm1042, %v1038
      %1072 = vst.msk [vmem:[%s316 + $0xe8] sm:$0xff] %vm1042, %v1039
      %1073 = vst.msk [vmem:[%s316 + $0xf0] sm:$0xff] %vm1042, %v1040
      %1074 = vst.msk [vmem:[%s316 + $0xf8] sm:$0xff] %vm1042, %v1041
      %s1075 = smul.u32 32, %s20
      %p1076 = scmp.lt.s32.totalorder %s1075, 63
      %s1077 = scalar_select %p1076, %s1075, 63
      %p1078 = scmp.lt.s32.totalorder %s21, 0
      %s1079 = scalar_select %p1078, %s21, 0
      %s1080 = sadd.s32 %s1079, %s1077
      %s1081 = smul.addr %s1080, 8
      %s1082 = scalar_lea.vmem %s5, %s1081
      // Predicated region
      $region41: #{demucs_forward.15} parent=39 // pred_check
        %p1083 = pneg %p178
      $region42: #{demucs_forward.15} parent=39 // pred_check_branch
        %1085 = sbr.rel (%p1083) target = $region44
      $region43: #{demucs_forward.15} parent=39 // pred_region
        %s1086 = smul.u32 32, %s20
      $region44: #{demucs_forward.15} parent=39 // pred_fallthru
        _
    $region40: #{demucs_forward.15} parent=5 // pred_fallthru
      _
    %p1087 = scmp.le.s32.totalorder 2, %s11
    // Predicated region
    $region45: #{demucs_forward.15} parent=5 // pred_check
      %p1088 = pneg %p1087
    $region46: #{demucs_forward.15} parent=5 // pred_check_branch
      %1090 = sbr.rel (%p1088) target = $region48
    $region47: #{demucs_forward.15} parent=5 // pred_region
      %s1091 = ssub.s32 %s11, 2
      // Predicated region
      $region49: #{demucs_forward.15} parent=47 // pred_check
        %p1092 = pneg %p184
      $region50: #{demucs_forward.15} parent=47 // pred_check_branch
        %1094 = sbr.rel (%p1092) target = $region52
      $region51: #{demucs_forward.15} parent=47 // pred_region
        %s1095 = smul.u32 32, %s22
        %p1096 = scmp.lt.s32.totalorder %s1095, 63
        %s1097 = scalar_select %p1096, %s1095, 63
        %p1098 = scmp.lt.s32.totalorder %s23, 0
        %s1099 = scalar_select %p1098, %s23, 0
        %s1100 = sadd.s32 %s1099, %s1097
        %s1101 = smul.addr %s1100, 8
        %s1102 = scalar_lea.vmem %s5, %s1101
      $region52: #{demucs_forward.15} parent=47 // pred_fallthru
        _
    $region48: #{demucs_forward.15} parent=5 // pred_fallthru
      _
  $region6: #{demucs_forward.15} parent=0 // loop_footer
    %s15 = sadd.s32 1, %s11
  $region7: #{demucs_forward.15} parent=0 // loop_footer_branch
    %10 = sbr.rel target = $region3
  $region8: #{demucs_forward.15} parent=0 // loop_exit
    _

// kernel: demucs_forward.16
$region0: #{demucs_forward.16}
  #allocation0 [shape = 'u32[]', space=smem, size = 0x4, offset = 0x4, fixed_abs, tag = 'smem constant byte address 0x4 - core index']
  #allocation1 [shape = 'u32[144,128]{1,0:T(1,128)}', space=vmem, size = 0x12000, scoped, tag = 'internal scratch']
  %s0 = inlined_call_operand.vmem [shape: bf16[128,64], index: 0, kind: input, shape index: {}]
  %s1 = inlined_call_operand.vmem [shape: bf16[128,64], index: 1, kind: input, shape index: {}]
  %s2 = inlined_call_operand.vmem [shape: bf16[64,32], index: 2, kind: input, shape index: {}]
  %s3 = inlined_call_operand.vmem [shape: bf16[64,32], index: 3, kind: input, shape index: {}]
  %s4 = inlined_call_operand.vmem [shape: f32[1,32], index: 4, kind: input, shape index: {}]
  %s5 = inlined_call_operand.vmem [shape: f32[128,32], index: 5, kind: output, shape index: {}]
  %s6 = sld [smem:[#allocation0]]
  $region30: #{demucs_forward.16} parent=0
    _
  %s8 = ssub.s32 1, %s6
  %s9 = scalar_select 0, %s8, %s6
  // Predicated region
  $region2: #{demucs_forward.16} parent=0 // pred_check
    _
  $region3: #{demucs_forward.16} parent=0 // pred_check_branch
    %11 = sbr.rel (0) target = $region5
  $region4: #{demucs_forward.16} parent=0 // pred_region
    _
  $region5: #{demucs_forward.16} parent=0 // pred_fallthru
    _
  // Predicated region
  $region6: #{demucs_forward.16} parent=0 // pred_check
    _
  $region7: #{demucs_forward.16} parent=0 // pred_check_branch
    %13 = sbr.rel (0) target = $region9
  $region8: #{demucs_forward.16} parent=0 // pred_region
    _
  $region9: #{demucs_forward.16} parent=0 // pred_fallthru
    _
  // Predicated region
  $region10: #{demucs_forward.16} parent=0 // pred_check
    _
  $region11: #{demucs_forward.16} parent=0 // pred_check_branch
    %15 = sbr.rel (0) target = $region13
  $region12: #{demucs_forward.16} parent=0 // pred_region
    _
  $region13: #{demucs_forward.16} parent=0 // pred_fallthru
    _
  // Predicated region
  $region14: #{demucs_forward.16} parent=0 // pred_check
    _
  $region15: #{demucs_forward.16} parent=0 // pred_check_branch
    %17 = sbr.rel (0) target = $region17
  $region16: #{demucs_forward.16} parent=0 // pred_region
    _
  $region17: #{demucs_forward.16} parent=0 // pred_fallthru
    _
  // Predicated region
  $region18: #{demucs_forward.16} parent=0 // pred_check
    _
  $region19: #{demucs_forward.16} parent=0 // pred_check_branch
    %19 = sbr.rel (0) target = $region21
  $region20: #{demucs_forward.16} parent=0 // pred_region
    _
  $region21: #{demucs_forward.16} parent=0 // pred_fallthru
    _
  %v21 = vld [vmem:[%s0] sm:$0xf]
  %v22 = vld [vmem:[%s0 + $0x4] sm:$0xf]
  %v23 = vld [vmem:[%s0 + $0x8] sm:$0xf]
  %v24 = vld [vmem:[%s0 + $0xc] sm:$0xf]
  %v25 = vld [vmem:[%s0 + $0x10] sm:$0xf]
  %v26 = vld [vmem:[%s0 + $0x14] sm:$0xf]
  %v27 = vld [vmem:[%s0 + $0x18] sm:$0xf]
  %v28 = vld [vmem:[%s0 + $0x1c] sm:$0xf]
  %v29 = vld [vmem:[%s0 + $0x20] sm:$0xf]
  %v30 = vld [vmem:[%s0 + $0x24] sm:$0xf]
  %v31 = vld [vmem:[%s0 + $0x28] sm:$0xf]
  %v32 = vld [vmem:[%s0 + $0x2c] sm:$0xf]
  %v33 = vld [vmem:[%s0 + $0x30] sm:$0xf]
  %v34 = vld [vmem:[%s0 + $0x34] sm:$0xf]
  %v35 = vld [vmem:[%s0 + $0x38] sm:$0xf]
  %v36 = vld [vmem:[%s0 + $0x3c] sm:$0xf]
  %v37 = vld [vmem:[%s2] sm:$0xf]
  %v38 = vld [vmem:[%s2 + $0x4] sm:$0xf]
  %v39 = vld [vmem:[%s2 + $0x8] sm:$0xf]
  %v40 = vld [vmem:[%s2 + $0xc] sm:$0xf]
  %v41 = vld [vmem:[%s2 + $0x10] sm:$0xf]
  %v42 = vld [vmem:[%s2 + $0x14] sm:$0xf]
  %v43 = vld [vmem:[%s2 + $0x18] sm:$0xf]
  %v44 = vld [vmem:[%s2 + $0x1c] sm:$0xf]
  %v45 = vld [vmem:[%s1] sm:$0xf]
  %v46 = vld [vmem:[%s1 + $0x4] sm:$0xf]
  %v47 = vld [vmem:[%s1 + $0x8] sm:$0xf]
  %v48 = vld [vmem:[%s1 + $0xc] sm:$0xf]
  %v49 = vld [vmem:[%s1 + $0x10] sm:$0xf]
  %v50 = vld [vmem:[%s1 + $0x14] sm:$0xf]
  %v51 = vld [vmem:[%s1 + $0x18] sm:$0xf]
  %v52 = vld [vmem:[%s1 + $0x1c] sm:$0xf]
  %v53 = vld [vmem:[%s1 + $0x20] sm:$0xf]
  %v54 = vld [vmem:[%s1 + $0x24] sm:$0xf]
  %v55 = vld [vmem:[%s1 + $0x28] sm:$0xf]
  %v56 = vld [vmem:[%s1 + $0x2c] sm:$0xf]
  %v57 = vld [vmem:[%s1 + $0x30] sm:$0xf]
  %v58 = vld [vmem:[%s1 + $0x34] sm:$0xf]
  %v59 = vld [vmem:[%s1 + $0x38] sm:$0xf]
  %v60 = vld [vmem:[%s1 + $0x3c] sm:$0xf]
  %v61 = vld [vmem:[%s3] sm:$0xf]
  %v62 = vld [vmem:[%s3 + $0x4] sm:$0xf]
  %v63 = vld [vmem:[%s3 + $0x8] sm:$0xf]
  %v64 = vld [vmem:[%s3 + $0xc] sm:$0xf]
  %v65 = vld [vmem:[%s3 + $0x10] sm:$0xf]
  %v66 = vld [vmem:[%s3 + $0x14] sm:$0xf]
  %v67 = vld [vmem:[%s3 + $0x18] sm:$0xf]
  %v68 = vld [vmem:[%s3 + $0x1c] sm:$0xf]
  %v85 = vunpack.c.l.b16 %v45
  %v86 = vunpack.c.l.b16 %v46
  %v87 = vunpack.c.l.b16 %v47
  %v88 = vunpack.c.l.b16 %v48
  %v89 = vunpack.c.l.b16 %v49
  %v90 = vunpack.c.l.b16 %v50
  %v91 = vunpack.c.l.b16 %v51
  %v92 = vunpack.c.l.b16 %v52
  %v93 = vunpack.c.l.b16 %v53
  %v94 = vunpack.c.l.b16 %v54
  %v95 = vunpack.c.l.b16 %v55
  %v96 = vunpack.c.l.b16 %v56
  %v97 = vunpack.c.l.b16 %v57
  %v98 = vunpack.c.l.b16 %v58
  %v99 = vunpack.c.l.b16 %v59
  %v100 = vunpack.c.l.b16 %v60
  %v101 = vpack.c.b16 %v86, %v85
  %v102 = vpack.c.b16 %v88, %v87
  %v103 = vpack.c.b16 %v90, %v89
  %v104 = vpack.c.b16 %v92, %v91
  %v105 = vpack.c.b16 %v94, %v93
  %v106 = vpack.c.b16 %v96, %v95
  %v107 = vpack.c.b16 %v98, %v97
  %v108 = vpack.c.b16 %v100, %v99
  %v117 = vunpack.c.l.b16 %v61
  %v118 = vunpack.c.l.b16 %v62
  %v119 = vunpack.c.l.b16 %v63
  %v120 = vunpack.c.l.b16 %v64
  %v121 = vunpack.c.l.b16 %v65
  %v122 = vunpack.c.l.b16 %v66
  %v123 = vunpack.c.l.b16 %v67
  %v124 = vunpack.c.l.b16 %v68
  %v125 = vpack.c.b16 %v118, %v117
  %v126 = vpack.c.b16 %v120, %v119
  %v127 = vpack.c.b16 %v122, %v121
  %v128 = vpack.c.b16 %v124, %v123
  %vm133 = vcmask 523264
  %v135 = vsel %vm133, %v101, 0
  %v138 = vsel %vm133, %v102, 0
  %v141 = vsel %vm133, %v103, 0
  %v144 = vsel %vm133, %v104, 0
  %v147 = vsel %vm133, %v105, 0
  %v150 = vsel %vm133, %v106, 0
  %v153 = vsel %vm133, %v107, 0
  %v156 = vsel %vm133, %v108, 0
  %158 = vmatprep.subr.bf16.mxu0 0
  %159 = vmatpush1.bf16.msra.mxu0 %v125
  %160 = vmatprep.subr.bf16.mxu0 0
  %161 = vmatpush1.bf16.msra.mxu0 %v126
  %162 = vmatprep.subr.bf16.mxu0 0
  %163 = vmatpush1.bf16.msra.mxu0 %v127
  %164 = vmatprep.subr.bf16.mxu0 0
  %165 = vmatpush1.bf16.msra.mxu0 %v128
  %166 = vmatprep.subr.bf16.mxu0 0
  %167 = vmatpush1.bf16.msra.mxu0 0
  %168 = vmatprep.subr.bf16.mxu0 0
  %169 = vmatpush1.bf16.msra.mxu0 0
  %170 = vmatprep.subr.bf16.mxu0 0
  %171 = vmatpush1.bf16.msra.mxu0 0
  %172 = vmatprep.subr.bf16.mxu0 0
  %173 = vmatpush1.bf16.msra.mxu0 0
  %174 = vmatprep.subr.bf16.mxu0 0
  %175 = vmatpush1.bf16.msra.mxu0 0
  %176 = vmatprep.subr.bf16.mxu0 0
  %177 = vmatpush1.bf16.msra.mxu0 0
  %178 = vmatprep.subr.bf16.mxu0 0
  %179 = vmatpush1.bf16.msra.mxu0 0
  %180 = vmatprep.subr.bf16.mxu0 0
  %181 = vmatpush1.bf16.msra.mxu0 0
  %182 = vmatprep.subr.bf16.mxu0 0
  %183 = vmatpush1.bf16.msra.mxu0 0
  %184 = vmatprep.subr.bf16.mxu0 0
  %185 = vmatpush1.bf16.msra.mxu0 0
  %186 = vmatprep.subr.bf16.mxu0 0
  %187 = vmatpush1.bf16.msra.mxu0 0
  %188 = vmatprep.subr.bf16.mxu0 0
  %189 = vmatpush1.bf16.msra.mxu0 0
  %190 = vmatprep.mubr.bf16.mxu0 0
  %191 = vmatmul.mubr.bf16.gmra.mrb[0].mxu0 %v135
  %v192 = vpop.f32.mrb[0].mxu0
  %v193 = vadd.f32 0.0, %v192
  %v194 = vpop.f32.mrb[0].mxu0
  %v195 = vpop.f32.mrb[0].mxu0
  %v196 = vadd.f32 0.0, %v195
  %v197 = vpop.f32.mrb[0].mxu0
  %198 = vmatprep.mubr.bf16.mxu0 0
  %199 = vmatmul.mubr.bf16.gmra.mrb[0].mxu0 %v138
  %v200 = vpop.f32.mrb[0].mxu0
  %v201 = vadd.f32 0.0, %v200
  %v202 = vpop.f32.mrb[0].mxu0
  %v203 = vpop.f32.mrb[0].mxu0
  %v204 = vadd.f32 0.0, %v203
  %v205 = vpop.f32.mrb[0].mxu0
  %206 = vmatprep.mubr.bf16.mxu0 0
  %207 = vmatmul.mubr.bf16.gmra.mrb[0].mxu0 %v141
  %v208 = vpop.f32.mrb[0].mxu0
  %v209 = vadd.f32 0.0, %v208
  %v210 = vpop.f32.mrb[0].mxu0
  %v211 = vpop.f32.mrb[0].mxu0
  %v212 = vadd.f32 0.0, %v211
  %v213 = vpop.f32.mrb[0].mxu0
  %214 = vmatprep.mubr.bf16.mxu0 0
  %215 = vmatmul.mubr.bf16.gmra.mrb[0].mxu0 %v144
  %v216 = vpop.f32.mrb[0].mxu0
  %v217 = vadd.f32 0.0, %v216
  %v218 = vpop.f32.mrb[0].mxu0
  %v219 = vpop.f32.mrb[0].mxu0
  %v220 = vadd.f32 0.0, %v219
  %v221 = vpop.f32.mrb[0].mxu0
  %222 = vmatprep.mubr.bf16.mxu0 0
  %223 = vmatmul.mubr.bf16.gmra.mrb[0].mxu0 %v147
  %v224 = vpop.f32.mrb[0].mxu0
  %v225 = vadd.f32 0.0, %v224
  %v226 = vpop.f32.mrb[0].mxu0
  %v227 = vpop.f32.mrb[0].mxu0
  %v228 = vadd.f32 0.0, %v227
  %v229 = vpop.f32.mrb[0].mxu0
  %230 = vmatprep.mubr.bf16.mxu0 0
  %231 = vmatmul.mubr.bf16.gmra.mrb[0].mxu0 %v150
  %v232 = vpop.f32.mrb[0].mxu0
  %v233 = vadd.f32 0.0, %v232
  %v234 = vpop.f32.mrb[0].mxu0
  %v235 = vpop.f32.mrb[0].mxu0
  %v236 = vadd.f32 0.0, %v235
  %v237 = vpop.f32.mrb[0].mxu0
  %238 = vmatprep.mubr.bf16.mxu0 0
  %239 = vmatmul.mubr.bf16.gmra.mrb[0].mxu0 %v153
  %v240 = vpop.f32.mrb[0].mxu0
  %v241 = vadd.f32 0.0, %v240
  %v242 = vpop.f32.mrb[0].mxu0
  %v243 = vpop.f32.mrb[0].mxu0
  %v244 = vadd.f32 0.0, %v243
  %v245 = vpop.f32.mrb[0].mxu0
  %246 = vmatprep.mubr.bf16.mxu0 0
  %247 = vmatmul.mubr.bf16.gmra.mrb[0].mxu0 %v156
  %v248 = vpop.f32.mrb[0].mxu0
  %v249 = vadd.f32 0.0, %v248
  %v250 = vpop.f32.mrb[0].mxu0
  %v251 = vpop.f32.mrb[0].mxu0
  %v252 = vadd.f32 0.0, %v251
  %v253 = vpop.f32.mrb[0].mxu0
  %254 = vdwg.mxu0
  %v271 = vunpack.c.l.b16 %v21
  %v272 = vunpack.c.l.b16 %v22
  %v273 = vunpack.c.l.b16 %v23
  %v274 = vunpack.c.l.b16 %v24
  %v275 = vunpack.c.l.b16 %v25
  %v276 = vunpack.c.l.b16 %v26
  %v277 = vunpack.c.l.b16 %v27
  %v278 = vunpack.c.l.b16 %v28
  %v279 = vunpack.c.l.b16 %v29
  %v280 = vunpack.c.l.b16 %v30
  %v281 = vunpack.c.l.b16 %v31
  %v282 = vunpack.c.l.b16 %v32
  %v283 = vunpack.c.l.b16 %v33
  %v284 = vunpack.c.l.b16 %v34
  %v285 = vunpack.c.l.b16 %v35
  %v286 = vunpack.c.l.b16 %v36
  %v287 = vpack.c.b16 %v272, %v271
  %v288 = vpack.c.b16 %v274, %v273
  %v289 = vpack.c.b16 %v276, %v275
  %v290 = vpack.c.b16 %v278, %v277
  %v291 = vpack.c.b16 %v280, %v279
  %v292 = vpack.c.b16 %v282, %v281
  %v293 = vpack.c.b16 %v284, %v283
  %v294 = vpack.c.b16 %v286, %v285
  %v303 = vunpack.c.l.b16 %v37
  %v304 = vunpack.c.l.b16 %v38
  %v305 = vunpack.c.l.b16 %v39
  %v306 = vunpack.c.l.b16 %v40
  %v307 = vunpack.c.l.b16 %v41
  %v308 = vunpack.c.l.b16 %v42
  %v309 = vunpack.c.l.b16 %v43
  %v310 = vunpack.c.l.b16 %v44
  %v311 = vpack.c.b16 %v304, %v303
  %v312 = vpack.c.b16 %v306, %v305
  %v313 = vpack.c.b16 %v308, %v307
  %v314 = vpack.c.b16 %v310, %v309
  %v320 = vsel %vm133, %v287, 0
  %v323 = vsel %vm133, %v288, 0
  %v326 = vsel %vm133, %v289, 0
  %v329 = vsel %vm133, %v290, 0
  %v332 = vsel %vm133, %v291, 0
  %v335 = vsel %vm133, %v292, 0
  %v338 = vsel %vm133, %v293, 0
  %v341 = vsel %vm133, %v294, 0
  %343 = vmatprep.subr.bf16.mxu0 0
  %344 = vmatpush1.bf16.msra.mxu0 %v311
  %345 = vmatprep.subr.bf16.mxu0 0
  %346 = vmatpush1.bf16.msra.mxu0 %v312
  %347 = vmatprep.subr.bf16.mxu0 0
  %348 = vmatpush1.bf16.msra.mxu0 %v313
  %349 = vmatprep.subr.bf16.mxu0 0
  %350 = vmatpush1.bf16.msra.mxu0 %v314
  %351 = vmatprep.subr.bf16.mxu0 0
  %352 = vmatpush1.bf16.msra.mxu0 0
  %353 = vmatprep.subr.bf16.mxu0 0
  %354 = vmatpush1.bf16.msra.mxu0 0
  %355 = vmatprep.subr.bf16.mxu0 0
  %356 = vmatpush1.bf16.msra.mxu0 0
  %357 = vmatprep.subr.bf16.mxu0 0
  %358 = vmatpush1.bf16.msra.mxu0 0
  %359 = vmatprep.subr.bf16.mxu0 0
  %360 = vmatpush1.bf16.msra.mxu0 0
  %361 = vmatprep.subr.bf16.mxu0 0
  %362 = vmatpush1.bf16.msra.mxu0 0
  %363 = vmatprep.subr.bf16.mxu0 0
  %364 = vmatpush1.bf16.msra.mxu0 0
  %365 = vmatprep.subr.bf16.mxu0 0
  %366 = vmatpush1.bf16.msra.mxu0 0
  %367 = vmatprep.subr.bf16.mxu0 0
  %368 = vmatpush1.bf16.msra.mxu0 0
  %369 = vmatprep.subr.bf16.mxu0 0
  %370 = vmatpush1.bf16.msra.mxu0 0
  %371 = vmatprep.subr.bf16.mxu0 0
  %372 = vmatpush1.bf16.msra.mxu0 0
  %373 = vmatprep.subr.bf16.mxu0 0
  %374 = vmatpush1.bf16.msra.mxu0 0
  %375 = vmatprep.mubr.bf16.mxu0 0
  %376 = vmatmul.mubr.bf16.gmra.mrb[0].mxu0 %v320
  %v377 = vpop.f32.mrb[0].mxu0
  %v378 = vadd.f32 %v193, %v377
  %v379 = vpop.f32.mrb[0].mxu0
  %v380 = vpop.f32.mrb[0].mxu0
  %v381 = vadd.f32 %v196, %v380
  %v382 = vpop.f32.mrb[0].mxu0
  %383 = vmatprep.mubr.bf16.mxu0 0
  %384 = vmatmul.mubr.bf16.gmra.mrb[0].mxu0 %v323
  %v385 = vpop.f32.mrb[0].mxu0
  %v386 = vadd.f32 %v201, %v385
  %v387 = vpop.f32.mrb[0].mxu0
  %v388 = vpop.f32.mrb[0].mxu0
  %v389 = vadd.f32 %v204, %v388
  %v390 = vpop.f32.mrb[0].mxu0
  %391 = vmatprep.mubr.bf16.mxu0 0
  %392 = vmatmul.mubr.bf16.gmra.mrb[0].mxu0 %v326
  %v393 = vpop.f32.mrb[0].mxu0
  %v394 = vadd.f32 %v209, %v393
  %v395 = vpop.f32.mrb[0].mxu0
  %v396 = vpop.f32.mrb[0].mxu0
  %v397 = vadd.f32 %v212, %v396
  %v398 = vpop.f32.mrb[0].mxu0
  %399 = vmatprep.mubr.bf16.mxu0 0
  %400 = vmatmul.mubr.bf16.gmra.mrb[0].mxu0 %v329
  %v401 = vpop.f32.mrb[0].mxu0
  %v402 = vadd.f32 %v217, %v401
  %v403 = vpop.f32.mrb[0].mxu0
  %v404 = vpop.f32.mrb[0].mxu0
  %v405 = vadd.f32 %v220, %v404
  %v406 = vpop.f32.mrb[0].mxu0
  %407 = vmatprep.mubr.bf16.mxu0 0
  %408 = vmatmul.mubr.bf16.gmra.mrb[0].mxu0 %v332
  %v409 = vpop.f32.mrb[0].mxu0
  %v410 = vadd.f32 %v225, %v409
  %v411 = vpop.f32.mrb[0].mxu0
  %v412 = vpop.f32.mrb[0].mxu0
  %v413 = vadd.f32 %v228, %v412
  %v414 = vpop.f32.mrb[0].mxu0
  %415 = vmatprep.mubr.bf16.mxu0 0
  %416 = vmatmul.mubr.bf16.gmra.mrb[0].mxu0 %v335
  %v417 = vpop.f32.mrb[0].mxu0
  %v418 = vadd.f32 %v233, %v417
  %v419 = vpop.f32.mrb[0].mxu0
  %v420 = vpop.f32.mrb[0].mxu0
  %v421 = vadd.f32 %v236, %v420
  %v422 = vpop.f32.mrb[0].mxu0
  %423 = vmatprep.mubr.bf16.mxu0 0
  %424 = vmatmul.mubr.bf16.gmra.mrb[0].mxu0 %v338
  %v425 = vpop.f32.mrb[0].mxu0
  %v426 = vadd.f32 %v241, %v425
  %v427 = vpop.f32.mrb[0].mxu0
  %v428 = vpop.f32.mrb[0].mxu0
  %v429 = vadd.f32 %v244, %v428
  %v430 = vpop.f32.mrb[0].mxu0
  %431 = vmatprep.mubr.bf16.mxu0 0
  %432 = vmatmul.mubr.bf16.gmra.mrb[0].mxu0 %v341
  %v433 = vpop.f32.mrb[0].mxu0
  %v434 = vadd.f32 %v249, %v433
  %v435 = vpop.f32.mrb[0].mxu0
  %v436 = vpop.f32.mrb[0].mxu0
  %v437 = vadd.f32 %v252, %v436
  %v438 = vpop.f32.mrb[0].mxu0
  %439 = vdwg.mxu0
  %v440 = vld [vmem:[%s4] sm:$0x1]
  %v442 = vlaneseq
  %v443 = vshrl.u32 %v442, 7
  %v444 = vsub.s32 0, %v443
  %v445 = vrot.slane %v440, %v444
  %v447 = vadd.f32 %v378, %v445
  %v448 = vadd.f32 %v381, %v445
  %v449 = vadd.f32 %v386, %v445
  %v450 = vadd.f32 %v389, %v445
  %v451 = vadd.f32 %v394, %v445
  %v452 = vadd.f32 %v397, %v445
  %v453 = vadd.f32 %v402, %v445
  %v454 = vadd.f32 %v405, %v445
  %v455 = vadd.f32 %v410, %v445
  %v456 = vadd.f32 %v413, %v445
  %v457 = vadd.f32 %v418, %v445
  %v458 = vadd.f32 %v421, %v445
  %v459 = vadd.f32 %v426, %v445
  %v460 = vadd.f32 %v429, %v445
  %v461 = vadd.f32 %v434, %v445
  %v462 = vadd.f32 %v437, %v445
  %v463 = vmax.f32 %v447, 0.0
  %v464 = vmax.f32 %v448, 0.0
  %v465 = vmax.f32 %v449, 0.0
  %v466 = vmax.f32 %v450, 0.0
  %v467 = vmax.f32 %v451, 0.0
  %v468 = vmax.f32 %v452, 0.0
  %v469 = vmax.f32 %v453, 0.0
  %v470 = vmax.f32 %v454, 0.0
  %v471 = vmax.f32 %v455, 0.0
  %v472 = vmax.f32 %v456, 0.0
  %v473 = vmax.f32 %v457, 0.0
  %v474 = vmax.f32 %v458, 0.0
  %v475 = vmax.f32 %v459, 0.0
  %v476 = vmax.f32 %v460, 0.0
  %v477 = vmax.f32 %v461, 0.0
  %v478 = vmax.f32 %v462, 0.0
  %vm479 = vcmask 261120
  %480 = vst.msk [vmem:[%s5] sm:$0xff] %vm479, %v463
  %481 = vst.msk [vmem:[%s5 + $0x8] sm:$0xff] %vm479, %v464
  %482 = vst.msk [vmem:[%s5 + $0x10] sm:$0xff] %vm479, %v465
  %483 = vst.msk [vmem:[%s5 + $0x18] sm:$0xff] %vm479, %v466
  %484 = vst.msk [vmem:[%s5 + $0x20] sm:$0xff] %vm479, %v467
  %485 = vst.msk [vmem:[%s5 + $0x28] sm:$0xff] %vm479, %v468
  %486 = vst.msk [vmem:[%s5 + $0x30] sm:$0xff] %vm479, %v469
  %487 = vst.msk [vmem:[%s5 + $0x38] sm:$0xff] %vm479, %v470
  %488 = vst.msk [vmem:[%s5 + $0x40] sm:$0xff] %vm479, %v471
  %489 = vst.msk [vmem:[%s5 + $0x48] sm:$0xff] %vm479, %v472
  %490 = vst.msk [vmem:[%s5 + $0x50] sm:$0xff] %vm479, %v473
  %491 = vst.msk [vmem:[%s5 + $0x58] sm:$0xff] %vm479, %v474
  %492 = vst.msk [vmem:[%s5 + $0x60] sm:$0xff] %vm479, %v475
  %493 = vst.msk [vmem:[%s5 + $0x68] sm:$0xff] %vm479, %v476
  %494 = vst.msk [vmem:[%s5 + $0x70] sm:$0xff] %vm479, %v477
  %495 = vst.msk [vmem:[%s5 + $0x78] sm:$0xff] %vm479, %v478
  // Predicated region
  $region22: #{demucs_forward.16} parent=0 // pred_check
    _
  $region23: #{demucs_forward.16} parent=0 // pred_check_branch
    %497 = sbr.rel (0) target = $region25
  $region24: #{demucs_forward.16} parent=0 // pred_region
    _
  $region25: #{demucs_forward.16} parent=0 // pred_fallthru
    _
  // Predicated region
  $region26: #{demucs_forward.16} parent=0 // pred_check
    _
  $region27: #{demucs_forward.16} parent=0 // pred_check_branch
    %499 = sbr.rel (0) target = $region29
  $region28: #{demucs_forward.16} parent=0 // pred_region
    _
  $region29: #{demucs_forward.16} parent=0 // pred_fallthru
    _

// kernel: demucs_forward.17
$region0: #{demucs_forward.17}
  #allocation0 [shape = 'u32[]', space=smem, size = 0x4, offset = 0x4, fixed_abs, tag = 'smem constant byte address 0x4 - core index']
  #allocation1 [shape = 'u32[144,128]{1,0:T(1,128)}', space=vmem, size = 0x12000, scoped, tag = 'internal scratch']
  %s0 = inlined_call_operand.vmem [shape: bf16[32,128], index: 0, kind: input, shape index: {}]
  %s1 = inlined_call_operand.vmem [shape: bf16[32,128], index: 1, kind: input, shape index: {}]
  %s2 = inlined_call_operand.vmem [shape: bf16[128,64], index: 2, kind: input, shape index: {}]
  %s3 = inlined_call_operand.vmem [shape: bf16[128,64], index: 3, kind: input, shape index: {}]
  %s4 = inlined_call_operand.vmem [shape: f32[1,64], index: 4, kind: input, shape index: {}]
  %s5 = inlined_call_operand.vmem [shape: f32[32,64], index: 5, kind: output, shape index: {}]
  %s6 = sld [smem:[#allocation0]]
  $region30: #{demucs_forward.17} parent=0
    _
  %s8 = ssub.s32 1, %s6
  %s9 = scalar_select 0, %s8, %s6
  // Predicated region
  $region2: #{demucs_forward.17} parent=0 // pred_check
    _
  $region3: #{demucs_forward.17} parent=0 // pred_check_branch
    %11 = sbr.rel (0) target = $region5
  $region4: #{demucs_forward.17} parent=0 // pred_region
    _
  $region5: #{demucs_forward.17} parent=0 // pred_fallthru
    _
  // Predicated region
  $region6: #{demucs_forward.17} parent=0 // pred_check
    _
  $region7: #{demucs_forward.17} parent=0 // pred_check_branch
    %13 = sbr.rel (0) target = $region9
  $region8: #{demucs_forward.17} parent=0 // pred_region
    _
  $region9: #{demucs_forward.17} parent=0 // pred_fallthru
    _
  // Predicated region
  $region10: #{demucs_forward.17} parent=0 // pred_check
    _
  $region11: #{demucs_forward.17} parent=0 // pred_check_branch
    %15 = sbr.rel (0) target = $region13
  $region12: #{demucs_forward.17} parent=0 // pred_region
    _
  $region13: #{demucs_forward.17} parent=0 // pred_fallthru
    _
  // Predicated region
  $region14: #{demucs_forward.17} parent=0 // pred_check
    _
  $region15: #{demucs_forward.17} parent=0 // pred_check_branch
    %17 = sbr.rel (0) target = $region17
  $region16: #{demucs_forward.17} parent=0 // pred_region
    _
  $region17: #{demucs_forward.17} parent=0 // pred_fallthru
    _
  // Predicated region
  $region18: #{demucs_forward.17} parent=0 // pred_check
    _
  $region19: #{demucs_forward.17} parent=0 // pred_check_branch
    %19 = sbr.rel (0) target = $region21
  $region20: #{demucs_forward.17} parent=0 // pred_region
    _
  $region21: #{demucs_forward.17} parent=0 // pred_fallthru
    _
  %v21 = vld [vmem:[%s0] sm:$0xf]
  %v22 = vld [vmem:[%s0 + $0x4] sm:$0xf]
  %v23 = vld [vmem:[%s0 + $0x8] sm:$0xf]
  %v24 = vld [vmem:[%s0 + $0xc] sm:$0xf]
  %v25 = vld [vmem:[%s2] sm:$0xf]
  %v26 = vld [vmem:[%s2 + $0x4] sm:$0xf]
  %v27 = vld [vmem:[%s2 + $0x8] sm:$0xf]
  %v28 = vld [vmem:[%s2 + $0xc] sm:$0xf]
  %v29 = vld [vmem:[%s2 + $0x10] sm:$0xf]
  %v30 = vld [vmem:[%s2 + $0x14] sm:$0xf]
  %v31 = vld [vmem:[%s2 + $0x18] sm:$0xf]
  %v32 = vld [vmem:[%s2 + $0x1c] sm:$0xf]
  %v33 = vld [vmem:[%s2 + $0x20] sm:$0xf]
  %v34 = vld [vmem:[%s2 + $0x24] sm:$0xf]
  %v35 = vld [vmem:[%s2 + $0x28] sm:$0xf]
  %v36 = vld [vmem:[%s2 + $0x2c] sm:$0xf]
  %v37 = vld [vmem:[%s2 + $0x30] sm:$0xf]
  %v38 = vld [vmem:[%s2 + $0x34] sm:$0xf]
  %v39 = vld [vmem:[%s2 + $0x38] sm:$0xf]
  %v40 = vld [vmem:[%s2 + $0x3c] sm:$0xf]
  %v41 = vld [vmem:[%s1] sm:$0xf]
  %v42 = vld [vmem:[%s1 + $0x4] sm:$0xf]
  %v43 = vld [vmem:[%s1 + $0x8] sm:$0xf]
  %v44 = vld [vmem:[%s1 + $0xc] sm:$0xf]
  %v45 = vld [vmem:[%s3] sm:$0xf]
  %v46 = vld [vmem:[%s3 + $0x4] sm:$0xf]
  %v47 = vld [vmem:[%s3 + $0x8] sm:$0xf]
  %v48 = vld [vmem:[%s3 + $0xc] sm:$0xf]
  %v49 = vld [vmem:[%s3 + $0x10] sm:$0xf]
  %v50 = vld [vmem:[%s3 + $0x14] sm:$0xf]
  %v51 = vld [vmem:[%s3 + $0x18] sm:$0xf]
  %v52 = vld [vmem:[%s3 + $0x1c] sm:$0xf]
  %v53 = vld [vmem:[%s3 + $0x20] sm:$0xf]
  %v54 = vld [vmem:[%s3 + $0x24] sm:$0xf]
  %v55 = vld [vmem:[%s3 + $0x28] sm:$0xf]
  %v56 = vld [vmem:[%s3 + $0x2c] sm:$0xf]
  %v57 = vld [vmem:[%s3 + $0x30] sm:$0xf]
  %v58 = vld [vmem:[%s3 + $0x34] sm:$0xf]
  %v59 = vld [vmem:[%s3 + $0x38] sm:$0xf]
  %v60 = vld [vmem:[%s3 + $0x3c] sm:$0xf]
  %v65 = vunpack.c.l.b16 %v41
  %v66 = vunpack.c.l.b16 %v42
  %v67 = vunpack.c.l.b16 %v43
  %v68 = vunpack.c.l.b16 %v44
  %v69 = vpack.c.b16 %v66, %v65
  %v70 = vpack.c.b16 %v68, %v67
  %v89 = vunpack.c.l.b16 %v45
  %v90 = vunpack.c.l.b16 %v46
  %v91 = vunpack.c.l.b16 %v47
  %v92 = vunpack.c.l.b16 %v48
  %v93 = vunpack.c.l.b16 %v49
  %v94 = vunpack.c.l.b16 %v50
  %v95 = vunpack.c.l.b16 %v51
  %v96 = vunpack.c.l.b16 %v52
  %v97 = vunpack.c.l.b16 %v53
  %v98 = vunpack.c.l.b16 %v54
  %v99 = vunpack.c.l.b16 %v55
  %v100 = vunpack.c.l.b16 %v56
  %v101 = vunpack.c.l.b16 %v57
  %v102 = vunpack.c.l.b16 %v58
  %v103 = vunpack.c.l.b16 %v59
  %v104 = vunpack.c.l.b16 %v60
  %v105 = vpack.c.b16 %v90, %v89
  %v106 = vpack.c.b16 %v92, %v91
  %v107 = vpack.c.b16 %v94, %v93
  %v108 = vpack.c.b16 %v96, %v95
  %v109 = vpack.c.b16 %v98, %v97
  %v110 = vpack.c.b16 %v100, %v99
  %v111 = vpack.c.b16 %v102, %v101
  %v112 = vpack.c.b16 %v104, %v103
  %121 = vmatprep.subr.bf16.mxu0 0
  %122 = vmatpush1.bf16.msra.mxu0 %v105
  %123 = vmatprep.subr.bf16.mxu0 0
  %124 = vmatpush1.bf16.msra.mxu0 %v106
  %125 = vmatprep.subr.bf16.mxu0 0
  %126 = vmatpush1.bf16.msra.mxu0 %v107
  %127 = vmatprep.subr.bf16.mxu0 0
  %128 = vmatpush1.bf16.msra.mxu0 %v108
  %129 = vmatprep.subr.bf16.mxu0 0
  %130 = vmatpush1.bf16.msra.mxu0 %v109
  %131 = vmatprep.subr.bf16.mxu0 0
  %132 = vmatpush1.bf16.msra.mxu0 %v110
  %133 = vmatprep.subr.bf16.mxu0 0
  %134 = vmatpush1.bf16.msra.mxu0 %v111
  %135 = vmatprep.subr.bf16.mxu0 0
  %136 = vmatpush1.bf16.msra.mxu0 %v112
  %137 = vmatprep.subr.bf16.mxu0 0
  %138 = vmatpush1.bf16.msra.mxu0 0
  %139 = vmatprep.subr.bf16.mxu0 0
  %140 = vmatpush1.bf16.msra.mxu0 0
  %141 = vmatprep.subr.bf16.mxu0 0
  %142 = vmatpush1.bf16.msra.mxu0 0
  %143 = vmatprep.subr.bf16.mxu0 0
  %144 = vmatpush1.bf16.msra.mxu0 0
  %145 = vmatprep.subr.bf16.mxu0 0
  %146 = vmatpush1.bf16.msra.mxu0 0
  %147 = vmatprep.subr.bf16.mxu0 0
  %148 = vmatpush1.bf16.msra.mxu0 0
  %149 = vmatprep.subr.bf16.mxu0 0
  %150 = vmatpush1.bf16.msra.mxu0 0
  %151 = vmatprep.subr.bf16.mxu0 0
  %152 = vmatpush1.bf16.msra.mxu0 0
  %153 = vmatprep.mubr.bf16.mxu0 0
  %154 = vmatmul.mubr.bf16.gmra.mrb[0].mxu0 %v69
  %v155 = vpop.f32.mrb[0].mxu0
  %v156 = vadd.f32 0.0, %v155
  %v157 = vpop.f32.mrb[0].mxu0
  %v158 = vpop.f32.mrb[0].mxu0
  %v159 = vadd.f32 0.0, %v158
  %v160 = vpop.f32.mrb[0].mxu0
  %161 = vmatprep.mubr.bf16.mxu0 0
  %162 = vmatmul.mubr.bf16.gmra.mrb[0].mxu0 %v70
  %v163 = vpop.f32.mrb[0].mxu0
  %v164 = vadd.f32 0.0, %v163
  %v165 = vpop.f32.mrb[0].mxu0
  %v166 = vpop.f32.mrb[0].mxu0
  %v167 = vadd.f32 0.0, %v166
  %v168 = vpop.f32.mrb[0].mxu0
  %169 = vdwg.mxu0
  %v174 = vunpack.c.l.b16 %v21
  %v175 = vunpack.c.l.b16 %v22
  %v176 = vunpack.c.l.b16 %v23
  %v177 = vunpack.c.l.b16 %v24
  %v178 = vpack.c.b16 %v175, %v174
  %v179 = vpack.c.b16 %v177, %v176
  %v198 = vunpack.c.l.b16 %v25
  %v199 = vunpack.c.l.b16 %v26
  %v200 = vunpack.c.l.b16 %v27
  %v201 = vunpack.c.l.b16 %v28
  %v202 = vunpack.c.l.b16 %v29
  %v203 = vunpack.c.l.b16 %v30
  %v204 = vunpack.c.l.b16 %v31
  %v205 = vunpack.c.l.b16 %v32
  %v206 = vunpack.c.l.b16 %v33
  %v207 = vunpack.c.l.b16 %v34
  %v208 = vunpack.c.l.b16 %v35
  %v209 = vunpack.c.l.b16 %v36
  %v210 = vunpack.c.l.b16 %v37
  %v211 = vunpack.c.l.b16 %v38
  %v212 = vunpack.c.l.b16 %v39
  %v213 = vunpack.c.l.b16 %v40
  %v214 = vpack.c.b16 %v199, %v198
  %v215 = vpack.c.b16 %v201, %v200
  %v216 = vpack.c.b16 %v203, %v202
  %v217 = vpack.c.b16 %v205, %v204
  %v218 = vpack.c.b16 %v207, %v206
  %v219 = vpack.c.b16 %v209, %v208
  %v220 = vpack.c.b16 %v211, %v210
  %v221 = vpack.c.b16 %v213, %v212
  %230 = vmatprep.subr.bf16.mxu0 0
  %231 = vmatpush1.bf16.msra.mxu0 %v214
  %232 = vmatprep.subr.bf16.mxu0 0
  %233 = vmatpush1.bf16.msra.mxu0 %v215
  %234 = vmatprep.subr.bf16.mxu0 0
  %235 = vmatpush1.bf16.msra.mxu0 %v216
  %236 = vmatprep.subr.bf16.mxu0 0
  %237 = vmatpush1.bf16.msra.mxu0 %v217
  %238 = vmatprep.subr.bf16.mxu0 0
  %239 = vmatpush1.bf16.msra.mxu0 %v218
  %240 = vmatprep.subr.bf16.mxu0 0
  %241 = vmatpush1.bf16.msra.mxu0 %v219
  %242 = vmatprep.subr.bf16.mxu0 0
  %243 = vmatpush1.bf16.msra.mxu0 %v220
  %244 = vmatprep.subr.bf16.mxu0 0
  %245 = vmatpush1.bf16.msra.mxu0 %v221
  %246 = vmatprep.subr.bf16.mxu0 0
  %247 = vmatpush1.bf16.msra.mxu0 0
  %248 = vmatprep.subr.bf16.mxu0 0
  %249 = vmatpush1.bf16.msra.mxu0 0
  %250 = vmatprep.subr.bf16.mxu0 0
  %251 = vmatpush1.bf16.msra.mxu0 0
  %252 = vmatprep.subr.bf16.mxu0 0
  %253 = vmatpush1.bf16.msra.mxu0 0
  %254 = vmatprep.subr.bf16.mxu0 0
  %255 = vmatpush1.bf16.msra.mxu0 0
  %256 = vmatprep.subr.bf16.mxu0 0
  %257 = vmatpush1.bf16.msra.mxu0 0
  %258 = vmatprep.subr.bf16.mxu0 0
  %259 = vmatpush1.bf16.msra.mxu0 0
  %260 = vmatprep.subr.bf16.mxu0 0
  %261 = vmatpush1.bf16.msra.mxu0 0
  %262 = vmatprep.mubr.bf16.mxu0 0
  %263 = vmatmul.mubr.bf16.gmra.mrb[0].mxu0 %v178
  %v264 = vpop.f32.mrb[0].mxu0
  %v265 = vadd.f32 %v156, %v264
  %v266 = vpop.f32.mrb[0].mxu0
  %v267 = vpop.f32.mrb[0].mxu0
  %v268 = vadd.f32 %v159, %v267
  %v269 = vpop.f32.mrb[0].mxu0
  %270 = vmatprep.mubr.bf16.mxu0 0
  %271 = vmatmul.mubr.bf16.gmra.mrb[0].mxu0 %v179
  %v272 = vpop.f32.mrb[0].mxu0
  %v273 = vadd.f32 %v164, %v272
  %v274 = vpop.f32.mrb[0].mxu0
  %v275 = vpop.f32.mrb[0].mxu0
  %v276 = vadd.f32 %v167, %v275
  %v277 = vpop.f32.mrb[0].mxu0
  %278 = vdwg.mxu0
  %v279 = vld [vmem:[%s4] sm:$0x1]
  %v281 = vlaneseq
  %v282 = vshrl.u32 %v281, 7
  %v283 = vsub.s32 0, %v282
  %v284 = vrot.slane %v279, %v283
  %v286 = vadd.f32 %v265, %v284
  %v287 = vadd.f32 %v268, %v284
  %v288 = vadd.f32 %v273, %v284
  %v289 = vadd.f32 %v276, %v284
  %v290 = vmax.f32 %v286, 0.0
  %v291 = vmax.f32 %v287, 0.0
  %v292 = vmax.f32 %v288, 0.0
  %v293 = vmax.f32 %v289, 0.0
  %vm294 = vcmask 523264
  %295 = vst.msk [vmem:[%s5] sm:$0xff] %vm294, %v290
  %296 = vst.msk [vmem:[%s5 + $0x8] sm:$0xff] %vm294, %v291
  %297 = vst.msk [vmem:[%s5 + $0x10] sm:$0xff] %vm294, %v292
  %298 = vst.msk [vmem:[%s5 + $0x18] sm:$0xff] %vm294, %v293
  // Predicated region
  $region22: #{demucs_forward.17} parent=0 // pred_check
    _
  $region23: #{demucs_forward.17} parent=0 // pred_check_branch
    %300 = sbr.rel (0) target = $region25
  $region24: #{demucs_forward.17} parent=0 // pred_region
    _
  $region25: #{demucs_forward.17} parent=0 // pred_fallthru
    _
  // Predicated region
  $region26: #{demucs_forward.17} parent=0 // pred_check
    _
  $region27: #{demucs_forward.17} parent=0 // pred_check_branch
    %302 = sbr.rel (0) target = $region29
  $region28: #{demucs_forward.17} parent=0 // pred_region
    _
  $region29: #{demucs_forward.17} parent=0 // pred_fallthru
    _

// kernel: demucs_forward.20
$region0: #{demucs_forward.20}
  #allocation0 [shape = 'u32[]', space=smem, size = 0x4, offset = 0x4, fixed_abs, tag = 'smem constant byte address 0x4 - core index']
  #allocation1 [shape = 'u32[144,128]{1,0:T(1,128)}', space=vmem, size = 0x12000, scoped, tag = 'internal scratch']
  %s0 = inlined_call_operand.vmem [shape: bf16[8,128], index: 0, kind: input, shape index: {}]
  %s1 = inlined_call_operand.vmem [shape: bf16[128,512], index: 1, kind: input, shape index: {}]
  %s2 = inlined_call_operand.vmem [shape: f32[1,512], index: 2, kind: input, shape index: {}]
  %s3 = inlined_call_operand.vmem [shape: f32[8,512], index: 3, kind: output, shape index: {}]
  %s4 = sld [smem:[#allocation0]]
  $region83: #{demucs_forward.20} parent=0
    _
  %s6 = ssub.s32 1, %s4
  %s7 = scalar_select 0, %s6, %s4
  $region1: #{demucs_forward.20} parent=0
    #allocation2 [shape = 'u8[131072]{0}', space=vmem, size = 0x20000, scoped, tag = 'input window, operand 1']
    loop: start=0, step=1, limit=4
    $region2: #{demucs_forward.20} parent=1 // loop_pre_header
      _
    $region3: #{demucs_forward.20} parent=1 // loop_header
      %s9 = sphi 0, %s13
      %p10 = scmp.ge.s32.totalorder %s9, 4
      %s16 = sphi 0, %s28
      %s17 = sphi 0, %s24
      %s18 = sphi 0, %s16
      %s19 = sphi 0, %s17
      %s20 = sphi 0, %s18
      %s21 = sphi 0, %s19
      %s31 = sphi 0, %s33
      %s34 = sphi 0, %s31
      %s35 = sphi 0, %s34
      %s51 = sphi 0, %s35
      %s57 = sphi 0, %s59
      %s60 = sphi 0, %s57
      %s61 = sphi 0, %s60
      %s77 = sphi 0, %s61
      %s83 = sphi 0, %s85
      %s86 = sphi 0, %s83
      %s87 = sphi 0, %s86
      %s103 = sphi 0, %s87
      %s111 = sphi 0, %s113
      %s114 = sphi 0, %s111
      %s115 = sphi 0, %s114
      %s131 = sphi 0, %s115
    $region4: #{demucs_forward.20} parent=1 // loop_header_branch
      %12 = sbr.rel (%p10) target = $region8
    $region5: #{demucs_forward.20} parent=1 // loop_body
      %s14 = ssub.s32 %s9, 1
      %s15 = ssub.s32 %s9, 2
      %s22 = sadd.s32 1, %s17
      %p23 = scmp.ge.s32.totalorder %s22, 2
      %s24 = scalar_select %p23, 0, %s22
      %s25 = sadd.s32 1, %s16
      %s26 = scalar_select %p23, %s25, %s16
      %p27 = scmp.ge.s32.totalorder %s26, 1
      %s28 = scalar_select %p27, 0, %s26
      %s29 = ssub.s32 %s16, %s28
      %p30 = scmp.eq.s32.totalorder %s29, 0
      %s32 = sadd.s32 %s31, 1
      %s33 = scalar_select %p30, %s31, %s32
      %p36 = pneg %p30
      %p37 = scmp.eq.s32.totalorder %s9, 1
      %p38 = por %p36, %p37
      %p39 = scmp.ne.s32.totalorder %s31, %s34
      %p40 = scmp.eq.s32.totalorder %s9, 0
      %p41 = por %p39, %p40
      %p42 = scmp.ne.s32.totalorder %s31, %s34
      %p43 = scmp.eq.s32.totalorder %s14, 1
      %p44 = por %p42, %p43
      %p45 = scmp.ne.s32.totalorder %s34, %s35
      %p46 = scmp.eq.s32.totalorder %s14, 0
      %p47 = por %p45, %p46
      %p48 = scmp.ne.s32.totalorder %s34, %s35
      %p49 = scmp.eq.s32.totalorder %s15, 1
      %p50 = por %p48, %p49
      %p52 = scmp.ne.s32.totalorder %s35, %s51
      %p53 = scmp.eq.s32.totalorder %s15, 0
      %p54 = por %p52, %p53
      %s55 = ssub.s32 %s17, %s24
      %p56 = scmp.eq.s32.totalorder %s55, 0
      %s58 = sadd.s32 %s57, 1
      %s59 = scalar_select %p56, %s57, %s58
      %p62 = pneg %p56
      %p63 = scmp.eq.s32.totalorder %s9, 1
      %p64 = por %p62, %p63
      %p65 = scmp.ne.s32.totalorder %s57, %s60
      %p66 = scmp.eq.s32.totalorder %s9, 0
      %p67 = por %p65, %p66
      %p68 = scmp.ne.s32.totalorder %s57, %s60
      %p69 = scmp.eq.s32.totalorder %s14, 1
      %p70 = por %p68, %p69
      %p71 = scmp.ne.s32.totalorder %s60, %s61
      %p72 = scmp.eq.s32.totalorder %s14, 0
      %p73 = por %p71, %p72
      %p74 = scmp.ne.s32.totalorder %s60, %s61
      %p75 = scmp.eq.s32.totalorder %s15, 1
      %p76 = por %p74, %p75
      %p78 = scmp.ne.s32.totalorder %s61, %s77
      %p79 = scmp.eq.s32.totalorder %s15, 0
      %p80 = por %p78, %p79
      %s81 = ssub.s32 %s17, %s24
      %p82 = scmp.eq.s32.totalorder %s81, 0
      %s84 = sadd.s32 %s83, 1
      %s85 = scalar_select %p82, %s83, %s84
      %p88 = pneg %p82
      %p89 = scmp.eq.s32.totalorder %s9, 1
      %p90 = por %p88, %p89
      %p91 = scmp.ne.s32.totalorder %s83, %s86
      %p92 = scmp.eq.s32.totalorder %s9, 0
      %p93 = por %p91, %p92
      %p94 = scmp.ne.s32.totalorder %s83, %s86
      %p95 = scmp.eq.s32.totalorder %s14, 1
      %p96 = por %p94, %p95
      %p97 = scmp.ne.s32.totalorder %s86, %s87
      %p98 = scmp.eq.s32.totalorder %s14, 0
      %p99 = por %p97, %p98
      %p100 = scmp.ne.s32.totalorder %s86, %s87
      %p101 = scmp.eq.s32.totalorder %s15, 1
      %p102 = por %p100, %p101
      %p104 = scmp.ne.s32.totalorder %s87, %s103
      %p105 = scmp.eq.s32.totalorder %s15, 0
      %p106 = por %p104, %p105
      %s107 = ssub.s32 %s16, %s28
      %s108 = ssub.s32 %s17, %s24
      %s109 = sor.u32 %s107, %s108
      %p110 = scmp.eq.s32.totalorder %s109, 0
      %s112 = sadd.s32 %s111, 1
      %s113 = scalar_select %p110, %s111, %s112
      %p116 = pneg %p110
      %p117 = scmp.eq.s32.totalorder %s9, 1
      %p118 = por %p116, %p117
      %p119 = scmp.ne.s32.totalorder %s111, %s114
      %p120 = scmp.eq.s32.totalorder %s9, 0
      %p121 = por %p119, %p120
      %p122 = scmp.ne.s32.totalorder %s111, %s114
      %p123 = scmp.eq.s32.totalorder %s14, 1
      %p124 = por %p122, %p123
      %p125 = scmp.ne.s32.totalorder %s114, %s115
      %p126 = scmp.eq.s32.totalorder %s14, 0
      %p127 = por %p125, %p126
      %p128 = scmp.ne.s32.totalorder %s114, %s115
      %p129 = scmp.eq.s32.totalorder %s15, 1
      %p130 = por %p128, %p129
      %p132 = scmp.ne.s32.totalorder %s115, %s131
      %p133 = scmp.eq.s32.totalorder %s15, 0
      %p134 = por %p132, %p133
      %p135 = scmp.le.s32.totalorder 1, %s9
      %p136 = scmp.lt.s32.totalorder %s9, 3
      %p137 = pnand %p135, %p136
      %p138 = pneg %p137
      // Predicated region
      $region9: #{demucs_forward.20} parent=5 // pred_check
        _
      $region10: #{demucs_forward.20} parent=5 // pred_check_branch
        %140 = sbr.rel (%p137) target = $region12
      $region11: #{demucs_forward.20} parent=5 // pred_region
        %s141 = ssub.s32 %s9, 1
        // Predicated region
        $region13: #{demucs_forward.20} parent=11 // pred_check
          %p142 = pneg %p47
        $region14: #{demucs_forward.20} parent=11 // pred_check_branch
          %144 = sbr.rel (%p142) target = $region16
        $region15: #{demucs_forward.20} parent=11 // pred_region
          %p145 = scmp.lt.s32.totalorder %s18, 0
          %s146 = scalar_select %p145, %s18, 0
          %s147 = smul.addr %s146, 4
          %s148 = scalar_lea.vmem %s0, %s147
        $region16: #{demucs_forward.20} parent=11 // pred_fallthru
          _
      $region12: #{demucs_forward.20} parent=5 // pred_fallthru
        _
      %p149 = scmp.lt.s32.totalorder %s9, 2
      // Predicated region
      $region17: #{demucs_forward.20} parent=5 // pred_check
        %p150 = pneg %p149
      $region18: #{demucs_forward.20} parent=5 // pred_check_branch
        %152 = sbr.rel (%p150) target = $region20
      $region19: #{demucs_forward.20} parent=5 // pred_region
        // Predicated region
        $region21: #{demucs_forward.20} parent=19 // pred_check
          %p153 = pneg %p67
        $region22: #{demucs_forward.20} parent=19 // pred_check_branch
          %155 = sbr.rel (%p153) target = $region24
        $region23: #{demucs_forward.20} parent=19 // pred_region
          %s156 = sand.u32 %s57, 1
          %s157 = sand.u32 %s57, 1
          %s158 = smul.addr %s157, 128
          %s159 = scalar_lea.vmem [#allocation2], %s158
          %s160 = smul.u32 2, %s17
          %s161 = smul.addr %s160, 4
          %s162 = scalar_lea.vmem %s1, %s161
          // Predicated region
          $region25: #{demucs_forward.20} parent=23 // pred_check
            _
          $region26: #{demucs_forward.20} parent=23 // pred_check_branch
            %164 = sbr.rel (0) target = $region28
          $region27: #{demucs_forward.20} parent=23 // pred_region
            // Predicated region
            $region29: #{demucs_forward.20} parent=27 // pred_check
              _
            $region30: #{demucs_forward.20} parent=27 // pred_check_branch
              %166 = sbr.rel (0) target = $region32
            $region31: #{demucs_forward.20} parent=27 // pred_region
              // Predicated region
              $region44: #{demucs_forward.20} parent=31 // pred_check
                _
              $region45: #{demucs_forward.20} parent=31 // pred_check_branch
                %211 = sbr.rel (0) target = $region47
              $region46: #{demucs_forward.20} parent=31 // pred_region
                loop: start=0, step=1, limit=1
                $region48: #{demucs_forward.20} parent=46 // loop_pre_header
                  _
                $region49: #{demucs_forward.20} parent=46 // loop_header
                  %s213 = sphi 0, %s217
                  %p214 = scmp.ge.s32.totalorder %s213, 1
                  %s218 = sphi %s162, %s162
                  %s219 = sphi %s159, %s159
                $region50: #{demucs_forward.20} parent=46 // loop_header_branch
                  %216 = sbr.rel (%p214) target = $region54
                $region51: #{demucs_forward.20} parent=46 // loop_body
                  %v220 = vld [vmem:[%s218] sm:$0xff]
                  %221 = vst [vmem:[%s219] sm:$0xff] %v220
                  %v222 = vld [vmem:[%s218 + $0x10] sm:$0xff]
                  %223 = vst [vmem:[%s219 + $0x8] sm:$0xff] %v222
                  %v224 = vld [vmem:[%s218 + $0x20] sm:$0xff]
                  %225 = vst [vmem:[%s219 + $0x10] sm:$0xff] %v224
                  %v226 = vld [vmem:[%s218 + $0x30] sm:$0xff]
                  %227 = vst [vmem:[%s219 + $0x18] sm:$0xff] %v226
                  %v228 = vld [vmem:[%s218 + $0x40] sm:$0xff]
                  %229 = vst [vmem:[%s219 + $0x20] sm:$0xff] %v228
                  %v230 = vld [vmem:[%s218 + $0x50] sm:$0xff]
                  %231 = vst [vmem:[%s219 + $0x28] sm:$0xff] %v230
                  %v232 = vld [vmem:[%s218 + $0x60] sm:$0xff]
                  %233 = vst [vmem:[%s219 + $0x30] sm:$0xff] %v232
                  %v234 = vld [vmem:[%s218 + $0x70] sm:$0xff]
                  %235 = vst [vmem:[%s219 + $0x38] sm:$0xff] %v234
                  %v236 = vld [vmem:[%s218 + $0x80] sm:$0xff]
                  %237 = vst [vmem:[%s219 + $0x40] sm:$0xff] %v236
                  %v238 = vld [vmem:[%s218 + $0x90] sm:$0xff]
                  %239 = vst [vmem:[%s219 + $0x48] sm:$0xff] %v238
                  %v240 = vld [vmem:[%s218 + $0xa0] sm:$0xff]
                  %241 = vst [vmem:[%s219 + $0x50] sm:$0xff] %v240
                  %v242 = vld [vmem:[%s218 + $0xb0] sm:$0xff]
                  %243 = vst [vmem:[%s219 + $0x58] sm:$0xff] %v242
                  %v244 = vld [vmem:[%s218 + $0xc0] sm:$0xff]
                  %245 = vst [vmem:[%s219 + $0x60] sm:$0xff] %v244
                  %v246 = vld [vmem:[%s218 + $0xd0] sm:$0xff]
                  %247 = vst [vmem:[%s219 + $0x68] sm:$0xff] %v246
                  %v248 = vld [vmem:[%s218 + $0xe0] sm:$0xff]
                  %249 = vst [vmem:[%s219 + $0x70] sm:$0xff] %v248
                  %v250 = vld [vmem:[%s218 + $0xf0] sm:$0xff]
                  %251 = vst [vmem:[%s219 + $0x78] sm:$0xff] %v250
                $region52: #{demucs_forward.20} parent=46 // loop_footer
                  %s217 = sadd.s32 1, %s213
                $region53: #{demucs_forward.20} parent=46 // loop_footer_branch
                  %212 = sbr.rel target = $region49
                $region54: #{demucs_forward.20} parent=46 // loop_exit
                  _
              $region47: #{demucs_forward.20} parent=31 // pred_fallthru
                _
              // Predicated region
              $region55: #{demucs_forward.20} parent=31 // pred_check
                _
              $region56: #{demucs_forward.20} parent=31 // pred_check_branch
                %253 = sbr.rel target = $region58
              $region57: #{demucs_forward.20} parent=31 // pred_region
                _
              $region58: #{demucs_forward.20} parent=31 // pred_fallthru
                _
            $region32: #{demucs_forward.20} parent=27 // pred_fallthru
              _
            // Predicated region
            $region33: #{demucs_forward.20} parent=27 // pred_check
              _
            $region34: #{demucs_forward.20} parent=27 // pred_check_branch
              %168 = sbr.rel target = $region36
            $region35: #{demucs_forward.20} parent=27 // pred_region
              loop: start=0, step=1, limit=1
              $region37: #{demucs_forward.20} parent=35 // loop_pre_header
                _
              $region38: #{demucs_forward.20} parent=35 // loop_header
                %s171 = sphi 0, %s175
                %p172 = scmp.ge.s32.totalorder %s171, 1
                %s176 = sphi %s162, %s162
                %s177 = sphi %s159, %s159
              $region39: #{demucs_forward.20} parent=35 // loop_header_branch
                %174 = sbr.rel (%p172) target = $region43
              $region40: #{demucs_forward.20} parent=35 // loop_body
                %v178 = vld [vmem:[%s176] sm:$0xff]
                %179 = vst [vmem:[%s177] sm:$0xff] %v178
                %v180 = vld [vmem:[%s176 + $0x10] sm:$0xff]
                %181 = vst [vmem:[%s177 + $0x8] sm:$0xff] %v180
                %v182 = vld [vmem:[%s176 + $0x20] sm:$0xff]
                %183 = vst [vmem:[%s177 + $0x10] sm:$0xff] %v182
                %v184 = vld [vmem:[%s176 + $0x30] sm:$0xff]
                %185 = vst [vmem:[%s177 + $0x18] sm:$0xff] %v184
                %v186 = vld [vmem:[%s176 + $0x40] sm:$0xff]
                %187 = vst [vmem:[%s177 + $0x20] sm:$0xff] %v186
                %v188 = vld [vmem:[%s176 + $0x50] sm:$0xff]
                %189 = vst [vmem:[%s177 + $0x28] sm:$0xff] %v188
                %v190 = vld [vmem:[%s176 + $0x60] sm:$0xff]
                %191 = vst [vmem:[%s177 + $0x30] sm:$0xff] %v190
                %v192 = vld [vmem:[%s176 + $0x70] sm:$0xff]
                %193 = vst [vmem:[%s177 + $0x38] sm:$0xff] %v192
                %v194 = vld [vmem:[%s176 + $0x80] sm:$0xff]
                %195 = vst [vmem:[%s177 + $0x40] sm:$0xff] %v194
                %v196 = vld [vmem:[%s176 + $0x90] sm:$0xff]
                %197 = vst [vmem:[%s177 + $0x48] sm:$0xff] %v196
                %v198 = vld [vmem:[%s176 + $0xa0] sm:$0xff]
                %199 = vst [vmem:[%s177 + $0x50] sm:$0xff] %v198
                %v200 = vld [vmem:[%s176 + $0xb0] sm:$0xff]
                %201 = vst [vmem:[%s177 + $0x58] sm:$0xff] %v200
                %v202 = vld [vmem:[%s176 + $0xc0] sm:$0xff]
                %203 = vst [vmem:[%s177 + $0x60] sm:$0xff] %v202
                %v204 = vld [vmem:[%s176 + $0xd0] sm:$0xff]
                %205 = vst [vmem:[%s177 + $0x68] sm:$0xff] %v204
                %v206 = vld [vmem:[%s176 + $0xe0] sm:$0xff]
                %207 = vst [vmem:[%s177 + $0x70] sm:$0xff] %v206
                %v208 = vld [vmem:[%s176 + $0xf0] sm:$0xff]
                %209 = vst [vmem:[%s177 + $0x78] sm:$0xff] %v208
              $region41: #{demucs_forward.20} parent=35 // loop_footer
                %s175 = sadd.s32 1, %s171
              $region42: #{demucs_forward.20} parent=35 // loop_footer_branch
                %170 = sbr.rel target = $region38
              $region43: #{demucs_forward.20} parent=35 // loop_exit
                _
            $region36: #{demucs_forward.20} parent=27 // pred_fallthru
              _
          $region28: #{demucs_forward.20} parent=23 // pred_fallthru
            _
          %254 = vnop
        $region24: #{demucs_forward.20} parent=19 // pred_fallthru
          _
        // Predicated region
        $region59: #{demucs_forward.20} parent=19 // pred_check
          %p255 = pneg %p93
        $region60: #{demucs_forward.20} parent=19 // pred_check_branch
          %257 = sbr.rel (%p255) target = $region62
        $region61: #{demucs_forward.20} parent=19 // pred_region
          %s258 = smul.u32 2, %s17
          %p259 = scmp.lt.s32.totalorder %s258, 3
          %s260 = scalar_select %p259, %s258, 3
          %s261 = scalar_lea.vmem %s2, %s260
          %s262 = smul.u32 2, %s17
        $region62: #{demucs_forward.20} parent=19 // pred_fallthru
          _
      $region20: #{demucs_forward.20} parent=5 // pred_fallthru
        _
      %p263 = scmp.le.s32.totalorder 1, %s9
      %p264 = scmp.lt.s32.totalorder %s9, 3
      %p265 = pnand %p263, %p264
      %p266 = pneg %p265
      // Predicated region
      $region63: #{demucs_forward.20} parent=5 // pred_check
        _
      $region64: #{demucs_forward.20} parent=5 // pred_check_branch
        %268 = sbr.rel (%p265) target = $region66
      $region65: #{demucs_forward.20} parent=5 // pred_region
        %s269 = ssub.s32 %s9, 1
        %s270 = sand.u32 %s60, 1
        %s271 = sand.u32 %s60, 1
        %s272 = smul.addr %s271, 128
        %s273 = scalar_lea.vmem [#allocation2], %s272
        // Predicated region
        $region67: #{demucs_forward.20} parent=65 // pred_check
          %p274 = pneg %p73
        $region68: #{demucs_forward.20} parent=65 // pred_check_branch
          %276 = sbr.rel (%p274) target = $region70
        $region69: #{demucs_forward.20} parent=65 // pred_region
          _
        $region70: #{demucs_forward.20} parent=65 // pred_fallthru
          _
        %p277 = scmp.lt.s32.totalorder %s18, 0
        %s278 = scalar_select %p277, %s18, 0
        %s279 = smul.addr %s278, 4
        %s280 = scalar_lea.vmem %s0, %s279
        %p281 = pneg %p47
        %p282 = pneg %p44
        %s283 = sand.u32 %s60, 1
        %s284 = sand.u32 %s60, 1
        %s285 = smul.addr %s284, 128
        %s286 = scalar_lea.vmem [#allocation2], %s285
        %p287 = pneg %p73
        %p288 = pneg %p70
        %s289 = smul.u32 2, %s19
        %p290 = scmp.lt.s32.totalorder %s289, 3
        %s291 = scalar_select %p290, %s289, 3
        %s292 = scalar_lea.vmem %s2, %s291
        %p293 = pneg %p99
        %p294 = pneg %p96
        %p295 = pneg %p127
        %p296 = pneg %p124
        %s297 = smul.u32 2, %s19
        %p298 = scmp.lt.s32.totalorder %s18, 0
        %s299 = scalar_select %p298, %s18, 0
        %p300 = scmp.lt.s32.totalorder %s297, 3
        %s301 = scalar_select %p300, %s297, 3
        %s302 = smul.addr %s299, 4
        %s303 = sadd.s32 %s301, %s302
        %s304 = smul.addr %s303, 8
        %s305 = scalar_lea.vmem %s3, %s304
        %p306 = scmp.lt.s32.totalorder %s18, 0
        %s307 = scalar_select %p306, %s18, 0
        %s308 = smul.addr %s307, 4
        %s309 = scalar_lea.vmem %s0, %s308
        %s310 = smul.u32 2, %s19
        %s311 = smul.u32 2, %s19
        %p312 = scmp.lt.s32.totalorder %s311, 3
        %s313 = scalar_select %p312, %s311, 3
        %s314 = scalar_lea.vmem %s2, %s313
        %s315 = smul.u32 2, %s19
        %s316 = smul.u32 2, %s19
        %p317 = scmp.lt.s32.totalorder %s18, 0
        %s318 = scalar_select %p317, %s18, 0
        %p319 = scmp.lt.s32.totalorder %s316, 3
        %s320 = scalar_select %p319, %s316, 3
        %s321 = smul.addr %s318, 4
        %s322 = sadd.s32 %s320, %s321
        %s323 = smul.addr %s322, 8
        %s324 = scalar_lea.vmem %s3, %s323
        %s325 = smul.u32 2, %s19
        %v327 = vld [vmem:[%s309] sm:$0xf]
        %v328 = vld [vmem:[%s273] sm:$0xff]
        %v329 = vld [vmem:[%s273 + $0x8] sm:$0xff]
        %v330 = vld [vmem:[%s273 + $0x10] sm:$0xff]
        %v331 = vld [vmem:[%s273 + $0x18] sm:$0xff]
        %v332 = vld [vmem:[%s273 + $0x20] sm:$0xff]
        %v333 = vld [vmem:[%s273 + $0x28] sm:$0xff]
        %v334 = vld [vmem:[%s273 + $0x30] sm:$0xff]
        %v335 = vld [vmem:[%s273 + $0x38] sm:$0xff]
        %v336 = vld [vmem:[%s273 + $0x40] sm:$0xff]
        %v337 = vld [vmem:[%s273 + $0x48] sm:$0xff]
        %v338 = vld [vmem:[%s273 + $0x50] sm:$0xff]
        %v339 = vld [vmem:[%s273 + $0x58] sm:$0xff]
        %v340 = vld [vmem:[%s273 + $0x60] sm:$0xff]
        %v341 = vld [vmem:[%s273 + $0x68] sm:$0xff]
        %v342 = vld [vmem:[%s273 + $0x70] sm:$0xff]
        %v343 = vld [vmem:[%s273 + $0x78] sm:$0xff]
        %v344 = vld [vmem:[%s314] sm:$0x3]
        %v346 = vlaneseq
        %v347 = vshrl.u32 %v346, 7
        %v348 = vsub.s32 0, %v347
        %v349 = vrot.slane %v344, %v348
        %v350 = vlaneseq
        %v351 = vshrl.u32 %v350, 7
        %v352 = vsub.s32 1, %v351
        %v353 = vrot.slane %v344, %v352
        %v372 = vunpack.c.l.b16 %v328
        %v373 = vunpack.c.h.b16 %v328
        %v374 = vunpack.c.l.b16 %v329
        %v375 = vunpack.c.h.b16 %v329
        %v376 = vunpack.c.l.b16 %v330
        %v377 = vunpack.c.h.b16 %v330
        %v378 = vunpack.c.l.b16 %v331
        %v379 = vunpack.c.h.b16 %v331
        %v380 = vunpack.c.l.b16 %v332
        %v381 = vunpack.c.h.b16 %v332
        %v382 = vunpack.c.l.b16 %v333
        %v383 = vunpack.c.h.b16 %v333
        %v384 = vunpack.c.l.b16 %v334
        %v385 = vunpack.c.h.b16 %v334
        %v386 = vunpack.c.l.b16 %v335
        %v387 = vunpack.c.h.b16 %v335
        %v388 = vunpack.c.l.b16 %v336
        %v389 = vunpack.c.h.b16 %v336
        %v390 = vunpack.c.l.b16 %v337
        %v391 = vunpack.c.h.b16 %v337
        %v392 = vunpack.c.l.b16 %v338
        %v393 = vunpack.c.h.b16 %v338
        %v394 = vunpack.c.l.b16 %v339
        %v395 = vunpack.c.h.b16 %v339
        %v396 = vunpack.c.l.b16 %v340
        %v397 = vunpack.c.h.b16 %v340
        %v398 = vunpack.c.l.b16 %v341
        %v399 = vunpack.c.h.b16 %v341
        %v400 = vunpack.c.l.b16 %v342
        %v401 = vunpack.c.h.b16 %v342
        %v402 = vunpack.c.l.b16 %v343
        %v403 = vunpack.c.h.b16 %v343
        %v404 = vpack.c.b16 %v374, %v372
        %v405 = vpack.c.b16 %v375, %v373
        %v406 = vpack.c.b16 %v378, %v376
        %v407 = vpack.c.b16 %v379, %v377
        %v408 = vpack.c.b16 %v382, %v380
        %v409 = vpack.c.b16 %v383, %v381
        %v410 = vpack.c.b16 %v386, %v384
        %v411 = vpack.c.b16 %v387, %v385
        %v412 = vpack.c.b16 %v390, %v388
        %v413 = vpack.c.b16 %v391, %v389
        %v414 = vpack.c.b16 %v394, %v392
        %v415 = vpack.c.b16 %v395, %v393
        %v416 = vpack.c.b16 %v398, %v396
        %v417 = vpack.c.b16 %v399, %v397
        %v418 = vpack.c.b16 %v402, %v400
        %v419 = vpack.c.b16 %v403, %v401
        %436 = vmatprep.subr.bf16.mxu0 %v405
        %437 = vmatpush1.bf16.msra.mxu0 %v404
        %438 = vmatprep.subr.bf16.mxu0 %v407
        %439 = vmatpush1.bf16.msra.mxu0 %v406
        %440 = vmatprep.subr.bf16.mxu0 %v409
        %441 = vmatpush1.bf16.msra.mxu0 %v408
        %442 = vmatprep.subr.bf16.mxu0 %v411
        %443 = vmatpush1.bf16.msra.mxu0 %v410
        %444 = vmatprep.subr.bf16.mxu0 %v413
        %445 = vmatpush1.bf16.msra.mxu0 %v412
        %446 = vmatprep.subr.bf16.mxu0 %v415
        %447 = vmatpush1.bf16.msra.mxu0 %v414
        %448 = vmatprep.subr.bf16.mxu0 %v417
        %449 = vmatpush1.bf16.msra.mxu0 %v416
        %450 = vmatprep.subr.bf16.mxu0 %v419
        %451 = vmatpush1.bf16.msra.mxu0 %v418
        %452 = vmatprep.subr.bf16.mxu0 0
        %453 = vmatpush1.bf16.msra.mxu0 0
        %454 = vmatprep.subr.bf16.mxu0 0
        %455 = vmatpush1.bf16.msra.mxu0 0
        %456 = vmatprep.subr.bf16.mxu0 0
        %457 = vmatpush1.bf16.msra.mxu0 0
        %458 = vmatprep.subr.bf16.mxu0 0
        %459 = vmatpush1.bf16.msra.mxu0 0
        %460 = vmatprep.subr.bf16.mxu0 0
        %461 = vmatpush1.bf16.msra.mxu0 0
        %462 = vmatprep.subr.bf16.mxu0 0
        %463 = vmatpush1.bf16.msra.mxu0 0
        %464 = vmatprep.subr.bf16.mxu0 0
        %465 = vmatpush1.bf16.msra.mxu0 0
        %466 = vmatprep.subr.bf16.mxu0 0
        %467 = vmatpush1.bf16.msra.mxu0 0
        %468 = vmatprep.mubr.bf16.mxu0 0
        %469 = vmatmul.mubr.bf16.gmra.mrb[0].mxu0 %v327
        %v470 = vpop.f32.mrb[0].mxu0
        %v471 = vadd.f32 %v349, %v470
        %v472 = vpop.f32.mrb[0].mxu0
        %v473 = vadd.f32 %v353, %v472
        %v474 = vpop.f32.mrb[0].mxu0
        %v475 = vpop.f32.mrb[0].mxu0
        %476 = vdwg.mxu0
        %477 = vst [vmem:[%s324] sm:$0xff] %v471
        %478 = vst [vmem:[%s324 + $0x8] sm:$0xff] %v473
        %s479 = smul.u32 2, %s19
        %p480 = scmp.lt.s32.totalorder %s18, 0
        %s481 = scalar_select %p480, %s18, 0
        %p482 = scmp.lt.s32.totalorder %s479, 3
        %s483 = scalar_select %p482, %s479, 3
        %s484 = smul.addr %s481, 4
        %s485 = sadd.s32 %s483, %s484
        %s486 = smul.addr %s485, 8
        %s487 = scalar_lea.vmem %s3, %s486
        // Predicated region
        $region71: #{demucs_forward.20} parent=65 // pred_check
          %p488 = pneg %p124
        $region72: #{demucs_forward.20} parent=65 // pred_check_branch
          %490 = sbr.rel (%p488) target = $region74
        $region73: #{demucs_forward.20} parent=65 // pred_region
          %s491 = smul.u32 2, %s19
        $region74: #{demucs_forward.20} parent=65 // pred_fallthru
          _
      $region66: #{demucs_forward.20} parent=5 // pred_fallthru
        _
      %p492 = scmp.le.s32.totalorder 2, %s9
      // Predicated region
      $region75: #{demucs_forward.20} parent=5 // pred_check
        %p493 = pneg %p492
      $region76: #{demucs_forward.20} parent=5 // pred_check_branch
        %495 = sbr.rel (%p493) target = $region78
      $region77: #{demucs_forward.20} parent=5 // pred_region
        %s496 = ssub.s32 %s9, 2
        // Predicated region
        $region79: #{demucs_forward.20} parent=77 // pred_check
          %p497 = pneg %p130
        $region80: #{demucs_forward.20} parent=77 // pred_check_branch
          %499 = sbr.rel (%p497) target = $region82
        $region81: #{demucs_forward.20} parent=77 // pred_region
          %s500 = smul.u32 2, %s21
          %p501 = scmp.lt.s32.totalorder %s20, 0
          %s502 = scalar_select %p501, %s20, 0
          %p503 = scmp.lt.s32.totalorder %s500, 3
          %s504 = scalar_select %p503, %s500, 3
          %s505 = smul.addr %s502, 4
          %s506 = sadd.s32 %s504, %s505
          %s507 = smul.addr %s506, 8
          %s508 = scalar_lea.vmem %s3, %s507
        $region82: #{demucs_forward.20} parent=77 // pred_fallthru
          _
      $region78: #{demucs_forward.20} parent=5 // pred_fallthru
        _
    $region6: #{demucs_forward.20} parent=1 // loop_footer
      %s13 = sadd.s32 1, %s9
    $region7: #{demucs_forward.20} parent=1 // loop_footer_branch
      %8 = sbr.rel target = $region3
    $region8: #{demucs_forward.20} parent=1 // loop_exit
      _

// kernel: demucs_forward.18
$region0: #{demucs_forward.18}
  #allocation0 [shape = 'u32[]', space=smem, size = 0x4, offset = 0x4, fixed_abs, tag = 'smem constant byte address 0x4 - core index']
  #allocation1 [shape = 'u32[144,128]{1,0:T(1,128)}', space=vmem, size = 0x12000, scoped, tag = 'internal scratch']
  %s0 = inlined_call_operand.vmem [shape: bf16[8,256], index: 0, kind: input, shape index: {}]
  %s1 = inlined_call_operand.vmem [shape: bf16[8,256], index: 1, kind: input, shape index: {}]
  %s2 = inlined_call_operand.vmem [shape: bf16[256,128], index: 2, kind: input, shape index: {}]
  %s3 = inlined_call_operand.vmem [shape: bf16[256,128], index: 3, kind: input, shape index: {}]
  %s4 = inlined_call_operand.vmem [shape: f32[1,128], index: 4, kind: input, shape index: {}]
  %s5 = inlined_call_operand.vmem [shape: f32[8,128], index: 5, kind: output, shape index: {}]
  %s6 = sld [smem:[#allocation0]]
  $region30: #{demucs_forward.18} parent=0
    _
  %s8 = ssub.s32 1, %s6
  %s9 = scalar_select 0, %s8, %s6
  // Predicated region
  $region2: #{demucs_forward.18} parent=0 // pred_check
    _
  $region3: #{demucs_forward.18} parent=0 // pred_check_branch
    %11 = sbr.rel (0) target = $region5
  $region4: #{demucs_forward.18} parent=0 // pred_region
    _
  $region5: #{demucs_forward.18} parent=0 // pred_fallthru
    _
  // Predicated region
  $region6: #{demucs_forward.18} parent=0 // pred_check
    _
  $region7: #{demucs_forward.18} parent=0 // pred_check_branch
    %13 = sbr.rel (0) target = $region9
  $region8: #{demucs_forward.18} parent=0 // pred_region
    _
  $region9: #{demucs_forward.18} parent=0 // pred_fallthru
    _
  // Predicated region
  $region10: #{demucs_forward.18} parent=0 // pred_check
    _
  $region11: #{demucs_forward.18} parent=0 // pred_check_branch
    %15 = sbr.rel (0) target = $region13
  $region12: #{demucs_forward.18} parent=0 // pred_region
    _
  $region13: #{demucs_forward.18} parent=0 // pred_fallthru
    _
  // Predicated region
  $region14: #{demucs_forward.18} parent=0 // pred_check
    _
  $region15: #{demucs_forward.18} parent=0 // pred_check_branch
    %17 = sbr.rel (0) target = $region17
  $region16: #{demucs_forward.18} parent=0 // pred_region
    _
  $region17: #{demucs_forward.18} parent=0 // pred_fallthru
    _
  // Predicated region
  $region18: #{demucs_forward.18} parent=0 // pred_check
    _
  $region19: #{demucs_forward.18} parent=0 // pred_check_branch
    %19 = sbr.rel (0) target = $region21
  $region20: #{demucs_forward.18} parent=0 // pred_region
    _
  $region21: #{demucs_forward.18} parent=0 // pred_fallthru
    _
  %v21 = vld [vmem:[%s0] sm:$0xff]
  %v22 = vld [vmem:[%s2] sm:$0xf]
  %v23 = vld [vmem:[%s2 + $0x4] sm:$0xf]
  %v24 = vld [vmem:[%s2 + $0x8] sm:$0xf]
  %v25 = vld [vmem:[%s2 + $0xc] sm:$0xf]
  %v26 = vld [vmem:[%s2 + $0x10] sm:$0xf]
  %v27 = vld [vmem:[%s2 + $0x14] sm:$0xf]
  %v28 = vld [vmem:[%s2 + $0x18] sm:$0xf]
  %v29 = vld [vmem:[%s2 + $0x1c] sm:$0xf]
  %v30 = vld [vmem:[%s2 + $0x20] sm:$0xf]
  %v31 = vld [vmem:[%s2 + $0x24] sm:$0xf]
  %v32 = vld [vmem:[%s2 + $0x28] sm:$0xf]
  %v33 = vld [vmem:[%s2 + $0x2c] sm:$0xf]
  %v34 = vld [vmem:[%s2 + $0x30] sm:$0xf]
  %v35 = vld [vmem:[%s2 + $0x34] sm:$0xf]
  %v36 = vld [vmem:[%s2 + $0x38] sm:$0xf]
  %v37 = vld [vmem:[%s2 + $0x3c] sm:$0xf]
  %v38 = vld [vmem:[%s2 + $0x40] sm:$0xf]
  %v39 = vld [vmem:[%s2 + $0x44] sm:$0xf]
  %v40 = vld [vmem:[%s2 + $0x48] sm:$0xf]
  %v41 = vld [vmem:[%s2 + $0x4c] sm:$0xf]
  %v42 = vld [vmem:[%s2 + $0x50] sm:$0xf]
  %v43 = vld [vmem:[%s2 + $0x54] sm:$0xf]
  %v44 = vld [vmem:[%s2 + $0x58] sm:$0xf]
  %v45 = vld [vmem:[%s2 + $0x5c] sm:$0xf]
  %v46 = vld [vmem:[%s2 + $0x60] sm:$0xf]
  %v47 = vld [vmem:[%s2 + $0x64] sm:$0xf]
  %v48 = vld [vmem:[%s2 + $0x68] sm:$0xf]
  %v49 = vld [vmem:[%s2 + $0x6c] sm:$0xf]
  %v50 = vld [vmem:[%s2 + $0x70] sm:$0xf]
  %v51 = vld [vmem:[%s2 + $0x74] sm:$0xf]
  %v52 = vld [vmem:[%s2 + $0x78] sm:$0xf]
  %v53 = vld [vmem:[%s2 + $0x7c] sm:$0xf]
  %v54 = vld [vmem:[%s1] sm:$0xff]
  %v55 = vld [vmem:[%s3] sm:$0xf]
  %v56 = vld [vmem:[%s3 + $0x4] sm:$0xf]
  %v57 = vld [vmem:[%s3 + $0x8] sm:$0xf]
  %v58 = vld [vmem:[%s3 + $0xc] sm:$0xf]
  %v59 = vld [vmem:[%s3 + $0x10] sm:$0xf]
  %v60 = vld [vmem:[%s3 + $0x14] sm:$0xf]
  %v61 = vld [vmem:[%s3 + $0x18] sm:$0xf]
  %v62 = vld [vmem:[%s3 + $0x1c] sm:$0xf]
  %v63 = vld [vmem:[%s3 + $0x20] sm:$0xf]
  %v64 = vld [vmem:[%s3 + $0x24] sm:$0xf]
  %v65 = vld [vmem:[%s3 + $0x28] sm:$0xf]
  %v66 = vld [vmem:[%s3 + $0x2c] sm:$0xf]
  %v67 = vld [vmem:[%s3 + $0x30] sm:$0xf]
  %v68 = vld [vmem:[%s3 + $0x34] sm:$0xf]
  %v69 = vld [vmem:[%s3 + $0x38] sm:$0xf]
  %v70 = vld [vmem:[%s3 + $0x3c] sm:$0xf]
  %v71 = vld [vmem:[%s3 + $0x40] sm:$0xf]
  %v72 = vld [vmem:[%s3 + $0x44] sm:$0xf]
  %v73 = vld [vmem:[%s3 + $0x48] sm:$0xf]
  %v74 = vld [vmem:[%s3 + $0x4c] sm:$0xf]
  %v75 = vld [vmem:[%s3 + $0x50] sm:$0xf]
  %v76 = vld [vmem:[%s3 + $0x54] sm:$0xf]
  %v77 = vld [vmem:[%s3 + $0x58] sm:$0xf]
  %v78 = vld [vmem:[%s3 + $0x5c] sm:$0xf]
  %v79 = vld [vmem:[%s3 + $0x60] sm:$0xf]
  %v80 = vld [vmem:[%s3 + $0x64] sm:$0xf]
  %v81 = vld [vmem:[%s3 + $0x68] sm:$0xf]
  %v82 = vld [vmem:[%s3 + $0x6c] sm:$0xf]
  %v83 = vld [vmem:[%s3 + $0x70] sm:$0xf]
  %v84 = vld [vmem:[%s3 + $0x74] sm:$0xf]
  %v85 = vld [vmem:[%s3 + $0x78] sm:$0xf]
  %v86 = vld [vmem:[%s3 + $0x7c] sm:$0xf]
  %v88 = vunpack.c.l.b16 %v54
  %v89 = vunpack.c.h.b16 %v54
  %v90 = vpack.c.b16 %v88, %v88
  %v91 = vpack.c.b16 %v89, %v89
  %v126 = vunpack.c.l.b16 %v55
  %v127 = vunpack.c.l.b16 %v56
  %v128 = vunpack.c.l.b16 %v57
  %v129 = vunpack.c.l.b16 %v58
  %v130 = vunpack.c.l.b16 %v59
  %v131 = vunpack.c.l.b16 %v60
  %v132 = vunpack.c.l.b16 %v61
  %v133 = vunpack.c.l.b16 %v62
  %v134 = vunpack.c.l.b16 %v63
  %v135 = vunpack.c.l.b16 %v64
  %v136 = vunpack.c.l.b16 %v65
  %v137 = vunpack.c.l.b16 %v66
  %v138 = vunpack.c.l.b16 %v67
  %v139 = vunpack.c.l.b16 %v68
  %v140 = vunpack.c.l.b16 %v69
  %v141 = vunpack.c.l.b16 %v70
  %v142 = vunpack.c.l.b16 %v71
  %v143 = vunpack.c.l.b16 %v72
  %v144 = vunpack.c.l.b16 %v73
  %v145 = vunpack.c.l.b16 %v74
  %v146 = vunpack.c.l.b16 %v75
  %v147 = vunpack.c.l.b16 %v76
  %v148 = vunpack.c.l.b16 %v77
  %v149 = vunpack.c.l.b16 %v78
  %v150 = vunpack.c.l.b16 %v79
  %v151 = vunpack.c.l.b16 %v80
  %v152 = vunpack.c.l.b16 %v81
  %v153 = vunpack.c.l.b16 %v82
  %v154 = vunpack.c.l.b16 %v83
  %v155 = vunpack.c.l.b16 %v84
  %v156 = vunpack.c.l.b16 %v85
  %v157 = vunpack.c.l.b16 %v86
  %v158 = vpack.c.b16 %v127, %v126
  %v159 = vpack.c.b16 %v129, %v128
  %v160 = vpack.c.b16 %v131, %v130
  %v161 = vpack.c.b16 %v133, %v132
  %v162 = vpack.c.b16 %v135, %v134
  %v163 = vpack.c.b16 %v137, %v136
  %v164 = vpack.c.b16 %v139, %v138
  %v165 = vpack.c.b16 %v141, %v140
  %v166 = vpack.c.b16 %v143, %v142
  %v167 = vpack.c.b16 %v145, %v144
  %v168 = vpack.c.b16 %v147, %v146
  %v169 = vpack.c.b16 %v149, %v148
  %v170 = vpack.c.b16 %v151, %v150
  %v171 = vpack.c.b16 %v153, %v152
  %v172 = vpack.c.b16 %v155, %v154
  %v173 = vpack.c.b16 %v157, %v156
  %190 = vmatprep.subr.bf16.mxu0 0
  %191 = vmatpush1.bf16.msra.mxu0 %v158
  %192 = vmatprep.subr.bf16.mxu0 0
  %193 = vmatpush1.bf16.msra.mxu0 %v159
  %194 = vmatprep.subr.bf16.mxu0 0
  %195 = vmatpush1.bf16.msra.mxu0 %v160
  %196 = vmatprep.subr.bf16.mxu0 0
  %197 = vmatpush1.bf16.msra.mxu0 %v161
  %198 = vmatprep.subr.bf16.mxu0 0
  %199 = vmatpush1.bf16.msra.mxu0 %v162
  %200 = vmatprep.subr.bf16.mxu0 0
  %201 = vmatpush1.bf16.msra.mxu0 %v163
  %202 = vmatprep.subr.bf16.mxu0 0
  %203 = vmatpush1.bf16.msra.mxu0 %v164
  %204 = vmatprep.subr.bf16.mxu0 0
  %205 = vmatpush1.bf16.msra.mxu0 %v165
  %206 = vmatprep.subr.bf16.mxu0 0
  %207 = vmatpush1.bf16.msra.mxu0 %v166
  %208 = vmatprep.subr.bf16.mxu0 0
  %209 = vmatpush1.bf16.msra.mxu0 %v167
  %210 = vmatprep.subr.bf16.mxu0 0
  %211 = vmatpush1.bf16.msra.mxu0 %v168
  %212 = vmatprep.subr.bf16.mxu0 0
  %213 = vmatpush1.bf16.msra.mxu0 %v169
  %214 = vmatprep.subr.bf16.mxu0 0
  %215 = vmatpush1.bf16.msra.mxu0 %v170
  %216 = vmatprep.subr.bf16.mxu0 0
  %217 = vmatpush1.bf16.msra.mxu0 %v171
  %218 = vmatprep.subr.bf16.mxu0 0
  %219 = vmatpush1.bf16.msra.mxu0 %v172
  %220 = vmatprep.subr.bf16.mxu0 0
  %221 = vmatpush1.bf16.msra.mxu0 %v173
  %222 = vmatprep.mubr.bf16.mxu0 %v91
  %223 = vmatmul.mubr.bf16.gmra.mrb[0].mxu0 %v90
  %v224 = vpop.f32.mrb[0].mxu0
  %v225 = vadd.f32 0.0, %v224
  %v226 = vpop.f32.mrb[0].mxu0
  %v227 = vpop.f32.mrb[0].mxu0
  %v228 = vpop.f32.mrb[0].mxu0
  %229 = vdwg.mxu0
  %v231 = vunpack.c.l.b16 %v21
  %v232 = vunpack.c.h.b16 %v21
  %v233 = vpack.c.b16 %v231, %v231
  %v234 = vpack.c.b16 %v232, %v232
  %v269 = vunpack.c.l.b16 %v22
  %v270 = vunpack.c.l.b16 %v23
  %v271 = vunpack.c.l.b16 %v24
  %v272 = vunpack.c.l.b16 %v25
  %v273 = vunpack.c.l.b16 %v26
  %v274 = vunpack.c.l.b16 %v27
  %v275 = vunpack.c.l.b16 %v28
  %v276 = vunpack.c.l.b16 %v29
  %v277 = vunpack.c.l.b16 %v30
  %v278 = vunpack.c.l.b16 %v31
  %v279 = vunpack.c.l.b16 %v32
  %v280 = vunpack.c.l.b16 %v33
  %v281 = vunpack.c.l.b16 %v34
  %v282 = vunpack.c.l.b16 %v35
  %v283 = vunpack.c.l.b16 %v36
  %v284 = vunpack.c.l.b16 %v37
  %v285 = vunpack.c.l.b16 %v38
  %v286 = vunpack.c.l.b16 %v39
  %v287 = vunpack.c.l.b16 %v40
  %v288 = vunpack.c.l.b16 %v41
  %v289 = vunpack.c.l.b16 %v42
  %v290 = vunpack.c.l.b16 %v43
  %v291 = vunpack.c.l.b16 %v44
  %v292 = vunpack.c.l.b16 %v45
  %v293 = vunpack.c.l.b16 %v46
  %v294 = vunpack.c.l.b16 %v47
  %v295 = vunpack.c.l.b16 %v48
  %v296 = vunpack.c.l.b16 %v49
  %v297 = vunpack.c.l.b16 %v50
  %v298 = vunpack.c.l.b16 %v51
  %v299 = vunpack.c.l.b16 %v52
  %v300 = vunpack.c.l.b16 %v53
  %v301 = vpack.c.b16 %v270, %v269
  %v302 = vpack.c.b16 %v272, %v271
  %v303 = vpack.c.b16 %v274, %v273
  %v304 = vpack.c.b16 %v276, %v275
  %v305 = vpack.c.b16 %v278, %v277
  %v306 = vpack.c.b16 %v280, %v279
  %v307 = vpack.c.b16 %v282, %v281
  %v308 = vpack.c.b16 %v284, %v283
  %v309 = vpack.c.b16 %v286, %v285
  %v310 = vpack.c.b16 %v288, %v287
  %v311 = vpack.c.b16 %v290, %v289
  %v312 = vpack.c.b16 %v292, %v291
  %v313 = vpack.c.b16 %v294, %v293
  %v314 = vpack.c.b16 %v296, %v295
  %v315 = vpack.c.b16 %v298, %v297
  %v316 = vpack.c.b16 %v300, %v299
  %333 = vmatprep.subr.bf16.mxu0 0
  %334 = vmatpush1.bf16.msra.mxu0 %v301
  %335 = vmatprep.subr.bf16.mxu0 0
  %336 = vmatpush1.bf16.msra.mxu0 %v302
  %337 = vmatprep.subr.bf16.mxu0 0
  %338 = vmatpush1.bf16.msra.mxu0 %v303
  %339 = vmatprep.subr.bf16.mxu0 0
  %340 = vmatpush1.bf16.msra.mxu0 %v304
  %341 = vmatprep.subr.bf16.mxu0 0
  %342 = vmatpush1.bf16.msra.mxu0 %v305
  %343 = vmatprep.subr.bf16.mxu0 0
  %344 = vmatpush1.bf16.msra.mxu0 %v306
  %345 = vmatprep.subr.bf16.mxu0 0
  %346 = vmatpush1.bf16.msra.mxu0 %v307
  %347 = vmatprep.subr.bf16.mxu0 0
  %348 = vmatpush1.bf16.msra.mxu0 %v308
  %349 = vmatprep.subr.bf16.mxu0 0
  %350 = vmatpush1.bf16.msra.mxu0 %v309
  %351 = vmatprep.subr.bf16.mxu0 0
  %352 = vmatpush1.bf16.msra.mxu0 %v310
  %353 = vmatprep.subr.bf16.mxu0 0
  %354 = vmatpush1.bf16.msra.mxu0 %v311
  %355 = vmatprep.subr.bf16.mxu0 0
  %356 = vmatpush1.bf16.msra.mxu0 %v312
  %357 = vmatprep.subr.bf16.mxu0 0
  %358 = vmatpush1.bf16.msra.mxu0 %v313
  %359 = vmatprep.subr.bf16.mxu0 0
  %360 = vmatpush1.bf16.msra.mxu0 %v314
  %361 = vmatprep.subr.bf16.mxu0 0
  %362 = vmatpush1.bf16.msra.mxu0 %v315
  %363 = vmatprep.subr.bf16.mxu0 0
  %364 = vmatpush1.bf16.msra.mxu0 %v316
  %365 = vmatprep.mubr.bf16.mxu0 %v234
  %366 = vmatmul.mubr.bf16.gmra.mrb[0].mxu0 %v233
  %v367 = vpop.f32.mrb[0].mxu0
  %v368 = vadd.f32 %v225, %v367
  %v369 = vpop.f32.mrb[0].mxu0
  %v370 = vpop.f32.mrb[0].mxu0
  %v371 = vpop.f32.mrb[0].mxu0
  %372 = vdwg.mxu0
  %v373 = vld [vmem:[%s4] sm:$0x1]
  %v375 = vlaneseq
  %v376 = vshrl.u32 %v375, 7
  %v377 = vsub.s32 0, %v376
  %v378 = vrot.slane %v373, %v377
  %v380 = vadd.f32 %v368, %v378
  %v381 = vmax.f32 %v380, 0.0
  %382 = vst [vmem:[%s5] sm:$0xff] %v381
  // Predicated region
  $region22: #{demucs_forward.18} parent=0 // pred_check
    _
  $region23: #{demucs_forward.18} parent=0 // pred_check_branch
    %384 = sbr.rel (0) target = $region25
  $region24: #{demucs_forward.18} parent=0 // pred_region
    _
  $region25: #{demucs_forward.18} parent=0 // pred_fallthru
    _
  // Predicated region
  $region26: #{demucs_forward.18} parent=0 // pred_check
    _
  $region27: #{demucs_forward.18} parent=0 // pred_check_branch
    %386 = sbr.rel (0) target = $region29
  $region28: #{demucs_forward.18} parent=0 // pred_region
    _
  $region29: #{demucs_forward.18} parent=0 // pred_fallthru
    _

// kernel: demucs_forward.23
$region0: #{demucs_forward.23}
  #allocation0 [shape = 'u32[]', space=smem, size = 0x4, offset = 0x4, fixed_abs, tag = 'smem constant byte address 0x4 - core index']
  #allocation1 [shape = 'u32[144,128]{1,0:T(1,128)}', space=vmem, size = 0x12000, scoped, tag = 'internal scratch']
  %s0 = inlined_call_operand.vmem [shape: bf16[8,256], index: 0, kind: input, shape index: {}]
  %s1 = inlined_call_operand.vmem [shape: bf16[256,512], index: 1, kind: input, shape index: {}]
  %s2 = inlined_call_operand.vmem [shape: f32[1,512], index: 2, kind: input, shape index: {}]
  %s3 = inlined_call_operand.vmem [shape: f32[8,512], index: 3, kind: output, shape index: {}]
  %s4 = sld [smem:[#allocation0]]
  $region83: #{demucs_forward.23} parent=0
    _
  %s6 = ssub.s32 1, %s4
  %s7 = scalar_select 0, %s6, %s4
  $region1: #{demucs_forward.23} parent=0
    #allocation2 [shape = 'u8[262144]{0}', space=vmem, size = 0x40000, scoped, tag = 'input window, operand 1']
    loop: start=0, step=1, limit=4
    $region2: #{demucs_forward.23} parent=1 // loop_pre_header
      _
    $region3: #{demucs_forward.23} parent=1 // loop_header
      %s9 = sphi 0, %s13
      %p10 = scmp.ge.s32.totalorder %s9, 4
      %s16 = sphi 0, %s28
      %s17 = sphi 0, %s24
      %s18 = sphi 0, %s16
      %s19 = sphi 0, %s17
      %s20 = sphi 0, %s18
      %s21 = sphi 0, %s19
      %s31 = sphi 0, %s33
      %s34 = sphi 0, %s31
      %s35 = sphi 0, %s34
      %s51 = sphi 0, %s35
      %s57 = sphi 0, %s59
      %s60 = sphi 0, %s57
      %s61 = sphi 0, %s60
      %s77 = sphi 0, %s61
      %s83 = sphi 0, %s85
      %s86 = sphi 0, %s83
      %s87 = sphi 0, %s86
      %s103 = sphi 0, %s87
      %s111 = sphi 0, %s113
      %s114 = sphi 0, %s111
      %s115 = sphi 0, %s114
      %s131 = sphi 0, %s115
    $region4: #{demucs_forward.23} parent=1 // loop_header_branch
      %12 = sbr.rel (%p10) target = $region8
    $region5: #{demucs_forward.23} parent=1 // loop_body
      %s14 = ssub.s32 %s9, 1
      %s15 = ssub.s32 %s9, 2
      %s22 = sadd.s32 1, %s17
      %p23 = scmp.ge.s32.totalorder %s22, 2
      %s24 = scalar_select %p23, 0, %s22
      %s25 = sadd.s32 1, %s16
      %s26 = scalar_select %p23, %s25, %s16
      %p27 = scmp.ge.s32.totalorder %s26, 1
      %s28 = scalar_select %p27, 0, %s26
      %s29 = ssub.s32 %s16, %s28
      %p30 = scmp.eq.s32.totalorder %s29, 0
      %s32 = sadd.s32 %s31, 1
      %s33 = scalar_select %p30, %s31, %s32
      %p36 = pneg %p30
      %p37 = scmp.eq.s32.totalorder %s9, 1
      %p38 = por %p36, %p37
      %p39 = scmp.ne.s32.totalorder %s31, %s34
      %p40 = scmp.eq.s32.totalorder %s9, 0
      %p41 = por %p39, %p40
      %p42 = scmp.ne.s32.totalorder %s31, %s34
      %p43 = scmp.eq.s32.totalorder %s14, 1
      %p44 = por %p42, %p43
      %p45 = scmp.ne.s32.totalorder %s34, %s35
      %p46 = scmp.eq.s32.totalorder %s14, 0
      %p47 = por %p45, %p46
      %p48 = scmp.ne.s32.totalorder %s34, %s35
      %p49 = scmp.eq.s32.totalorder %s15, 1
      %p50 = por %p48, %p49
      %p52 = scmp.ne.s32.totalorder %s35, %s51
      %p53 = scmp.eq.s32.totalorder %s15, 0
      %p54 = por %p52, %p53
      %s55 = ssub.s32 %s17, %s24
      %p56 = scmp.eq.s32.totalorder %s55, 0
      %s58 = sadd.s32 %s57, 1
      %s59 = scalar_select %p56, %s57, %s58
      %p62 = pneg %p56
      %p63 = scmp.eq.s32.totalorder %s9, 1
      %p64 = por %p62, %p63
      %p65 = scmp.ne.s32.totalorder %s57, %s60
      %p66 = scmp.eq.s32.totalorder %s9, 0
      %p67 = por %p65, %p66
      %p68 = scmp.ne.s32.totalorder %s57, %s60
      %p69 = scmp.eq.s32.totalorder %s14, 1
      %p70 = por %p68, %p69
      %p71 = scmp.ne.s32.totalorder %s60, %s61
      %p72 = scmp.eq.s32.totalorder %s14, 0
      %p73 = por %p71, %p72
      %p74 = scmp.ne.s32.totalorder %s60, %s61
      %p75 = scmp.eq.s32.totalorder %s15, 1
      %p76 = por %p74, %p75
      %p78 = scmp.ne.s32.totalorder %s61, %s77
      %p79 = scmp.eq.s32.totalorder %s15, 0
      %p80 = por %p78, %p79
      %s81 = ssub.s32 %s17, %s24
      %p82 = scmp.eq.s32.totalorder %s81, 0
      %s84 = sadd.s32 %s83, 1
      %s85 = scalar_select %p82, %s83, %s84
      %p88 = pneg %p82
      %p89 = scmp.eq.s32.totalorder %s9, 1
      %p90 = por %p88, %p89
      %p91 = scmp.ne.s32.totalorder %s83, %s86
      %p92 = scmp.eq.s32.totalorder %s9, 0
      %p93 = por %p91, %p92
      %p94 = scmp.ne.s32.totalorder %s83, %s86
      %p95 = scmp.eq.s32.totalorder %s14, 1
      %p96 = por %p94, %p95
      %p97 = scmp.ne.s32.totalorder %s86, %s87
      %p98 = scmp.eq.s32.totalorder %s14, 0
      %p99 = por %p97, %p98
      %p100 = scmp.ne.s32.totalorder %s86, %s87
      %p101 = scmp.eq.s32.totalorder %s15, 1
      %p102 = por %p100, %p101
      %p104 = scmp.ne.s32.totalorder %s87, %s103
      %p105 = scmp.eq.s32.totalorder %s15, 0
      %p106 = por %p104, %p105
      %s107 = ssub.s32 %s16, %s28
      %s108 = ssub.s32 %s17, %s24
      %s109 = sor.u32 %s107, %s108
      %p110 = scmp.eq.s32.totalorder %s109, 0
      %s112 = sadd.s32 %s111, 1
      %s113 = scalar_select %p110, %s111, %s112
      %p116 = pneg %p110
      %p117 = scmp.eq.s32.totalorder %s9, 1
      %p118 = por %p116, %p117
      %p119 = scmp.ne.s32.totalorder %s111, %s114
      %p120 = scmp.eq.s32.totalorder %s9, 0
      %p121 = por %p119, %p120
      %p122 = scmp.ne.s32.totalorder %s111, %s114
      %p123 = scmp.eq.s32.totalorder %s14, 1
      %p124 = por %p122, %p123
      %p125 = scmp.ne.s32.totalorder %s114, %s115
      %p126 = scmp.eq.s32.totalorder %s14, 0
      %p127 = por %p125, %p126
      %p128 = scmp.ne.s32.totalorder %s114, %s115
      %p129 = scmp.eq.s32.totalorder %s15, 1
      %p130 = por %p128, %p129
      %p132 = scmp.ne.s32.totalorder %s115, %s131
      %p133 = scmp.eq.s32.totalorder %s15, 0
      %p134 = por %p132, %p133
      %p135 = scmp.le.s32.totalorder 1, %s9
      %p136 = scmp.lt.s32.totalorder %s9, 3
      %p137 = pnand %p135, %p136
      %p138 = pneg %p137
      // Predicated region
      $region9: #{demucs_forward.23} parent=5 // pred_check
        _
      $region10: #{demucs_forward.23} parent=5 // pred_check_branch
        %140 = sbr.rel (%p137) target = $region12
      $region11: #{demucs_forward.23} parent=5 // pred_region
        %s141 = ssub.s32 %s9, 1
        // Predicated region
        $region13: #{demucs_forward.23} parent=11 // pred_check
          %p142 = pneg %p47
        $region14: #{demucs_forward.23} parent=11 // pred_check_branch
          %144 = sbr.rel (%p142) target = $region16
        $region15: #{demucs_forward.23} parent=11 // pred_region
          %p145 = scmp.lt.s32.totalorder %s18, 0
          %s146 = scalar_select %p145, %s18, 0
          %s147 = smul.addr %s146, 2
          %s148 = smul.addr %s147, 4
          %s149 = scalar_lea.vmem %s0, %s148
        $region16: #{demucs_forward.23} parent=11 // pred_fallthru
          _
      $region12: #{demucs_forward.23} parent=5 // pred_fallthru
        _
      %p150 = scmp.lt.s32.totalorder %s9, 2
      // Predicated region
      $region17: #{demucs_forward.23} parent=5 // pred_check
        %p151 = pneg %p150
      $region18: #{demucs_forward.23} parent=5 // pred_check_branch
        %153 = sbr.rel (%p151) target = $region20
      $region19: #{demucs_forward.23} parent=5 // pred_region
        // Predicated region
        $region21: #{demucs_forward.23} parent=19 // pred_check
          %p154 = pneg %p67
        $region22: #{demucs_forward.23} parent=19 // pred_check_branch
          %156 = sbr.rel (%p154) target = $region24
        $region23: #{demucs_forward.23} parent=19 // pred_region
          %s157 = sand.u32 %s57, 1
          %s158 = sand.u32 %s57, 1
          %s159 = smul.addr %s158, 256
          %s160 = scalar_lea.vmem [#allocation2], %s159
          %s161 = smul.u32 2, %s17
          %s162 = smul.addr %s161, 4
          %s163 = scalar_lea.vmem %s1, %s162
          // Predicated region
          $region25: #{demucs_forward.23} parent=23 // pred_check
            _
          $region26: #{demucs_forward.23} parent=23 // pred_check_branch
            %165 = sbr.rel (0) target = $region28
          $region27: #{demucs_forward.23} parent=23 // pred_region
            // Predicated region
            $region29: #{demucs_forward.23} parent=27 // pred_check
              _
            $region30: #{demucs_forward.23} parent=27 // pred_check_branch
              %167 = sbr.rel (0) target = $region32
            $region31: #{demucs_forward.23} parent=27 // pred_region
              // Predicated region
              $region44: #{demucs_forward.23} parent=31 // pred_check
                _
              $region45: #{demucs_forward.23} parent=31 // pred_check_branch
                %244 = sbr.rel (0) target = $region47
              $region46: #{demucs_forward.23} parent=31 // pred_region
                loop: start=0, step=1, limit=1
                $region48: #{demucs_forward.23} parent=46 // loop_pre_header
                  _
                $region49: #{demucs_forward.23} parent=46 // loop_header
                  %s246 = sphi 0, %s250
                  %p247 = scmp.ge.s32.totalorder %s246, 1
                  %s251 = sphi %s163, %s163
                  %s252 = sphi %s160, %s160
                $region50: #{demucs_forward.23} parent=46 // loop_header_branch
                  %249 = sbr.rel (%p247) target = $region54
                $region51: #{demucs_forward.23} parent=46 // loop_body
                  %v253 = vld [vmem:[%s251] sm:$0xff]
                  %254 = vst [vmem:[%s252] sm:$0xff] %v253
                  %v255 = vld [vmem:[%s251 + $0x10] sm:$0xff]
                  %256 = vst [vmem:[%s252 + $0x8] sm:$0xff] %v255
                  %v257 = vld [vmem:[%s251 + $0x20] sm:$0xff]
                  %258 = vst [vmem:[%s252 + $0x10] sm:$0xff] %v257
                  %v259 = vld [vmem:[%s251 + $0x30] sm:$0xff]
                  %260 = vst [vmem:[%s252 + $0x18] sm:$0xff] %v259
                  %v261 = vld [vmem:[%s251 + $0x40] sm:$0xff]
                  %262 = vst [vmem:[%s252 + $0x20] sm:$0xff] %v261
                  %v263 = vld [vmem:[%s251 + $0x50] sm:$0xff]
                  %264 = vst [vmem:[%s252 + $0x28] sm:$0xff] %v263
                  %v265 = vld [vmem:[%s251 + $0x60] sm:$0xff]
                  %266 = vst [vmem:[%s252 + $0x30] sm:$0xff] %v265
                  %v267 = vld [vmem:[%s251 + $0x70] sm:$0xff]
                  %268 = vst [vmem:[%s252 + $0x38] sm:$0xff] %v267
                  %v269 = vld [vmem:[%s251 + $0x80] sm:$0xff]
                  %270 = vst [vmem:[%s252 + $0x40] sm:$0xff] %v269
                  %v271 = vld [vmem:[%s251 + $0x90] sm:$0xff]
                  %272 = vst [vmem:[%s252 + $0x48] sm:$0xff] %v271
                  %v273 = vld [vmem:[%s251 + $0xa0] sm:$0xff]
                  %274 = vst [vmem:[%s252 + $0x50] sm:$0xff] %v273
                  %v275 = vld [vmem:[%s251 + $0xb0] sm:$0xff]
                  %276 = vst [vmem:[%s252 + $0x58] sm:$0xff] %v275
                  %v277 = vld [vmem:[%s251 + $0xc0] sm:$0xff]
                  %278 = vst [vmem:[%s252 + $0x60] sm:$0xff] %v277
                  %v279 = vld [vmem:[%s251 + $0xd0] sm:$0xff]
                  %280 = vst [vmem:[%s252 + $0x68] sm:$0xff] %v279
                  %v281 = vld [vmem:[%s251 + $0xe0] sm:$0xff]
                  %282 = vst [vmem:[%s252 + $0x70] sm:$0xff] %v281
                  %v283 = vld [vmem:[%s251 + $0xf0] sm:$0xff]
                  %284 = vst [vmem:[%s252 + $0x78] sm:$0xff] %v283
                  %v285 = vld [vmem:[%s251 + $0x100] sm:$0xff]
                  %286 = vst [vmem:[%s252 + $0x80] sm:$0xff] %v285
                  %v287 = vld [vmem:[%s251 + $0x110] sm:$0xff]
                  %288 = vst [vmem:[%s252 + $0x88] sm:$0xff] %v287
                  %v289 = vld [vmem:[%s251 + $0x120] sm:$0xff]
                  %290 = vst [vmem:[%s252 + $0x90] sm:$0xff] %v289
                  %v291 = vld [vmem:[%s251 + $0x130] sm:$0xff]
                  %292 = vst [vmem:[%s252 + $0x98] sm:$0xff] %v291
                  %v293 = vld [vmem:[%s251 + $0x140] sm:$0xff]
                  %294 = vst [vmem:[%s252 + $0xa0] sm:$0xff] %v293
                  %v295 = vld [vmem:[%s251 + $0x150] sm:$0xff]
                  %296 = vst [vmem:[%s252 + $0xa8] sm:$0xff] %v295
                  %v297 = vld [vmem:[%s251 + $0x160] sm:$0xff]
                  %298 = vst [vmem:[%s252 + $0xb0] sm:$0xff] %v297
                  %v299 = vld [vmem:[%s251 + $0x170] sm:$0xff]
                  %300 = vst [vmem:[%s252 + $0xb8] sm:$0xff] %v299
                  %v301 = vld [vmem:[%s251 + $0x180] sm:$0xff]
                  %302 = vst [vmem:[%s252 + $0xc0] sm:$0xff] %v301
                  %v303 = vld [vmem:[%s251 + $0x190] sm:$0xff]
                  %304 = vst [vmem:[%s252 + $0xc8] sm:$0xff] %v303
                  %v305 = vld [vmem:[%s251 + $0x1a0] sm:$0xff]
                  %306 = vst [vmem:[%s252 + $0xd0] sm:$0xff] %v305
                  %v307 = vld [vmem:[%s251 + $0x1b0] sm:$0xff]
                  %308 = vst [vmem:[%s252 + $0xd8] sm:$0xff] %v307
                  %v309 = vld [vmem:[%s251 + $0x1c0] sm:$0xff]
                  %310 = vst [vmem:[%s252 + $0xe0] sm:$0xff] %v309
                  %v311 = vld [vmem:[%s251 + $0x1d0] sm:$0xff]
                  %312 = vst [vmem:[%s252 + $0xe8] sm:$0xff] %v311
                  %v313 = vld [vmem:[%s251 + $0x1e0] sm:$0xff]
                  %314 = vst [vmem:[%s252 + $0xf0] sm:$0xff] %v313
                  %v315 = vld [vmem:[%s251 + $0x1f0] sm:$0xff]
                  %316 = vst [vmem:[%s252 + $0xf8] sm:$0xff] %v315
                $region52: #{demucs_forward.23} parent=46 // loop_footer
                  %s250 = sadd.s32 1, %s246
                $region53: #{demucs_forward.23} parent=46 // loop_footer_branch
                  %245 = sbr.rel target = $region49
                $region54: #{demucs_forward.23} parent=46 // loop_exit
                  _
              $region47: #{demucs_forward.23} parent=31 // pred_fallthru
                _
              // Predicated region
              $region55: #{demucs_forward.23} parent=31 // pred_check
                _
              $region56: #{demucs_forward.23} parent=31 // pred_check_branch
                %318 = sbr.rel target = $region58
              $region57: #{demucs_forward.23} parent=31 // pred_region
                _
              $region58: #{demucs_forward.23} parent=31 // pred_fallthru
                _
            $region32: #{demucs_forward.23} parent=27 // pred_fallthru
              _
            // Predicated region
            $region33: #{demucs_forward.23} parent=27 // pred_check
              _
            $region34: #{demucs_forward.23} parent=27 // pred_check_branch
              %169 = sbr.rel target = $region36
            $region35: #{demucs_forward.23} parent=27 // pred_region
              loop: start=0, step=1, limit=1
              $region37: #{demucs_forward.23} parent=35 // loop_pre_header
                _
              $region38: #{demucs_forward.23} parent=35 // loop_header
                %s172 = sphi 0, %s176
                %p173 = scmp.ge.s32.totalorder %s172, 1
                %s177 = sphi %s163, %s163
                %s178 = sphi %s160, %s160
              $region39: #{demucs_forward.23} parent=35 // loop_header_branch
                %175 = sbr.rel (%p173) target = $region43
              $region40: #{demucs_forward.23} parent=35 // loop_body
                %v179 = vld [vmem:[%s177] sm:$0xff]
                %180 = vst [vmem:[%s178] sm:$0xff] %v179
                %v181 = vld [vmem:[%s177 + $0x10] sm:$0xff]
                %182 = vst [vmem:[%s178 + $0x8] sm:$0xff] %v181
                %v183 = vld [vmem:[%s177 + $0x20] sm:$0xff]
                %184 = vst [vmem:[%s178 + $0x10] sm:$0xff] %v183
                %v185 = vld [vmem:[%s177 + $0x30] sm:$0xff]
                %186 = vst [vmem:[%s178 + $0x18] sm:$0xff] %v185
                %v187 = vld [vmem:[%s177 + $0x40] sm:$0xff]
                %188 = vst [vmem:[%s178 + $0x20] sm:$0xff] %v187
                %v189 = vld [vmem:[%s177 + $0x50] sm:$0xff]
                %190 = vst [vmem:[%s178 + $0x28] sm:$0xff] %v189
                %v191 = vld [vmem:[%s177 + $0x60] sm:$0xff]
                %192 = vst [vmem:[%s178 + $0x30] sm:$0xff] %v191
                %v193 = vld [vmem:[%s177 + $0x70] sm:$0xff]
                %194 = vst [vmem:[%s178 + $0x38] sm:$0xff] %v193
                %v195 = vld [vmem:[%s177 + $0x80] sm:$0xff]
                %196 = vst [vmem:[%s178 + $0x40] sm:$0xff] %v195
                %v197 = vld [vmem:[%s177 + $0x90] sm:$0xff]
                %198 = vst [vmem:[%s178 + $0x48] sm:$0xff] %v197
                %v199 = vld [vmem:[%s177 + $0xa0] sm:$0xff]
                %200 = vst [vmem:[%s178 + $0x50] sm:$0xff] %v199
                %v201 = vld [vmem:[%s177 + $0xb0] sm:$0xff]
                %202 = vst [vmem:[%s178 + $0x58] sm:$0xff] %v201
                %v203 = vld [vmem:[%s177 + $0xc0] sm:$0xff]
                %204 = vst [vmem:[%s178 + $0x60] sm:$0xff] %v203
                %v205 = vld [vmem:[%s177 + $0xd0] sm:$0xff]
                %206 = vst [vmem:[%s178 + $0x68] sm:$0xff] %v205
                %v207 = vld [vmem:[%s177 + $0xe0] sm:$0xff]
                %208 = vst [vmem:[%s178 + $0x70] sm:$0xff] %v207
                %v209 = vld [vmem:[%s177 + $0xf0] sm:$0xff]
                %210 = vst [vmem:[%s178 + $0x78] sm:$0xff] %v209
                %v211 = vld [vmem:[%s177 + $0x100] sm:$0xff]
                %212 = vst [vmem:[%s178 + $0x80] sm:$0xff] %v211
                %v213 = vld [vmem:[%s177 + $0x110] sm:$0xff]
                %214 = vst [vmem:[%s178 + $0x88] sm:$0xff] %v213
                %v215 = vld [vmem:[%s177 + $0x120] sm:$0xff]
                %216 = vst [vmem:[%s178 + $0x90] sm:$0xff] %v215
                %v217 = vld [vmem:[%s177 + $0x130] sm:$0xff]
                %218 = vst [vmem:[%s178 + $0x98] sm:$0xff] %v217
                %v219 = vld [vmem:[%s177 + $0x140] sm:$0xff]
                %220 = vst [vmem:[%s178 + $0xa0] sm:$0xff] %v219
                %v221 = vld [vmem:[%s177 + $0x150] sm:$0xff]
                %222 = vst [vmem:[%s178 + $0xa8] sm:$0xff] %v221
                %v223 = vld [vmem:[%s177 + $0x160] sm:$0xff]
                %224 = vst [vmem:[%s178 + $0xb0] sm:$0xff] %v223
                %v225 = vld [vmem:[%s177 + $0x170] sm:$0xff]
                %226 = vst [vmem:[%s178 + $0xb8] sm:$0xff] %v225
                %v227 = vld [vmem:[%s177 + $0x180] sm:$0xff]
                %228 = vst [vmem:[%s178 + $0xc0] sm:$0xff] %v227
                %v229 = vld [vmem:[%s177 + $0x190] sm:$0xff]
                %230 = vst [vmem:[%s178 + $0xc8] sm:$0xff] %v229
                %v231 = vld [vmem:[%s177 + $0x1a0] sm:$0xff]
                %232 = vst [vmem:[%s178 + $0xd0] sm:$0xff] %v231
                %v233 = vld [vmem:[%s177 + $0x1b0] sm:$0xff]
                %234 = vst [vmem:[%s178 + $0xd8] sm:$0xff] %v233
                %v235 = vld [vmem:[%s177 + $0x1c0] sm:$0xff]
                %236 = vst [vmem:[%s178 + $0xe0] sm:$0xff] %v235
                %v237 = vld [vmem:[%s177 + $0x1d0] sm:$0xff]
                %238 = vst [vmem:[%s178 + $0xe8] sm:$0xff] %v237
                %v239 = vld [vmem:[%s177 + $0x1e0] sm:$0xff]
                %240 = vst [vmem:[%s178 + $0xf0] sm:$0xff] %v239
                %v241 = vld [vmem:[%s177 + $0x1f0] sm:$0xff]
                %242 = vst [vmem:[%s178 + $0xf8] sm:$0xff] %v241
              $region41: #{demucs_forward.23} parent=35 // loop_footer
                %s176 = sadd.s32 1, %s172
              $region42: #{demucs_forward.23} parent=35 // loop_footer_branch
                %171 = sbr.rel target = $region38
              $region43: #{demucs_forward.23} parent=35 // loop_exit
                _
            $region36: #{demucs_forward.23} parent=27 // pred_fallthru
              _
          $region28: #{demucs_forward.23} parent=23 // pred_fallthru
            _
          %319 = vnop
        $region24: #{demucs_forward.23} parent=19 // pred_fallthru
          _
        // Predicated region
        $region59: #{demucs_forward.23} parent=19 // pred_check
          %p320 = pneg %p93
        $region60: #{demucs_forward.23} parent=19 // pred_check_branch
          %322 = sbr.rel (%p320) target = $region62
        $region61: #{demucs_forward.23} parent=19 // pred_region
          %s323 = smul.u32 2, %s17
          %p324 = scmp.lt.s32.totalorder %s323, 3
          %s325 = scalar_select %p324, %s323, 3
          %s326 = scalar_lea.vmem %s2, %s325
          %s327 = smul.u32 2, %s17
        $region62: #{demucs_forward.23} parent=19 // pred_fallthru
          _
      $region20: #{demucs_forward.23} parent=5 // pred_fallthru
        _
      %p328 = scmp.le.s32.totalorder 1, %s9
      %p329 = scmp.lt.s32.totalorder %s9, 3
      %p330 = pnand %p328, %p329
      %p331 = pneg %p330
      // Predicated region
      $region63: #{demucs_forward.23} parent=5 // pred_check
        _
      $region64: #{demucs_forward.23} parent=5 // pred_check_branch
        %333 = sbr.rel (%p330) target = $region66
      $region65: #{demucs_forward.23} parent=5 // pred_region
        %s334 = ssub.s32 %s9, 1
        %s335 = sand.u32 %s60, 1
        %s336 = sand.u32 %s60, 1
        %s337 = smul.addr %s336, 256
        %s338 = scalar_lea.vmem [#allocation2], %s337
        // Predicated region
        $region67: #{demucs_forward.23} parent=65 // pred_check
          %p339 = pneg %p73
        $region68: #{demucs_forward.23} parent=65 // pred_check_branch
          %341 = sbr.rel (%p339) target = $region70
        $region69: #{demucs_forward.23} parent=65 // pred_region
          _
        $region70: #{demucs_forward.23} parent=65 // pred_fallthru
          _
        %p342 = scmp.lt.s32.totalorder %s18, 0
        %s343 = scalar_select %p342, %s18, 0
        %s344 = smul.addr %s343, 2
        %s345 = smul.addr %s344, 4
        %s346 = scalar_lea.vmem %s0, %s345
        %p347 = pneg %p47
        %p348 = pneg %p44
        %s349 = sand.u32 %s60, 1
        %s350 = sand.u32 %s60, 1
        %s351 = smul.addr %s350, 256
        %s352 = scalar_lea.vmem [#allocation2], %s351
        %p353 = pneg %p73
        %p354 = pneg %p70
        %s355 = smul.u32 2, %s19
        %p356 = scmp.lt.s32.totalorder %s355, 3
        %s357 = scalar_select %p356, %s355, 3
        %s358 = scalar_lea.vmem %s2, %s357
        %p359 = pneg %p99
        %p360 = pneg %p96
        %p361 = pneg %p127
        %p362 = pneg %p124
        %s363 = smul.u32 2, %s19
        %p364 = scmp.lt.s32.totalorder %s18, 0
        %s365 = scalar_select %p364, %s18, 0
        %p366 = scmp.lt.s32.totalorder %s363, 3
        %s367 = scalar_select %p366, %s363, 3
        %s368 = smul.addr %s365, 4
        %s369 = sadd.s32 %s367, %s368
        %s370 = smul.addr %s369, 8
        %s371 = scalar_lea.vmem %s3, %s370
        %p372 = scmp.lt.s32.totalorder %s18, 0
        %s373 = scalar_select %p372, %s18, 0
        %s374 = smul.addr %s373, 2
        %s375 = smul.addr %s374, 4
        %s376 = scalar_lea.vmem %s0, %s375
        %s377 = smul.u32 2, %s19
        %s378 = smul.u32 2, %s19
        %p379 = scmp.lt.s32.totalorder %s378, 3
        %s380 = scalar_select %p379, %s378, 3
        %s381 = scalar_lea.vmem %s2, %s380
        %s382 = smul.u32 2, %s19
        %s383 = smul.u32 2, %s19
        %p384 = scmp.lt.s32.totalorder %s18, 0
        %s385 = scalar_select %p384, %s18, 0
        %p386 = scmp.lt.s32.totalorder %s383, 3
        %s387 = scalar_select %p386, %s383, 3
        %s388 = smul.addr %s385, 4
        %s389 = sadd.s32 %s387, %s388
        %s390 = smul.addr %s389, 8
        %s391 = scalar_lea.vmem %s3, %s390
        %s392 = smul.u32 2, %s19
        %v393 = vld [vmem:[%s376] sm:$0xff]
        %v394 = vld [vmem:[%s338] sm:$0xff]
        %v395 = vld [vmem:[%s338 + $0x8] sm:$0xff]
        %v396 = vld [vmem:[%s338 + $0x10] sm:$0xff]
        %v397 = vld [vmem:[%s338 + $0x18] sm:$0xff]
        %v398 = vld [vmem:[%s338 + $0x20] sm:$0xff]
        %v399 = vld [vmem:[%s338 + $0x28] sm:$0xff]
        %v400 = vld [vmem:[%s338 + $0x30] sm:$0xff]
        %v401 = vld [vmem:[%s338 + $0x38] sm:$0xff]
        %v402 = vld [vmem:[%s338 + $0x40] sm:$0xff]
        %v403 = vld [vmem:[%s338 + $0x48] sm:$0xff]
        %v404 = vld [vmem:[%s338 + $0x50] sm:$0xff]
        %v405 = vld [vmem:[%s338 + $0x58] sm:$0xff]
        %v406 = vld [vmem:[%s338 + $0x60] sm:$0xff]
        %v407 = vld [vmem:[%s338 + $0x68] sm:$0xff]
        %v408 = vld [vmem:[%s338 + $0x70] sm:$0xff]
        %v409 = vld [vmem:[%s338 + $0x78] sm:$0xff]
        %v410 = vld [vmem:[%s338 + $0x80] sm:$0xff]
        %v411 = vld [vmem:[%s338 + $0x88] sm:$0xff]
        %v412 = vld [vmem:[%s338 + $0x90] sm:$0xff]
        %v413 = vld [vmem:[%s338 + $0x98] sm:$0xff]
        %v414 = vld [vmem:[%s338 + $0xa0] sm:$0xff]
        %v415 = vld [vmem:[%s338 + $0xa8] sm:$0xff]
        %v416 = vld [vmem:[%s338 + $0xb0] sm:$0xff]
        %v417 = vld [vmem:[%s338 + $0xb8] sm:$0xff]
        %v418 = vld [vmem:[%s338 + $0xc0] sm:$0xff]
        %v419 = vld [vmem:[%s338 + $0xc8] sm:$0xff]
        %v420 = vld [vmem:[%s338 + $0xd0] sm:$0xff]
        %v421 = vld [vmem:[%s338 + $0xd8] sm:$0xff]
        %v422 = vld [vmem:[%s338 + $0xe0] sm:$0xff]
        %v423 = vld [vmem:[%s338 + $0xe8] sm:$0xff]
        %v424 = vld [vmem:[%s338 + $0xf0] sm:$0xff]
        %v425 = vld [vmem:[%s338 + $0xf8] sm:$0xff]
        %v426 = vld [vmem:[%s381] sm:$0x3]
        %v428 = vlaneseq
        %v429 = vshrl.u32 %v428, 7
        %v430 = vsub.s32 0, %v429
        %v431 = vrot.slane %v426, %v430
        %v432 = vlaneseq
        %v433 = vshrl.u32 %v432, 7
        %v434 = vsub.s32 1, %v433
        %v435 = vrot.slane %v426, %v434
        %v439 = vunpack.c.l.b16 %v393
        %v440 = vunpack.c.h.b16 %v393
        %v441 = vpack.c.b16 %v439, %v439
        %v442 = vpack.c.b16 %v440, %v440
        %v477 = vunpack.c.l.b16 %v394
        %v478 = vunpack.c.h.b16 %v394
        %v479 = vunpack.c.l.b16 %v395
        %v480 = vunpack.c.h.b16 %v395
        %v481 = vunpack.c.l.b16 %v396
        %v482 = vunpack.c.h.b16 %v396
        %v483 = vunpack.c.l.b16 %v397
        %v484 = vunpack.c.h.b16 %v397
        %v485 = vunpack.c.l.b16 %v398
        %v486 = vunpack.c.h.b16 %v398
        %v487 = vunpack.c.l.b16 %v399
        %v488 = vunpack.c.h.b16 %v399
        %v489 = vunpack.c.l.b16 %v400
        %v490 = vunpack.c.h.b16 %v400
        %v491 = vunpack.c.l.b16 %v401
        %v492 = vunpack.c.h.b16 %v401
        %v493 = vunpack.c.l.b16 %v402
        %v494 = vunpack.c.h.b16 %v402
        %v495 = vunpack.c.l.b16 %v403
        %v496 = vunpack.c.h.b16 %v403
        %v497 = vunpack.c.l.b16 %v404
        %v498 = vunpack.c.h.b16 %v404
        %v499 = vunpack.c.l.b16 %v405
        %v500 = vunpack.c.h.b16 %v405
        %v501 = vunpack.c.l.b16 %v406
        %v502 = vunpack.c.h.b16 %v406
        %v503 = vunpack.c.l.b16 %v407
        %v504 = vunpack.c.h.b16 %v407
        %v505 = vunpack.c.l.b16 %v408
        %v506 = vunpack.c.h.b16 %v408
        %v507 = vunpack.c.l.b16 %v409
        %v508 = vunpack.c.h.b16 %v409
        %v509 = vunpack.c.l.b16 %v410
        %v510 = vunpack.c.h.b16 %v410
        %v511 = vunpack.c.l.b16 %v411
        %v512 = vunpack.c.h.b16 %v411
        %v513 = vunpack.c.l.b16 %v412
        %v514 = vunpack.c.h.b16 %v412
        %v515 = vunpack.c.l.b16 %v413
        %v516 = vunpack.c.h.b16 %v413
        %v517 = vunpack.c.l.b16 %v414
        %v518 = vunpack.c.h.b16 %v414
        %v519 = vunpack.c.l.b16 %v415
        %v520 = vunpack.c.h.b16 %v415
        %v521 = vunpack.c.l.b16 %v416
        %v522 = vunpack.c.h.b16 %v416
        %v523 = vunpack.c.l.b16 %v417
        %v524 = vunpack.c.h.b16 %v417
        %v525 = vunpack.c.l.b16 %v418
        %v526 = vunpack.c.h.b16 %v418
        %v527 = vunpack.c.l.b16 %v419
        %v528 = vunpack.c.h.b16 %v419
        %v529 = vunpack.c.l.b16 %v420
        %v530 = vunpack.c.h.b16 %v420
        %v531 = vunpack.c.l.b16 %v421
        %v532 = vunpack.c.h.b16 %v421
        %v533 = vunpack.c.l.b16 %v422
        %v534 = vunpack.c.h.b16 %v422
        %v535 = vunpack.c.l.b16 %v423
        %v536 = vunpack.c.h.b16 %v423
        %v537 = vunpack.c.l.b16 %v424
        %v538 = vunpack.c.h.b16 %v424
        %v539 = vunpack.c.l.b16 %v425
        %v540 = vunpack.c.h.b16 %v425
        %v541 = vpack.c.b16 %v479, %v477
        %v542 = vpack.c.b16 %v480, %v478
        %v543 = vpack.c.b16 %v483, %v481
        %v544 = vpack.c.b16 %v484, %v482
        %v545 = vpack.c.b16 %v487, %v485
        %v546 = vpack.c.b16 %v488, %v486
        %v547 = vpack.c.b16 %v491, %v489
        %v548 = vpack.c.b16 %v492, %v490
        %v549 = vpack.c.b16 %v495, %v493
        %v550 = vpack.c.b16 %v496, %v494
        %v551 = vpack.c.b16 %v499, %v497
        %v552 = vpack.c.b16 %v500, %v498
        %v553 = vpack.c.b16 %v503, %v501
        %v554 = vpack.c.b16 %v504, %v502
        %v555 = vpack.c.b16 %v507, %v505
        %v556 = vpack.c.b16 %v508, %v506
        %v557 = vpack.c.b16 %v511, %v509
        %v558 = vpack.c.b16 %v512, %v510
        %v559 = vpack.c.b16 %v515, %v513
        %v560 = vpack.c.b16 %v516, %v514
        %v561 = vpack.c.b16 %v519, %v517
        %v562 = vpack.c.b16 %v520, %v518
        %v563 = vpack.c.b16 %v523, %v521
        %v564 = vpack.c.b16 %v524, %v522
        %v565 = vpack.c.b16 %v527, %v525
        %v566 = vpack.c.b16 %v528, %v526
        %v567 = vpack.c.b16 %v531, %v529
        %v568 = vpack.c.b16 %v532, %v530
        %v569 = vpack.c.b16 %v535, %v533
        %v570 = vpack.c.b16 %v536, %v534
        %v571 = vpack.c.b16 %v539, %v537
        %v572 = vpack.c.b16 %v540, %v538
        %605 = vmatprep.subr.bf16.mxu0 %v542
        %606 = vmatpush1.bf16.msra.mxu0 %v541
        %607 = vmatprep.subr.bf16.mxu0 %v544
        %608 = vmatpush1.bf16.msra.mxu0 %v543
        %609 = vmatprep.subr.bf16.mxu0 %v546
        %610 = vmatpush1.bf16.msra.mxu0 %v545
        %611 = vmatprep.subr.bf16.mxu0 %v548
        %612 = vmatpush1.bf16.msra.mxu0 %v547
        %613 = vmatprep.subr.bf16.mxu0 %v550
        %614 = vmatpush1.bf16.msra.mxu0 %v549
        %615 = vmatprep.subr.bf16.mxu0 %v552
        %616 = vmatpush1.bf16.msra.mxu0 %v551
        %617 = vmatprep.subr.bf16.mxu0 %v554
        %618 = vmatpush1.bf16.msra.mxu0 %v553
        %619 = vmatprep.subr.bf16.mxu0 %v556
        %620 = vmatpush1.bf16.msra.mxu0 %v555
        %621 = vmatprep.subr.bf16.mxu0 %v558
        %622 = vmatpush1.bf16.msra.mxu0 %v557
        %623 = vmatprep.subr.bf16.mxu0 %v560
        %624 = vmatpush1.bf16.msra.mxu0 %v559
        %625 = vmatprep.subr.bf16.mxu0 %v562
        %626 = vmatpush1.bf16.msra.mxu0 %v561
        %627 = vmatprep.subr.bf16.mxu0 %v564
        %628 = vmatpush1.bf16.msra.mxu0 %v563
        %629 = vmatprep.subr.bf16.mxu0 %v566
        %630 = vmatpush1.bf16.msra.mxu0 %v565
        %631 = vmatprep.subr.bf16.mxu0 %v568
        %632 = vmatpush1.bf16.msra.mxu0 %v567
        %633 = vmatprep.subr.bf16.mxu0 %v570
        %634 = vmatpush1.bf16.msra.mxu0 %v569
        %635 = vmatprep.subr.bf16.mxu0 %v572
        %636 = vmatpush1.bf16.msra.mxu0 %v571
        %637 = vmatprep.mubr.bf16.mxu0 %v442
        %638 = vmatmul.mubr.bf16.gmra.mrb[0].mxu0 %v441
        %v639 = vpop.f32.mrb[0].mxu0
        %v640 = vadd.f32 %v431, %v639
        %v641 = vpop.f32.mrb[0].mxu0
        %v642 = vadd.f32 %v435, %v641
        %v643 = vpop.f32.mrb[0].mxu0
        %v644 = vpop.f32.mrb[0].mxu0
        %645 = vdwg.mxu0
        %646 = vst [vmem:[%s391] sm:$0xff] %v640
        %647 = vst [vmem:[%s391 + $0x8] sm:$0xff] %v642
        %s648 = smul.u32 2, %s19
        %p649 = scmp.lt.s32.totalorder %s18, 0
        %s650 = scalar_select %p649, %s18, 0
        %p651 = scmp.lt.s32.totalorder %s648, 3
        %s652 = scalar_select %p651, %s648, 3
        %s653 = smul.addr %s650, 4
        %s654 = sadd.s32 %s652, %s653
        %s655 = smul.addr %s654, 8
        %s656 = scalar_lea.vmem %s3, %s655
        // Predicated region
        $region71: #{demucs_forward.23} parent=65 // pred_check
          %p657 = pneg %p124
        $region72: #{demucs_forward.23} parent=65 // pred_check_branch
          %659 = sbr.rel (%p657) target = $region74
        $region73: #{demucs_forward.23} parent=65 // pred_region
          %s660 = smul.u32 2, %s19
        $region74: #{demucs_forward.23} parent=65 // pred_fallthru
          _
      $region66: #{demucs_forward.23} parent=5 // pred_fallthru
        _
      %p661 = scmp.le.s32.totalorder 2, %s9
      // Predicated region
      $region75: #{demucs_forward.23} parent=5 // pred_check
        %p662 = pneg %p661
      $region76: #{demucs_forward.23} parent=5 // pred_check_branch
        %664 = sbr.rel (%p662) target = $region78
      $region77: #{demucs_forward.23} parent=5 // pred_region
        %s665 = ssub.s32 %s9, 2
        // Predicated region
        $region79: #{demucs_forward.23} parent=77 // pred_check
          %p666 = pneg %p130
        $region80: #{demucs_forward.23} parent=77 // pred_check_branch
          %668 = sbr.rel (%p666) target = $region82
        $region81: #{demucs_forward.23} parent=77 // pred_region
          %s669 = smul.u32 2, %s21
          %p670 = scmp.lt.s32.totalorder %s20, 0
          %s671 = scalar_select %p670, %s20, 0
          %p672 = scmp.lt.s32.totalorder %s669, 3
          %s673 = scalar_select %p672, %s669, 3
          %s674 = smul.addr %s671, 4
          %s675 = sadd.s32 %s673, %s674
          %s676 = smul.addr %s675, 8
          %s677 = scalar_lea.vmem %s3, %s676
        $region82: #{demucs_forward.23} parent=77 // pred_fallthru
          _
      $region78: #{demucs_forward.23} parent=5 // pred_fallthru
        _
    $region6: #{demucs_forward.23} parent=1 // loop_footer
      %s13 = sadd.s32 1, %s9
    $region7: #{demucs_forward.23} parent=1 // loop_footer_branch
      %8 = sbr.rel target = $region3
    $region8: #{demucs_forward.23} parent=1 // loop_exit
      _

// kernel: demucs_forward.25
$region0: #{demucs_forward.25}
  #allocation0 [shape = 'u32[]', space=smem, size = 0x4, offset = 0x4, fixed_abs, tag = 'smem constant byte address 0x4 - core index']
  #allocation1 [shape = 'u32[144,128]{1,0:T(1,128)}', space=vmem, size = 0x12000, scoped, tag = 'internal scratch']
  %s0 = inlined_call_operand.vmem [shape: bf16[8,256], index: 0, kind: input, shape index: {}]
  %s1 = inlined_call_operand.vmem [shape: bf16[256,128], index: 1, kind: input, shape index: {}]
  %s2 = inlined_call_operand.vmem [shape: f32[1,128], index: 2, kind: input, shape index: {}]
  %s3 = inlined_call_operand.vmem [shape: f32[8,128], index: 3, kind: output, shape index: {}]
  %s4 = sld [smem:[#allocation0]]
  $region22: #{demucs_forward.25} parent=0
    _
  %s6 = ssub.s32 1, %s4
  %s7 = scalar_select 0, %s6, %s4
  // Predicated region
  $region2: #{demucs_forward.25} parent=0 // pred_check
    _
  $region3: #{demucs_forward.25} parent=0 // pred_check_branch
    %9 = sbr.rel (0) target = $region5
  $region4: #{demucs_forward.25} parent=0 // pred_region
    _
  $region5: #{demucs_forward.25} parent=0 // pred_fallthru
    _
  // Predicated region
  $region6: #{demucs_forward.25} parent=0 // pred_check
    _
  $region7: #{demucs_forward.25} parent=0 // pred_check_branch
    %11 = sbr.rel (0) target = $region9
  $region8: #{demucs_forward.25} parent=0 // pred_region
    _
  $region9: #{demucs_forward.25} parent=0 // pred_fallthru
    _
  // Predicated region
  $region10: #{demucs_forward.25} parent=0 // pred_check
    _
  $region11: #{demucs_forward.25} parent=0 // pred_check_branch
    %13 = sbr.rel (0) target = $region13
  $region12: #{demucs_forward.25} parent=0 // pred_region
    _
  $region13: #{demucs_forward.25} parent=0 // pred_fallthru
    _
  %v15 = vld [vmem:[%s0] sm:$0xff]
  %v16 = vld [vmem:[%s1] sm:$0xf]
  %v17 = vld [vmem:[%s1 + $0x4] sm:$0xf]
  %v18 = vld [vmem:[%s1 + $0x8] sm:$0xf]
  %v19 = vld [vmem:[%s1 + $0xc] sm:$0xf]
  %v20 = vld [vmem:[%s1 + $0x10] sm:$0xf]
  %v21 = vld [vmem:[%s1 + $0x14] sm:$0xf]
  %v22 = vld [vmem:[%s1 + $0x18] sm:$0xf]
  %v23 = vld [vmem:[%s1 + $0x1c] sm:$0xf]
  %v24 = vld [vmem:[%s1 + $0x20] sm:$0xf]
  %v25 = vld [vmem:[%s1 + $0x24] sm:$0xf]
  %v26 = vld [vmem:[%s1 + $0x28] sm:$0xf]
  %v27 = vld [vmem:[%s1 + $0x2c] sm:$0xf]
  %v28 = vld [vmem:[%s1 + $0x30] sm:$0xf]
  %v29 = vld [vmem:[%s1 + $0x34] sm:$0xf]
  %v30 = vld [vmem:[%s1 + $0x38] sm:$0xf]
  %v31 = vld [vmem:[%s1 + $0x3c] sm:$0xf]
  %v32 = vld [vmem:[%s1 + $0x40] sm:$0xf]
  %v33 = vld [vmem:[%s1 + $0x44] sm:$0xf]
  %v34 = vld [vmem:[%s1 + $0x48] sm:$0xf]
  %v35 = vld [vmem:[%s1 + $0x4c] sm:$0xf]
  %v36 = vld [vmem:[%s1 + $0x50] sm:$0xf]
  %v37 = vld [vmem:[%s1 + $0x54] sm:$0xf]
  %v38 = vld [vmem:[%s1 + $0x58] sm:$0xf]
  %v39 = vld [vmem:[%s1 + $0x5c] sm:$0xf]
  %v40 = vld [vmem:[%s1 + $0x60] sm:$0xf]
  %v41 = vld [vmem:[%s1 + $0x64] sm:$0xf]
  %v42 = vld [vmem:[%s1 + $0x68] sm:$0xf]
  %v43 = vld [vmem:[%s1 + $0x6c] sm:$0xf]
  %v44 = vld [vmem:[%s1 + $0x70] sm:$0xf]
  %v45 = vld [vmem:[%s1 + $0x74] sm:$0xf]
  %v46 = vld [vmem:[%s1 + $0x78] sm:$0xf]
  %v47 = vld [vmem:[%s1 + $0x7c] sm:$0xf]
  %v48 = vld [vmem:[%s2] sm:$0x1]
  %v50 = vlaneseq
  %v51 = vshrl.u32 %v50, 7
  %v52 = vsub.s32 0, %v51
  %v53 = vrot.slane %v48, %v52
  %v56 = vunpack.c.l.b16 %v15
  %v57 = vunpack.c.h.b16 %v15
  %v58 = vpack.c.b16 %v56, %v56
  %v59 = vpack.c.b16 %v57, %v57
  %v94 = vunpack.c.l.b16 %v16
  %v95 = vunpack.c.l.b16 %v17
  %v96 = vunpack.c.l.b16 %v18
  %v97 = vunpack.c.l.b16 %v19
  %v98 = vunpack.c.l.b16 %v20
  %v99 = vunpack.c.l.b16 %v21
  %v100 = vunpack.c.l.b16 %v22
  %v101 = vunpack.c.l.b16 %v23
  %v102 = vunpack.c.l.b16 %v24
  %v103 = vunpack.c.l.b16 %v25
  %v104 = vunpack.c.l.b16 %v26
  %v105 = vunpack.c.l.b16 %v27
  %v106 = vunpack.c.l.b16 %v28
  %v107 = vunpack.c.l.b16 %v29
  %v108 = vunpack.c.l.b16 %v30
  %v109 = vunpack.c.l.b16 %v31
  %v110 = vunpack.c.l.b16 %v32
  %v111 = vunpack.c.l.b16 %v33
  %v112 = vunpack.c.l.b16 %v34
  %v113 = vunpack.c.l.b16 %v35
  %v114 = vunpack.c.l.b16 %v36
  %v115 = vunpack.c.l.b16 %v37
  %v116 = vunpack.c.l.b16 %v38
  %v117 = vunpack.c.l.b16 %v39
  %v118 = vunpack.c.l.b16 %v40
  %v119 = vunpack.c.l.b16 %v41
  %v120 = vunpack.c.l.b16 %v42
  %v121 = vunpack.c.l.b16 %v43
  %v122 = vunpack.c.l.b16 %v44
  %v123 = vunpack.c.l.b16 %v45
  %v124 = vunpack.c.l.b16 %v46
  %v125 = vunpack.c.l.b16 %v47
  %v126 = vpack.c.b16 %v95, %v94
  %v127 = vpack.c.b16 %v97, %v96
  %v128 = vpack.c.b16 %v99, %v98
  %v129 = vpack.c.b16 %v101, %v100
  %v130 = vpack.c.b16 %v103, %v102
  %v131 = vpack.c.b16 %v105, %v104
  %v132 = vpack.c.b16 %v107, %v106
  %v133 = vpack.c.b16 %v109, %v108
  %v134 = vpack.c.b16 %v111, %v110
  %v135 = vpack.c.b16 %v113, %v112
  %v136 = vpack.c.b16 %v115, %v114
  %v137 = vpack.c.b16 %v117, %v116
  %v138 = vpack.c.b16 %v119, %v118
  %v139 = vpack.c.b16 %v121, %v120
  %v140 = vpack.c.b16 %v123, %v122
  %v141 = vpack.c.b16 %v125, %v124
  %158 = vmatprep.subr.bf16.mxu0 0
  %159 = vmatpush1.bf16.msra.mxu0 %v126
  %160 = vmatprep.subr.bf16.mxu0 0
  %161 = vmatpush1.bf16.msra.mxu0 %v127
  %162 = vmatprep.subr.bf16.mxu0 0
  %163 = vmatpush1.bf16.msra.mxu0 %v128
  %164 = vmatprep.subr.bf16.mxu0 0
  %165 = vmatpush1.bf16.msra.mxu0 %v129
  %166 = vmatprep.subr.bf16.mxu0 0
  %167 = vmatpush1.bf16.msra.mxu0 %v130
  %168 = vmatprep.subr.bf16.mxu0 0
  %169 = vmatpush1.bf16.msra.mxu0 %v131
  %170 = vmatprep.subr.bf16.mxu0 0
  %171 = vmatpush1.bf16.msra.mxu0 %v132
  %172 = vmatprep.subr.bf16.mxu0 0
  %173 = vmatpush1.bf16.msra.mxu0 %v133
  %174 = vmatprep.subr.bf16.mxu0 0
  %175 = vmatpush1.bf16.msra.mxu0 %v134
  %176 = vmatprep.subr.bf16.mxu0 0
  %177 = vmatpush1.bf16.msra.mxu0 %v135
  %178 = vmatprep.subr.bf16.mxu0 0
  %179 = vmatpush1.bf16.msra.mxu0 %v136
  %180 = vmatprep.subr.bf16.mxu0 0
  %181 = vmatpush1.bf16.msra.mxu0 %v137
  %182 = vmatprep.subr.bf16.mxu0 0
  %183 = vmatpush1.bf16.msra.mxu0 %v138
  %184 = vmatprep.subr.bf16.mxu0 0
  %185 = vmatpush1.bf16.msra.mxu0 %v139
  %186 = vmatprep.subr.bf16.mxu0 0
  %187 = vmatpush1.bf16.msra.mxu0 %v140
  %188 = vmatprep.subr.bf16.mxu0 0
  %189 = vmatpush1.bf16.msra.mxu0 %v141
  %190 = vmatprep.mubr.bf16.mxu0 %v59
  %191 = vmatmul.mubr.bf16.gmra.mrb[0].mxu0 %v58
  %v192 = vpop.f32.mrb[0].mxu0
  %v193 = vadd.f32 %v53, %v192
  %v194 = vpop.f32.mrb[0].mxu0
  %v195 = vpop.f32.mrb[0].mxu0
  %v196 = vpop.f32.mrb[0].mxu0
  %197 = vdwg.mxu0
  %198 = vst [vmem:[%s3] sm:$0xff] %v193
  // Predicated region
  $region14: #{demucs_forward.25} parent=0 // pred_check
    _
  $region15: #{demucs_forward.25} parent=0 // pred_check_branch
    %200 = sbr.rel (0) target = $region17
  $region16: #{demucs_forward.25} parent=0 // pred_region
    _
  $region17: #{demucs_forward.25} parent=0 // pred_fallthru
    _
  // Predicated region
  $region18: #{demucs_forward.25} parent=0 // pred_check
    _
  $region19: #{demucs_forward.25} parent=0 // pred_check_branch
    %202 = sbr.rel (0) target = $region21
  $region20: #{demucs_forward.25} parent=0 // pred_region
    _
  $region21: #{demucs_forward.25} parent=0 // pred_fallthru
    _

// kernel: demucs_forward.21
$region0: #{demucs_forward.21}
  #allocation0 [shape = 'u32[]', space=smem, size = 0x4, offset = 0x4, fixed_abs, tag = 'smem constant byte address 0x4 - core index']
  #allocation1 [shape = 'u32[144,128]{1,0:T(1,128)}', space=vmem, size = 0x12000, scoped, tag = 'internal scratch']
  #allocation2 [shape = 'f32[2,128]{1,0:T(2,128)}', space=vmem, size = 0x400, scoped, tag = 'scratch operand']
  #allocation3 [shape = 'f32[2,128]{1,0:T(2,128)}', space=vmem, size = 0x400, scoped, tag = 'scratch operand']
  #allocation4 [shape = 'f32[2,128]{1,0:T(2,128)}', space=vmem, size = 0x400, scoped, tag = 'scratch operand']
  #allocation5 [shape = 'f32[2,128]{1,0:T(2,128)}', space=vmem, size = 0x400, scoped, tag = 'scratch operand']
  %s0 = inlined_call_operand.vmem [shape: f32[4,2,512], index: 0, kind: input, shape index: {}]
  %s1 = inlined_call_operand.vmem [shape: f32[4,2,512], index: 1, kind: input, shape index: {}]
  %s2 = inlined_call_operand.vmem [shape: f32[128,512], index: 2, kind: input, shape index: {}]
  %s3 = inlined_call_operand.vmem [shape: f32[128,512], index: 3, kind: input, shape index: {}]
  %s4 = inlined_call_operand.vmem [shape: f32[4,2,128], index: 4, kind: output, shape index: {0}]
  %s5 = inlined_call_operand.vmem [shape: f32[4,2,128], index: 5, kind: output, shape index: {1}]
  %6 = xla_tuple %s4, %s5
  %s7 = sld [smem:[#allocation0]]
  $region38: #{demucs_forward.21} parent=0
    _
  %s9 = ssub.s32 1, %s7
  %s10 = scalar_select 0, %s9, %s7
  // Predicated region
  $region2: #{demucs_forward.21} parent=0 // pred_check
    _
  $region3: #{demucs_forward.21} parent=0 // pred_check_branch
    %12 = sbr.rel (0) target = $region5
  $region4: #{demucs_forward.21} parent=0 // pred_region
    _
  $region5: #{demucs_forward.21} parent=0 // pred_fallthru
    _
  // Predicated region
  $region6: #{demucs_forward.21} parent=0 // pred_check
    _
  $region7: #{demucs_forward.21} parent=0 // pred_check_branch
    %14 = sbr.rel (0) target = $region9
  $region8: #{demucs_forward.21} parent=0 // pred_region
    %s15 = ssub.s32 0, 0
    %s16 = smul.u32 4, %s15
    %p17 = scmp.lt.s32.totalorder %s16, 3
    %s18 = scalar_select %p17, %s16, 3
    %s19 = smul.addr %s18, 4
    %s20 = smul.addr %s19, 2
    %s21 = scalar_lea.vmem %s1, %s20
    %s22 = ssub.s32 0, 0
    %s23 = smul.u32 4, %s22
  $region9: #{demucs_forward.21} parent=0 // pred_fallthru
    _
  // Predicated region
  $region10: #{demucs_forward.21} parent=0 // pred_check
    _
  $region11: #{demucs_forward.21} parent=0 // pred_check_branch
    %25 = sbr.rel (0) target = $region13
  $region12: #{demucs_forward.21} parent=0 // pred_region
    _
  $region13: #{demucs_forward.21} parent=0 // pred_fallthru
    _
  // Predicated region
  $region14: #{demucs_forward.21} parent=0 // pred_check
    _
  $region15: #{demucs_forward.21} parent=0 // pred_check_branch
    %27 = sbr.rel (0) target = $region17
  $region16: #{demucs_forward.21} parent=0 // pred_region
    _
  $region17: #{demucs_forward.21} parent=0 // pred_fallthru
    _
  %s28 = ssub.s32 0, 0
  %s29 = smul.u32 4, %s28
  %p30 = scmp.lt.s32.totalorder %s29, 3
  %s31 = scalar_select %p30, %s29, 3
  %s32 = smul.addr %s31, 4
  %s33 = smul.addr %s32, 2
  %s34 = scalar_lea.vmem %s1, %s33
  %s35 = ssub.s32 0, 0
  %s36 = smul.u32 4, %s35
  %p37 = scmp.lt.s32.totalorder %s36, 3
  %s38 = scalar_select %p37, %s36, 3
  %s39 = smul.addr %s38, 2
  %s40 = scalar_lea.vmem %s5, %s39
  %s41 = ssub.s32 0, 0
  %s42 = smul.u32 4, %s41
  %p43 = scmp.lt.s32.totalorder %s42, 3
  %s44 = scalar_select %p43, %s42, 3
  %s45 = smul.addr %s44, 4
  %s46 = smul.addr %s45, 2
  %s47 = scalar_lea.vmem %s1, %s46
  %s48 = ssub.s32 0, 0
  %s49 = smul.u32 4, %s48
  %s50 = ssub.s32 0, 0
  %s51 = smul.u32 4, %s50
  %p52 = scmp.lt.s32.totalorder %s51, 3
  %s53 = scalar_select %p52, %s51, 3
  %s54 = smul.addr %s53, 2
  %s55 = scalar_lea.vmem %s5, %s54
  %s56 = ssub.s32 0, 0
  %s57 = smul.u32 4, %s56
  %p58 = scmp.eq.s32.totalorder 0, 0
  // Predicated region
  $region18: #{demucs_forward.21} parent=0 // pred_check
    %p59 = pneg %p58
  $region19: #{demucs_forward.21} parent=0 // pred_check_branch
    %61 = sbr.rel (%p59) target = $region21
  $region20: #{demucs_forward.21} parent=0 // pred_region
    %62 = vst [vmem:[#allocation2] sm:$0x3] 0.0
    %63 = vst [vmem:[#allocation3] sm:$0x3] 0.0
    %64 = vst [vmem:[#allocation4] sm:$0x3] 0.0
    %65 = vst [vmem:[#allocation5] sm:$0x3] 0.0
  $region21: #{demucs_forward.21} parent=0 // pred_fallthru
    _
  %v66 = vld [vmem:[%s2] sm:$0xff]
  %v67 = vld [vmem:[%s2 + $0x8] sm:$0xff]
  %v68 = vld [vmem:[%s2 + $0x10] sm:$0xff]
  %v69 = vld [vmem:[%s2 + $0x18] sm:$0xff]
  %v70 = vld [vmem:[%s2 + $0x20] sm:$0xff]
  %v71 = vld [vmem:[%s2 + $0x28] sm:$0xff]
  %v72 = vld [vmem:[%s2 + $0x30] sm:$0xff]
  %v73 = vld [vmem:[%s2 + $0x38] sm:$0xff]
  %v74 = vld [vmem:[%s2 + $0x40] sm:$0xff]
  %v75 = vld [vmem:[%s2 + $0x48] sm:$0xff]
  %v76 = vld [vmem:[%s2 + $0x50] sm:$0xff]
  %v77 = vld [vmem:[%s2 + $0x58] sm:$0xff]
  %v78 = vld [vmem:[%s2 + $0x60] sm:$0xff]
  %v79 = vld [vmem:[%s2 + $0x68] sm:$0xff]
  %v80 = vld [vmem:[%s2 + $0x70] sm:$0xff]
  %v81 = vld [vmem:[%s2 + $0x78] sm:$0xff]
  %v82 = vld [vmem:[%s2 + $0x80] sm:$0xff]
  %v83 = vld [vmem:[%s2 + $0x88] sm:$0xff]
  %v84 = vld [vmem:[%s2 + $0x90] sm:$0xff]
  %v85 = vld [vmem:[%s2 + $0x98] sm:$0xff]
  %v86 = vld [vmem:[%s2 + $0xa0] sm:$0xff]
  %v87 = vld [vmem:[%s2 + $0xa8] sm:$0xff]
  %v88 = vld [vmem:[%s2 + $0xb0] sm:$0xff]
  %v89 = vld [vmem:[%s2 + $0xb8] sm:$0xff]
  %v90 = vld [vmem:[%s2 + $0xc0] sm:$0xff]
  %v91 = vld [vmem:[%s2 + $0xc8] sm:$0xff]
  %v92 = vld [vmem:[%s2 + $0xd0] sm:$0xff]
  %v93 = vld [vmem:[%s2 + $0xd8] sm:$0xff]
  %v94 = vld [vmem:[%s2 + $0xe0] sm:$0xff]
  %v95 = vld [vmem:[%s2 + $0xe8] sm:$0xff]
  %v96 = vld [vmem:[%s2 + $0xf0] sm:$0xff]
  %v97 = vld [vmem:[%s2 + $0xf8] sm:$0xff]
  %v98 = vld [vmem:[%s2 + $0x100] sm:$0xff]
  %v99 = vld [vmem:[%s2 + $0x108] sm:$0xff]
  %v100 = vld [vmem:[%s2 + $0x110] sm:$0xff]
  %v101 = vld [vmem:[%s2 + $0x118] sm:$0xff]
  %v102 = vld [vmem:[%s2 + $0x120] sm:$0xff]
  %v103 = vld [vmem:[%s2 + $0x128] sm:$0xff]
  %v104 = vld [vmem:[%s2 + $0x130] sm:$0xff]
  %v105 = vld [vmem:[%s2 + $0x138] sm:$0xff]
  %v106 = vld [vmem:[%s2 + $0x140] sm:$0xff]
  %v107 = vld [vmem:[%s2 + $0x148] sm:$0xff]
  %v108 = vld [vmem:[%s2 + $0x150] sm:$0xff]
  %v109 = vld [vmem:[%s2 + $0x158] sm:$0xff]
  %v110 = vld [vmem:[%s2 + $0x160] sm:$0xff]
  %v111 = vld [vmem:[%s2 + $0x168] sm:$0xff]
  %v112 = vld [vmem:[%s2 + $0x170] sm:$0xff]
  %v113 = vld [vmem:[%s2 + $0x178] sm:$0xff]
  %v114 = vld [vmem:[%s2 + $0x180] sm:$0xff]
  %v115 = vld [vmem:[%s2 + $0x188] sm:$0xff]
  %v116 = vld [vmem:[%s2 + $0x190] sm:$0xff]
  %v117 = vld [vmem:[%s2 + $0x198] sm:$0xff]
  %v118 = vld [vmem:[%s2 + $0x1a0] sm:$0xff]
  %v119 = vld [vmem:[%s2 + $0x1a8] sm:$0xff]
  %v120 = vld [vmem:[%s2 + $0x1b0] sm:$0xff]
  %v121 = vld [vmem:[%s2 + $0x1b8] sm:$0xff]
  %v122 = vld [vmem:[%s2 + $0x1c0] sm:$0xff]
  %v123 = vld [vmem:[%s2 + $0x1c8] sm:$0xff]
  %v124 = vld [vmem:[%s2 + $0x1d0] sm:$0xff]
  %v125 = vld [vmem:[%s2 + $0x1d8] sm:$0xff]
  %v126 = vld [vmem:[%s2 + $0x1e0] sm:$0xff]
  %v127 = vld [vmem:[%s2 + $0x1e8] sm:$0xff]
  %v128 = vld [vmem:[%s2 + $0x1f0] sm:$0xff]
  %v129 = vld [vmem:[%s2 + $0x1f8] sm:$0xff]
  %v130 = vld [vmem:[%s3] sm:$0xff]
  %v131 = vld [vmem:[%s3 + $0x8] sm:$0xff]
  %v132 = vld [vmem:[%s3 + $0x10] sm:$0xff]
  %v133 = vld [vmem:[%s3 + $0x18] sm:$0xff]
  %v134 = vld [vmem:[%s3 + $0x20] sm:$0xff]
  %v135 = vld [vmem:[%s3 + $0x28] sm:$0xff]
  %v136 = vld [vmem:[%s3 + $0x30] sm:$0xff]
  %v137 = vld [vmem:[%s3 + $0x38] sm:$0xff]
  %v138 = vld [vmem:[%s3 + $0x40] sm:$0xff]
  %v139 = vld [vmem:[%s3 + $0x48] sm:$0xff]
  %v140 = vld [vmem:[%s3 + $0x50] sm:$0xff]
  %v141 = vld [vmem:[%s3 + $0x58] sm:$0xff]
  %v142 = vld [vmem:[%s3 + $0x60] sm:$0xff]
  %v143 = vld [vmem:[%s3 + $0x68] sm:$0xff]
  %v144 = vld [vmem:[%s3 + $0x70] sm:$0xff]
  %v145 = vld [vmem:[%s3 + $0x78] sm:$0xff]
  %v146 = vld [vmem:[%s3 + $0x80] sm:$0xff]
  %v147 = vld [vmem:[%s3 + $0x88] sm:$0xff]
  %v148 = vld [vmem:[%s3 + $0x90] sm:$0xff]
  %v149 = vld [vmem:[%s3 + $0x98] sm:$0xff]
  %v150 = vld [vmem:[%s3 + $0xa0] sm:$0xff]
  %v151 = vld [vmem:[%s3 + $0xa8] sm:$0xff]
  %v152 = vld [vmem:[%s3 + $0xb0] sm:$0xff]
  %v153 = vld [vmem:[%s3 + $0xb8] sm:$0xff]
  %v154 = vld [vmem:[%s3 + $0xc0] sm:$0xff]
  %v155 = vld [vmem:[%s3 + $0xc8] sm:$0xff]
  %v156 = vld [vmem:[%s3 + $0xd0] sm:$0xff]
  %v157 = vld [vmem:[%s3 + $0xd8] sm:$0xff]
  %v158 = vld [vmem:[%s3 + $0xe0] sm:$0xff]
  %v159 = vld [vmem:[%s3 + $0xe8] sm:$0xff]
  %v160 = vld [vmem:[%s3 + $0xf0] sm:$0xff]
  %v161 = vld [vmem:[%s3 + $0xf8] sm:$0xff]
  %v162 = vld [vmem:[%s3 + $0x100] sm:$0xff]
  %v163 = vld [vmem:[%s3 + $0x108] sm:$0xff]
  %v164 = vld [vmem:[%s3 + $0x110] sm:$0xff]
  %v165 = vld [vmem:[%s3 + $0x118] sm:$0xff]
  %v166 = vld [vmem:[%s3 + $0x120] sm:$0xff]
  %v167 = vld [vmem:[%s3 + $0x128] sm:$0xff]
  %v168 = vld [vmem:[%s3 + $0x130] sm:$0xff]
  %v169 = vld [vmem:[%s3 + $0x138] sm:$0xff]
  %v170 = vld [vmem:[%s3 + $0x140] sm:$0xff]
  %v171 = vld [vmem:[%s3 + $0x148] sm:$0xff]
  %v172 = vld [vmem:[%s3 + $0x150] sm:$0xff]
  %v173 = vld [vmem:[%s3 + $0x158] sm:$0xff]
  %v174 = vld [vmem:[%s3 + $0x160] sm:$0xff]
  %v175 = vld [vmem:[%s3 + $0x168] sm:$0xff]
  %v176 = vld [vmem:[%s3 + $0x170] sm:$0xff]
  %v177 = vld [vmem:[%s3 + $0x178] sm:$0xff]
  %v178 = vld [vmem:[%s3 + $0x180] sm:$0xff]
  %v179 = vld [vmem:[%s3 + $0x188] sm:$0xff]
  %v180 = vld [vmem:[%s3 + $0x190] sm:$0xff]
  %v181 = vld [vmem:[%s3 + $0x198] sm:$0xff]
  %v182 = vld [vmem:[%s3 + $0x1a0] sm:$0xff]
  %v183 = vld [vmem:[%s3 + $0x1a8] sm:$0xff]
  %v184 = vld [vmem:[%s3 + $0x1b0] sm:$0xff]
  %v185 = vld [vmem:[%s3 + $0x1b8] sm:$0xff]
  %v186 = vld [vmem:[%s3 + $0x1c0] sm:$0xff]
  %v187 = vld [vmem:[%s3 + $0x1c8] sm:$0xff]
  %v188 = vld [vmem:[%s3 + $0x1d0] sm:$0xff]
  %v189 = vld [vmem:[%s3 + $0x1d8] sm:$0xff]
  %v190 = vld [vmem:[%s3 + $0x1e0] sm:$0xff]
  %v191 = vld [vmem:[%s3 + $0x1e8] sm:$0xff]
  %v192 = vld [vmem:[%s3 + $0x1f0] sm:$0xff]
  %v193 = vld [vmem:[%s3 + $0x1f8] sm:$0xff]
  %v194 = vld [vmem:[%s0] sm:$0xff]
  %v195 = vld [vmem:[#allocation2] sm:$0x3]
  %196 = vmatprep.subr.mxu0 %v67
  %197 = vmatpush1.msra.mxu0 %v66
  %198 = vmatprep.subr.mxu0 %v71
  %199 = vmatpush1.msra.mxu0 %v70
  %200 = vmatprep.subr.mxu0 %v75
  %201 = vmatpush1.msra.mxu0 %v74
  %202 = vmatprep.subr.mxu0 %v79
  %203 = vmatpush1.msra.mxu0 %v78
  %204 = vmatprep.subr.mxu0 %v83
  %205 = vmatpush1.msra.mxu0 %v82
  %206 = vmatprep.subr.mxu0 %v87
  %207 = vmatpush1.msra.mxu0 %v86
  %208 = vmatprep.subr.mxu0 %v91
  %209 = vmatpush1.msra.mxu0 %v90
  %210 = vmatprep.subr.mxu0 %v95
  %211 = vmatpush1.msra.mxu0 %v94
  %212 = vmatprep.subr.mxu0 %v99
  %213 = vmatpush1.msra.mxu0 %v98
  %214 = vmatprep.subr.mxu0 %v103
  %215 = vmatpush1.msra.mxu0 %v102
  %216 = vmatprep.subr.mxu0 %v107
  %217 = vmatpush1.msra.mxu0 %v106
  %218 = vmatprep.subr.mxu0 %v111
  %219 = vmatpush1.msra.mxu0 %v110
  %220 = vmatprep.subr.mxu0 %v115
  %221 = vmatpush1.msra.mxu0 %v114
  %222 = vmatprep.subr.mxu0 %v119
  %223 = vmatpush1.msra.mxu0 %v118
  %224 = vmatprep.subr.mxu0 %v123
  %225 = vmatpush1.msra.mxu0 %v122
  %226 = vmatprep.subr.mxu0 %v127
  %227 = vmatpush1.msra.mxu0 %v126
  %228 = vmatprep.subr.mxu0 0.0
  %229 = vmatpush1.msra.mxu0 0.0
  %230 = vmatprep.subr.mxu0 0.0
  %231 = vmatpush1.msra.mxu0 0.0
  %232 = vmatprep.subr.mxu0 0.0
  %233 = vmatpush1.msra.mxu0 0.0
  %234 = vmatprep.subr.mxu0 0.0
  %235 = vmatpush1.msra.mxu0 0.0
  %236 = vmatprep.subr.mxu0 0.0
  %237 = vmatpush1.msra.mxu0 0.0
  %238 = vmatprep.subr.mxu0 0.0
  %239 = vmatpush1.msra.mxu0 0.0
  %240 = vmatprep.subr.mxu0 0.0
  %241 = vmatpush1.msra.mxu0 0.0
  %242 = vmatprep.subr.mxu0 0.0
  %243 = vmatpush1.msra.mxu0 0.0
  %244 = vmatprep.subr.mxu0 0.0
  %245 = vmatpush1.msra.mxu0 0.0
  %246 = vmatprep.subr.mxu0 0.0
  %247 = vmatpush1.msra.mxu0 0.0
  %248 = vmatprep.subr.mxu0 0.0
  %249 = vmatpush1.msra.mxu0 0.0
  %250 = vmatprep.subr.mxu0 0.0
  %251 = vmatpush1.msra.mxu0 0.0
  %252 = vmatprep.subr.mxu0 0.0
  %253 = vmatpush1.msra.mxu0 0.0
  %254 = vmatprep.subr.mxu0 0.0
  %255 = vmatpush1.msra.mxu0 0.0
  %256 = vmatprep.subr.mxu0 0.0
  %257 = vmatpush1.msra.mxu0 0.0
  %258 = vmatprep.subr.mxu0 0.0
  %259 = vmatpush1.msra.mxu0 0.0
  %260 = vmatprep.mubr.f32.mxu0 0.0
  %261 = vmatmul.mubr.f32.gmra.mrb[0].mxu0 %v195
  %v262 = vpop.f32.mrb[0].mxu0
  %v263 = vadd.f32 0.0, %v262
  %v264 = vpop.f32.mrb[0].mxu0
  %v265 = vadd.f32 0.0, %v264
  %266 = vdwg.mxu0
  %267 = vmatprep.subr.mxu0 %v69
  %268 = vmatpush1.msra.mxu0 %v68
  %269 = vmatprep.subr.mxu0 %v73
  %270 = vmatpush1.msra.mxu0 %v72
  %271 = vmatprep.subr.mxu0 %v77
  %272 = vmatpush1.msra.mxu0 %v76
  %273 = vmatprep.subr.mxu0 %v81
  %274 = vmatpush1.msra.mxu0 %v80
  %275 = vmatprep.subr.mxu0 %v85
  %276 = vmatpush1.msra.mxu0 %v84
  %277 = vmatprep.subr.mxu0 %v89
  %278 = vmatpush1.msra.mxu0 %v88
  %279 = vmatprep.subr.mxu0 %v93
  %280 = vmatpush1.msra.mxu0 %v92
  %281 = vmatprep.subr.mxu0 %v97
  %282 = vmatpush1.msra.mxu0 %v96
  %283 = vmatprep.subr.mxu0 %v101
  %284 = vmatpush1.msra.mxu0 %v100
  %285 = vmatprep.subr.mxu0 %v105
  %286 = vmatpush1.msra.mxu0 %v104
  %287 = vmatprep.subr.mxu0 %v109
  %288 = vmatpush1.msra.mxu0 %v108
  %289 = vmatprep.subr.mxu0 %v113
  %290 = vmatpush1.msra.mxu0 %v112
  %291 = vmatprep.subr.mxu0 %v117
  %292 = vmatpush1.msra.mxu0 %v116
  %293 = vmatprep.subr.mxu0 %v121
  %294 = vmatpush1.msra.mxu0 %v120
  %295 = vmatprep.subr.mxu0 %v125
  %296 = vmatpush1.msra.mxu0 %v124
  %297 = vmatprep.subr.mxu0 %v129
  %298 = vmatpush1.msra.mxu0 %v128
  %299 = vmatprep.subr.mxu0 0.0
  %300 = vmatpush1.msra.mxu0 0.0
  %301 = vmatprep.subr.mxu0 0.0
  %302 = vmatpush1.msra.mxu0 0.0
  %303 = vmatprep.subr.mxu0 0.0
  %304 = vmatpush1.msra.mxu0 0.0
  %305 = vmatprep.subr.mxu0 0.0
  %306 = vmatpush1.msra.mxu0 0.0
  %307 = vmatprep.subr.mxu0 0.0
  %308 = vmatpush1.msra.mxu0 0.0
  %309 = vmatprep.subr.mxu0 0.0
  %310 = vmatpush1.msra.mxu0 0.0
  %311 = vmatprep.subr.mxu0 0.0
  %312 = vmatpush1.msra.mxu0 0.0
  %313 = vmatprep.subr.mxu0 0.0
  %314 = vmatpush1.msra.mxu0 0.0
  %315 = vmatprep.subr.mxu0 0.0
  %316 = vmatpush1.msra.mxu0 0.0
  %317 = vmatprep.subr.mxu0 0.0
  %318 = vmatpush1.msra.mxu0 0.0
  %319 = vmatprep.subr.mxu0 0.0
  %320 = vmatpush1.msra.mxu0 0.0
  %321 = vmatprep.subr.mxu0 0.0
  %322 = vmatpush1.msra.mxu0 0.0
  %323 = vmatprep.subr.mxu0 0.0
  %324 = vmatpush1.msra.mxu0 0.0
  %325 = vmatprep.subr.mxu0 0.0
  %326 = vmatpush1.msra.mxu0 0.0
  %327 = vmatprep.subr.mxu0 0.0
  %328 = vmatpush1.msra.mxu0 0.0
  %329 = vmatprep.subr.mxu0 0.0
  %330 = vmatpush1.msra.mxu0 0.0
  %331 = vmatprep.mubr.f32.mxu0 0.0
  %332 = vmatmul.mubr.f32.gmra.mrb[0].mxu0 %v195
  %v333 = vpop.f32.mrb[0].mxu0
  %v334 = vadd.f32 0.0, %v333
  %v335 = vpop.f32.mrb[0].mxu0
  %v336 = vadd.f32 0.0, %v335
  %337 = vdwg.mxu0
  %v342 = vcombine.low %v263, %v265
  %v343 = vcombine.low %v334, %v336
  %v345 = vunpack.c.l.s4 1983009808
  %v346 = vunpack.c.0.s8 %v345
  %v347 = vlaneseq
  %v348 = vshrl.u32 %v347, 7
  %v349 = vsub.s32 %v346, %v348
  %v350 = vrot.slane %v342, %v349
  %v352 = vunpack.c.l.s4 1983009808
  %v353 = vunpack.c.0.s8 %v352
  %v354 = vlaneseq
  %v355 = vshrl.u32 %v354, 7
  %v356 = vsub.s32 %v353, %v355
  %v357 = vrot.slane %v343, %v356
  %v358 = vcombine.low %v350, %v357
  %v360 = vadd.f32 %v194, %v358
  %v361 = vld [vmem:[#allocation3] sm:$0x3]
  %v362 = vxor.u32 %v360, 2147483648
  %v363 = vmul.f32 %v362, 1.442695
  %v364 = vpow.pop %v363
  %v365 = vadd.f32 %v364, 1.0
  %v366 = vrcp.pop %v365
  %v367 = vmul.f32 1.0, %v366
  %v369 = vrot.slane %v360, 2
  %v371 = vxor.u32 %v369, 2147483648
  %v372 = vmul.f32 %v371, 1.442695
  %v373 = vpow.pop %v372
  %v374 = vadd.f32 %v373, 1.0
  %v375 = vrcp.pop %v374
  %v376 = vmul.f32 1.0, %v375
  %v377 = vrot.slane %v360, 4
  %v379 = vtanh.pop %v377
  %v380 = vrot.slane %v360, 6
  %v382 = vxor.u32 %v380, 2147483648
  %v383 = vmul.f32 %v382, 1.442695
  %v384 = vpow.pop %v383
  %v385 = vadd.f32 %v384, 1.0
  %v386 = vrcp.pop %v385
  %v387 = vmul.f32 1.0, %v386
  %v388 = vmul.f32 %v376, %v361
  %v389 = vmul.f32 %v367, %v379
  %v390 = vadd.f32 %v388, %v389
  %v391 = vtanh.pop %v390
  %v392 = vmul.f32 %v387, %v391
  %393 = vst [vmem:[#allocation3] sm:$0x3] %v390
  %394 = vst [vmem:[#allocation2] sm:$0x3] %v392
  %395 = vst [vmem:[%s4] sm:$0x3] %v392
  %s396 = scalar_lea.vmem %s47, 24
  %v397 = vld [vmem:[%s396] sm:$0xff]
  %v398 = vld [vmem:[#allocation4] sm:$0x3]
  %399 = vmatprep.subr.mxu0 %v131
  %400 = vmatpush1.msra.mxu0 %v130
  %401 = vmatprep.subr.mxu0 %v135
  %402 = vmatpush1.msra.mxu0 %v134
  %403 = vmatprep.subr.mxu0 %v139
  %404 = vmatpush1.msra.mxu0 %v138
  %405 = vmatprep.subr.mxu0 %v143
  %406 = vmatpush1.msra.mxu0 %v142
  %407 = vmatprep.subr.mxu0 %v147
  %408 = vmatpush1.msra.mxu0 %v146
  %409 = vmatprep.subr.mxu0 %v151
  %410 = vmatpush1.msra.mxu0 %v150
  %411 = vmatprep.subr.mxu0 %v155
  %412 = vmatpush1.msra.mxu0 %v154
  %413 = vmatprep.subr.mxu0 %v159
  %414 = vmatpush1.msra.mxu0 %v158
  %415 = vmatprep.subr.mxu0 %v163
  %416 = vmatpush1.msra.mxu0 %v162
  %417 = vmatprep.subr.mxu0 %v167
  %418 = vmatpush1.msra.mxu0 %v166
  %419 = vmatprep.subr.mxu0 %v171
  %420 = vmatpush1.msra.mxu0 %v170
  %421 = vmatprep.subr.mxu0 %v175
  %422 = vmatpush1.msra.mxu0 %v174
  %423 = vmatprep.subr.mxu0 %v179
  %424 = vmatpush1.msra.mxu0 %v178
  %425 = vmatprep.subr.mxu0 %v183
  %426 = vmatpush1.msra.mxu0 %v182
  %427 = vmatprep.subr.mxu0 %v187
  %428 = vmatpush1.msra.mxu0 %v186
  %429 = vmatprep.subr.mxu0 %v191
  %430 = vmatpush1.msra.mxu0 %v190
  %431 = vmatprep.subr.mxu0 0.0
  %432 = vmatpush1.msra.mxu0 0.0
  %433 = vmatprep.subr.mxu0 0.0
  %434 = vmatpush1.msra.mxu0 0.0
  %435 = vmatprep.subr.mxu0 0.0
  %436 = vmatpush1.msra.mxu0 0.0
  %437 = vmatprep.subr.mxu0 0.0
  %438 = vmatpush1.msra.mxu0 0.0
  %439 = vmatprep.subr.mxu0 0.0
  %440 = vmatpush1.msra.mxu0 0.0
  %441 = vmatprep.subr.mxu0 0.0
  %442 = vmatpush1.msra.mxu0 0.0
  %443 = vmatprep.subr.mxu0 0.0
  %444 = vmatpush1.msra.mxu0 0.0
  %445 = vmatprep.subr.mxu0 0.0
  %446 = vmatpush1.msra.mxu0 0.0
  %447 = vmatprep.subr.mxu0 0.0
  %448 = vmatpush1.msra.mxu0 0.0
  %449 = vmatprep.subr.mxu0 0.0
  %450 = vmatpush1.msra.mxu0 0.0
  %451 = vmatprep.subr.mxu0 0.0
  %452 = vmatpush1.msra.mxu0 0.0
  %453 = vmatprep.subr.mxu0 0.0
  %454 = vmatpush1.msra.mxu0 0.0
  %455 = vmatprep.subr.mxu0 0.0
  %456 = vmatpush1.msra.mxu0 0.0
  %457 = vmatprep.subr.mxu0 0.0
  %458 = vmatpush1.msra.mxu0 0.0
  %459 = vmatprep.subr.mxu0 0.0
  %460 = vmatpush1.msra.mxu0 0.0
  %461 = vmatprep.subr.mxu0 0.0
  %462 = vmatpush1.msra.mxu0 0.0
  %463 = vmatprep.mubr.f32.mxu0 0.0
  %464 = vmatmul.mubr.f32.gmra.mrb[0].mxu0 %v398
  %v465 = vpop.f32.mrb[0].mxu0
  %v466 = vadd.f32 0.0, %v465
  %v467 = vpop.f32.mrb[0].mxu0
  %v468 = vadd.f32 0.0, %v467
  %469 = vdwg.mxu0
  %470 = vmatprep.subr.mxu0 %v133
  %471 = vmatpush1.msra.mxu0 %v132
  %472 = vmatprep.subr.mxu0 %v137
  %473 = vmatpush1.msra.mxu0 %v136
  %474 = vmatprep.subr.mxu0 %v141
  %475 = vmatpush1.msra.mxu0 %v140
  %476 = vmatprep.subr.mxu0 %v145
  %477 = vmatpush1.msra.mxu0 %v144
  %478 = vmatprep.subr.mxu0 %v149
  %479 = vmatpush1.msra.mxu0 %v148
  %480 = vmatprep.subr.mxu0 %v153
  %481 = vmatpush1.msra.mxu0 %v152
  %482 = vmatprep.subr.mxu0 %v157
  %483 = vmatpush1.msra.mxu0 %v156
  %484 = vmatprep.subr.mxu0 %v161
  %485 = vmatpush1.msra.mxu0 %v160
  %486 = vmatprep.subr.mxu0 %v165
  %487 = vmatpush1.msra.mxu0 %v164
  %488 = vmatprep.subr.mxu0 %v169
  %489 = vmatpush1.msra.mxu0 %v168
  %490 = vmatprep.subr.mxu0 %v173
  %491 = vmatpush1.msra.mxu0 %v172
  %492 = vmatprep.subr.mxu0 %v177
  %493 = vmatpush1.msra.mxu0 %v176
  %494 = vmatprep.subr.mxu0 %v181
  %495 = vmatpush1.msra.mxu0 %v180
  %496 = vmatprep.subr.mxu0 %v185
  %497 = vmatpush1.msra.mxu0 %v184
  %498 = vmatprep.subr.mxu0 %v189
  %499 = vmatpush1.msra.mxu0 %v188
  %500 = vmatprep.subr.mxu0 %v193
  %501 = vmatpush1.msra.mxu0 %v192
  %502 = vmatprep.subr.mxu0 0.0
  %503 = vmatpush1.msra.mxu0 0.0
  %504 = vmatprep.subr.mxu0 0.0
  %505 = vmatpush1.msra.mxu0 0.0
  %506 = vmatprep.subr.mxu0 0.0
  %507 = vmatpush1.msra.mxu0 0.0
  %508 = vmatprep.subr.mxu0 0.0
  %509 = vmatpush1.msra.mxu0 0.0
  %510 = vmatprep.subr.mxu0 0.0
  %511 = vmatpush1.msra.mxu0 0.0
  %512 = vmatprep.subr.mxu0 0.0
  %513 = vmatpush1.msra.mxu0 0.0
  %514 = vmatprep.subr.mxu0 0.0
  %515 = vmatpush1.msra.mxu0 0.0
  %516 = vmatprep.subr.mxu0 0.0
  %517 = vmatpush1.msra.mxu0 0.0
  %518 = vmatprep.subr.mxu0 0.0
  %519 = vmatpush1.msra.mxu0 0.0
  %520 = vmatprep.subr.mxu0 0.0
  %521 = vmatpush1.msra.mxu0 0.0
  %522 = vmatprep.subr.mxu0 0.0
  %523 = vmatpush1.msra.mxu0 0.0
  %524 = vmatprep.subr.mxu0 0.0
  %525 = vmatpush1.msra.mxu0 0.0
  %526 = vmatprep.subr.mxu0 0.0
  %527 = vmatpush1.msra.mxu0 0.0
  %528 = vmatprep.subr.mxu0 0.0
  %529 = vmatpush1.msra.mxu0 0.0
  %530 = vmatprep.subr.mxu0 0.0
  %531 = vmatpush1.msra.mxu0 0.0
  %532 = vmatprep.subr.mxu0 0.0
  %533 = vmatpush1.msra.mxu0 0.0
  %534 = vmatprep.mubr.f32.mxu0 0.0
  %535 = vmatmul.mubr.f32.gmra.mrb[0].mxu0 %v398
  %v536 = vpop.f32.mrb[0].mxu0
  %v537 = vadd.f32 0.0, %v536
  %v538 = vpop.f32.mrb[0].mxu0
  %v539 = vadd.f32 0.0, %v538
  %540 = vdwg.mxu0
  %v545 = vcombine.low %v466, %v468
  %v546 = vcombine.low %v537, %v539
  %v548 = vunpack.c.l.s4 1983009808
  %v549 = vunpack.c.0.s8 %v548
  %v550 = vlaneseq
  %v551 = vshrl.u32 %v550, 7
  %v552 = vsub.s32 %v549, %v551
  %v553 = vrot.slane %v545, %v552
  %v555 = vunpack.c.l.s4 1983009808
  %v556 = vunpack.c.0.s8 %v555
  %v557 = vlaneseq
  %v558 = vshrl.u32 %v557, 7
  %v559 = vsub.s32 %v556, %v558
  %v560 = vrot.slane %v546, %v559
  %v561 = vcombine.low %v553, %v560
  %v563 = vadd.f32 %v397, %v561
  %v564 = vld [vmem:[#allocation5] sm:$0x3]
  %v565 = vxor.u32 %v563, 2147483648
  %v566 = vmul.f32 %v565, 1.442695
  %v567 = vpow.pop %v566
  %v568 = vadd.f32 %v567, 1.0
  %v569 = vrcp.pop %v568
  %v570 = vmul.f32 1.0, %v569
  %v572 = vrot.slane %v563, 2
  %v574 = vxor.u32 %v572, 2147483648
  %v575 = vmul.f32 %v574, 1.442695
  %v576 = vpow.pop %v575
  %v577 = vadd.f32 %v576, 1.0
  %v578 = vrcp.pop %v577
  %v579 = vmul.f32 1.0, %v578
  %v580 = vrot.slane %v563, 4
  %v582 = vtanh.pop %v580
  %v583 = vrot.slane %v563, 6
  %v585 = vxor.u32 %v583, 2147483648
  %v586 = vmul.f32 %v585, 1.442695
  %v587 = vpow.pop %v586
  %v588 = vadd.f32 %v587, 1.0
  %v589 = vrcp.pop %v588
  %v590 = vmul.f32 1.0, %v589
  %v591 = vmul.f32 %v579, %v564
  %v592 = vmul.f32 %v570, %v582
  %v593 = vadd.f32 %v591, %v592
  %v594 = vtanh.pop %v593
  %v595 = vmul.f32 %v590, %v594
  %596 = vst [vmem:[#allocation5] sm:$0x3] %v593
  %597 = vst [vmem:[#allocation4] sm:$0x3] %v595
  %s598 = scalar_lea.vmem %s55, 6
  %599 = vst [vmem:[%s598] sm:$0x3] %v595
  %s600 = scalar_lea.vmem %s0, 8
  %v601 = vld [vmem:[%s600] sm:$0xff]
  %v602 = vld [vmem:[#allocation2] sm:$0x3]
  %603 = vmatprep.subr.mxu0 %v67
  %604 = vmatpush1.msra.mxu0 %v66
  %605 = vmatprep.subr.mxu0 %v71
  %606 = vmatpush1.msra.mxu0 %v70
  %607 = vmatprep.subr.mxu0 %v75
  %608 = vmatpush1.msra.mxu0 %v74
  %609 = vmatprep.subr.mxu0 %v79
  %610 = vmatpush1.msra.mxu0 %v78
  %611 = vmatprep.subr.mxu0 %v83
  %612 = vmatpush1.msra.mxu0 %v82
  %613 = vmatprep.subr.mxu0 %v87
  %614 = vmatpush1.msra.mxu0 %v86
  %615 = vmatprep.subr.mxu0 %v91
  %616 = vmatpush1.msra.mxu0 %v90
  %617 = vmatprep.subr.mxu0 %v95
  %618 = vmatpush1.msra.mxu0 %v94
  %619 = vmatprep.subr.mxu0 %v99
  %620 = vmatpush1.msra.mxu0 %v98
  %621 = vmatprep.subr.mxu0 %v103
  %622 = vmatpush1.msra.mxu0 %v102
  %623 = vmatprep.subr.mxu0 %v107
  %624 = vmatpush1.msra.mxu0 %v106
  %625 = vmatprep.subr.mxu0 %v111
  %626 = vmatpush1.msra.mxu0 %v110
  %627 = vmatprep.subr.mxu0 %v115
  %628 = vmatpush1.msra.mxu0 %v114
  %629 = vmatprep.subr.mxu0 %v119
  %630 = vmatpush1.msra.mxu0 %v118
  %631 = vmatprep.subr.mxu0 %v123
  %632 = vmatpush1.msra.mxu0 %v122
  %633 = vmatprep.subr.mxu0 %v127
  %634 = vmatpush1.msra.mxu0 %v126
  %635 = vmatprep.subr.mxu0 0.0
  %636 = vmatpush1.msra.mxu0 0.0
  %637 = vmatprep.subr.mxu0 0.0
  %638 = vmatpush1.msra.mxu0 0.0
  %639 = vmatprep.subr.mxu0 0.0
  %640 = vmatpush1.msra.mxu0 0.0
  %641 = vmatprep.subr.mxu0 0.0
  %642 = vmatpush1.msra.mxu0 0.0
  %643 = vmatprep.subr.mxu0 0.0
  %644 = vmatpush1.msra.mxu0 0.0
  %645 = vmatprep.subr.mxu0 0.0
  %646 = vmatpush1.msra.mxu0 0.0
  %647 = vmatprep.subr.mxu0 0.0
  %648 = vmatpush1.msra.mxu0 0.0
  %649 = vmatprep.subr.mxu0 0.0
  %650 = vmatpush1.msra.mxu0 0.0
  %651 = vmatprep.subr.mxu0 0.0
  %652 = vmatpush1.msra.mxu0 0.0
  %653 = vmatprep.subr.mxu0 0.0
  %654 = vmatpush1.msra.mxu0 0.0
  %655 = vmatprep.subr.mxu0 0.0
  %656 = vmatpush1.msra.mxu0 0.0
  %657 = vmatprep.subr.mxu0 0.0
  %658 = vmatpush1.msra.mxu0 0.0
  %659 = vmatprep.subr.mxu0 0.0
  %660 = vmatpush1.msra.mxu0 0.0
  %661 = vmatprep.subr.mxu0 0.0
  %662 = vmatpush1.msra.mxu0 0.0
  %663 = vmatprep.subr.mxu0 0.0
  %664 = vmatpush1.msra.mxu0 0.0
  %665 = vmatprep.subr.mxu0 0.0
  %666 = vmatpush1.msra.mxu0 0.0
  %667 = vmatprep.mubr.f32.mxu0 0.0
  %668 = vmatmul.mubr.f32.gmra.mrb[0].mxu0 %v602
  %v669 = vpop.f32.mrb[0].mxu0
  %v670 = vadd.f32 0.0, %v669
  %v671 = vpop.f32.mrb[0].mxu0
  %v672 = vadd.f32 0.0, %v671
  %673 = vdwg.mxu0
  %674 = vmatprep.subr.mxu0 %v69
  %675 = vmatpush1.msra.mxu0 %v68
  %676 = vmatprep.subr.mxu0 %v73
  %677 = vmatpush1.msra.mxu0 %v72
  %678 = vmatprep.subr.mxu0 %v77
  %679 = vmatpush1.msra.mxu0 %v76
  %680 = vmatprep.subr.mxu0 %v81
  %681 = vmatpush1.msra.mxu0 %v80
  %682 = vmatprep.subr.mxu0 %v85
  %683 = vmatpush1.msra.mxu0 %v84
  %684 = vmatprep.subr.mxu0 %v89
  %685 = vmatpush1.msra.mxu0 %v88
  %686 = vmatprep.subr.mxu0 %v93
  %687 = vmatpush1.msra.mxu0 %v92
  %688 = vmatprep.subr.mxu0 %v97
  %689 = vmatpush1.msra.mxu0 %v96
  %690 = vmatprep.subr.mxu0 %v101
  %691 = vmatpush1.msra.mxu0 %v100
  %692 = vmatprep.subr.mxu0 %v105
  %693 = vmatpush1.msra.mxu0 %v104
  %694 = vmatprep.subr.mxu0 %v109
  %695 = vmatpush1.msra.mxu0 %v108
  %696 = vmatprep.subr.mxu0 %v113
  %697 = vmatpush1.msra.mxu0 %v112
  %698 = vmatprep.subr.mxu0 %v117
  %699 = vmatpush1.msra.mxu0 %v116
  %700 = vmatprep.subr.mxu0 %v121
  %701 = vmatpush1.msra.mxu0 %v120
  %702 = vmatprep.subr.mxu0 %v125
  %703 = vmatpush1.msra.mxu0 %v124
  %704 = vmatprep.subr.mxu0 %v129
  %705 = vmatpush1.msra.mxu0 %v128
  %706 = vmatprep.subr.mxu0 0.0
  %707 = vmatpush1.msra.mxu0 0.0
  %708 = vmatprep.subr.mxu0 0.0
  %709 = vmatpush1.msra.mxu0 0.0
  %710 = vmatprep.subr.mxu0 0.0
  %711 = vmatpush1.msra.mxu0 0.0
  %712 = vmatprep.subr.mxu0 0.0
  %713 = vmatpush1.msra.mxu0 0.0
  %714 = vmatprep.subr.mxu0 0.0
  %715 = vmatpush1.msra.mxu0 0.0
  %716 = vmatprep.subr.mxu0 0.0
  %717 = vmatpush1.msra.mxu0 0.0
  %718 = vmatprep.subr.mxu0 0.0
  %719 = vmatpush1.msra.mxu0 0.0
  %720 = vmatprep.subr.mxu0 0.0
  %721 = vmatpush1.msra.mxu0 0.0
  %722 = vmatprep.subr.mxu0 0.0
  %723 = vmatpush1.msra.mxu0 0.0
  %724 = vmatprep.subr.mxu0 0.0
  %725 = vmatpush1.msra.mxu0 0.0
  %726 = vmatprep.subr.mxu0 0.0
  %727 = vmatpush1.msra.mxu0 0.0
  %728 = vmatprep.subr.mxu0 0.0
  %729 = vmatpush1.msra.mxu0 0.0
  %730 = vmatprep.subr.mxu0 0.0
  %731 = vmatpush1.msra.mxu0 0.0
  %732 = vmatprep.subr.mxu0 0.0
  %733 = vmatpush1.msra.mxu0 0.0
  %734 = vmatprep.subr.mxu0 0.0
  %735 = vmatpush1.msra.mxu0 0.0
  %736 = vmatprep.subr.mxu0 0.0
  %737 = vmatpush1.msra.mxu0 0.0
  %738 = vmatprep.mubr.f32.mxu0 0.0
  %739 = vmatmul.mubr.f32.gmra.mrb[0].mxu0 %v602
  %v740 = vpop.f32.mrb[0].mxu0
  %v741 = vadd.f32 0.0, %v740
  %v742 = vpop.f32.mrb[0].mxu0
  %v743 = vadd.f32 0.0, %v742
  %744 = vdwg.mxu0
  %v749 = vcombine.low %v670, %v672
  %v750 = vcombine.low %v741, %v743
  %v752 = vunpack.c.l.s4 1983009808
  %v753 = vunpack.c.0.s8 %v752
  %v754 = vlaneseq
  %v755 = vshrl.u32 %v754, 7
  %v756 = vsub.s32 %v753, %v755
  %v757 = vrot.slane %v749, %v756
  %v759 = vunpack.c.l.s4 1983009808
  %v760 = vunpack.c.0.s8 %v759
  %v761 = vlaneseq
  %v762 = vshrl.u32 %v761, 7
  %v763 = vsub.s32 %v760, %v762
  %v764 = vrot.slane %v750, %v763
  %v765 = vcombine.low %v757, %v764
  %v767 = vadd.f32 %v601, %v765
  %v768 = vld [vmem:[#allocation3] sm:$0x3]
  %v769 = vxor.u32 %v767, 2147483648
  %v770 = vmul.f32 %v769, 1.442695
  %v771 = vpow.pop %v770
  %v772 = vadd.f32 %v771, 1.0
  %v773 = vrcp.pop %v772
  %v774 = vmul.f32 1.0, %v773
  %v776 = vrot.slane %v767, 2
  %v778 = vxor.u32 %v776, 2147483648
  %v779 = vmul.f32 %v778, 1.442695
  %v780 = vpow.pop %v779
  %v781 = vadd.f32 %v780, 1.0
  %v782 = vrcp.pop %v781
  %v783 = vmul.f32 1.0, %v782
  %v784 = vrot.slane %v767, 4
  %v786 = vtanh.pop %v784
  %v787 = vrot.slane %v767, 6
  %v789 = vxor.u32 %v787, 2147483648
  %v790 = vmul.f32 %v789, 1.442695
  %v791 = vpow.pop %v790
  %v792 = vadd.f32 %v791, 1.0
  %v793 = vrcp.pop %v792
  %v794 = vmul.f32 1.0, %v793
  %v795 = vmul.f32 %v783, %v768
  %v796 = vmul.f32 %v774, %v786
  %v797 = vadd.f32 %v795, %v796
  %v798 = vtanh.pop %v797
  %v799 = vmul.f32 %v794, %v798
  %800 = vst [vmem:[#allocation3] sm:$0x3] %v797
  %801 = vst [vmem:[#allocation2] sm:$0x3] %v799
  %s802 = scalar_lea.vmem %s4, 2
  %803 = vst [vmem:[%s802] sm:$0x3] %v799
  %s804 = scalar_lea.vmem %s47, 16
  %v805 = vld [vmem:[%s804] sm:$0xff]
  %v806 = vld [vmem:[#allocation4] sm:$0x3]
  %807 = vmatprep.subr.mxu0 %v131
  %808 = vmatpush1.msra.mxu0 %v130
  %809 = vmatprep.subr.mxu0 %v135
  %810 = vmatpush1.msra.mxu0 %v134
  %811 = vmatprep.subr.mxu0 %v139
  %812 = vmatpush1.msra.mxu0 %v138
  %813 = vmatprep.subr.mxu0 %v143
  %814 = vmatpush1.msra.mxu0 %v142
  %815 = vmatprep.subr.mxu0 %v147
  %816 = vmatpush1.msra.mxu0 %v146
  %817 = vmatprep.subr.mxu0 %v151
  %818 = vmatpush1.msra.mxu0 %v150
  %819 = vmatprep.subr.mxu0 %v155
  %820 = vmatpush1.msra.mxu0 %v154
  %821 = vmatprep.subr.mxu0 %v159
  %822 = vmatpush1.msra.mxu0 %v158
  %823 = vmatprep.subr.mxu0 %v163
  %824 = vmatpush1.msra.mxu0 %v162
  %825 = vmatprep.subr.mxu0 %v167
  %826 = vmatpush1.msra.mxu0 %v166
  %827 = vmatprep.subr.mxu0 %v171
  %828 = vmatpush1.msra.mxu0 %v170
  %829 = vmatprep.subr.mxu0 %v175
  %830 = vmatpush1.msra.mxu0 %v174
  %831 = vmatprep.subr.mxu0 %v179
  %832 = vmatpush1.msra.mxu0 %v178
  %833 = vmatprep.subr.mxu0 %v183
  %834 = vmatpush1.msra.mxu0 %v182
  %835 = vmatprep.subr.mxu0 %v187
  %836 = vmatpush1.msra.mxu0 %v186
  %837 = vmatprep.subr.mxu0 %v191
  %838 = vmatpush1.msra.mxu0 %v190
  %839 = vmatprep.subr.mxu0 0.0
  %840 = vmatpush1.msra.mxu0 0.0
  %841 = vmatprep.subr.mxu0 0.0
  %842 = vmatpush1.msra.mxu0 0.0
  %843 = vmatprep.subr.mxu0 0.0
  %844 = vmatpush1.msra.mxu0 0.0
  %845 = vmatprep.subr.mxu0 0.0
  %846 = vmatpush1.msra.mxu0 0.0
  %847 = vmatprep.subr.mxu0 0.0
  %848 = vmatpush1.msra.mxu0 0.0
  %849 = vmatprep.subr.mxu0 0.0
  %850 = vmatpush1.msra.mxu0 0.0
  %851 = vmatprep.subr.mxu0 0.0
  %852 = vmatpush1.msra.mxu0 0.0
  %853 = vmatprep.subr.mxu0 0.0
  %854 = vmatpush1.msra.mxu0 0.0
  %855 = vmatprep.subr.mxu0 0.0
  %856 = vmatpush1.msra.mxu0 0.0
  %857 = vmatprep.subr.mxu0 0.0
  %858 = vmatpush1.msra.mxu0 0.0
  %859 = vmatprep.subr.mxu0 0.0
  %860 = vmatpush1.msra.mxu0 0.0
  %861 = vmatprep.subr.mxu0 0.0
  %862 = vmatpush1.msra.mxu0 0.0
  %863 = vmatprep.subr.mxu0 0.0
  %864 = vmatpush1.msra.mxu0 0.0
  %865 = vmatprep.subr.mxu0 0.0
  %866 = vmatpush1.msra.mxu0 0.0
  %867 = vmatprep.subr.mxu0 0.0
  %868 = vmatpush1.msra.mxu0 0.0
  %869 = vmatprep.subr.mxu0 0.0
  %870 = vmatpush1.msra.mxu0 0.0
  %871 = vmatprep.mubr.f32.mxu0 0.0
  %872 = vmatmul.mubr.f32.gmra.mrb[0].mxu0 %v806
  %v873 = vpop.f32.mrb[0].mxu0
  %v874 = vadd.f32 0.0, %v873
  %v875 = vpop.f32.mrb[0].mxu0
  %v876 = vadd.f32 0.0, %v875
  %877 = vdwg.mxu0
  %878 = vmatprep.subr.mxu0 %v133
  %879 = vmatpush1.msra.mxu0 %v132
  %880 = vmatprep.subr.mxu0 %v137
  %881 = vmatpush1.msra.mxu0 %v136
  %882 = vmatprep.subr.mxu0 %v141
  %883 = vmatpush1.msra.mxu0 %v140
  %884 = vmatprep.subr.mxu0 %v145
  %885 = vmatpush1.msra.mxu0 %v144
  %886 = vmatprep.subr.mxu0 %v149
  %887 = vmatpush1.msra.mxu0 %v148
  %888 = vmatprep.subr.mxu0 %v153
  %889 = vmatpush1.msra.mxu0 %v152
  %890 = vmatprep.subr.mxu0 %v157
  %891 = vmatpush1.msra.mxu0 %v156
  %892 = vmatprep.subr.mxu0 %v161
  %893 = vmatpush1.msra.mxu0 %v160
  %894 = vmatprep.subr.mxu0 %v165
  %895 = vmatpush1.msra.mxu0 %v164
  %896 = vmatprep.subr.mxu0 %v169
  %897 = vmatpush1.msra.mxu0 %v168
  %898 = vmatprep.subr.mxu0 %v173
  %899 = vmatpush1.msra.mxu0 %v172
  %900 = vmatprep.subr.mxu0 %v177
  %901 = vmatpush1.msra.mxu0 %v176
  %902 = vmatprep.subr.mxu0 %v181
  %903 = vmatpush1.msra.mxu0 %v180
  %904 = vmatprep.subr.mxu0 %v185
  %905 = vmatpush1.msra.mxu0 %v184
  %906 = vmatprep.subr.mxu0 %v189
  %907 = vmatpush1.msra.mxu0 %v188
  %908 = vmatprep.subr.mxu0 %v193
  %909 = vmatpush1.msra.mxu0 %v192
  %910 = vmatprep.subr.mxu0 0.0
  %911 = vmatpush1.msra.mxu0 0.0
  %912 = vmatprep.subr.mxu0 0.0
  %913 = vmatpush1.msra.mxu0 0.0
  %914 = vmatprep.subr.mxu0 0.0
  %915 = vmatpush1.msra.mxu0 0.0
  %916 = vmatprep.subr.mxu0 0.0
  %917 = vmatpush1.msra.mxu0 0.0
  %918 = vmatprep.subr.mxu0 0.0
  %919 = vmatpush1.msra.mxu0 0.0
  %920 = vmatprep.subr.mxu0 0.0
  %921 = vmatpush1.msra.mxu0 0.0
  %922 = vmatprep.subr.mxu0 0.0
  %923 = vmatpush1.msra.mxu0 0.0
  %924 = vmatprep.subr.mxu0 0.0
  %925 = vmatpush1.msra.mxu0 0.0
  %926 = vmatprep.subr.mxu0 0.0
  %927 = vmatpush1.msra.mxu0 0.0
  %928 = vmatprep.subr.mxu0 0.0
  %929 = vmatpush1.msra.mxu0 0.0
  %930 = vmatprep.subr.mxu0 0.0
  %931 = vmatpush1.msra.mxu0 0.0
  %932 = vmatprep.subr.mxu0 0.0
  %933 = vmatpush1.msra.mxu0 0.0
  %934 = vmatprep.subr.mxu0 0.0
  %935 = vmatpush1.msra.mxu0 0.0
  %936 = vmatprep.subr.mxu0 0.0
  %937 = vmatpush1.msra.mxu0 0.0
  %938 = vmatprep.subr.mxu0 0.0
  %939 = vmatpush1.msra.mxu0 0.0
  %940 = vmatprep.subr.mxu0 0.0
  %941 = vmatpush1.msra.mxu0 0.0
  %942 = vmatprep.mubr.f32.mxu0 0.0
  %943 = vmatmul.mubr.f32.gmra.mrb[0].mxu0 %v806
  %v944 = vpop.f32.mrb[0].mxu0
  %v945 = vadd.f32 0.0, %v944
  %v946 = vpop.f32.mrb[0].mxu0
  %v947 = vadd.f32 0.0, %v946
  %948 = vdwg.mxu0
  %v953 = vcombine.low %v874, %v876
  %v954 = vcombine.low %v945, %v947
  %v956 = vunpack.c.l.s4 1983009808
  %v957 = vunpack.c.0.s8 %v956
  %v958 = vlaneseq
  %v959 = vshrl.u32 %v958, 7
  %v960 = vsub.s32 %v957, %v959
  %v961 = vrot.slane %v953, %v960
  %v963 = vunpack.c.l.s4 1983009808
  %v964 = vunpack.c.0.s8 %v963
  %v965 = vlaneseq
  %v966 = vshrl.u32 %v965, 7
  %v967 = vsub.s32 %v964, %v966
  %v968 = vrot.slane %v954, %v967
  %v969 = vcombine.low %v961, %v968
  %v971 = vadd.f32 %v805, %v969
  %v972 = vld [vmem:[#allocation5] sm:$0x3]
  %v973 = vxor.u32 %v971, 2147483648
  %v974 = vmul.f32 %v973, 1.442695
  %v975 = vpow.pop %v974
  %v976 = vadd.f32 %v975, 1.0
  %v977 = vrcp.pop %v976
  %v978 = vmul.f32 1.0, %v977
  %v980 = vrot.slane %v971, 2
  %v982 = vxor.u32 %v980, 2147483648
  %v983 = vmul.f32 %v982, 1.442695
  %v984 = vpow.pop %v983
  %v985 = vadd.f32 %v984, 1.0
  %v986 = vrcp.pop %v985
  %v987 = vmul.f32 1.0, %v986
  %v988 = vrot.slane %v971, 4
  %v990 = vtanh.pop %v988
  %v991 = vrot.slane %v971, 6
  %v993 = vxor.u32 %v991, 2147483648
  %v994 = vmul.f32 %v993, 1.442695
  %v995 = vpow.pop %v994
  %v996 = vadd.f32 %v995, 1.0
  %v997 = vrcp.pop %v996
  %v998 = vmul.f32 1.0, %v997
  %v999 = vmul.f32 %v987, %v972
  %v1000 = vmul.f32 %v978, %v990
  %v1001 = vadd.f32 %v999, %v1000
  %v1002 = vtanh.pop %v1001
  %v1003 = vmul.f32 %v998, %v1002
  %1004 = vst [vmem:[#allocation5] sm:$0x3] %v1001
  %1005 = vst [vmem:[#allocation4] sm:$0x3] %v1003
  %s1006 = scalar_lea.vmem %s55, 4
  %1007 = vst [vmem:[%s1006] sm:$0x3] %v1003
  %s1008 = scalar_lea.vmem %s0, 16
  %v1009 = vld [vmem:[%s1008] sm:$0xff]
  %v1010 = vld [vmem:[#allocation2] sm:$0x3]
  %1011 = vmatprep.subr.mxu0 %v67
  %1012 = vmatpush1.msra.mxu0 %v66
  %1013 = vmatprep.subr.mxu0 %v71
  %1014 = vmatpush1.msra.mxu0 %v70
  %1015 = vmatprep.subr.mxu0 %v75
  %1016 = vmatpush1.msra.mxu0 %v74
  %1017 = vmatprep.subr.mxu0 %v79
  %1018 = vmatpush1.msra.mxu0 %v78
  %1019 = vmatprep.subr.mxu0 %v83
  %1020 = vmatpush1.msra.mxu0 %v82
  %1021 = vmatprep.subr.mxu0 %v87
  %1022 = vmatpush1.msra.mxu0 %v86
  %1023 = vmatprep.subr.mxu0 %v91
  %1024 = vmatpush1.msra.mxu0 %v90
  %1025 = vmatprep.subr.mxu0 %v95
  %1026 = vmatpush1.msra.mxu0 %v94
  %1027 = vmatprep.subr.mxu0 %v99
  %1028 = vmatpush1.msra.mxu0 %v98
  %1029 = vmatprep.subr.mxu0 %v103
  %1030 = vmatpush1.msra.mxu0 %v102
  %1031 = vmatprep.subr.mxu0 %v107
  %1032 = vmatpush1.msra.mxu0 %v106
  %1033 = vmatprep.subr.mxu0 %v111
  %1034 = vmatpush1.msra.mxu0 %v110
  %1035 = vmatprep.subr.mxu0 %v115
  %1036 = vmatpush1.msra.mxu0 %v114
  %1037 = vmatprep.subr.mxu0 %v119
  %1038 = vmatpush1.msra.mxu0 %v118
  %1039 = vmatprep.subr.mxu0 %v123
  %1040 = vmatpush1.msra.mxu0 %v122
  %1041 = vmatprep.subr.mxu0 %v127
  %1042 = vmatpush1.msra.mxu0 %v126
  %1043 = vmatprep.subr.mxu0 0.0
  %1044 = vmatpush1.msra.mxu0 0.0
  %1045 = vmatprep.subr.mxu0 0.0
  %1046 = vmatpush1.msra.mxu0 0.0
  %1047 = vmatprep.subr.mxu0 0.0
  %1048 = vmatpush1.msra.mxu0 0.0
  %1049 = vmatprep.subr.mxu0 0.0
  %1050 = vmatpush1.msra.mxu0 0.0
  %1051 = vmatprep.subr.mxu0 0.0
  %1052 = vmatpush1.msra.mxu0 0.0
  %1053 = vmatprep.subr.mxu0 0.0
  %1054 = vmatpush1.msra.mxu0 0.0
  %1055 = vmatprep.subr.mxu0 0.0
  %1056 = vmatpush1.msra.mxu0 0.0
  %1057 = vmatprep.subr.mxu0 0.0
  %1058 = vmatpush1.msra.mxu0 0.0
  %1059 = vmatprep.subr.mxu0 0.0
  %1060 = vmatpush1.msra.mxu0 0.0
  %1061 = vmatprep.subr.mxu0 0.0
  %1062 = vmatpush1.msra.mxu0 0.0
  %1063 = vmatprep.subr.mxu0 0.0
  %1064 = vmatpush1.msra.mxu0 0.0
  %1065 = vmatprep.subr.mxu0 0.0
  %1066 = vmatpush1.msra.mxu0 0.0
  %1067 = vmatprep.subr.mxu0 0.0
  %1068 = vmatpush1.msra.mxu0 0.0
  %1069 = vmatprep.subr.mxu0 0.0
  %1070 = vmatpush1.msra.mxu0 0.0
  %1071 = vmatprep.subr.mxu0 0.0
  %1072 = vmatpush1.msra.mxu0 0.0
  %1073 = vmatprep.subr.mxu0 0.0
  %1074 = vmatpush1.msra.mxu0 0.0
  %1075 = vmatprep.mubr.f32.mxu0 0.0
  %1076 = vmatmul.mubr.f32.gmra.mrb[0].mxu0 %v1010
  %v1077 = vpop.f32.mrb[0].mxu0
  %v1078 = vadd.f32 0.0, %v1077
  %v1079 = vpop.f32.mrb[0].mxu0
  %v1080 = vadd.f32 0.0, %v1079
  %1081 = vdwg.mxu0
  %1082 = vmatprep.subr.mxu0 %v69
  %1083 = vmatpush1.msra.mxu0 %v68
  %1084 = vmatprep.subr.mxu0 %v73
  %1085 = vmatpush1.msra.mxu0 %v72
  %1086 = vmatprep.subr.mxu0 %v77
  %1087 = vmatpush1.msra.mxu0 %v76
  %1088 = vmatprep.subr.mxu0 %v81
  %1089 = vmatpush1.msra.mxu0 %v80
  %1090 = vmatprep.subr.mxu0 %v85
  %1091 = vmatpush1.msra.mxu0 %v84
  %1092 = vmatprep.subr.mxu0 %v89
  %1093 = vmatpush1.msra.mxu0 %v88
  %1094 = vmatprep.subr.mxu0 %v93
  %1095 = vmatpush1.msra.mxu0 %v92
  %1096 = vmatprep.subr.mxu0 %v97
  %1097 = vmatpush1.msra.mxu0 %v96
  %1098 = vmatprep.subr.mxu0 %v101
  %1099 = vmatpush1.msra.mxu0 %v100
  %1100 = vmatprep.subr.mxu0 %v105
  %1101 = vmatpush1.msra.mxu0 %v104
  %1102 = vmatprep.subr.mxu0 %v109
  %1103 = vmatpush1.msra.mxu0 %v108
  %1104 = vmatprep.subr.mxu0 %v113
  %1105 = vmatpush1.msra.mxu0 %v112
  %1106 = vmatprep.subr.mxu0 %v117
  %1107 = vmatpush1.msra.mxu0 %v116
  %1108 = vmatprep.subr.mxu0 %v121
  %1109 = vmatpush1.msra.mxu0 %v120
  %1110 = vmatprep.subr.mxu0 %v125
  %1111 = vmatpush1.msra.mxu0 %v124
  %1112 = vmatprep.subr.mxu0 %v129
  %1113 = vmatpush1.msra.mxu0 %v128
  %1114 = vmatprep.subr.mxu0 0.0
  %1115 = vmatpush1.msra.mxu0 0.0
  %1116 = vmatprep.subr.mxu0 0.0
  %1117 = vmatpush1.msra.mxu0 0.0
  %1118 = vmatprep.subr.mxu0 0.0
  %1119 = vmatpush1.msra.mxu0 0.0
  %1120 = vmatprep.subr.mxu0 0.0
  %1121 = vmatpush1.msra.mxu0 0.0
  %1122 = vmatprep.subr.mxu0 0.0
  %1123 = vmatpush1.msra.mxu0 0.0
  %1124 = vmatprep.subr.mxu0 0.0
  %1125 = vmatpush1.msra.mxu0 0.0
  %1126 = vmatprep.subr.mxu0 0.0
  %1127 = vmatpush1.msra.mxu0 0.0
  %1128 = vmatprep.subr.mxu0 0.0
  %1129 = vmatpush1.msra.mxu0 0.0
  %1130 = vmatprep.subr.mxu0 0.0
  %1131 = vmatpush1.msra.mxu0 0.0
  %1132 = vmatprep.subr.mxu0 0.0
  %1133 = vmatpush1.msra.mxu0 0.0
  %1134 = vmatprep.subr.mxu0 0.0
  %1135 = vmatpush1.msra.mxu0 0.0
  %1136 = vmatprep.subr.mxu0 0.0
  %1137 = vmatpush1.msra.mxu0 0.0
  %1138 = vmatprep.subr.mxu0 0.0
  %1139 = vmatpush1.msra.mxu0 0.0
  %1140 = vmatprep.subr.mxu0 0.0
  %1141 = vmatpush1.msra.mxu0 0.0
  %1142 = vmatprep.subr.mxu0 0.0
  %1143 = vmatpush1.msra.mxu0 0.0
  %1144 = vmatprep.subr.mxu0 0.0
  %1145 = vmatpush1.msra.mxu0 0.0
  %1146 = vmatprep.mubr.f32.mxu0 0.0
  %1147 = vmatmul.mubr.f32.gmra.mrb[0].mxu0 %v1010
  %v1148 = vpop.f32.mrb[0].mxu0
  %v1149 = vadd.f32 0.0, %v1148
  %v1150 = vpop.f32.mrb[0].mxu0
  %v1151 = vadd.f32 0.0, %v1150
  %1152 = vdwg.mxu0
  %v1157 = vcombine.low %v1078, %v1080
  %v1158 = vcombine.low %v1149, %v1151
  %v1160 = vunpack.c.l.s4 1983009808
  %v1161 = vunpack.c.0.s8 %v1160
  %v1162 = vlaneseq
  %v1163 = vshrl.u32 %v1162, 7
  %v1164 = vsub.s32 %v1161, %v1163
  %v1165 = vrot.slane %v1157, %v1164
  %v1167 = vunpack.c.l.s4 1983009808
  %v1168 = vunpack.c.0.s8 %v1167
  %v1169 = vlaneseq
  %v1170 = vshrl.u32 %v1169, 7
  %v1171 = vsub.s32 %v1168, %v1170
  %v1172 = vrot.slane %v1158, %v1171
  %v1173 = vcombine.low %v1165, %v1172
  %v1175 = vadd.f32 %v1009, %v1173
  %v1176 = vld [vmem:[#allocation3] sm:$0x3]
  %v1177 = vxor.u32 %v1175, 2147483648
  %v1178 = vmul.f32 %v1177, 1.442695
  %v1179 = vpow.pop %v1178
  %v1180 = vadd.f32 %v1179, 1.0
  %v1181 = vrcp.pop %v1180
  %v1182 = vmul.f32 1.0, %v1181
  %v1184 = vrot.slane %v1175, 2
  %v1186 = vxor.u32 %v1184, 2147483648
  %v1187 = vmul.f32 %v1186, 1.442695
  %v1188 = vpow.pop %v1187
  %v1189 = vadd.f32 %v1188, 1.0
  %v1190 = vrcp.pop %v1189
  %v1191 = vmul.f32 1.0, %v1190
  %v1192 = vrot.slane %v1175, 4
  %v1194 = vtanh.pop %v1192
  %v1195 = vrot.slane %v1175, 6
  %v1197 = vxor.u32 %v1195, 2147483648
  %v1198 = vmul.f32 %v1197, 1.442695
  %v1199 = vpow.pop %v1198
  %v1200 = vadd.f32 %v1199, 1.0
  %v1201 = vrcp.pop %v1200
  %v1202 = vmul.f32 1.0, %v1201
  %v1203 = vmul.f32 %v1191, %v1176
  %v1204 = vmul.f32 %v1182, %v1194
  %v1205 = vadd.f32 %v1203, %v1204
  %v1206 = vtanh.pop %v1205
  %v1207 = vmul.f32 %v1202, %v1206
  %1208 = vst [vmem:[#allocation3] sm:$0x3] %v1205
  %1209 = vst [vmem:[#allocation2] sm:$0x3] %v1207
  %s1210 = scalar_lea.vmem %s4, 4
  %1211 = vst [vmem:[%s1210] sm:$0x3] %v1207
  %s1212 = scalar_lea.vmem %s47, 8
  %v1213 = vld [vmem:[%s1212] sm:$0xff]
  %v1214 = vld [vmem:[#allocation4] sm:$0x3]
  %1215 = vmatprep.subr.mxu0 %v131
  %1216 = vmatpush1.msra.mxu0 %v130
  %1217 = vmatprep.subr.mxu0 %v135
  %1218 = vmatpush1.msra.mxu0 %v134
  %1219 = vmatprep.subr.mxu0 %v139
  %1220 = vmatpush1.msra.mxu0 %v138
  %1221 = vmatprep.subr.mxu0 %v143
  %1222 = vmatpush1.msra.mxu0 %v142
  %1223 = vmatprep.subr.mxu0 %v147
  %1224 = vmatpush1.msra.mxu0 %v146
  %1225 = vmatprep.subr.mxu0 %v151
  %1226 = vmatpush1.msra.mxu0 %v150
  %1227 = vmatprep.subr.mxu0 %v155
  %1228 = vmatpush1.msra.mxu0 %v154
  %1229 = vmatprep.subr.mxu0 %v159
  %1230 = vmatpush1.msra.mxu0 %v158
  %1231 = vmatprep.subr.mxu0 %v163
  %1232 = vmatpush1.msra.mxu0 %v162
  %1233 = vmatprep.subr.mxu0 %v167
  %1234 = vmatpush1.msra.mxu0 %v166
  %1235 = vmatprep.subr.mxu0 %v171
  %1236 = vmatpush1.msra.mxu0 %v170
  %1237 = vmatprep.subr.mxu0 %v175
  %1238 = vmatpush1.msra.mxu0 %v174
  %1239 = vmatprep.subr.mxu0 %v179
  %1240 = vmatpush1.msra.mxu0 %v178
  %1241 = vmatprep.subr.mxu0 %v183
  %1242 = vmatpush1.msra.mxu0 %v182
  %1243 = vmatprep.subr.mxu0 %v187
  %1244 = vmatpush1.msra.mxu0 %v186
  %1245 = vmatprep.subr.mxu0 %v191
  %1246 = vmatpush1.msra.mxu0 %v190
  %1247 = vmatprep.subr.mxu0 0.0
  %1248 = vmatpush1.msra.mxu0 0.0
  %1249 = vmatprep.subr.mxu0 0.0
  %1250 = vmatpush1.msra.mxu0 0.0
  %1251 = vmatprep.subr.mxu0 0.0
  %1252 = vmatpush1.msra.mxu0 0.0
  %1253 = vmatprep.subr.mxu0 0.0
  %1254 = vmatpush1.msra.mxu0 0.0
  %1255 = vmatprep.subr.mxu0 0.0
  %1256 = vmatpush1.msra.mxu0 0.0
  %1257 = vmatprep.subr.mxu0 0.0
  %1258 = vmatpush1.msra.mxu0 0.0
  %1259 = vmatprep.subr.mxu0 0.0
  %1260 = vmatpush1.msra.mxu0 0.0
  %1261 = vmatprep.subr.mxu0 0.0
  %1262 = vmatpush1.msra.mxu0 0.0
  %1263 = vmatprep.subr.mxu0 0.0
  %1264 = vmatpush1.msra.mxu0 0.0
  %1265 = vmatprep.subr.mxu0 0.0
  %1266 = vmatpush1.msra.mxu0 0.0
  %1267 = vmatprep.subr.mxu0 0.0
  %1268 = vmatpush1.msra.mxu0 0.0
  %1269 = vmatprep.subr.mxu0 0.0
  %1270 = vmatpush1.msra.mxu0 0.0
  %1271 = vmatprep.subr.mxu0 0.0
  %1272 = vmatpush1.msra.mxu0 0.0
  %1273 = vmatprep.subr.mxu0 0.0
  %1274 = vmatpush1.msra.mxu0 0.0
  %1275 = vmatprep.subr.mxu0 0.0
  %1276 = vmatpush1.msra.mxu0 0.0
  %1277 = vmatprep.subr.mxu0 0.0
  %1278 = vmatpush1.msra.mxu0 0.0
  %1279 = vmatprep.mubr.f32.mxu0 0.0
  %1280 = vmatmul.mubr.f32.gmra.mrb[0].mxu0 %v1214
  %v1281 = vpop.f32.mrb[0].mxu0
  %v1282 = vadd.f32 0.0, %v1281
  %v1283 = vpop.f32.mrb[0].mxu0
  %v1284 = vadd.f32 0.0, %v1283
  %1285 = vdwg.mxu0
  %1286 = vmatprep.subr.mxu0 %v133
  %1287 = vmatpush1.msra.mxu0 %v132
  %1288 = vmatprep.subr.mxu0 %v137
  %1289 = vmatpush1.msra.mxu0 %v136
  %1290 = vmatprep.subr.mxu0 %v141
  %1291 = vmatpush1.msra.mxu0 %v140
  %1292 = vmatprep.subr.mxu0 %v145
  %1293 = vmatpush1.msra.mxu0 %v144
  %1294 = vmatprep.subr.mxu0 %v149
  %1295 = vmatpush1.msra.mxu0 %v148
  %1296 = vmatprep.subr.mxu0 %v153
  %1297 = vmatpush1.msra.mxu0 %v152
  %1298 = vmatprep.subr.mxu0 %v157
  %1299 = vmatpush1.msra.mxu0 %v156
  %1300 = vmatprep.subr.mxu0 %v161
  %1301 = vmatpush1.msra.mxu0 %v160
  %1302 = vmatprep.subr.mxu0 %v165
  %1303 = vmatpush1.msra.mxu0 %v164
  %1304 = vmatprep.subr.mxu0 %v169
  %1305 = vmatpush1.msra.mxu0 %v168
  %1306 = vmatprep.subr.mxu0 %v173
  %1307 = vmatpush1.msra.mxu0 %v172
  %1308 = vmatprep.subr.mxu0 %v177
  %1309 = vmatpush1.msra.mxu0 %v176
  %1310 = vmatprep.subr.mxu0 %v181
  %1311 = vmatpush1.msra.mxu0 %v180
  %1312 = vmatprep.subr.mxu0 %v185
  %1313 = vmatpush1.msra.mxu0 %v184
  %1314 = vmatprep.subr.mxu0 %v189
  %1315 = vmatpush1.msra.mxu0 %v188
  %1316 = vmatprep.subr.mxu0 %v193
  %1317 = vmatpush1.msra.mxu0 %v192
  %1318 = vmatprep.subr.mxu0 0.0
  %1319 = vmatpush1.msra.mxu0 0.0
  %1320 = vmatprep.subr.mxu0 0.0
  %1321 = vmatpush1.msra.mxu0 0.0
  %1322 = vmatprep.subr.mxu0 0.0
  %1323 = vmatpush1.msra.mxu0 0.0
  %1324 = vmatprep.subr.mxu0 0.0
  %1325 = vmatpush1.msra.mxu0 0.0
  %1326 = vmatprep.subr.mxu0 0.0
  %1327 = vmatpush1.msra.mxu0 0.0
  %1328 = vmatprep.subr.mxu0 0.0
  %1329 = vmatpush1.msra.mxu0 0.0
  %1330 = vmatprep.subr.mxu0 0.0
  %1331 = vmatpush1.msra.mxu0 0.0
  %1332 = vmatprep.subr.mxu0 0.0
  %1333 = vmatpush1.msra.mxu0 0.0
  %1334 = vmatprep.subr.mxu0 0.0
  %1335 = vmatpush1.msra.mxu0 0.0
  %1336 = vmatprep.subr.mxu0 0.0
  %1337 = vmatpush1.msra.mxu0 0.0
  %1338 = vmatprep.subr.mxu0 0.0
  %1339 = vmatpush1.msra.mxu0 0.0
  %1340 = vmatprep.subr.mxu0 0.0
  %1341 = vmatpush1.msra.mxu0 0.0
  %1342 = vmatprep.subr.mxu0 0.0
  %1343 = vmatpush1.msra.mxu0 0.0
  %1344 = vmatprep.subr.mxu0 0.0
  %1345 = vmatpush1.msra.mxu0 0.0
  %1346 = vmatprep.subr.mxu0 0.0
  %1347 = vmatpush1.msra.mxu0 0.0
  %1348 = vmatprep.subr.mxu0 0.0
  %1349 = vmatpush1.msra.mxu0 0.0
  %1350 = vmatprep.mubr.f32.mxu0 0.0
  %1351 = vmatmul.mubr.f32.gmra.mrb[0].mxu0 %v1214
  %v1352 = vpop.f32.mrb[0].mxu0
  %v1353 = vadd.f32 0.0, %v1352
  %v1354 = vpop.f32.mrb[0].mxu0
  %v1355 = vadd.f32 0.0, %v1354
  %1356 = vdwg.mxu0
  %v1361 = vcombine.low %v1282, %v1284
  %v1362 = vcombine.low %v1353, %v1355
  %v1364 = vunpack.c.l.s4 1983009808
  %v1365 = vunpack.c.0.s8 %v1364
  %v1366 = vlaneseq
  %v1367 = vshrl.u32 %v1366, 7
  %v1368 = vsub.s32 %v1365, %v1367
  %v1369 = vrot.slane %v1361, %v1368
  %v1371 = vunpack.c.l.s4 1983009808
  %v1372 = vunpack.c.0.s8 %v1371
  %v1373 = vlaneseq
  %v1374 = vshrl.u32 %v1373, 7
  %v1375 = vsub.s32 %v1372, %v1374
  %v1376 = vrot.slane %v1362, %v1375
  %v1377 = vcombine.low %v1369, %v1376
  %v1379 = vadd.f32 %v1213, %v1377
  %v1380 = vld [vmem:[#allocation5] sm:$0x3]
  %v1381 = vxor.u32 %v1379, 2147483648
  %v1382 = vmul.f32 %v1381, 1.442695
  %v1383 = vpow.pop %v1382
  %v1384 = vadd.f32 %v1383, 1.0
  %v1385 = vrcp.pop %v1384
  %v1386 = vmul.f32 1.0, %v1385
  %v1388 = vrot.slane %v1379, 2
  %v1390 = vxor.u32 %v1388, 2147483648
  %v1391 = vmul.f32 %v1390, 1.442695
  %v1392 = vpow.pop %v1391
  %v1393 = vadd.f32 %v1392, 1.0
  %v1394 = vrcp.pop %v1393
  %v1395 = vmul.f32 1.0, %v1394
  %v1396 = vrot.slane %v1379, 4
  %v1398 = vtanh.pop %v1396
  %v1399 = vrot.slane %v1379, 6
  %v1401 = vxor.u32 %v1399, 2147483648
  %v1402 = vmul.f32 %v1401, 1.442695
  %v1403 = vpow.pop %v1402
  %v1404 = vadd.f32 %v1403, 1.0
  %v1405 = vrcp.pop %v1404
  %v1406 = vmul.f32 1.0, %v1405
  %v1407 = vmul.f32 %v1395, %v1380
  %v1408 = vmul.f32 %v1386, %v1398
  %v1409 = vadd.f32 %v1407, %v1408
  %v1410 = vtanh.pop %v1409
  %v1411 = vmul.f32 %v1406, %v1410
  %1412 = vst [vmem:[#allocation5] sm:$0x3] %v1409
  %1413 = vst [vmem:[#allocation4] sm:$0x3] %v1411
  %s1414 = scalar_lea.vmem %s55, 2
  %1415 = vst [vmem:[%s1414] sm:$0x3] %v1411
  %s1416 = scalar_lea.vmem %s0, 24
  %v1417 = vld [vmem:[%s1416] sm:$0xff]
  %v1418 = vld [vmem:[#allocation2] sm:$0x3]
  %1419 = vmatprep.subr.mxu0 %v67
  %1420 = vmatpush1.msra.mxu0 %v66
  %1421 = vmatprep.subr.mxu0 %v71
  %1422 = vmatpush1.msra.mxu0 %v70
  %1423 = vmatprep.subr.mxu0 %v75
  %1424 = vmatpush1.msra.mxu0 %v74
  %1425 = vmatprep.subr.mxu0 %v79
  %1426 = vmatpush1.msra.mxu0 %v78
  %1427 = vmatprep.subr.mxu0 %v83
  %1428 = vmatpush1.msra.mxu0 %v82
  %1429 = vmatprep.subr.mxu0 %v87
  %1430 = vmatpush1.msra.mxu0 %v86
  %1431 = vmatprep.subr.mxu0 %v91
  %1432 = vmatpush1.msra.mxu0 %v90
  %1433 = vmatprep.subr.mxu0 %v95
  %1434 = vmatpush1.msra.mxu0 %v94
  %1435 = vmatprep.subr.mxu0 %v99
  %1436 = vmatpush1.msra.mxu0 %v98
  %1437 = vmatprep.subr.mxu0 %v103
  %1438 = vmatpush1.msra.mxu0 %v102
  %1439 = vmatprep.subr.mxu0 %v107
  %1440 = vmatpush1.msra.mxu0 %v106
  %1441 = vmatprep.subr.mxu0 %v111
  %1442 = vmatpush1.msra.mxu0 %v110
  %1443 = vmatprep.subr.mxu0 %v115
  %1444 = vmatpush1.msra.mxu0 %v114
  %1445 = vmatprep.subr.mxu0 %v119
  %1446 = vmatpush1.msra.mxu0 %v118
  %1447 = vmatprep.subr.mxu0 %v123
  %1448 = vmatpush1.msra.mxu0 %v122
  %1449 = vmatprep.subr.mxu0 %v127
  %1450 = vmatpush1.msra.mxu0 %v126
  %1451 = vmatprep.subr.mxu0 0.0
  %1452 = vmatpush1.msra.mxu0 0.0
  %1453 = vmatprep.subr.mxu0 0.0
  %1454 = vmatpush1.msra.mxu0 0.0
  %1455 = vmatprep.subr.mxu0 0.0
  %1456 = vmatpush1.msra.mxu0 0.0
  %1457 = vmatprep.subr.mxu0 0.0
  %1458 = vmatpush1.msra.mxu0 0.0
  %1459 = vmatprep.subr.mxu0 0.0
  %1460 = vmatpush1.msra.mxu0 0.0
  %1461 = vmatprep.subr.mxu0 0.0
  %1462 = vmatpush1.msra.mxu0 0.0
  %1463 = vmatprep.subr.mxu0 0.0
  %1464 = vmatpush1.msra.mxu0 0.0
  %1465 = vmatprep.subr.mxu0 0.0
  %1466 = vmatpush1.msra.mxu0 0.0
  %1467 = vmatprep.subr.mxu0 0.0
  %1468 = vmatpush1.msra.mxu0 0.0
  %1469 = vmatprep.subr.mxu0 0.0
  %1470 = vmatpush1.msra.mxu0 0.0
  %1471 = vmatprep.subr.mxu0 0.0
  %1472 = vmatpush1.msra.mxu0 0.0
  %1473 = vmatprep.subr.mxu0 0.0
  %1474 = vmatpush1.msra.mxu0 0.0
  %1475 = vmatprep.subr.mxu0 0.0
  %1476 = vmatpush1.msra.mxu0 0.0
  %1477 = vmatprep.subr.mxu0 0.0
  %1478 = vmatpush1.msra.mxu0 0.0
  %1479 = vmatprep.subr.mxu0 0.0
  %1480 = vmatpush1.msra.mxu0 0.0
  %1481 = vmatprep.subr.mxu0 0.0
  %1482 = vmatpush1.msra.mxu0 0.0
  %1483 = vmatprep.mubr.f32.mxu0 0.0
  %1484 = vmatmul.mubr.f32.gmra.mrb[0].mxu0 %v1418
  %v1485 = vpop.f32.mrb[0].mxu0
  %v1486 = vadd.f32 0.0, %v1485
  %v1487 = vpop.f32.mrb[0].mxu0
  %v1488 = vadd.f32 0.0, %v1487
  %1489 = vdwg.mxu0
  %1490 = vmatprep.subr.mxu0 %v69
  %1491 = vmatpush1.msra.mxu0 %v68
  %1492 = vmatprep.subr.mxu0 %v73
  %1493 = vmatpush1.msra.mxu0 %v72
  %1494 = vmatprep.subr.mxu0 %v77
  %1495 = vmatpush1.msra.mxu0 %v76
  %1496 = vmatprep.subr.mxu0 %v81
  %1497 = vmatpush1.msra.mxu0 %v80
  %1498 = vmatprep.subr.mxu0 %v85
  %1499 = vmatpush1.msra.mxu0 %v84
  %1500 = vmatprep.subr.mxu0 %v89
  %1501 = vmatpush1.msra.mxu0 %v88
  %1502 = vmatprep.subr.mxu0 %v93
  %1503 = vmatpush1.msra.mxu0 %v92
  %1504 = vmatprep.subr.mxu0 %v97
  %1505 = vmatpush1.msra.mxu0 %v96
  %1506 = vmatprep.subr.mxu0 %v101
  %1507 = vmatpush1.msra.mxu0 %v100
  %1508 = vmatprep.subr.mxu0 %v105
  %1509 = vmatpush1.msra.mxu0 %v104
  %1510 = vmatprep.subr.mxu0 %v109
  %1511 = vmatpush1.msra.mxu0 %v108
  %1512 = vmatprep.subr.mxu0 %v113
  %1513 = vmatpush1.msra.mxu0 %v112
  %1514 = vmatprep.subr.mxu0 %v117
  %1515 = vmatpush1.msra.mxu0 %v116
  %1516 = vmatprep.subr.mxu0 %v121
  %1517 = vmatpush1.msra.mxu0 %v120
  %1518 = vmatprep.subr.mxu0 %v125
  %1519 = vmatpush1.msra.mxu0 %v124
  %1520 = vmatprep.subr.mxu0 %v129
  %1521 = vmatpush1.msra.mxu0 %v128
  %1522 = vmatprep.subr.mxu0 0.0
  %1523 = vmatpush1.msra.mxu0 0.0
  %1524 = vmatprep.subr.mxu0 0.0
  %1525 = vmatpush1.msra.mxu0 0.0
  %1526 = vmatprep.subr.mxu0 0.0
  %1527 = vmatpush1.msra.mxu0 0.0
  %1528 = vmatprep.subr.mxu0 0.0
  %1529 = vmatpush1.msra.mxu0 0.0
  %1530 = vmatprep.subr.mxu0 0.0
  %1531 = vmatpush1.msra.mxu0 0.0
  %1532 = vmatprep.subr.mxu0 0.0
  %1533 = vmatpush1.msra.mxu0 0.0
  %1534 = vmatprep.subr.mxu0 0.0
  %1535 = vmatpush1.msra.mxu0 0.0
  %1536 = vmatprep.subr.mxu0 0.0
  %1537 = vmatpush1.msra.mxu0 0.0
  %1538 = vmatprep.subr.mxu0 0.0
  %1539 = vmatpush1.msra.mxu0 0.0
  %1540 = vmatprep.subr.mxu0 0.0
  %1541 = vmatpush1.msra.mxu0 0.0
  %1542 = vmatprep.subr.mxu0 0.0
  %1543 = vmatpush1.msra.mxu0 0.0
  %1544 = vmatprep.subr.mxu0 0.0
  %1545 = vmatpush1.msra.mxu0 0.0
  %1546 = vmatprep.subr.mxu0 0.0
  %1547 = vmatpush1.msra.mxu0 0.0
  %1548 = vmatprep.subr.mxu0 0.0
  %1549 = vmatpush1.msra.mxu0 0.0
  %1550 = vmatprep.subr.mxu0 0.0
  %1551 = vmatpush1.msra.mxu0 0.0
  %1552 = vmatprep.subr.mxu0 0.0
  %1553 = vmatpush1.msra.mxu0 0.0
  %1554 = vmatprep.mubr.f32.mxu0 0.0
  %1555 = vmatmul.mubr.f32.gmra.mrb[0].mxu0 %v1418
  %v1556 = vpop.f32.mrb[0].mxu0
  %v1557 = vadd.f32 0.0, %v1556
  %v1558 = vpop.f32.mrb[0].mxu0
  %v1559 = vadd.f32 0.0, %v1558
  %1560 = vdwg.mxu0
  %v1565 = vcombine.low %v1486, %v1488
  %v1566 = vcombine.low %v1557, %v1559
  %v1568 = vunpack.c.l.s4 1983009808
  %v1569 = vunpack.c.0.s8 %v1568
  %v1570 = vlaneseq
  %v1571 = vshrl.u32 %v1570, 7
  %v1572 = vsub.s32 %v1569, %v1571
  %v1573 = vrot.slane %v1565, %v1572
  %v1575 = vunpack.c.l.s4 1983009808
  %v1576 = vunpack.c.0.s8 %v1575
  %v1577 = vlaneseq
  %v1578 = vshrl.u32 %v1577, 7
  %v1579 = vsub.s32 %v1576, %v1578
  %v1580 = vrot.slane %v1566, %v1579
  %v1581 = vcombine.low %v1573, %v1580
  %v1583 = vadd.f32 %v1417, %v1581
  %v1584 = vld [vmem:[#allocation3] sm:$0x3]
  %v1585 = vxor.u32 %v1583, 2147483648
  %v1586 = vmul.f32 %v1585, 1.442695
  %v1587 = vpow.pop %v1586
  %v1588 = vadd.f32 %v1587, 1.0
  %v1589 = vrcp.pop %v1588
  %v1590 = vmul.f32 1.0, %v1589
  %v1592 = vrot.slane %v1583, 2
  %v1594 = vxor.u32 %v1592, 2147483648
  %v1595 = vmul.f32 %v1594, 1.442695
  %v1596 = vpow.pop %v1595
  %v1597 = vadd.f32 %v1596, 1.0
  %v1598 = vrcp.pop %v1597
  %v1599 = vmul.f32 1.0, %v1598
  %v1600 = vrot.slane %v1583, 4
  %v1602 = vtanh.pop %v1600
  %v1603 = vrot.slane %v1583, 6
  %v1605 = vxor.u32 %v1603, 2147483648
  %v1606 = vmul.f32 %v1605, 1.442695
  %v1607 = vpow.pop %v1606
  %v1608 = vadd.f32 %v1607, 1.0
  %v1609 = vrcp.pop %v1608
  %v1610 = vmul.f32 1.0, %v1609
  %v1611 = vmul.f32 %v1599, %v1584
  %v1612 = vmul.f32 %v1590, %v1602
  %v1613 = vadd.f32 %v1611, %v1612
  %v1614 = vtanh.pop %v1613
  %v1615 = vmul.f32 %v1610, %v1614
  %1616 = vst [vmem:[#allocation3] sm:$0x3] %v1613
  %1617 = vst [vmem:[#allocation2] sm:$0x3] %v1615
  %s1618 = scalar_lea.vmem %s4, 6
  %1619 = vst [vmem:[%s1618] sm:$0x3] %v1615
  %v1620 = vld [vmem:[%s47] sm:$0xff]
  %v1621 = vld [vmem:[#allocation4] sm:$0x3]
  %1622 = vmatprep.subr.mxu0 %v131
  %1623 = vmatpush1.msra.mxu0 %v130
  %1624 = vmatprep.subr.mxu0 %v135
  %1625 = vmatpush1.msra.mxu0 %v134
  %1626 = vmatprep.subr.mxu0 %v139
  %1627 = vmatpush1.msra.mxu0 %v138
  %1628 = vmatprep.subr.mxu0 %v143
  %1629 = vmatpush1.msra.mxu0 %v142
  %1630 = vmatprep.subr.mxu0 %v147
  %1631 = vmatpush1.msra.mxu0 %v146
  %1632 = vmatprep.subr.mxu0 %v151
  %1633 = vmatpush1.msra.mxu0 %v150
  %1634 = vmatprep.subr.mxu0 %v155
  %1635 = vmatpush1.msra.mxu0 %v154
  %1636 = vmatprep.subr.mxu0 %v159
  %1637 = vmatpush1.msra.mxu0 %v158
  %1638 = vmatprep.subr.mxu0 %v163
  %1639 = vmatpush1.msra.mxu0 %v162
  %1640 = vmatprep.subr.mxu0 %v167
  %1641 = vmatpush1.msra.mxu0 %v166
  %1642 = vmatprep.subr.mxu0 %v171
  %1643 = vmatpush1.msra.mxu0 %v170
  %1644 = vmatprep.subr.mxu0 %v175
  %1645 = vmatpush1.msra.mxu0 %v174
  %1646 = vmatprep.subr.mxu0 %v179
  %1647 = vmatpush1.msra.mxu0 %v178
  %1648 = vmatprep.subr.mxu0 %v183
  %1649 = vmatpush1.msra.mxu0 %v182
  %1650 = vmatprep.subr.mxu0 %v187
  %1651 = vmatpush1.msra.mxu0 %v186
  %1652 = vmatprep.subr.mxu0 %v191
  %1653 = vmatpush1.msra.mxu0 %v190
  %1654 = vmatprep.subr.mxu0 0.0
  %1655 = vmatpush1.msra.mxu0 0.0
  %1656 = vmatprep.subr.mxu0 0.0
  %1657 = vmatpush1.msra.mxu0 0.0
  %1658 = vmatprep.subr.mxu0 0.0
  %1659 = vmatpush1.msra.mxu0 0.0
  %1660 = vmatprep.subr.mxu0 0.0
  %1661 = vmatpush1.msra.mxu0 0.0
  %1662 = vmatprep.subr.mxu0 0.0
  %1663 = vmatpush1.msra.mxu0 0.0
  %1664 = vmatprep.subr.mxu0 0.0
  %1665 = vmatpush1.msra.mxu0 0.0
  %1666 = vmatprep.subr.mxu0 0.0
  %1667 = vmatpush1.msra.mxu0 0.0
  %1668 = vmatprep.subr.mxu0 0.0
  %1669 = vmatpush1.msra.mxu0 0.0
  %1670 = vmatprep.subr.mxu0 0.0
  %1671 = vmatpush1.msra.mxu0 0.0
  %1672 = vmatprep.subr.mxu0 0.0
  %1673 = vmatpush1.msra.mxu0 0.0
  %1674 = vmatprep.subr.mxu0 0.0
  %1675 = vmatpush1.msra.mxu0 0.0
  %1676 = vmatprep.subr.mxu0 0.0
  %1677 = vmatpush1.msra.mxu0 0.0
  %1678 = vmatprep.subr.mxu0 0.0
  %1679 = vmatpush1.msra.mxu0 0.0
  %1680 = vmatprep.subr.mxu0 0.0
  %1681 = vmatpush1.msra.mxu0 0.0
  %1682 = vmatprep.subr.mxu0 0.0
  %1683 = vmatpush1.msra.mxu0 0.0
  %1684 = vmatprep.subr.mxu0 0.0
  %1685 = vmatpush1.msra.mxu0 0.0
  %1686 = vmatprep.mubr.f32.mxu0 0.0
  %1687 = vmatmul.mubr.f32.gmra.mrb[0].mxu0 %v1621
  %v1688 = vpop.f32.mrb[0].mxu0
  %v1689 = vadd.f32 0.0, %v1688
  %v1690 = vpop.f32.mrb[0].mxu0
  %v1691 = vadd.f32 0.0, %v1690
  %1692 = vdwg.mxu0
  %1693 = vmatprep.subr.mxu0 %v133
  %1694 = vmatpush1.msra.mxu0 %v132
  %1695 = vmatprep.subr.mxu0 %v137
  %1696 = vmatpush1.msra.mxu0 %v136
  %1697 = vmatprep.subr.mxu0 %v141
  %1698 = vmatpush1.msra.mxu0 %v140
  %1699 = vmatprep.subr.mxu0 %v145
  %1700 = vmatpush1.msra.mxu0 %v144
  %1701 = vmatprep.subr.mxu0 %v149
  %1702 = vmatpush1.msra.mxu0 %v148
  %1703 = vmatprep.subr.mxu0 %v153
  %1704 = vmatpush1.msra.mxu0 %v152
  %1705 = vmatprep.subr.mxu0 %v157
  %1706 = vmatpush1.msra.mxu0 %v156
  %1707 = vmatprep.subr.mxu0 %v161
  %1708 = vmatpush1.msra.mxu0 %v160
  %1709 = vmatprep.subr.mxu0 %v165
  %1710 = vmatpush1.msra.mxu0 %v164
  %1711 = vmatprep.subr.mxu0 %v169
  %1712 = vmatpush1.msra.mxu0 %v168
  %1713 = vmatprep.subr.mxu0 %v173
  %1714 = vmatpush1.msra.mxu0 %v172
  %1715 = vmatprep.subr.mxu0 %v177
  %1716 = vmatpush1.msra.mxu0 %v176
  %1717 = vmatprep.subr.mxu0 %v181
  %1718 = vmatpush1.msra.mxu0 %v180
  %1719 = vmatprep.subr.mxu0 %v185
  %1720 = vmatpush1.msra.mxu0 %v184
  %1721 = vmatprep.subr.mxu0 %v189
  %1722 = vmatpush1.msra.mxu0 %v188
  %1723 = vmatprep.subr.mxu0 %v193
  %1724 = vmatpush1.msra.mxu0 %v192
  %1725 = vmatprep.subr.mxu0 0.0
  %1726 = vmatpush1.msra.mxu0 0.0
  %1727 = vmatprep.subr.mxu0 0.0
  %1728 = vmatpush1.msra.mxu0 0.0
  %1729 = vmatprep.subr.mxu0 0.0
  %1730 = vmatpush1.msra.mxu0 0.0
  %1731 = vmatprep.subr.mxu0 0.0
  %1732 = vmatpush1.msra.mxu0 0.0
  %1733 = vmatprep.subr.mxu0 0.0
  %1734 = vmatpush1.msra.mxu0 0.0
  %1735 = vmatprep.subr.mxu0 0.0
  %1736 = vmatpush1.msra.mxu0 0.0
  %1737 = vmatprep.subr.mxu0 0.0
  %1738 = vmatpush1.msra.mxu0 0.0
  %1739 = vmatprep.subr.mxu0 0.0
  %1740 = vmatpush1.msra.mxu0 0.0
  %1741 = vmatprep.subr.mxu0 0.0
  %1742 = vmatpush1.msra.mxu0 0.0
  %1743 = vmatprep.subr.mxu0 0.0
  %1744 = vmatpush1.msra.mxu0 0.0
  %1745 = vmatprep.subr.mxu0 0.0
  %1746 = vmatpush1.msra.mxu0 0.0
  %1747 = vmatprep.subr.mxu0 0.0
  %1748 = vmatpush1.msra.mxu0 0.0
  %1749 = vmatprep.subr.mxu0 0.0
  %1750 = vmatpush1.msra.mxu0 0.0
  %1751 = vmatprep.subr.mxu0 0.0
  %1752 = vmatpush1.msra.mxu0 0.0
  %1753 = vmatprep.subr.mxu0 0.0
  %1754 = vmatpush1.msra.mxu0 0.0
  %1755 = vmatprep.subr.mxu0 0.0
  %1756 = vmatpush1.msra.mxu0 0.0
  %1757 = vmatprep.mubr.f32.mxu0 0.0
  %1758 = vmatmul.mubr.f32.gmra.mrb[0].mxu0 %v1621
  %v1759 = vpop.f32.mrb[0].mxu0
  %v1760 = vadd.f32 0.0, %v1759
  %v1761 = vpop.f32.mrb[0].mxu0
  %v1762 = vadd.f32 0.0, %v1761
  %1763 = vdwg.mxu0
  %v1768 = vcombine.low %v1689, %v1691
  %v1769 = vcombine.low %v1760, %v1762
  %v1771 = vunpack.c.l.s4 1983009808
  %v1772 = vunpack.c.0.s8 %v1771
  %v1773 = vlaneseq
  %v1774 = vshrl.u32 %v1773, 7
  %v1775 = vsub.s32 %v1772, %v1774
  %v1776 = vrot.slane %v1768, %v1775
  %v1778 = vunpack.c.l.s4 1983009808
  %v1779 = vunpack.c.0.s8 %v1778
  %v1780 = vlaneseq
  %v1781 = vshrl.u32 %v1780, 7
  %v1782 = vsub.s32 %v1779, %v1781
  %v1783 = vrot.slane %v1769, %v1782
  %v1784 = vcombine.low %v1776, %v1783
  %v1786 = vadd.f32 %v1620, %v1784
  %v1787 = vld [vmem:[#allocation5] sm:$0x3]
  %v1788 = vxor.u32 %v1786, 2147483648
  %v1789 = vmul.f32 %v1788, 1.442695
  %v1790 = vpow.pop %v1789
  %v1791 = vadd.f32 %v1790, 1.0
  %v1792 = vrcp.pop %v1791
  %v1793 = vmul.f32 1.0, %v1792
  %v1795 = vrot.slane %v1786, 2
  %v1797 = vxor.u32 %v1795, 2147483648
  %v1798 = vmul.f32 %v1797, 1.442695
  %v1799 = vpow.pop %v1798
  %v1800 = vadd.f32 %v1799, 1.0
  %v1801 = vrcp.pop %v1800
  %v1802 = vmul.f32 1.0, %v1801
  %v1803 = vrot.slane %v1786, 4
  %v1805 = vtanh.pop %v1803
  %v1806 = vrot.slane %v1786, 6
  %v1808 = vxor.u32 %v1806, 2147483648
  %v1809 = vmul.f32 %v1808, 1.442695
  %v1810 = vpow.pop %v1809
  %v1811 = vadd.f32 %v1810, 1.0
  %v1812 = vrcp.pop %v1811
  %v1813 = vmul.f32 1.0, %v1812
  %v1814 = vmul.f32 %v1802, %v1787
  %v1815 = vmul.f32 %v1793, %v1805
  %v1816 = vadd.f32 %v1814, %v1815
  %v1817 = vtanh.pop %v1816
  %v1818 = vmul.f32 %v1813, %v1817
  %1819 = vst [vmem:[#allocation5] sm:$0x3] %v1816
  %1820 = vst [vmem:[#allocation4] sm:$0x3] %v1818
  %1821 = vst [vmem:[%s55] sm:$0x3] %v1818
  %s1822 = ssub.s32 0, 0
  %s1823 = smul.u32 4, %s1822
  %p1824 = scmp.lt.s32.totalorder %s1823, 3
  %s1825 = scalar_select %p1824, %s1823, 3
  %s1826 = smul.addr %s1825, 2
  %s1827 = scalar_lea.vmem %s5, %s1826
  // Predicated region
  $region22: #{demucs_forward.21} parent=0 // pred_check
    _
  $region23: #{demucs_forward.21} parent=0 // pred_check_branch
    %1829 = sbr.rel (0) target = $region25
  $region24: #{demucs_forward.21} parent=0 // pred_region
    _
  $region25: #{demucs_forward.21} parent=0 // pred_fallthru
    _
  // Predicated region
  $region26: #{demucs_forward.21} parent=0 // pred_check
    _
  $region27: #{demucs_forward.21} parent=0 // pred_check_branch
    %1831 = sbr.rel (0) target = $region29
  $region28: #{demucs_forward.21} parent=0 // pred_region
    %s1832 = ssub.s32 0, 0
    %s1833 = smul.u32 4, %s1832
  $region29: #{demucs_forward.21} parent=0 // pred_fallthru
    _
  // Predicated region
  $region30: #{demucs_forward.21} parent=0 // pred_check
    _
  $region31: #{demucs_forward.21} parent=0 // pred_check_branch
    %1835 = sbr.rel (0) target = $region33
  $region32: #{demucs_forward.21} parent=0 // pred_region
    _
  $region33: #{demucs_forward.21} parent=0 // pred_fallthru
    _
  // Predicated region
  $region34: #{demucs_forward.21} parent=0 // pred_check
    _
  $region35: #{demucs_forward.21} parent=0 // pred_check_branch
    %1837 = sbr.rel (0) target = $region37
  $region36: #{demucs_forward.21} parent=0 // pred_region
    %s1838 = ssub.s32 0, 0
    %s1839 = smul.u32 4, %s1838
    %p1840 = scmp.lt.s32.totalorder %s1839, 3
    %s1841 = scalar_select %p1840, %s1839, 3
    %s1842 = smul.addr %s1841, 2
    %s1843 = scalar_lea.vmem %s5, %s1842
  $region37: #{demucs_forward.21} parent=0 // pred_fallthru
    _

// kernel: demucs_forward.26
$region0: #{demucs_forward.26}
  #allocation0 [shape = 'u32[]', space=smem, size = 0x4, offset = 0x4, fixed_abs, tag = 'smem constant byte address 0x4 - core index']
  #allocation1 [shape = 'u32[144,128]{1,0:T(1,128)}', space=vmem, size = 0x12000, scoped, tag = 'internal scratch']
  %s0 = inlined_call_operand.vmem [shape: bf16[8,128], index: 0, kind: input, shape index: {}]
  %s1 = inlined_call_operand.vmem [shape: bf16[8,128], index: 1, kind: input, shape index: {}]
  %s2 = inlined_call_operand.vmem [shape: bf16[8,128], index: 2, kind: input, shape index: {}]
  %s3 = inlined_call_operand.vmem [shape: bf16[128,256], index: 3, kind: input, shape index: {}]
  %s4 = inlined_call_operand.vmem [shape: bf16[128,256], index: 4, kind: input, shape index: {}]
  %s5 = inlined_call_operand.vmem [shape: bf16[128,256], index: 5, kind: input, shape index: {}]
  %s6 = inlined_call_operand.vmem [shape: f32[1,256], index: 6, kind: input, shape index: {}]
  %s7 = inlined_call_operand.vmem [shape: f32[8,256], index: 7, kind: input, shape index: {}]
  %s8 = inlined_call_operand.vmem [shape: f32[8,256], index: 8, kind: output, shape index: {}]
  %s9 = sld [smem:[#allocation0]]
  $region42: #{demucs_forward.26} parent=0
    _
  %s11 = ssub.s32 1, %s9
  %s12 = scalar_select 0, %s11, %s9
  // Predicated region
  $region2: #{demucs_forward.26} parent=0 // pred_check
    _
  $region3: #{demucs_forward.26} parent=0 // pred_check_branch
    %14 = sbr.rel (0) target = $region5
  $region4: #{demucs_forward.26} parent=0 // pred_region
    _
  $region5: #{demucs_forward.26} parent=0 // pred_fallthru
    _
  // Predicated region
  $region6: #{demucs_forward.26} parent=0 // pred_check
    _
  $region7: #{demucs_forward.26} parent=0 // pred_check_branch
    %16 = sbr.rel (0) target = $region9
  $region8: #{demucs_forward.26} parent=0 // pred_region
    _
  $region9: #{demucs_forward.26} parent=0 // pred_fallthru
    _
  // Predicated region
  $region10: #{demucs_forward.26} parent=0 // pred_check
    _
  $region11: #{demucs_forward.26} parent=0 // pred_check_branch
    %18 = sbr.rel (0) target = $region13
  $region12: #{demucs_forward.26} parent=0 // pred_region
    _
  $region13: #{demucs_forward.26} parent=0 // pred_fallthru
    _
  // Predicated region
  $region14: #{demucs_forward.26} parent=0 // pred_check
    _
  $region15: #{demucs_forward.26} parent=0 // pred_check_branch
    %20 = sbr.rel (0) target = $region17
  $region16: #{demucs_forward.26} parent=0 // pred_region
    _
  $region17: #{demucs_forward.26} parent=0 // pred_fallthru
    _
  // Predicated region
  $region18: #{demucs_forward.26} parent=0 // pred_check
    _
  $region19: #{demucs_forward.26} parent=0 // pred_check_branch
    %22 = sbr.rel (0) target = $region21
  $region20: #{demucs_forward.26} parent=0 // pred_region
    _
  $region21: #{demucs_forward.26} parent=0 // pred_fallthru
    _
  // Predicated region
  $region22: #{demucs_forward.26} parent=0 // pred_check
    _
  $region23: #{demucs_forward.26} parent=0 // pred_check_branch
    %24 = sbr.rel (0) target = $region25
  $region24: #{demucs_forward.26} parent=0 // pred_region
    _
  $region25: #{demucs_forward.26} parent=0 // pred_fallthru
    _
  // Predicated region
  $region26: #{demucs_forward.26} parent=0 // pred_check
    _
  $region27: #{demucs_forward.26} parent=0 // pred_check_branch
    %26 = sbr.rel (0) target = $region29
  $region28: #{demucs_forward.26} parent=0 // pred_region
    _
  $region29: #{demucs_forward.26} parent=0 // pred_fallthru
    _
  // Predicated region
  $region30: #{demucs_forward.26} parent=0 // pred_check
    _
  $region31: #{demucs_forward.26} parent=0 // pred_check_branch
    %28 = sbr.rel (0) target = $region33
  $region32: #{demucs_forward.26} parent=0 // pred_region
    _
  $region33: #{demucs_forward.26} parent=0 // pred_fallthru
    _
  %v30 = vld [vmem:[%s0] sm:$0xf]
  %v31 = vld [vmem:[%s3] sm:$0xff]
  %v32 = vld [vmem:[%s3 + $0x8] sm:$0xff]
  %v33 = vld [vmem:[%s3 + $0x10] sm:$0xff]
  %v34 = vld [vmem:[%s3 + $0x18] sm:$0xff]
  %v35 = vld [vmem:[%s3 + $0x20] sm:$0xff]
  %v36 = vld [vmem:[%s3 + $0x28] sm:$0xff]
  %v37 = vld [vmem:[%s3 + $0x30] sm:$0xff]
  %v38 = vld [vmem:[%s3 + $0x38] sm:$0xff]
  %v39 = vld [vmem:[%s3 + $0x40] sm:$0xff]
  %v40 = vld [vmem:[%s3 + $0x48] sm:$0xff]
  %v41 = vld [vmem:[%s3 + $0x50] sm:$0xff]
  %v42 = vld [vmem:[%s3 + $0x58] sm:$0xff]
  %v43 = vld [vmem:[%s3 + $0x60] sm:$0xff]
  %v44 = vld [vmem:[%s3 + $0x68] sm:$0xff]
  %v45 = vld [vmem:[%s3 + $0x70] sm:$0xff]
  %v46 = vld [vmem:[%s3 + $0x78] sm:$0xff]
  %v47 = vld [vmem:[%s1] sm:$0xf]
  %v48 = vld [vmem:[%s4] sm:$0xff]
  %v49 = vld [vmem:[%s4 + $0x8] sm:$0xff]
  %v50 = vld [vmem:[%s4 + $0x10] sm:$0xff]
  %v51 = vld [vmem:[%s4 + $0x18] sm:$0xff]
  %v52 = vld [vmem:[%s4 + $0x20] sm:$0xff]
  %v53 = vld [vmem:[%s4 + $0x28] sm:$0xff]
  %v54 = vld [vmem:[%s4 + $0x30] sm:$0xff]
  %v55 = vld [vmem:[%s4 + $0x38] sm:$0xff]
  %v56 = vld [vmem:[%s4 + $0x40] sm:$0xff]
  %v57 = vld [vmem:[%s4 + $0x48] sm:$0xff]
  %v58 = vld [vmem:[%s4 + $0x50] sm:$0xff]
  %v59 = vld [vmem:[%s4 + $0x58] sm:$0xff]
  %v60 = vld [vmem:[%s4 + $0x60] sm:$0xff]
  %v61 = vld [vmem:[%s4 + $0x68] sm:$0xff]
  %v62 = vld [vmem:[%s4 + $0x70] sm:$0xff]
  %v63 = vld [vmem:[%s4 + $0x78] sm:$0xff]
  %v80 = vunpack.c.l.b16 %v48
  %v81 = vunpack.c.h.b16 %v48
  %v82 = vunpack.c.l.b16 %v49
  %v83 = vunpack.c.h.b16 %v49
  %v84 = vunpack.c.l.b16 %v50
  %v85 = vunpack.c.h.b16 %v50
  %v86 = vunpack.c.l.b16 %v51
  %v87 = vunpack.c.h.b16 %v51
  %v88 = vunpack.c.l.b16 %v52
  %v89 = vunpack.c.h.b16 %v52
  %v90 = vunpack.c.l.b16 %v53
  %v91 = vunpack.c.h.b16 %v53
  %v92 = vunpack.c.l.b16 %v54
  %v93 = vunpack.c.h.b16 %v54
  %v94 = vunpack.c.l.b16 %v55
  %v95 = vunpack.c.h.b16 %v55
  %v96 = vunpack.c.l.b16 %v56
  %v97 = vunpack.c.h.b16 %v56
  %v98 = vunpack.c.l.b16 %v57
  %v99 = vunpack.c.h.b16 %v57
  %v100 = vunpack.c.l.b16 %v58
  %v101 = vunpack.c.h.b16 %v58
  %v102 = vunpack.c.l.b16 %v59
  %v103 = vunpack.c.h.b16 %v59
  %v104 = vunpack.c.l.b16 %v60
  %v105 = vunpack.c.h.b16 %v60
  %v106 = vunpack.c.l.b16 %v61
  %v107 = vunpack.c.h.b16 %v61
  %v108 = vunpack.c.l.b16 %v62
  %v109 = vunpack.c.h.b16 %v62
  %v110 = vunpack.c.l.b16 %v63
  %v111 = vunpack.c.h.b16 %v63
  %v112 = vpack.c.b16 %v82, %v80
  %v113 = vpack.c.b16 %v83, %v81
  %v114 = vpack.c.b16 %v86, %v84
  %v115 = vpack.c.b16 %v87, %v85
  %v116 = vpack.c.b16 %v90, %v88
  %v117 = vpack.c.b16 %v91, %v89
  %v118 = vpack.c.b16 %v94, %v92
  %v119 = vpack.c.b16 %v95, %v93
  %v120 = vpack.c.b16 %v98, %v96
  %v121 = vpack.c.b16 %v99, %v97
  %v122 = vpack.c.b16 %v102, %v100
  %v123 = vpack.c.b16 %v103, %v101
  %v124 = vpack.c.b16 %v106, %v104
  %v125 = vpack.c.b16 %v107, %v105
  %v126 = vpack.c.b16 %v110, %v108
  %v127 = vpack.c.b16 %v111, %v109
  %144 = vmatprep.subr.bf16.mxu0 %v113
  %145 = vmatpush1.bf16.msra.mxu0 %v112
  %146 = vmatprep.subr.bf16.mxu0 %v115
  %147 = vmatpush1.bf16.msra.mxu0 %v114
  %148 = vmatprep.subr.bf16.mxu0 %v117
  %149 = vmatpush1.bf16.msra.mxu0 %v116
  %150 = vmatprep.subr.bf16.mxu0 %v119
  %151 = vmatpush1.bf16.msra.mxu0 %v118
  %152 = vmatprep.subr.bf16.mxu0 %v121
  %153 = vmatpush1.bf16.msra.mxu0 %v120
  %154 = vmatprep.subr.bf16.mxu0 %v123
  %155 = vmatpush1.bf16.msra.mxu0 %v122
  %156 = vmatprep.subr.bf16.mxu0 %v125
  %157 = vmatpush1.bf16.msra.mxu0 %v124
  %158 = vmatprep.subr.bf16.mxu0 %v127
  %159 = vmatpush1.bf16.msra.mxu0 %v126
  %160 = vmatprep.subr.bf16.mxu0 0
  %161 = vmatpush1.bf16.msra.mxu0 0
  %162 = vmatprep.subr.bf16.mxu0 0
  %163 = vmatpush1.bf16.msra.mxu0 0
  %164 = vmatprep.subr.bf16.mxu0 0
  %165 = vmatpush1.bf16.msra.mxu0 0
  %166 = vmatprep.subr.bf16.mxu0 0
  %167 = vmatpush1.bf16.msra.mxu0 0
  %168 = vmatprep.subr.bf16.mxu0 0
  %169 = vmatpush1.bf16.msra.mxu0 0
  %170 = vmatprep.subr.bf16.mxu0 0
  %171 = vmatpush1.bf16.msra.mxu0 0
  %172 = vmatprep.subr.bf16.mxu0 0
  %173 = vmatpush1.bf16.msra.mxu0 0
  %174 = vmatprep.subr.bf16.mxu0 0
  %175 = vmatpush1.bf16.msra.mxu0 0
  %176 = vmatprep.mubr.bf16.mxu0 0
  %177 = vmatmul.mubr.bf16.gmra.mrb[0].mxu0 %v47
  %v178 = vpop.f32.mrb[0].mxu0
  %v179 = vadd.f32 0.0, %v178
  %v180 = vpop.f32.mrb[0].mxu0
  %v181 = vadd.f32 0.0, %v180
  %v182 = vpop.f32.mrb[0].mxu0
  %v183 = vpop.f32.mrb[0].mxu0
  %184 = vdwg.mxu0
  %v201 = vunpack.c.l.b16 %v31
  %v202 = vunpack.c.h.b16 %v31
  %v203 = vunpack.c.l.b16 %v32
  %v204 = vunpack.c.h.b16 %v32
  %v205 = vunpack.c.l.b16 %v33
  %v206 = vunpack.c.h.b16 %v33
  %v207 = vunpack.c.l.b16 %v34
  %v208 = vunpack.c.h.b16 %v34
  %v209 = vunpack.c.l.b16 %v35
  %v210 = vunpack.c.h.b16 %v35
  %v211 = vunpack.c.l.b16 %v36
  %v212 = vunpack.c.h.b16 %v36
  %v213 = vunpack.c.l.b16 %v37
  %v214 = vunpack.c.h.b16 %v37
  %v215 = vunpack.c.l.b16 %v38
  %v216 = vunpack.c.h.b16 %v38
  %v217 = vunpack.c.l.b16 %v39
  %v218 = vunpack.c.h.b16 %v39
  %v219 = vunpack.c.l.b16 %v40
  %v220 = vunpack.c.h.b16 %v40
  %v221 = vunpack.c.l.b16 %v41
  %v222 = vunpack.c.h.b16 %v41
  %v223 = vunpack.c.l.b16 %v42
  %v224 = vunpack.c.h.b16 %v42
  %v225 = vunpack.c.l.b16 %v43
  %v226 = vunpack.c.h.b16 %v43
  %v227 = vunpack.c.l.b16 %v44
  %v228 = vunpack.c.h.b16 %v44
  %v229 = vunpack.c.l.b16 %v45
  %v230 = vunpack.c.h.b16 %v45
  %v231 = vunpack.c.l.b16 %v46
  %v232 = vunpack.c.h.b16 %v46
  %v233 = vpack.c.b16 %v203, %v201
  %v234 = vpack.c.b16 %v204, %v202
  %v235 = vpack.c.b16 %v207, %v205
  %v236 = vpack.c.b16 %v208, %v206
  %v237 = vpack.c.b16 %v211, %v209
  %v238 = vpack.c.b16 %v212, %v210
  %v239 = vpack.c.b16 %v215, %v213
  %v240 = vpack.c.b16 %v216, %v214
  %v241 = vpack.c.b16 %v219, %v217
  %v242 = vpack.c.b16 %v220, %v218
  %v243 = vpack.c.b16 %v223, %v221
  %v244 = vpack.c.b16 %v224, %v222
  %v245 = vpack.c.b16 %v227, %v225
  %v246 = vpack.c.b16 %v228, %v226
  %v247 = vpack.c.b16 %v231, %v229
  %v248 = vpack.c.b16 %v232, %v230
  %265 = vmatprep.subr.bf16.mxu0 %v234
  %266 = vmatpush1.bf16.msra.mxu0 %v233
  %267 = vmatprep.subr.bf16.mxu0 %v236
  %268 = vmatpush1.bf16.msra.mxu0 %v235
  %269 = vmatprep.subr.bf16.mxu0 %v238
  %270 = vmatpush1.bf16.msra.mxu0 %v237
  %271 = vmatprep.subr.bf16.mxu0 %v240
  %272 = vmatpush1.bf16.msra.mxu0 %v239
  %273 = vmatprep.subr.bf16.mxu0 %v242
  %274 = vmatpush1.bf16.msra.mxu0 %v241
  %275 = vmatprep.subr.bf16.mxu0 %v244
  %276 = vmatpush1.bf16.msra.mxu0 %v243
  %277 = vmatprep.subr.bf16.mxu0 %v246
  %278 = vmatpush1.bf16.msra.mxu0 %v245
  %279 = vmatprep.subr.bf16.mxu0 %v248
  %280 = vmatpush1.bf16.msra.mxu0 %v247
  %281 = vmatprep.subr.bf16.mxu0 0
  %282 = vmatpush1.bf16.msra.mxu0 0
  %283 = vmatprep.subr.bf16.mxu0 0
  %284 = vmatpush1.bf16.msra.mxu0 0
  %285 = vmatprep.subr.bf16.mxu0 0
  %286 = vmatpush1.bf16.msra.mxu0 0
  %287 = vmatprep.subr.bf16.mxu0 0
  %288 = vmatpush1.bf16.msra.mxu0 0
  %289 = vmatprep.subr.bf16.mxu0 0
  %290 = vmatpush1.bf16.msra.mxu0 0
  %291 = vmatprep.subr.bf16.mxu0 0
  %292 = vmatpush1.bf16.msra.mxu0 0
  %293 = vmatprep.subr.bf16.mxu0 0
  %294 = vmatpush1.bf16.msra.mxu0 0
  %295 = vmatprep.subr.bf16.mxu0 0
  %296 = vmatpush1.bf16.msra.mxu0 0
  %297 = vmatprep.mubr.bf16.mxu0 0
  %298 = vmatmul.mubr.bf16.gmra.mrb[0].mxu0 %v30
  %v299 = vpop.f32.mrb[0].mxu0
  %v300 = vadd.f32 %v179, %v299
  %v301 = vpop.f32.mrb[0].mxu0
  %v302 = vadd.f32 %v181, %v301
  %v303 = vpop.f32.mrb[0].mxu0
  %v304 = vpop.f32.mrb[0].mxu0
  %305 = vdwg.mxu0
  %v306 = vld [vmem:[%s2] sm:$0xf]
  %v307 = vld [vmem:[%s5] sm:$0xff]
  %v308 = vld [vmem:[%s5 + $0x8] sm:$0xff]
  %v309 = vld [vmem:[%s5 + $0x10] sm:$0xff]
  %v310 = vld [vmem:[%s5 + $0x18] sm:$0xff]
  %v311 = vld [vmem:[%s5 + $0x20] sm:$0xff]
  %v312 = vld [vmem:[%s5 + $0x28] sm:$0xff]
  %v313 = vld [vmem:[%s5 + $0x30] sm:$0xff]
  %v314 = vld [vmem:[%s5 + $0x38] sm:$0xff]
  %v315 = vld [vmem:[%s5 + $0x40] sm:$0xff]
  %v316 = vld [vmem:[%s5 + $0x48] sm:$0xff]
  %v317 = vld [vmem:[%s5 + $0x50] sm:$0xff]
  %v318 = vld [vmem:[%s5 + $0x58] sm:$0xff]
  %v319 = vld [vmem:[%s5 + $0x60] sm:$0xff]
  %v320 = vld [vmem:[%s5 + $0x68] sm:$0xff]
  %v321 = vld [vmem:[%s5 + $0x70] sm:$0xff]
  %v322 = vld [vmem:[%s5 + $0x78] sm:$0xff]
  %v339 = vunpack.c.l.b16 %v307
  %v340 = vunpack.c.h.b16 %v307
  %v341 = vunpack.c.l.b16 %v308
  %v342 = vunpack.c.h.b16 %v308
  %v343 = vunpack.c.l.b16 %v309
  %v344 = vunpack.c.h.b16 %v309
  %v345 = vunpack.c.l.b16 %v310
  %v346 = vunpack.c.h.b16 %v310
  %v347 = vunpack.c.l.b16 %v311
  %v348 = vunpack.c.h.b16 %v311
  %v349 = vunpack.c.l.b16 %v312
  %v350 = vunpack.c.h.b16 %v312
  %v351 = vunpack.c.l.b16 %v313
  %v352 = vunpack.c.h.b16 %v313
  %v353 = vunpack.c.l.b16 %v314
  %v354 = vunpack.c.h.b16 %v314
  %v355 = vunpack.c.l.b16 %v315
  %v356 = vunpack.c.h.b16 %v315
  %v357 = vunpack.c.l.b16 %v316
  %v358 = vunpack.c.h.b16 %v316
  %v359 = vunpack.c.l.b16 %v317
  %v360 = vunpack.c.h.b16 %v317
  %v361 = vunpack.c.l.b16 %v318
  %v362 = vunpack.c.h.b16 %v318
  %v363 = vunpack.c.l.b16 %v319
  %v364 = vunpack.c.h.b16 %v319
  %v365 = vunpack.c.l.b16 %v320
  %v366 = vunpack.c.h.b16 %v320
  %v367 = vunpack.c.l.b16 %v321
  %v368 = vunpack.c.h.b16 %v321
  %v369 = vunpack.c.l.b16 %v322
  %v370 = vunpack.c.h.b16 %v322
  %v371 = vpack.c.b16 %v341, %v339
  %v372 = vpack.c.b16 %v342, %v340
  %v373 = vpack.c.b16 %v345, %v343
  %v374 = vpack.c.b16 %v346, %v344
  %v375 = vpack.c.b16 %v349, %v347
  %v376 = vpack.c.b16 %v350, %v348
  %v377 = vpack.c.b16 %v353, %v351
  %v378 = vpack.c.b16 %v354, %v352
  %v379 = vpack.c.b16 %v357, %v355
  %v380 = vpack.c.b16 %v358, %v356
  %v381 = vpack.c.b16 %v361, %v359
  %v382 = vpack.c.b16 %v362, %v360
  %v383 = vpack.c.b16 %v365, %v363
  %v384 = vpack.c.b16 %v366, %v364
  %v385 = vpack.c.b16 %v369, %v367
  %v386 = vpack.c.b16 %v370, %v368
  %403 = vmatprep.subr.bf16.mxu0 %v372
  %404 = vmatpush1.bf16.msra.mxu0 %v371
  %405 = vmatprep.subr.bf16.mxu0 %v374
  %406 = vmatpush1.bf16.msra.mxu0 %v373
  %407 = vmatprep.subr.bf16.mxu0 %v376
  %408 = vmatpush1.bf16.msra.mxu0 %v375
  %409 = vmatprep.subr.bf16.mxu0 %v378
  %410 = vmatpush1.bf16.msra.mxu0 %v377
  %411 = vmatprep.subr.bf16.mxu0 %v380
  %412 = vmatpush1.bf16.msra.mxu0 %v379
  %413 = vmatprep.subr.bf16.mxu0 %v382
  %414 = vmatpush1.bf16.msra.mxu0 %v381
  %415 = vmatprep.subr.bf16.mxu0 %v384
  %416 = vmatpush1.bf16.msra.mxu0 %v383
  %417 = vmatprep.subr.bf16.mxu0 %v386
  %418 = vmatpush1.bf16.msra.mxu0 %v385
  %419 = vmatprep.subr.bf16.mxu0 0
  %420 = vmatpush1.bf16.msra.mxu0 0
  %421 = vmatprep.subr.bf16.mxu0 0
  %422 = vmatpush1.bf16.msra.mxu0 0
  %423 = vmatprep.subr.bf16.mxu0 0
  %424 = vmatpush1.bf16.msra.mxu0 0
  %425 = vmatprep.subr.bf16.mxu0 0
  %426 = vmatpush1.bf16.msra.mxu0 0
  %427 = vmatprep.subr.bf16.mxu0 0
  %428 = vmatpush1.bf16.msra.mxu0 0
  %429 = vmatprep.subr.bf16.mxu0 0
  %430 = vmatpush1.bf16.msra.mxu0 0
  %431 = vmatprep.subr.bf16.mxu0 0
  %432 = vmatpush1.bf16.msra.mxu0 0
  %433 = vmatprep.subr.bf16.mxu0 0
  %434 = vmatpush1.bf16.msra.mxu0 0
  %435 = vmatprep.mubr.bf16.mxu0 0
  %436 = vmatmul.mubr.bf16.gmra.mrb[0].mxu0 %v306
  %v437 = vpop.f32.mrb[0].mxu0
  %v438 = vadd.f32 0.0, %v437
  %v439 = vpop.f32.mrb[0].mxu0
  %v440 = vadd.f32 0.0, %v439
  %v441 = vpop.f32.mrb[0].mxu0
  %v442 = vpop.f32.mrb[0].mxu0
  %443 = vdwg.mxu0
  %v444 = vadd.f32 %v300, %v438
  %v445 = vadd.f32 %v302, %v440
  %v446 = vld [vmem:[%s6] sm:$0x3]
  %v448 = vlaneseq
  %v449 = vshrl.u32 %v448, 7
  %v450 = vsub.s32 0, %v449
  %v451 = vrot.slane %v446, %v450
  %v452 = vlaneseq
  %v453 = vshrl.u32 %v452, 7
  %v454 = vsub.s32 1, %v453
  %v455 = vrot.slane %v446, %v454
  %v458 = vadd.f32 %v444, %v451
  %v459 = vadd.f32 %v445, %v455
  %v460 = vmax.f32 %v458, 0.0
  %v461 = vmax.f32 %v459, 0.0
  %v462 = vld [vmem:[%s7] sm:$0xff]
  %v463 = vld [vmem:[%s7 + $0x8] sm:$0xff]
  %v464 = vadd.f32 %v460, %v462
  %v465 = vadd.f32 %v461, %v463
  %466 = vst [vmem:[%s8] sm:$0xff] %v464
  %467 = vst [vmem:[%s8 + $0x8] sm:$0xff] %v465
  // Predicated region
  $region34: #{demucs_forward.26} parent=0 // pred_check
    _
  $region35: #{demucs_forward.26} parent=0 // pred_check_branch
    %469 = sbr.rel (0) target = $region37
  $region36: #{demucs_forward.26} parent=0 // pred_region
    _
  $region37: #{demucs_forward.26} parent=0 // pred_fallthru
    _
  // Predicated region
  $region38: #{demucs_forward.26} parent=0 // pred_check
    _
  $region39: #{demucs_forward.26} parent=0 // pred_check_branch
    %471 = sbr.rel (0) target = $region41
  $region40: #{demucs_forward.26} parent=0 // pred_region
    _
  $region41: #{demucs_forward.26} parent=0 // pred_fallthru
    _

// kernel: demucs_forward.27
$region0: #{demucs_forward.27}
  #allocation0 [shape = 'u32[]', space=smem, size = 0x4, offset = 0x4, fixed_abs, tag = 'smem constant byte address 0x4 - core index']
  #allocation1 [shape = 'u32[144,128]{1,0:T(1,128)}', space=vmem, size = 0x12000, scoped, tag = 'internal scratch']
  %s0 = inlined_call_operand.vmem [shape: bf16[32,64], index: 0, kind: input, shape index: {}]
  %s1 = inlined_call_operand.vmem [shape: bf16[32,64], index: 1, kind: input, shape index: {}]
  %s2 = inlined_call_operand.vmem [shape: bf16[32,64], index: 2, kind: input, shape index: {}]
  %s3 = inlined_call_operand.vmem [shape: bf16[64,128], index: 3, kind: input, shape index: {}]
  %s4 = inlined_call_operand.vmem [shape: bf16[64,128], index: 4, kind: input, shape index: {}]
  %s5 = inlined_call_operand.vmem [shape: bf16[64,128], index: 5, kind: input, shape index: {}]
  %s6 = inlined_call_operand.vmem [shape: f32[1,128], index: 6, kind: input, shape index: {}]
  %s7 = inlined_call_operand.vmem [shape: f32[32,128], index: 7, kind: input, shape index: {}]
  %s8 = inlined_call_operand.vmem [shape: f32[32,128], index: 8, kind: output, shape index: {}]
  %s9 = sld [smem:[#allocation0]]
  $region42: #{demucs_forward.27} parent=0
    _
  %s11 = ssub.s32 1, %s9
  %s12 = scalar_select 0, %s11, %s9
  // Predicated region
  $region2: #{demucs_forward.27} parent=0 // pred_check
    _
  $region3: #{demucs_forward.27} parent=0 // pred_check_branch
    %14 = sbr.rel (0) target = $region5
  $region4: #{demucs_forward.27} parent=0 // pred_region
    _
  $region5: #{demucs_forward.27} parent=0 // pred_fallthru
    _
  // Predicated region
  $region6: #{demucs_forward.27} parent=0 // pred_check
    _
  $region7: #{demucs_forward.27} parent=0 // pred_check_branch
    %16 = sbr.rel (0) target = $region9
  $region8: #{demucs_forward.27} parent=0 // pred_region
    _
  $region9: #{demucs_forward.27} parent=0 // pred_fallthru
    _
  // Predicated region
  $region10: #{demucs_forward.27} parent=0 // pred_check
    _
  $region11: #{demucs_forward.27} parent=0 // pred_check_branch
    %18 = sbr.rel (0) target = $region13
  $region12: #{demucs_forward.27} parent=0 // pred_region
    _
  $region13: #{demucs_forward.27} parent=0 // pred_fallthru
    _
  // Predicated region
  $region14: #{demucs_forward.27} parent=0 // pred_check
    _
  $region15: #{demucs_forward.27} parent=0 // pred_check_branch
    %20 = sbr.rel (0) target = $region17
  $region16: #{demucs_forward.27} parent=0 // pred_region
    _
  $region17: #{demucs_forward.27} parent=0 // pred_fallthru
    _
  // Predicated region
  $region18: #{demucs_forward.27} parent=0 // pred_check
    _
  $region19: #{demucs_forward.27} parent=0 // pred_check_branch
    %22 = sbr.rel (0) target = $region21
  $region20: #{demucs_forward.27} parent=0 // pred_region
    _
  $region21: #{demucs_forward.27} parent=0 // pred_fallthru
    _
  // Predicated region
  $region22: #{demucs_forward.27} parent=0 // pred_check
    _
  $region23: #{demucs_forward.27} parent=0 // pred_check_branch
    %24 = sbr.rel (0) target = $region25
  $region24: #{demucs_forward.27} parent=0 // pred_region
    _
  $region25: #{demucs_forward.27} parent=0 // pred_fallthru
    _
  // Predicated region
  $region26: #{demucs_forward.27} parent=0 // pred_check
    _
  $region27: #{demucs_forward.27} parent=0 // pred_check_branch
    %26 = sbr.rel (0) target = $region29
  $region28: #{demucs_forward.27} parent=0 // pred_region
    _
  $region29: #{demucs_forward.27} parent=0 // pred_fallthru
    _
  // Predicated region
  $region30: #{demucs_forward.27} parent=0 // pred_check
    _
  $region31: #{demucs_forward.27} parent=0 // pred_check_branch
    %28 = sbr.rel (0) target = $region33
  $region32: #{demucs_forward.27} parent=0 // pred_region
    _
  $region33: #{demucs_forward.27} parent=0 // pred_fallthru
    _
  %v30 = vld [vmem:[%s0] sm:$0xf]
  %v31 = vld [vmem:[%s0 + $0x4] sm:$0xf]
  %v32 = vld [vmem:[%s0 + $0x8] sm:$0xf]
  %v33 = vld [vmem:[%s0 + $0xc] sm:$0xf]
  %v34 = vld [vmem:[%s3] sm:$0xf]
  %v35 = vld [vmem:[%s3 + $0x4] sm:$0xf]
  %v36 = vld [vmem:[%s3 + $0x8] sm:$0xf]
  %v37 = vld [vmem:[%s3 + $0xc] sm:$0xf]
  %v38 = vld [vmem:[%s3 + $0x10] sm:$0xf]
  %v39 = vld [vmem:[%s3 + $0x14] sm:$0xf]
  %v40 = vld [vmem:[%s3 + $0x18] sm:$0xf]
  %v41 = vld [vmem:[%s3 + $0x1c] sm:$0xf]
  %v42 = vld [vmem:[%s1] sm:$0xf]
  %v43 = vld [vmem:[%s1 + $0x4] sm:$0xf]
  %v44 = vld [vmem:[%s1 + $0x8] sm:$0xf]
  %v45 = vld [vmem:[%s1 + $0xc] sm:$0xf]
  %v46 = vld [vmem:[%s4] sm:$0xf]
  %v47 = vld [vmem:[%s4 + $0x4] sm:$0xf]
  %v48 = vld [vmem:[%s4 + $0x8] sm:$0xf]
  %v49 = vld [vmem:[%s4 + $0xc] sm:$0xf]
  %v50 = vld [vmem:[%s4 + $0x10] sm:$0xf]
  %v51 = vld [vmem:[%s4 + $0x14] sm:$0xf]
  %v52 = vld [vmem:[%s4 + $0x18] sm:$0xf]
  %v53 = vld [vmem:[%s4 + $0x1c] sm:$0xf]
  %v58 = vunpack.c.l.b16 %v42
  %v59 = vunpack.c.l.b16 %v43
  %v60 = vunpack.c.l.b16 %v44
  %v61 = vunpack.c.l.b16 %v45
  %v62 = vpack.c.b16 %v59, %v58
  %v63 = vpack.c.b16 %v61, %v60
  %v72 = vunpack.c.l.b16 %v46
  %v73 = vunpack.c.l.b16 %v47
  %v74 = vunpack.c.l.b16 %v48
  %v75 = vunpack.c.l.b16 %v49
  %v76 = vunpack.c.l.b16 %v50
  %v77 = vunpack.c.l.b16 %v51
  %v78 = vunpack.c.l.b16 %v52
  %v79 = vunpack.c.l.b16 %v53
  %v80 = vpack.c.b16 %v73, %v72
  %v81 = vpack.c.b16 %v75, %v74
  %v82 = vpack.c.b16 %v77, %v76
  %v83 = vpack.c.b16 %v79, %v78
  %vm88 = vcmask 523264
  %v90 = vsel %vm88, %v62, 0
  %v93 = vsel %vm88, %v63, 0
  %95 = vmatprep.subr.bf16.mxu0 0
  %96 = vmatpush1.bf16.msra.mxu0 %v80
  %97 = vmatprep.subr.bf16.mxu0 0
  %98 = vmatpush1.bf16.msra.mxu0 %v81
  %99 = vmatprep.subr.bf16.mxu0 0
  %100 = vmatpush1.bf16.msra.mxu0 %v82
  %101 = vmatprep.subr.bf16.mxu0 0
  %102 = vmatpush1.bf16.msra.mxu0 %v83
  %103 = vmatprep.subr.bf16.mxu0 0
  %104 = vmatpush1.bf16.msra.mxu0 0
  %105 = vmatprep.subr.bf16.mxu0 0
  %106 = vmatpush1.bf16.msra.mxu0 0
  %107 = vmatprep.subr.bf16.mxu0 0
  %108 = vmatpush1.bf16.msra.mxu0 0
  %109 = vmatprep.subr.bf16.mxu0 0
  %110 = vmatpush1.bf16.msra.mxu0 0
  %111 = vmatprep.subr.bf16.mxu0 0
  %112 = vmatpush1.bf16.msra.mxu0 0
  %113 = vmatprep.subr.bf16.mxu0 0
  %114 = vmatpush1.bf16.msra.mxu0 0
  %115 = vmatprep.subr.bf16.mxu0 0
  %116 = vmatpush1.bf16.msra.mxu0 0
  %117 = vmatprep.subr.bf16.mxu0 0
  %118 = vmatpush1.bf16.msra.mxu0 0
  %119 = vmatprep.subr.bf16.mxu0 0
  %120 = vmatpush1.bf16.msra.mxu0 0
  %121 = vmatprep.subr.bf16.mxu0 0
  %122 = vmatpush1.bf16.msra.mxu0 0
  %123 = vmatprep.subr.bf16.mxu0 0
  %124 = vmatpush1.bf16.msra.mxu0 0
  %125 = vmatprep.subr.bf16.mxu0 0
  %126 = vmatpush1.bf16.msra.mxu0 0
  %127 = vmatprep.mubr.bf16.mxu0 0
  %128 = vmatmul.mubr.bf16.gmra.mrb[0].mxu0 %v90
  %v129 = vpop.f32.mrb[0].mxu0
  %v130 = vadd.f32 0.0, %v129
  %v131 = vpop.f32.mrb[0].mxu0
  %v132 = vpop.f32.mrb[0].mxu0
  %v133 = vadd.f32 0.0, %v132
  %v134 = vpop.f32.mrb[0].mxu0
  %135 = vmatprep.mubr.bf16.mxu0 0
  %136 = vmatmul.mubr.bf16.gmra.mrb[0].mxu0 %v93
  %v137 = vpop.f32.mrb[0].mxu0
  %v138 = vadd.f32 0.0, %v137
  %v139 = vpop.f32.mrb[0].mxu0
  %v140 = vpop.f32.mrb[0].mxu0
  %v141 = vadd.f32 0.0, %v140
  %v142 = vpop.f32.mrb[0].mxu0
  %143 = vdwg.mxu0
  %v148 = vunpack.c.l.b16 %v30
  %v149 = vunpack.c.l.b16 %v31
  %v150 = vunpack.c.l.b16 %v32
  %v151 = vunpack.c.l.b16 %v33
  %v152 = vpack.c.b16 %v149, %v148
  %v153 = vpack.c.b16 %v151, %v150
  %v162 = vunpack.c.l.b16 %v34
  %v163 = vunpack.c.l.b16 %v35
  %v164 = vunpack.c.l.b16 %v36
  %v165 = vunpack.c.l.b16 %v37
  %v166 = vunpack.c.l.b16 %v38
  %v167 = vunpack.c.l.b16 %v39
  %v168 = vunpack.c.l.b16 %v40
  %v169 = vunpack.c.l.b16 %v41
  %v170 = vpack.c.b16 %v163, %v162
  %v171 = vpack.c.b16 %v165, %v164
  %v172 = vpack.c.b16 %v167, %v166
  %v173 = vpack.c.b16 %v169, %v168
  %v179 = vsel %vm88, %v152, 0
  %v182 = vsel %vm88, %v153, 0
  %184 = vmatprep.subr.bf16.mxu0 0
  %185 = vmatpush1.bf16.msra.mxu0 %v170
  %186 = vmatprep.subr.bf16.mxu0 0
  %187 = vmatpush1.bf16.msra.mxu0 %v171
  %188 = vmatprep.subr.bf16.mxu0 0
  %189 = vmatpush1.bf16.msra.mxu0 %v172
  %190 = vmatprep.subr.bf16.mxu0 0
  %191 = vmatpush1.bf16.msra.mxu0 %v173
  %192 = vmatprep.subr.bf16.mxu0 0
  %193 = vmatpush1.bf16.msra.mxu0 0
  %194 = vmatprep.subr.bf16.mxu0 0
  %195 = vmatpush1.bf16.msra.mxu0 0
  %196 = vmatprep.subr.bf16.mxu0 0
  %197 = vmatpush1.bf16.msra.mxu0 0
  %198 = vmatprep.subr.bf16.mxu0 0
  %199 = vmatpush1.bf16.msra.mxu0 0
  %200 = vmatprep.subr.bf16.mxu0 0
  %201 = vmatpush1.bf16.msra.mxu0 0
  %202 = vmatprep.subr.bf16.mxu0 0
  %203 = vmatpush1.bf16.msra.mxu0 0
  %204 = vmatprep.subr.bf16.mxu0 0
  %205 = vmatpush1.bf16.msra.mxu0 0
  %206 = vmatprep.subr.bf16.mxu0 0
  %207 = vmatpush1.bf16.msra.mxu0 0
  %208 = vmatprep.subr.bf16.mxu0 0
  %209 = vmatpush1.bf16.msra.mxu0 0
  %210 = vmatprep.subr.bf16.mxu0 0
  %211 = vmatpush1.bf16.msra.mxu0 0
  %212 = vmatprep.subr.bf16.mxu0 0
  %213 = vmatpush1.bf16.msra.mxu0 0
  %214 = vmatprep.subr.bf16.mxu0 0
  %215 = vmatpush1.bf16.msra.mxu0 0
  %216 = vmatprep.mubr.bf16.mxu0 0
  %217 = vmatmul.mubr.bf16.gmra.mrb[0].mxu0 %v179
  %v218 = vpop.f32.mrb[0].mxu0
  %v219 = vadd.f32 %v130, %v218
  %v220 = vpop.f32.mrb[0].mxu0
  %v221 = vpop.f32.mrb[0].mxu0
  %v222 = vadd.f32 %v133, %v221
  %v223 = vpop.f32.mrb[0].mxu0
  %224 = vmatprep.mubr.bf16.mxu0 0
  %225 = vmatmul.mubr.bf16.gmra.mrb[0].mxu0 %v182
  %v226 = vpop.f32.mrb[0].mxu0
  %v227 = vadd.f32 %v138, %v226
  %v228 = vpop.f32.mrb[0].mxu0
  %v229 = vpop.f32.mrb[0].mxu0
  %v230 = vadd.f32 %v141, %v229
  %v231 = vpop.f32.mrb[0].mxu0
  %232 = vdwg.mxu0
  %v233 = vld [vmem:[%s2] sm:$0xf]
  %v234 = vld [vmem:[%s2 + $0x4] sm:$0xf]
  %v235 = vld [vmem:[%s2 + $0x8] sm:$0xf]
  %v236 = vld [vmem:[%s2 + $0xc] sm:$0xf]
  %v237 = vld [vmem:[%s5] sm:$0xf]
  %v238 = vld [vmem:[%s5 + $0x4] sm:$0xf]
  %v239 = vld [vmem:[%s5 + $0x8] sm:$0xf]
  %v240 = vld [vmem:[%s5 + $0xc] sm:$0xf]
  %v241 = vld [vmem:[%s5 + $0x10] sm:$0xf]
  %v242 = vld [vmem:[%s5 + $0x14] sm:$0xf]
  %v243 = vld [vmem:[%s5 + $0x18] sm:$0xf]
  %v244 = vld [vmem:[%s5 + $0x1c] sm:$0xf]
  %v249 = vunpack.c.l.b16 %v233
  %v250 = vunpack.c.l.b16 %v234
  %v251 = vunpack.c.l.b16 %v235
  %v252 = vunpack.c.l.b16 %v236
  %v253 = vpack.c.b16 %v250, %v249
  %v254 = vpack.c.b16 %v252, %v251
  %v263 = vunpack.c.l.b16 %v237
  %v264 = vunpack.c.l.b16 %v238
  %v265 = vunpack.c.l.b16 %v239
  %v266 = vunpack.c.l.b16 %v240
  %v267 = vunpack.c.l.b16 %v241
  %v268 = vunpack.c.l.b16 %v242
  %v269 = vunpack.c.l.b16 %v243
  %v270 = vunpack.c.l.b16 %v244
  %v271 = vpack.c.b16 %v264, %v263
  %v272 = vpack.c.b16 %v266, %v265
  %v273 = vpack.c.b16 %v268, %v267
  %v274 = vpack.c.b16 %v270, %v269
  %v280 = vsel %vm88, %v253, 0
  %v283 = vsel %vm88, %v254, 0
  %285 = vmatprep.subr.bf16.mxu0 0
  %286 = vmatpush1.bf16.msra.mxu0 %v271
  %287 = vmatprep.subr.bf16.mxu0 0
  %288 = vmatpush1.bf16.msra.mxu0 %v272
  %289 = vmatprep.subr.bf16.mxu0 0
  %290 = vmatpush1.bf16.msra.mxu0 %v273
  %291 = vmatprep.subr.bf16.mxu0 0
  %292 = vmatpush1.bf16.msra.mxu0 %v274
  %293 = vmatprep.subr.bf16.mxu0 0
  %294 = vmatpush1.bf16.msra.mxu0 0
  %295 = vmatprep.subr.bf16.mxu0 0
  %296 = vmatpush1.bf16.msra.mxu0 0
  %297 = vmatprep.subr.bf16.mxu0 0
  %298 = vmatpush1.bf16.msra.mxu0 0
  %299 = vmatprep.subr.bf16.mxu0 0
  %300 = vmatpush1.bf16.msra.mxu0 0
  %301 = vmatprep.subr.bf16.mxu0 0
  %302 = vmatpush1.bf16.msra.mxu0 0
  %303 = vmatprep.subr.bf16.mxu0 0
  %304 = vmatpush1.bf16.msra.mxu0 0
  %305 = vmatprep.subr.bf16.mxu0 0
  %306 = vmatpush1.bf16.msra.mxu0 0
  %307 = vmatprep.subr.bf16.mxu0 0
  %308 = vmatpush1.bf16.msra.mxu0 0
  %309 = vmatprep.subr.bf16.mxu0 0
  %310 = vmatpush1.bf16.msra.mxu0 0
  %311 = vmatprep.subr.bf16.mxu0 0
  %312 = vmatpush1.bf16.msra.mxu0 0
  %313 = vmatprep.subr.bf16.mxu0 0
  %314 = vmatpush1.bf16.msra.mxu0 0
  %315 = vmatprep.subr.bf16.mxu0 0
  %316 = vmatpush1.bf16.msra.mxu0 0
  %317 = vmatprep.mubr.bf16.mxu0 0
  %318 = vmatmul.mubr.bf16.gmra.mrb[0].mxu0 %v280
  %v319 = vpop.f32.mrb[0].mxu0
  %v320 = vadd.f32 0.0, %v319
  %v321 = vpop.f32.mrb[0].mxu0
  %v322 = vpop.f32.mrb[0].mxu0
  %v323 = vadd.f32 0.0, %v322
  %v324 = vpop.f32.mrb[0].mxu0
  %325 = vmatprep.mubr.bf16.mxu0 0
  %326 = vmatmul.mubr.bf16.gmra.mrb[0].mxu0 %v283
  %v327 = vpop.f32.mrb[0].mxu0
  %v328 = vadd.f32 0.0, %v327
  %v329 = vpop.f32.mrb[0].mxu0
  %v330 = vpop.f32.mrb[0].mxu0
  %v331 = vadd.f32 0.0, %v330
  %v332 = vpop.f32.mrb[0].mxu0
  %333 = vdwg.mxu0
  %v334 = vadd.f32 %v219, %v320
  %v335 = vadd.f32 %v222, %v323
  %v336 = vadd.f32 %v227, %v328
  %v337 = vadd.f32 %v230, %v331
  %v338 = vld [vmem:[%s6] sm:$0x1]
  %v340 = vlaneseq
  %v341 = vshrl.u32 %v340, 7
  %v342 = vsub.s32 0, %v341
  %v343 = vrot.slane %v338, %v342
  %v345 = vadd.f32 %v334, %v343
  %v346 = vadd.f32 %v335, %v343
  %v347 = vadd.f32 %v336, %v343
  %v348 = vadd.f32 %v337, %v343
  %v349 = vmax.f32 %v345, 0.0
  %v350 = vmax.f32 %v346, 0.0
  %v351 = vmax.f32 %v347, 0.0
  %v352 = vmax.f32 %v348, 0.0
  %v353 = vld [vmem:[%s7] sm:$0xff]
  %v354 = vld [vmem:[%s7 + $0x8] sm:$0xff]
  %v355 = vld [vmem:[%s7 + $0x10] sm:$0xff]
  %v356 = vld [vmem:[%s7 + $0x18] sm:$0xff]
  %v357 = vadd.f32 %v349, %v353
  %v358 = vadd.f32 %v350, %v354
  %v359 = vadd.f32 %v351, %v355
  %v360 = vadd.f32 %v352, %v356
  %361 = vst [vmem:[%s8] sm:$0xff] %v357
  %362 = vst [vmem:[%s8 + $0x8] sm:$0xff] %v358
  %363 = vst [vmem:[%s8 + $0x10] sm:$0xff] %v359
  %364 = vst [vmem:[%s8 + $0x18] sm:$0xff] %v360
  // Predicated region
  $region34: #{demucs_forward.27} parent=0 // pred_check
    _
  $region35: #{demucs_forward.27} parent=0 // pred_check_branch
    %366 = sbr.rel (0) target = $region37
  $region36: #{demucs_forward.27} parent=0 // pred_region
    _
  $region37: #{demucs_forward.27} parent=0 // pred_fallthru
    _
  // Predicated region
  $region38: #{demucs_forward.27} parent=0 // pred_check
    _
  $region39: #{demucs_forward.27} parent=0 // pred_check_branch
    %368 = sbr.rel (0) target = $region41
  $region40: #{demucs_forward.27} parent=0 // pred_region
    _
  $region41: #{demucs_forward.27} parent=0 // pred_fallthru
    _

// kernel: demucs_forward.28
$region0: #{demucs_forward.28}
  #allocation0 [shape = 'u32[]', space=smem, size = 0x4, offset = 0x4, fixed_abs, tag = 'smem constant byte address 0x4 - core index']
  #allocation1 [shape = 'u32[144,128]{1,0:T(1,128)}', space=vmem, size = 0x12000, scoped, tag = 'internal scratch']
  %s0 = inlined_call_operand.vmem [shape: bf16[128,32], index: 0, kind: input, shape index: {}]
  %s1 = inlined_call_operand.vmem [shape: bf16[128,32], index: 1, kind: input, shape index: {}]
  %s2 = inlined_call_operand.vmem [shape: bf16[128,32], index: 2, kind: input, shape index: {}]
  %s3 = inlined_call_operand.vmem [shape: bf16[32,64], index: 3, kind: input, shape index: {}]
  %s4 = inlined_call_operand.vmem [shape: bf16[32,64], index: 4, kind: input, shape index: {}]
  %s5 = inlined_call_operand.vmem [shape: bf16[32,64], index: 5, kind: input, shape index: {}]
  %s6 = inlined_call_operand.vmem [shape: f32[1,64], index: 6, kind: input, shape index: {}]
  %s7 = inlined_call_operand.vmem [shape: f32[128,64], index: 7, kind: input, shape index: {}]
  %s8 = inlined_call_operand.vmem [shape: f32[128,64], index: 8, kind: output, shape index: {}]
  %s9 = sld [smem:[#allocation0]]
  $region42: #{demucs_forward.28} parent=0
    _
  %s11 = ssub.s32 1, %s9
  %s12 = scalar_select 0, %s11, %s9
  // Predicated region
  $region2: #{demucs_forward.28} parent=0 // pred_check
    _
  $region3: #{demucs_forward.28} parent=0 // pred_check_branch
    %14 = sbr.rel (0) target = $region5
  $region4: #{demucs_forward.28} parent=0 // pred_region
    _
  $region5: #{demucs_forward.28} parent=0 // pred_fallthru
    _
  // Predicated region
  $region6: #{demucs_forward.28} parent=0 // pred_check
    _
  $region7: #{demucs_forward.28} parent=0 // pred_check_branch
    %16 = sbr.rel (0) target = $region9
  $region8: #{demucs_forward.28} parent=0 // pred_region
    _
  $region9: #{demucs_forward.28} parent=0 // pred_fallthru
    _
  // Predicated region
  $region10: #{demucs_forward.28} parent=0 // pred_check
    _
  $region11: #{demucs_forward.28} parent=0 // pred_check_branch
    %18 = sbr.rel (0) target = $region13
  $region12: #{demucs_forward.28} parent=0 // pred_region
    _
  $region13: #{demucs_forward.28} parent=0 // pred_fallthru
    _
  // Predicated region
  $region14: #{demucs_forward.28} parent=0 // pred_check
    _
  $region15: #{demucs_forward.28} parent=0 // pred_check_branch
    %20 = sbr.rel (0) target = $region17
  $region16: #{demucs_forward.28} parent=0 // pred_region
    _
  $region17: #{demucs_forward.28} parent=0 // pred_fallthru
    _
  // Predicated region
  $region18: #{demucs_forward.28} parent=0 // pred_check
    _
  $region19: #{demucs_forward.28} parent=0 // pred_check_branch
    %22 = sbr.rel (0) target = $region21
  $region20: #{demucs_forward.28} parent=0 // pred_region
    _
  $region21: #{demucs_forward.28} parent=0 // pred_fallthru
    _
  // Predicated region
  $region22: #{demucs_forward.28} parent=0 // pred_check
    _
  $region23: #{demucs_forward.28} parent=0 // pred_check_branch
    %24 = sbr.rel (0) target = $region25
  $region24: #{demucs_forward.28} parent=0 // pred_region
    _
  $region25: #{demucs_forward.28} parent=0 // pred_fallthru
    _
  // Predicated region
  $region26: #{demucs_forward.28} parent=0 // pred_check
    _
  $region27: #{demucs_forward.28} parent=0 // pred_check_branch
    %26 = sbr.rel (0) target = $region29
  $region28: #{demucs_forward.28} parent=0 // pred_region
    _
  $region29: #{demucs_forward.28} parent=0 // pred_fallthru
    _
  // Predicated region
  $region30: #{demucs_forward.28} parent=0 // pred_check
    _
  $region31: #{demucs_forward.28} parent=0 // pred_check_branch
    %28 = sbr.rel (0) target = $region33
  $region32: #{demucs_forward.28} parent=0 // pred_region
    _
  $region33: #{demucs_forward.28} parent=0 // pred_fallthru
    _
  %v30 = vld [vmem:[%s0] sm:$0xf]
  %v31 = vld [vmem:[%s0 + $0x4] sm:$0xf]
  %v32 = vld [vmem:[%s0 + $0x8] sm:$0xf]
  %v33 = vld [vmem:[%s0 + $0xc] sm:$0xf]
  %v34 = vld [vmem:[%s0 + $0x10] sm:$0xf]
  %v35 = vld [vmem:[%s0 + $0x14] sm:$0xf]
  %v36 = vld [vmem:[%s0 + $0x18] sm:$0xf]
  %v37 = vld [vmem:[%s0 + $0x1c] sm:$0xf]
  %v38 = vld [vmem:[%s0 + $0x20] sm:$0xf]
  %v39 = vld [vmem:[%s0 + $0x24] sm:$0xf]
  %v40 = vld [vmem:[%s0 + $0x28] sm:$0xf]
  %v41 = vld [vmem:[%s0 + $0x2c] sm:$0xf]
  %v42 = vld [vmem:[%s0 + $0x30] sm:$0xf]
  %v43 = vld [vmem:[%s0 + $0x34] sm:$0xf]
  %v44 = vld [vmem:[%s0 + $0x38] sm:$0xf]
  %v45 = vld [vmem:[%s0 + $0x3c] sm:$0xf]
  %v46 = vld [vmem:[%s3] sm:$0xf]
  %v47 = vld [vmem:[%s3 + $0x4] sm:$0xf]
  %v48 = vld [vmem:[%s3 + $0x8] sm:$0xf]
  %v49 = vld [vmem:[%s3 + $0xc] sm:$0xf]
  %v50 = vld [vmem:[%s1] sm:$0xf]
  %v51 = vld [vmem:[%s1 + $0x4] sm:$0xf]
  %v52 = vld [vmem:[%s1 + $0x8] sm:$0xf]
  %v53 = vld [vmem:[%s1 + $0xc] sm:$0xf]
  %v54 = vld [vmem:[%s1 + $0x10] sm:$0xf]
  %v55 = vld [vmem:[%s1 + $0x14] sm:$0xf]
  %v56 = vld [vmem:[%s1 + $0x18] sm:$0xf]
  %v57 = vld [vmem:[%s1 + $0x1c] sm:$0xf]
  %v58 = vld [vmem:[%s1 + $0x20] sm:$0xf]
  %v59 = vld [vmem:[%s1 + $0x24] sm:$0xf]
  %v60 = vld [vmem:[%s1 + $0x28] sm:$0xf]
  %v61 = vld [vmem:[%s1 + $0x2c] sm:$0xf]
  %v62 = vld [vmem:[%s1 + $0x30] sm:$0xf]
  %v63 = vld [vmem:[%s1 + $0x34] sm:$0xf]
  %v64 = vld [vmem:[%s1 + $0x38] sm:$0xf]
  %v65 = vld [vmem:[%s1 + $0x3c] sm:$0xf]
  %v66 = vld [vmem:[%s4] sm:$0xf]
  %v67 = vld [vmem:[%s4 + $0x4] sm:$0xf]
  %v68 = vld [vmem:[%s4 + $0x8] sm:$0xf]
  %v69 = vld [vmem:[%s4 + $0xc] sm:$0xf]
  %v86 = vunpack.c.l.b16 %v50
  %v87 = vunpack.c.l.b16 %v51
  %v88 = vunpack.c.l.b16 %v52
  %v89 = vunpack.c.l.b16 %v53
  %v90 = vunpack.c.l.b16 %v54
  %v91 = vunpack.c.l.b16 %v55
  %v92 = vunpack.c.l.b16 %v56
  %v93 = vunpack.c.l.b16 %v57
  %v94 = vunpack.c.l.b16 %v58
  %v95 = vunpack.c.l.b16 %v59
  %v96 = vunpack.c.l.b16 %v60
  %v97 = vunpack.c.l.b16 %v61
  %v98 = vunpack.c.l.b16 %v62
  %v99 = vunpack.c.l.b16 %v63
  %v100 = vunpack.c.l.b16 %v64
  %v101 = vunpack.c.l.b16 %v65
  %v102 = vpack.c.b16 %v87, %v86
  %v103 = vpack.c.b16 %v89, %v88
  %v104 = vpack.c.b16 %v91, %v90
  %v105 = vpack.c.b16 %v93, %v92
  %v106 = vpack.c.b16 %v95, %v94
  %v107 = vpack.c.b16 %v97, %v96
  %v108 = vpack.c.b16 %v99, %v98
  %v109 = vpack.c.b16 %v101, %v100
  %v114 = vunpack.c.l.b16 %v66
  %v115 = vunpack.c.l.b16 %v67
  %v116 = vunpack.c.l.b16 %v68
  %v117 = vunpack.c.l.b16 %v69
  %v118 = vpack.c.b16 %v115, %v114
  %v119 = vpack.c.b16 %v117, %v116
  %vm122 = vcmask 261120
  %v124 = vsel %vm122, %v102, 0
  %v127 = vsel %vm122, %v103, 0
  %v130 = vsel %vm122, %v104, 0
  %v133 = vsel %vm122, %v105, 0
  %v136 = vsel %vm122, %v106, 0
  %v139 = vsel %vm122, %v107, 0
  %v142 = vsel %vm122, %v108, 0
  %v145 = vsel %vm122, %v109, 0
  %147 = vmatprep.subr.bf16.mxu0 0
  %148 = vmatpush1.bf16.msra.mxu0 %v118
  %149 = vmatprep.subr.bf16.mxu0 0
  %150 = vmatpush1.bf16.msra.mxu0 %v119
  %151 = vmatprep.subr.bf16.mxu0 0
  %152 = vmatpush1.bf16.msra.mxu0 0
  %153 = vmatprep.subr.bf16.mxu0 0
  %154 = vmatpush1.bf16.msra.mxu0 0
  %155 = vmatprep.subr.bf16.mxu0 0
  %156 = vmatpush1.bf16.msra.mxu0 0
  %157 = vmatprep.subr.bf16.mxu0 0
  %158 = vmatpush1.bf16.msra.mxu0 0
  %159 = vmatprep.subr.bf16.mxu0 0
  %160 = vmatpush1.bf16.msra.mxu0 0
  %161 = vmatprep.subr.bf16.mxu0 0
  %162 = vmatpush1.bf16.msra.mxu0 0
  %163 = vmatprep.subr.bf16.mxu0 0
  %164 = vmatpush1.bf16.msra.mxu0 0
  %165 = vmatprep.subr.bf16.mxu0 0
  %166 = vmatpush1.bf16.msra.mxu0 0
  %167 = vmatprep.subr.bf16.mxu0 0
  %168 = vmatpush1.bf16.msra.mxu0 0
  %169 = vmatprep.subr.bf16.mxu0 0
  %170 = vmatpush1.bf16.msra.mxu0 0
  %171 = vmatprep.subr.bf16.mxu0 0
  %172 = vmatpush1.bf16.msra.mxu0 0
  %173 = vmatprep.subr.bf16.mxu0 0
  %174 = vmatpush1.bf16.msra.mxu0 0
  %175 = vmatprep.subr.bf16.mxu0 0
  %176 = vmatpush1.bf16.msra.mxu0 0
  %177 = vmatprep.subr.bf16.mxu0 0
  %178 = vmatpush1.bf16.msra.mxu0 0
  %179 = vmatprep.mubr.bf16.mxu0 0
  %180 = vmatmul.mubr.bf16.gmra.mrb[0].mxu0 %v124
  %v181 = vpop.f32.mrb[0].mxu0
  %v182 = vadd.f32 0.0, %v181
  %v183 = vpop.f32.mrb[0].mxu0
  %v184 = vpop.f32.mrb[0].mxu0
  %v185 = vadd.f32 0.0, %v184
  %v186 = vpop.f32.mrb[0].mxu0
  %187 = vmatprep.mubr.bf16.mxu0 0
  %188 = vmatmul.mubr.bf16.gmra.mrb[0].mxu0 %v127
  %v189 = vpop.f32.mrb[0].mxu0
  %v190 = vadd.f32 0.0, %v189
  %v191 = vpop.f32.mrb[0].mxu0
  %v192 = vpop.f32.mrb[0].mxu0
  %v193 = vadd.f32 0.0, %v192
  %v194 = vpop.f32.mrb[0].mxu0
  %195 = vmatprep.mubr.bf16.mxu0 0
  %196 = vmatmul.mubr.bf16.gmra.mrb[0].mxu0 %v130
  %v197 = vpop.f32.mrb[0].mxu0
  %v198 = vadd.f32 0.0, %v197
  %v199 = vpop.f32.mrb[0].mxu0
  %v200 = vpop.f32.mrb[0].mxu0
  %v201 = vadd.f32 0.0, %v200
  %v202 = vpop.f32.mrb[0].mxu0
  %203 = vmatprep.mubr.bf16.mxu0 0
  %204 = vmatmul.mubr.bf16.gmra.mrb[0].mxu0 %v133
  %v205 = vpop.f32.mrb[0].mxu0
  %v206 = vadd.f32 0.0, %v205
  %v207 = vpop.f32.mrb[0].mxu0
  %v208 = vpop.f32.mrb[0].mxu0
  %v209 = vadd.f32 0.0, %v208
  %v210 = vpop.f32.mrb[0].mxu0
  %211 = vmatprep.mubr.bf16.mxu0 0
  %212 = vmatmul.mubr.bf16.gmra.mrb[0].mxu0 %v136
  %v213 = vpop.f32.mrb[0].mxu0
  %v214 = vadd.f32 0.0, %v213
  %v215 = vpop.f32.mrb[0].mxu0
  %v216 = vpop.f32.mrb[0].mxu0
  %v217 = vadd.f32 0.0, %v216
  %v218 = vpop.f32.mrb[0].mxu0
  %219 = vmatprep.mubr.bf16.mxu0 0
  %220 = vmatmul.mubr.bf16.gmra.mrb[0].mxu0 %v139
  %v221 = vpop.f32.mrb[0].mxu0
  %v222 = vadd.f32 0.0, %v221
  %v223 = vpop.f32.mrb[0].mxu0
  %v224 = vpop.f32.mrb[0].mxu0
  %v225 = vadd.f32 0.0, %v224
  %v226 = vpop.f32.mrb[0].mxu0
  %227 = vmatprep.mubr.bf16.mxu0 0
  %228 = vmatmul.mubr.bf16.gmra.mrb[0].mxu0 %v142
  %v229 = vpop.f32.mrb[0].mxu0
  %v230 = vadd.f32 0.0, %v229
  %v231 = vpop.f32.mrb[0].mxu0
  %v232 = vpop.f32.mrb[0].mxu0
  %v233 = vadd.f32 0.0, %v232
  %v234 = vpop.f32.mrb[0].mxu0
  %235 = vmatprep.mubr.bf16.mxu0 0
  %236 = vmatmul.mubr.bf16.gmra.mrb[0].mxu0 %v145
  %v237 = vpop.f32.mrb[0].mxu0
  %v238 = vadd.f32 0.0, %v237
  %v239 = vpop.f32.mrb[0].mxu0
  %v240 = vpop.f32.mrb[0].mxu0
  %v241 = vadd.f32 0.0, %v240
  %v242 = vpop.f32.mrb[0].mxu0
  %243 = vdwg.mxu0
  %v260 = vunpack.c.l.b16 %v30
  %v261 = vunpack.c.l.b16 %v31
  %v262 = vunpack.c.l.b16 %v32
  %v263 = vunpack.c.l.b16 %v33
  %v264 = vunpack.c.l.b16 %v34
  %v265 = vunpack.c.l.b16 %v35
  %v266 = vunpack.c.l.b16 %v36
  %v267 = vunpack.c.l.b16 %v37
  %v268 = vunpack.c.l.b16 %v38
  %v269 = vunpack.c.l.b16 %v39
  %v270 = vunpack.c.l.b16 %v40
  %v271 = vunpack.c.l.b16 %v41
  %v272 = vunpack.c.l.b16 %v42
  %v273 = vunpack.c.l.b16 %v43
  %v274 = vunpack.c.l.b16 %v44
  %v275 = vunpack.c.l.b16 %v45
  %v276 = vpack.c.b16 %v261, %v260
  %v277 = vpack.c.b16 %v263, %v262
  %v278 = vpack.c.b16 %v265, %v264
  %v279 = vpack.c.b16 %v267, %v266
  %v280 = vpack.c.b16 %v269, %v268
  %v281 = vpack.c.b16 %v271, %v270
  %v282 = vpack.c.b16 %v273, %v272
  %v283 = vpack.c.b16 %v275, %v274
  %v288 = vunpack.c.l.b16 %v46
  %v289 = vunpack.c.l.b16 %v47
  %v290 = vunpack.c.l.b16 %v48
  %v291 = vunpack.c.l.b16 %v49
  %v292 = vpack.c.b16 %v289, %v288
  %v293 = vpack.c.b16 %v291, %v290
  %v297 = vsel %vm122, %v276, 0
  %v300 = vsel %vm122, %v277, 0
  %v303 = vsel %vm122, %v278, 0
  %v306 = vsel %vm122, %v279, 0
  %v309 = vsel %vm122, %v280, 0
  %v312 = vsel %vm122, %v281, 0
  %v315 = vsel %vm122, %v282, 0
  %v318 = vsel %vm122, %v283, 0
  %320 = vmatprep.subr.bf16.mxu0 0
  %321 = vmatpush1.bf16.msra.mxu0 %v292
  %322 = vmatprep.subr.bf16.mxu0 0
  %323 = vmatpush1.bf16.msra.mxu0 %v293
  %324 = vmatprep.subr.bf16.mxu0 0
  %325 = vmatpush1.bf16.msra.mxu0 0
  %326 = vmatprep.subr.bf16.mxu0 0
  %327 = vmatpush1.bf16.msra.mxu0 0
  %328 = vmatprep.subr.bf16.mxu0 0
  %329 = vmatpush1.bf16.msra.mxu0 0
  %330 = vmatprep.subr.bf16.mxu0 0
  %331 = vmatpush1.bf16.msra.mxu0 0
  %332 = vmatprep.subr.bf16.mxu0 0
  %333 = vmatpush1.bf16.msra.mxu0 0
  %334 = vmatprep.subr.bf16.mxu0 0
  %335 = vmatpush1.bf16.msra.mxu0 0
  %336 = vmatprep.subr.bf16.mxu0 0
  %337 = vmatpush1.bf16.msra.mxu0 0
  %338 = vmatprep.subr.bf16.mxu0 0
  %339 = vmatpush1.bf16.msra.mxu0 0
  %340 = vmatprep.subr.bf16.mxu0 0
  %341 = vmatpush1.bf16.msra.mxu0 0
  %342 = vmatprep.subr.bf16.mxu0 0
  %343 = vmatpush1.bf16.msra.mxu0 0
  %344 = vmatprep.subr.bf16.mxu0 0
  %345 = vmatpush1.bf16.msra.mxu0 0
  %346 = vmatprep.subr.bf16.mxu0 0
  %347 = vmatpush1.bf16.msra.mxu0 0
  %348 = vmatprep.subr.bf16.mxu0 0
  %349 = vmatpush1.bf16.msra.mxu0 0
  %350 = vmatprep.subr.bf16.mxu0 0
  %351 = vmatpush1.bf16.msra.mxu0 0
  %352 = vmatprep.mubr.bf16.mxu0 0
  %353 = vmatmul.mubr.bf16.gmra.mrb[0].mxu0 %v297
  %v354 = vpop.f32.mrb[0].mxu0
  %v355 = vadd.f32 %v182, %v354
  %v356 = vpop.f32.mrb[0].mxu0
  %v357 = vpop.f32.mrb[0].mxu0
  %v358 = vadd.f32 %v185, %v357
  %v359 = vpop.f32.mrb[0].mxu0
  %360 = vmatprep.mubr.bf16.mxu0 0
  %361 = vmatmul.mubr.bf16.gmra.mrb[0].mxu0 %v300
  %v362 = vpop.f32.mrb[0].mxu0
  %v363 = vadd.f32 %v190, %v362
  %v364 = vpop.f32.mrb[0].mxu0
  %v365 = vpop.f32.mrb[0].mxu0
  %v366 = vadd.f32 %v193, %v365
  %v367 = vpop.f32.mrb[0].mxu0
  %368 = vmatprep.mubr.bf16.mxu0 0
  %369 = vmatmul.mubr.bf16.gmra.mrb[0].mxu0 %v303
  %v370 = vpop.f32.mrb[0].mxu0
  %v371 = vadd.f32 %v198, %v370
  %v372 = vpop.f32.mrb[0].mxu0
  %v373 = vpop.f32.mrb[0].mxu0
  %v374 = vadd.f32 %v201, %v373
  %v375 = vpop.f32.mrb[0].mxu0
  %376 = vmatprep.mubr.bf16.mxu0 0
  %377 = vmatmul.mubr.bf16.gmra.mrb[0].mxu0 %v306
  %v378 = vpop.f32.mrb[0].mxu0
  %v379 = vadd.f32 %v206, %v378
  %v380 = vpop.f32.mrb[0].mxu0
  %v381 = vpop.f32.mrb[0].mxu0
  %v382 = vadd.f32 %v209, %v381
  %v383 = vpop.f32.mrb[0].mxu0
  %384 = vmatprep.mubr.bf16.mxu0 0
  %385 = vmatmul.mubr.bf16.gmra.mrb[0].mxu0 %v309
  %v386 = vpop.f32.mrb[0].mxu0
  %v387 = vadd.f32 %v214, %v386
  %v388 = vpop.f32.mrb[0].mxu0
  %v389 = vpop.f32.mrb[0].mxu0
  %v390 = vadd.f32 %v217, %v389
  %v391 = vpop.f32.mrb[0].mxu0
  %392 = vmatprep.mubr.bf16.mxu0 0
  %393 = vmatmul.mubr.bf16.gmra.mrb[0].mxu0 %v312
  %v394 = vpop.f32.mrb[0].mxu0
  %v395 = vadd.f32 %v222, %v394
  %v396 = vpop.f32.mrb[0].mxu0
  %v397 = vpop.f32.mrb[0].mxu0
  %v398 = vadd.f32 %v225, %v397
  %v399 = vpop.f32.mrb[0].mxu0
  %400 = vmatprep.mubr.bf16.mxu0 0
  %401 = vmatmul.mubr.bf16.gmra.mrb[0].mxu0 %v315
  %v402 = vpop.f32.mrb[0].mxu0
  %v403 = vadd.f32 %v230, %v402
  %v404 = vpop.f32.mrb[0].mxu0
  %v405 = vpop.f32.mrb[0].mxu0
  %v406 = vadd.f32 %v233, %v405
  %v407 = vpop.f32.mrb[0].mxu0
  %408 = vmatprep.mubr.bf16.mxu0 0
  %409 = vmatmul.mubr.bf16.gmra.mrb[0].mxu0 %v318
  %v410 = vpop.f32.mrb[0].mxu0
  %v411 = vadd.f32 %v238, %v410
  %v412 = vpop.f32.mrb[0].mxu0
  %v413 = vpop.f32.mrb[0].mxu0
  %v414 = vadd.f32 %v241, %v413
  %v415 = vpop.f32.mrb[0].mxu0
  %416 = vdwg.mxu0
  %v417 = vld [vmem:[%s2] sm:$0xf]
  %v418 = vld [vmem:[%s2 + $0x4] sm:$0xf]
  %v419 = vld [vmem:[%s2 + $0x8] sm:$0xf]
  %v420 = vld [vmem:[%s2 + $0xc] sm:$0xf]
  %v421 = vld [vmem:[%s2 + $0x10] sm:$0xf]
  %v422 = vld [vmem:[%s2 + $0x14] sm:$0xf]
  %v423 = vld [vmem:[%s2 + $0x18] sm:$0xf]
  %v424 = vld [vmem:[%s2 + $0x1c] sm:$0xf]
  %v425 = vld [vmem:[%s2 + $0x20] sm:$0xf]
  %v426 = vld [vmem:[%s2 + $0x24] sm:$0xf]
  %v427 = vld [vmem:[%s2 + $0x28] sm:$0xf]
  %v428 = vld [vmem:[%s2 + $0x2c] sm:$0xf]
  %v429 = vld [vmem:[%s2 + $0x30] sm:$0xf]
  %v430 = vld [vmem:[%s2 + $0x34] sm:$0xf]
  %v431 = vld [vmem:[%s2 + $0x38] sm:$0xf]
  %v432 = vld [vmem:[%s2 + $0x3c] sm:$0xf]
  %v433 = vld [vmem:[%s5] sm:$0xf]
  %v434 = vld [vmem:[%s5 + $0x4] sm:$0xf]
  %v435 = vld [vmem:[%s5 + $0x8] sm:$0xf]
  %v436 = vld [vmem:[%s5 + $0xc] sm:$0xf]
  %v453 = vunpack.c.l.b16 %v417
  %v454 = vunpack.c.l.b16 %v418
  %v455 = vunpack.c.l.b16 %v419
  %v456 = vunpack.c.l.b16 %v420
  %v457 = vunpack.c.l.b16 %v421
  %v458 = vunpack.c.l.b16 %v422
  %v459 = vunpack.c.l.b16 %v423
  %v460 = vunpack.c.l.b16 %v424
  %v461 = vunpack.c.l.b16 %v425
  %v462 = vunpack.c.l.b16 %v426
  %v463 = vunpack.c.l.b16 %v427
  %v464 = vunpack.c.l.b16 %v428
  %v465 = vunpack.c.l.b16 %v429
  %v466 = vunpack.c.l.b16 %v430
  %v467 = vunpack.c.l.b16 %v431
  %v468 = vunpack.c.l.b16 %v432
  %v469 = vpack.c.b16 %v454, %v453
  %v470 = vpack.c.b16 %v456, %v455
  %v471 = vpack.c.b16 %v458, %v457
  %v472 = vpack.c.b16 %v460, %v459
  %v473 = vpack.c.b16 %v462, %v461
  %v474 = vpack.c.b16 %v464, %v463
  %v475 = vpack.c.b16 %v466, %v465
  %v476 = vpack.c.b16 %v468, %v467
  %v481 = vunpack.c.l.b16 %v433
  %v482 = vunpack.c.l.b16 %v434
  %v483 = vunpack.c.l.b16 %v435
  %v484 = vunpack.c.l.b16 %v436
  %v485 = vpack.c.b16 %v482, %v481
  %v486 = vpack.c.b16 %v484, %v483
  %v490 = vsel %vm122, %v469, 0
  %v493 = vsel %vm122, %v470, 0
  %v496 = vsel %vm122, %v471, 0
  %v499 = vsel %vm122, %v472, 0
  %v502 = vsel %vm122, %v473, 0
  %v505 = vsel %vm122, %v474, 0
  %v508 = vsel %vm122, %v475, 0
  %v511 = vsel %vm122, %v476, 0
  %513 = vmatprep.subr.bf16.mxu0 0
  %514 = vmatpush1.bf16.msra.mxu0 %v485
  %515 = vmatprep.subr.bf16.mxu0 0
  %516 = vmatpush1.bf16.msra.mxu0 %v486
  %517 = vmatprep.subr.bf16.mxu0 0
  %518 = vmatpush1.bf16.msra.mxu0 0
  %519 = vmatprep.subr.bf16.mxu0 0
  %520 = vmatpush1.bf16.msra.mxu0 0
  %521 = vmatprep.subr.bf16.mxu0 0
  %522 = vmatpush1.bf16.msra.mxu0 0
  %523 = vmatprep.subr.bf16.mxu0 0
  %524 = vmatpush1.bf16.msra.mxu0 0
  %525 = vmatprep.subr.bf16.mxu0 0
  %526 = vmatpush1.bf16.msra.mxu0 0
  %527 = vmatprep.subr.bf16.mxu0 0
  %528 = vmatpush1.bf16.msra.mxu0 0
  %529 = vmatprep.subr.bf16.mxu0 0
  %530 = vmatpush1.bf16.msra.mxu0 0
  %531 = vmatprep.subr.bf16.mxu0 0
  %532 = vmatpush1.bf16.msra.mxu0 0
  %533 = vmatprep.subr.bf16.mxu0 0
  %534 = vmatpush1.bf16.msra.mxu0 0
  %535 = vmatprep.subr.bf16.mxu0 0
  %536 = vmatpush1.bf16.msra.mxu0 0
  %537 = vmatprep.subr.bf16.mxu0 0
  %538 = vmatpush1.bf16.msra.mxu0 0
  %539 = vmatprep.subr.bf16.mxu0 0
  %540 = vmatpush1.bf16.msra.mxu0 0
  %541 = vmatprep.subr.bf16.mxu0 0
  %542 = vmatpush1.bf16.msra.mxu0 0
  %543 = vmatprep.subr.bf16.mxu0 0
  %544 = vmatpush1.bf16.msra.mxu0 0
  %545 = vmatprep.mubr.bf16.mxu0 0
  %546 = vmatmul.mubr.bf16.gmra.mrb[0].mxu0 %v490
  %v547 = vpop.f32.mrb[0].mxu0
  %v548 = vadd.f32 0.0, %v547
  %v549 = vpop.f32.mrb[0].mxu0
  %v550 = vpop.f32.mrb[0].mxu0
  %v551 = vadd.f32 0.0, %v550
  %v552 = vpop.f32.mrb[0].mxu0
  %553 = vmatprep.mubr.bf16.mxu0 0
  %554 = vmatmul.mubr.bf16.gmra.mrb[0].mxu0 %v493
  %v555 = vpop.f32.mrb[0].mxu0
  %v556 = vadd.f32 0.0, %v555
  %v557 = vpop.f32.mrb[0].mxu0
  %v558 = vpop.f32.mrb[0].mxu0
  %v559 = vadd.f32 0.0, %v558
  %v560 = vpop.f32.mrb[0].mxu0
  %561 = vmatprep.mubr.bf16.mxu0 0
  %562 = vmatmul.mubr.bf16.gmra.mrb[0].mxu0 %v496
  %v563 = vpop.f32.mrb[0].mxu0
  %v564 = vadd.f32 0.0, %v563
  %v565 = vpop.f32.mrb[0].mxu0
  %v566 = vpop.f32.mrb[0].mxu0
  %v567 = vadd.f32 0.0, %v566
  %v568 = vpop.f32.mrb[0].mxu0
  %569 = vmatprep.mubr.bf16.mxu0 0
  %570 = vmatmul.mubr.bf16.gmra.mrb[0].mxu0 %v499
  %v571 = vpop.f32.mrb[0].mxu0
  %v572 = vadd.f32 0.0, %v571
  %v573 = vpop.f32.mrb[0].mxu0
  %v574 = vpop.f32.mrb[0].mxu0
  %v575 = vadd.f32 0.0, %v574
  %v576 = vpop.f32.mrb[0].mxu0
  %577 = vmatprep.mubr.bf16.mxu0 0
  %578 = vmatmul.mubr.bf16.gmra.mrb[0].mxu0 %v502
  %v579 = vpop.f32.mrb[0].mxu0
  %v580 = vadd.f32 0.0, %v579
  %v581 = vpop.f32.mrb[0].mxu0
  %v582 = vpop.f32.mrb[0].mxu0
  %v583 = vadd.f32 0.0, %v582
  %v584 = vpop.f32.mrb[0].mxu0
  %585 = vmatprep.mubr.bf16.mxu0 0
  %586 = vmatmul.mubr.bf16.gmra.mrb[0].mxu0 %v505
  %v587 = vpop.f32.mrb[0].mxu0
  %v588 = vadd.f32 0.0, %v587
  %v589 = vpop.f32.mrb[0].mxu0
  %v590 = vpop.f32.mrb[0].mxu0
  %v591 = vadd.f32 0.0, %v590
  %v592 = vpop.f32.mrb[0].mxu0
  %593 = vmatprep.mubr.bf16.mxu0 0
  %594 = vmatmul.mubr.bf16.gmra.mrb[0].mxu0 %v508
  %v595 = vpop.f32.mrb[0].mxu0
  %v596 = vadd.f32 0.0, %v595
  %v597 = vpop.f32.mrb[0].mxu0
  %v598 = vpop.f32.mrb[0].mxu0
  %v599 = vadd.f32 0.0, %v598
  %v600 = vpop.f32.mrb[0].mxu0
  %601 = vmatprep.mubr.bf16.mxu0 0
  %602 = vmatmul.mubr.bf16.gmra.mrb[0].mxu0 %v511
  %v603 = vpop.f32.mrb[0].mxu0
  %v604 = vadd.f32 0.0, %v603
  %v605 = vpop.f32.mrb[0].mxu0
  %v606 = vpop.f32.mrb[0].mxu0
  %v607 = vadd.f32 0.0, %v606
  %v608 = vpop.f32.mrb[0].mxu0
  %609 = vdwg.mxu0
  %v610 = vadd.f32 %v355, %v548
  %v611 = vadd.f32 %v358, %v551
  %v612 = vadd.f32 %v363, %v556
  %v613 = vadd.f32 %v366, %v559
  %v614 = vadd.f32 %v371, %v564
  %v615 = vadd.f32 %v374, %v567
  %v616 = vadd.f32 %v379, %v572
  %v617 = vadd.f32 %v382, %v575
  %v618 = vadd.f32 %v387, %v580
  %v619 = vadd.f32 %v390, %v583
  %v620 = vadd.f32 %v395, %v588
  %v621 = vadd.f32 %v398, %v591
  %v622 = vadd.f32 %v403, %v596
  %v623 = vadd.f32 %v406, %v599
  %v624 = vadd.f32 %v411, %v604
  %v625 = vadd.f32 %v414, %v607
  %v626 = vld [vmem:[%s6] sm:$0x1]
  %v628 = vlaneseq
  %v629 = vshrl.u32 %v628, 7
  %v630 = vsub.s32 0, %v629
  %v631 = vrot.slane %v626, %v630
  %v633 = vadd.f32 %v610, %v631
  %v634 = vadd.f32 %v611, %v631
  %v635 = vadd.f32 %v612, %v631
  %v636 = vadd.f32 %v613, %v631
  %v637 = vadd.f32 %v614, %v631
  %v638 = vadd.f32 %v615, %v631
  %v639 = vadd.f32 %v616, %v631
  %v640 = vadd.f32 %v617, %v631
  %v641 = vadd.f32 %v618, %v631
  %v642 = vadd.f32 %v619, %v631
  %v643 = vadd.f32 %v620, %v631
  %v644 = vadd.f32 %v621, %v631
  %v645 = vadd.f32 %v622, %v631
  %v646 = vadd.f32 %v623, %v631
  %v647 = vadd.f32 %v624, %v631
  %v648 = vadd.f32 %v625, %v631
  %v649 = vmax.f32 %v633, 0.0
  %v650 = vmax.f32 %v634, 0.0
  %v651 = vmax.f32 %v635, 0.0
  %v652 = vmax.f32 %v636, 0.0
  %v653 = vmax.f32 %v637, 0.0
  %v654 = vmax.f32 %v638, 0.0
  %v655 = vmax.f32 %v639, 0.0
  %v656 = vmax.f32 %v640, 0.0
  %v657 = vmax.f32 %v641, 0.0
  %v658 = vmax.f32 %v642, 0.0
  %v659 = vmax.f32 %v643, 0.0
  %v660 = vmax.f32 %v644, 0.0
  %v661 = vmax.f32 %v645, 0.0
  %v662 = vmax.f32 %v646, 0.0
  %v663 = vmax.f32 %v647, 0.0
  %v664 = vmax.f32 %v648, 0.0
  %v665 = vld [vmem:[%s7] sm:$0xff]
  %v666 = vld [vmem:[%s7 + $0x8] sm:$0xff]
  %v667 = vld [vmem:[%s7 + $0x10] sm:$0xff]
  %v668 = vld [vmem:[%s7 + $0x18] sm:$0xff]
  %v669 = vld [vmem:[%s7 + $0x20] sm:$0xff]
  %v670 = vld [vmem:[%s7 + $0x28] sm:$0xff]
  %v671 = vld [vmem:[%s7 + $0x30] sm:$0xff]
  %v672 = vld [vmem:[%s7 + $0x38] sm:$0xff]
  %v673 = vld [vmem:[%s7 + $0x40] sm:$0xff]
  %v674 = vld [vmem:[%s7 + $0x48] sm:$0xff]
  %v675 = vld [vmem:[%s7 + $0x50] sm:$0xff]
  %v676 = vld [vmem:[%s7 + $0x58] sm:$0xff]
  %v677 = vld [vmem:[%s7 + $0x60] sm:$0xff]
  %v678 = vld [vmem:[%s7 + $0x68] sm:$0xff]
  %v679 = vld [vmem:[%s7 + $0x70] sm:$0xff]
  %v680 = vld [vmem:[%s7 + $0x78] sm:$0xff]
  %v681 = vadd.f32 %v649, %v665
  %v682 = vadd.f32 %v650, %v666
  %v683 = vadd.f32 %v651, %v667
  %v684 = vadd.f32 %v652, %v668
  %v685 = vadd.f32 %v653, %v669
  %v686 = vadd.f32 %v654, %v670
  %v687 = vadd.f32 %v655, %v671
  %v688 = vadd.f32 %v656, %v672
  %v689 = vadd.f32 %v657, %v673
  %v690 = vadd.f32 %v658, %v674
  %v691 = vadd.f32 %v659, %v675
  %v692 = vadd.f32 %v660, %v676
  %v693 = vadd.f32 %v661, %v677
  %v694 = vadd.f32 %v662, %v678
  %v695 = vadd.f32 %v663, %v679
  %v696 = vadd.f32 %v664, %v680
  %vm697 = vcmask 523264
  %698 = vst.msk [vmem:[%s8] sm:$0xff] %vm697, %v681
  %699 = vst.msk [vmem:[%s8 + $0x8] sm:$0xff] %vm697, %v682
  %700 = vst.msk [vmem:[%s8 + $0x10] sm:$0xff] %vm697, %v683
  %701 = vst.msk [vmem:[%s8 + $0x18] sm:$0xff] %vm697, %v684
  %702 = vst.msk [vmem:[%s8 + $0x20] sm:$0xff] %vm697, %v685
  %703 = vst.msk [vmem:[%s8 + $0x28] sm:$0xff] %vm697, %v686
  %704 = vst.msk [vmem:[%s8 + $0x30] sm:$0xff] %vm697, %v687
  %705 = vst.msk [vmem:[%s8 + $0x38] sm:$0xff] %vm697, %v688
  %706 = vst.msk [vmem:[%s8 + $0x40] sm:$0xff] %vm697, %v689
  %707 = vst.msk [vmem:[%s8 + $0x48] sm:$0xff] %vm697, %v690
  %708 = vst.msk [vmem:[%s8 + $0x50] sm:$0xff] %vm697, %v691
  %709 = vst.msk [vmem:[%s8 + $0x58] sm:$0xff] %vm697, %v692
  %710 = vst.msk [vmem:[%s8 + $0x60] sm:$0xff] %vm697, %v693
  %711 = vst.msk [vmem:[%s8 + $0x68] sm:$0xff] %vm697, %v694
  %712 = vst.msk [vmem:[%s8 + $0x70] sm:$0xff] %vm697, %v695
  %713 = vst.msk [vmem:[%s8 + $0x78] sm:$0xff] %vm697, %v696
  // Predicated region
  $region34: #{demucs_forward.28} parent=0 // pred_check
    _
  $region35: #{demucs_forward.28} parent=0 // pred_check_branch
    %715 = sbr.rel (0) target = $region37
  $region36: #{demucs_forward.28} parent=0 // pred_region
    _
  $region37: #{demucs_forward.28} parent=0 // pred_fallthru
    _
  // Predicated region
  $region38: #{demucs_forward.28} parent=0 // pred_check
    _
  $region39: #{demucs_forward.28} parent=0 // pred_check_branch
    %717 = sbr.rel (0) target = $region41
  $region40: #{demucs_forward.28} parent=0 // pred_region
    _
  $region41: #{demucs_forward.28} parent=0 // pred_fallthru
    _

// kernel: demucs_forward.29
$region0: #{demucs_forward.29}
  #allocation0 [shape = 'u32[]', space=smem, size = 0x4, offset = 0x4, fixed_abs, tag = 'smem constant byte address 0x4 - core index']
  #allocation1 [shape = 'u32[144,128]{1,0:T(1,128)}', space=vmem, size = 0x12000, scoped, tag = 'internal scratch']
  %s0 = inlined_call_operand.vmem [shape: bf16[512,16], index: 0, kind: input, shape index: {}]
  %s1 = inlined_call_operand.vmem [shape: bf16[512,16], index: 1, kind: input, shape index: {}]
  %s2 = inlined_call_operand.vmem [shape: bf16[512,16], index: 2, kind: input, shape index: {}]
  %s3 = inlined_call_operand.vmem [shape: bf16[16,16], index: 3, kind: input, shape index: {}]
  %s4 = inlined_call_operand.vmem [shape: bf16[16,16], index: 4, kind: input, shape index: {}]
  %s5 = inlined_call_operand.vmem [shape: bf16[16,16], index: 5, kind: input, shape index: {}]
  %s6 = inlined_call_operand.vmem [shape: f32[1,16], index: 6, kind: input, shape index: {}]
  %s7 = inlined_call_operand.vmem [shape: f32[512,16], index: 7, kind: output, shape index: {}]
  %s8 = sld [smem:[#allocation0]]
  $region61: #{demucs_forward.29} parent=0
    _
  %s10 = ssub.s32 1, %s8
  %s11 = scalar_select 0, %s10, %s8
  loop: start=0, step=1, limit=4
  $region2: #{demucs_forward.29} parent=0 // loop_pre_header
    _
  $region3: #{demucs_forward.29} parent=0 // loop_header
    %s13 = sphi 0, %s17
    %p14 = scmp.ge.s32.totalorder %s13, 4
    %s20 = sphi 0, %s32
    %s21 = sphi 0, %s28
    %s22 = sphi 0, %s20
    %s23 = sphi 0, %s21
    %s24 = sphi 0, %s22
    %s25 = sphi 0, %s23
    %s35 = sphi 0, %s37
    %s38 = sphi 0, %s35
    %s39 = sphi 0, %s38
    %s55 = sphi 0, %s39
    %s61 = sphi 0, %s63
    %s64 = sphi 0, %s61
    %s65 = sphi 0, %s64
    %s81 = sphi 0, %s65
    %s87 = sphi 0, %s89
    %s90 = sphi 0, %s87
    %s91 = sphi 0, %s90
    %s107 = sphi 0, %s91
    %s113 = sphi 0, %s115
    %s116 = sphi 0, %s113
    %s117 = sphi 0, %s116
    %s133 = sphi 0, %s117
    %s139 = sphi 0, %s141
    %s142 = sphi 0, %s139
    %s143 = sphi 0, %s142
    %s159 = sphi 0, %s143
    %s165 = sphi 0, %s167
    %s168 = sphi 0, %s165
    %s169 = sphi 0, %s168
    %s185 = sphi 0, %s169
    %s191 = sphi 0, %s193
    %s194 = sphi 0, %s191
    %s195 = sphi 0, %s194
    %s211 = sphi 0, %s195
    %s219 = sphi 0, %s221
    %s222 = sphi 0, %s219
    %s223 = sphi 0, %s222
    %s239 = sphi 0, %s223
  $region4: #{demucs_forward.29} parent=0 // loop_header_branch
    %16 = sbr.rel (%p14) target = $region8
  $region5: #{demucs_forward.29} parent=0 // loop_body
    %s18 = ssub.s32 %s13, 1
    %s19 = ssub.s32 %s13, 2
    %s26 = sadd.s32 1, %s21
    %p27 = scmp.ge.s32.totalorder %s26, 1
    %s28 = scalar_select %p27, 0, %s26
    %s29 = sadd.s32 1, %s20
    %s30 = scalar_select %p27, %s29, %s20
    %p31 = scmp.ge.s32.totalorder %s30, 2
    %s32 = scalar_select %p31, 0, %s30
    %s33 = ssub.s32 %s20, %s32
    %p34 = scmp.eq.s32.totalorder %s33, 0
    %s36 = sadd.s32 %s35, 1
    %s37 = scalar_select %p34, %s35, %s36
    %p40 = pneg %p34
    %p41 = scmp.eq.s32.totalorder %s13, 1
    %p42 = por %p40, %p41
    %p43 = scmp.ne.s32.totalorder %s35, %s38
    %p44 = scmp.eq.s32.totalorder %s13, 0
    %p45 = por %p43, %p44
    %p46 = scmp.ne.s32.totalorder %s35, %s38
    %p47 = scmp.eq.s32.totalorder %s18, 1
    %p48 = por %p46, %p47
    %p49 = scmp.ne.s32.totalorder %s38, %s39
    %p50 = scmp.eq.s32.totalorder %s18, 0
    %p51 = por %p49, %p50
    %p52 = scmp.ne.s32.totalorder %s38, %s39
    %p53 = scmp.eq.s32.totalorder %s19, 1
    %p54 = por %p52, %p53
    %p56 = scmp.ne.s32.totalorder %s39, %s55
    %p57 = scmp.eq.s32.totalorder %s19, 0
    %p58 = por %p56, %p57
    %s59 = ssub.s32 %s20, %s32
    %p60 = scmp.eq.s32.totalorder %s59, 0
    %s62 = sadd.s32 %s61, 1
    %s63 = scalar_select %p60, %s61, %s62
    %p66 = pneg %p60
    %p67 = scmp.eq.s32.totalorder %s13, 1
    %p68 = por %p66, %p67
    %p69 = scmp.ne.s32.totalorder %s61, %s64
    %p70 = scmp.eq.s32.totalorder %s13, 0
    %p71 = por %p69, %p70
    %p72 = scmp.ne.s32.totalorder %s61, %s64
    %p73 = scmp.eq.s32.totalorder %s18, 1
    %p74 = por %p72, %p73
    %p75 = scmp.ne.s32.totalorder %s64, %s65
    %p76 = scmp.eq.s32.totalorder %s18, 0
    %p77 = por %p75, %p76
    %p78 = scmp.ne.s32.totalorder %s64, %s65
    %p79 = scmp.eq.s32.totalorder %s19, 1
    %p80 = por %p78, %p79
    %p82 = scmp.ne.s32.totalorder %s65, %s81
    %p83 = scmp.eq.s32.totalorder %s19, 0
    %p84 = por %p82, %p83
    %s85 = ssub.s32 %s20, %s32
    %p86 = scmp.eq.s32.totalorder %s85, 0
    %s88 = sadd.s32 %s87, 1
    %s89 = scalar_select %p86, %s87, %s88
    %p92 = pneg %p86
    %p93 = scmp.eq.s32.totalorder %s13, 1
    %p94 = por %p92, %p93
    %p95 = scmp.ne.s32.totalorder %s87, %s90
    %p96 = scmp.eq.s32.totalorder %s13, 0
    %p97 = por %p95, %p96
    %p98 = scmp.ne.s32.totalorder %s87, %s90
    %p99 = scmp.eq.s32.totalorder %s18, 1
    %p100 = por %p98, %p99
    %p101 = scmp.ne.s32.totalorder %s90, %s91
    %p102 = scmp.eq.s32.totalorder %s18, 0
    %p103 = por %p101, %p102
    %p104 = scmp.ne.s32.totalorder %s90, %s91
    %p105 = scmp.eq.s32.totalorder %s19, 1
    %p106 = por %p104, %p105
    %p108 = scmp.ne.s32.totalorder %s91, %s107
    %p109 = scmp.eq.s32.totalorder %s19, 0
    %p110 = por %p108, %p109
    %s111 = ssub.s32 %s21, %s28
    %p112 = scmp.eq.s32.totalorder %s111, 0
    %s114 = sadd.s32 %s113, 1
    %s115 = scalar_select %p112, %s113, %s114
    %p118 = pneg %p112
    %p119 = scmp.eq.s32.totalorder %s13, 1
    %p120 = por %p118, %p119
    %p121 = scmp.ne.s32.totalorder %s113, %s116
    %p122 = scmp.eq.s32.totalorder %s13, 0
    %p123 = por %p121, %p122
    %p124 = scmp.ne.s32.totalorder %s113, %s116
    %p125 = scmp.eq.s32.totalorder %s18, 1
    %p126 = por %p124, %p125
    %p127 = scmp.ne.s32.totalorder %s116, %s117
    %p128 = scmp.eq.s32.totalorder %s18, 0
    %p129 = por %p127, %p128
    %p130 = scmp.ne.s32.totalorder %s116, %s117
    %p131 = scmp.eq.s32.totalorder %s19, 1
    %p132 = por %p130, %p131
    %p134 = scmp.ne.s32.totalorder %s117, %s133
    %p135 = scmp.eq.s32.totalorder %s19, 0
    %p136 = por %p134, %p135
    %s137 = ssub.s32 %s21, %s28
    %p138 = scmp.eq.s32.totalorder %s137, 0
    %s140 = sadd.s32 %s139, 1
    %s141 = scalar_select %p138, %s139, %s140
    %p144 = pneg %p138
    %p145 = scmp.eq.s32.totalorder %s13, 1
    %p146 = por %p144, %p145
    %p147 = scmp.ne.s32.totalorder %s139, %s142
    %p148 = scmp.eq.s32.totalorder %s13, 0
    %p149 = por %p147, %p148
    %p150 = scmp.ne.s32.totalorder %s139, %s142
    %p151 = scmp.eq.s32.totalorder %s18, 1
    %p152 = por %p150, %p151
    %p153 = scmp.ne.s32.totalorder %s142, %s143
    %p154 = scmp.eq.s32.totalorder %s18, 0
    %p155 = por %p153, %p154
    %p156 = scmp.ne.s32.totalorder %s142, %s143
    %p157 = scmp.eq.s32.totalorder %s19, 1
    %p158 = por %p156, %p157
    %p160 = scmp.ne.s32.totalorder %s143, %s159
    %p161 = scmp.eq.s32.totalorder %s19, 0
    %p162 = por %p160, %p161
    %s163 = ssub.s32 %s21, %s28
    %p164 = scmp.eq.s32.totalorder %s163, 0
    %s166 = sadd.s32 %s165, 1
    %s167 = scalar_select %p164, %s165, %s166
    %p170 = pneg %p164
    %p171 = scmp.eq.s32.totalorder %s13, 1
    %p172 = por %p170, %p171
    %p173 = scmp.ne.s32.totalorder %s165, %s168
    %p174 = scmp.eq.s32.totalorder %s13, 0
    %p175 = por %p173, %p174
    %p176 = scmp.ne.s32.totalorder %s165, %s168
    %p177 = scmp.eq.s32.totalorder %s18, 1
    %p178 = por %p176, %p177
    %p179 = scmp.ne.s32.totalorder %s168, %s169
    %p180 = scmp.eq.s32.totalorder %s18, 0
    %p181 = por %p179, %p180
    %p182 = scmp.ne.s32.totalorder %s168, %s169
    %p183 = scmp.eq.s32.totalorder %s19, 1
    %p184 = por %p182, %p183
    %p186 = scmp.ne.s32.totalorder %s169, %s185
    %p187 = scmp.eq.s32.totalorder %s19, 0
    %p188 = por %p186, %p187
    %s189 = ssub.s32 %s21, %s28
    %p190 = scmp.eq.s32.totalorder %s189, 0
    %s192 = sadd.s32 %s191, 1
    %s193 = scalar_select %p190, %s191, %s192
    %p196 = pneg %p190
    %p197 = scmp.eq.s32.totalorder %s13, 1
    %p198 = por %p196, %p197
    %p199 = scmp.ne.s32.totalorder %s191, %s194
    %p200 = scmp.eq.s32.totalorder %s13, 0
    %p201 = por %p199, %p200
    %p202 = scmp.ne.s32.totalorder %s191, %s194
    %p203 = scmp.eq.s32.totalorder %s18, 1
    %p204 = por %p202, %p203
    %p205 = scmp.ne.s32.totalorder %s194, %s195
    %p206 = scmp.eq.s32.totalorder %s18, 0
    %p207 = por %p205, %p206
    %p208 = scmp.ne.s32.totalorder %s194, %s195
    %p209 = scmp.eq.s32.totalorder %s19, 1
    %p210 = por %p208, %p209
    %p212 = scmp.ne.s32.totalorder %s195, %s211
    %p213 = scmp.eq.s32.totalorder %s19, 0
    %p214 = por %p212, %p213
    %s215 = ssub.s32 %s20, %s32
    %s216 = ssub.s32 %s21, %s28
    %s217 = sor.u32 %s215, %s216
    %p218 = scmp.eq.s32.totalorder %s217, 0
    %s220 = sadd.s32 %s219, 1
    %s221 = scalar_select %p218, %s219, %s220
    %p224 = pneg %p218
    %p225 = scmp.eq.s32.totalorder %s13, 1
    %p226 = por %p224, %p225
    %p227 = scmp.ne.s32.totalorder %s219, %s222
    %p228 = scmp.eq.s32.totalorder %s13, 0
    %p229 = por %p227, %p228
    %p230 = scmp.ne.s32.totalorder %s219, %s222
    %p231 = scmp.eq.s32.totalorder %s18, 1
    %p232 = por %p230, %p231
    %p233 = scmp.ne.s32.totalorder %s222, %s223
    %p234 = scmp.eq.s32.totalorder %s18, 0
    %p235 = por %p233, %p234
    %p236 = scmp.ne.s32.totalorder %s222, %s223
    %p237 = scmp.eq.s32.totalorder %s19, 1
    %p238 = por %p236, %p237
    %p240 = scmp.ne.s32.totalorder %s223, %s239
    %p241 = scmp.eq.s32.totalorder %s19, 0
    %p242 = por %p240, %p241
    %p243 = scmp.le.s32.totalorder 1, %s13
    %p244 = scmp.lt.s32.totalorder %s13, 3
    %p245 = pnand %p243, %p244
    %p246 = pneg %p245
    // Predicated region
    $region9: #{demucs_forward.29} parent=5 // pred_check
      _
    $region10: #{demucs_forward.29} parent=5 // pred_check_branch
      %248 = sbr.rel (%p245) target = $region12
    $region11: #{demucs_forward.29} parent=5 // pred_region
      %s249 = ssub.s32 %s13, 1
      // Predicated region
      $region13: #{demucs_forward.29} parent=11 // pred_check
        %p250 = pneg %p129
      $region14: #{demucs_forward.29} parent=11 // pred_check_branch
        %252 = sbr.rel (%p250) target = $region16
      $region15: #{demucs_forward.29} parent=11 // pred_region
        %p253 = scmp.lt.s32.totalorder %s23, 0
        %s254 = scalar_select %p253, %s23, 0
        %s255 = smul.addr %s254, 4
        %s256 = scalar_lea.vmem %s3, %s255
      $region16: #{demucs_forward.29} parent=11 // pred_fallthru
        _
      // Predicated region
      $region17: #{demucs_forward.29} parent=11 // pred_check
        %p257 = pneg %p155
      $region18: #{demucs_forward.29} parent=11 // pred_check_branch
        %259 = sbr.rel (%p257) target = $region20
      $region19: #{demucs_forward.29} parent=11 // pred_region
        %p260 = scmp.lt.s32.totalorder %s23, 0
        %s261 = scalar_select %p260, %s23, 0
        %s262 = smul.addr %s261, 4
        %s263 = scalar_lea.vmem %s4, %s262
      $region20: #{demucs_forward.29} parent=11 // pred_fallthru
        _
      // Predicated region
      $region21: #{demucs_forward.29} parent=11 // pred_check
        %p264 = pneg %p181
      $region22: #{demucs_forward.29} parent=11 // pred_check_branch
        %266 = sbr.rel (%p264) target = $region24
      $region23: #{demucs_forward.29} parent=11 // pred_region
        %p267 = scmp.lt.s32.totalorder %s23, 0
        %s268 = scalar_select %p267, %s23, 0
        %s269 = smul.addr %s268, 4
        %s270 = scalar_lea.vmem %s5, %s269
      $region24: #{demucs_forward.29} parent=11 // pred_fallthru
        _
      // Predicated region
      $region25: #{demucs_forward.29} parent=11 // pred_check
        %p271 = pneg %p207
      $region26: #{demucs_forward.29} parent=11 // pred_check_branch
        %273 = sbr.rel (%p271) target = $region28
      $region27: #{demucs_forward.29} parent=11 // pred_region
        %p274 = scmp.lt.s32.totalorder %s23, 0
        %s275 = scalar_select %p274, %s23, 0
        %s276 = scalar_lea.vmem %s6, %s275
      $region28: #{demucs_forward.29} parent=11 // pred_fallthru
        _
    $region12: #{demucs_forward.29} parent=5 // pred_fallthru
      _
    %p277 = scmp.lt.s32.totalorder %s13, 2
    // Predicated region
    $region29: #{demucs_forward.29} parent=5 // pred_check
      %p278 = pneg %p277
    $region30: #{demucs_forward.29} parent=5 // pred_check_branch
      %280 = sbr.rel (%p278) target = $region32
    $region31: #{demucs_forward.29} parent=5 // pred_region
      // Predicated region
      $region33: #{demucs_forward.29} parent=31 // pred_check
        %p281 = pneg %p45
      $region34: #{demucs_forward.29} parent=31 // pred_check_branch
        %283 = sbr.rel (%p281) target = $region36
      $region35: #{demucs_forward.29} parent=31 // pred_region
        %s284 = smul.u32 32, %s20
        %p285 = scmp.lt.s32.totalorder %s284, 63
        %s286 = scalar_select %p285, %s284, 63
        %s287 = smul.addr %s286, 4
        %s288 = scalar_lea.vmem %s0, %s287
        %s289 = smul.u32 32, %s20
      $region36: #{demucs_forward.29} parent=31 // pred_fallthru
        _
      // Predicated region
      $region37: #{demucs_forward.29} parent=31 // pred_check
        %p290 = pneg %p71
      $region38: #{demucs_forward.29} parent=31 // pred_check_branch
        %292 = sbr.rel (%p290) target = $region40
      $region39: #{demucs_forward.29} parent=31 // pred_region
        %s293 = smul.u32 32, %s20
        %p294 = scmp.lt.s32.totalorder %s293, 63
        %s295 = scalar_select %p294, %s293, 63
        %s296 = smul.addr %s295, 4
        %s297 = scalar_lea.vmem %s1, %s296
        %s298 = smul.u32 32, %s20
      $region40: #{demucs_forward.29} parent=31 // pred_fallthru
        _
      // Predicated region
      $region41: #{demucs_forward.29} parent=31 // pred_check
        %p299 = pneg %p97
      $region42: #{demucs_forward.29} parent=31 // pred_check_branch
        %301 = sbr.rel (%p299) target = $region44
      $region43: #{demucs_forward.29} parent=31 // pred_region
        %s302 = smul.u32 32, %s20
        %p303 = scmp.lt.s32.totalorder %s302, 63
        %s304 = scalar_select %p303, %s302, 63
        %s305 = smul.addr %s304, 4
        %s306 = scalar_lea.vmem %s2, %s305
        %s307 = smul.u32 32, %s20
      $region44: #{demucs_forward.29} parent=31 // pred_fallthru
        _
    $region32: #{demucs_forward.29} parent=5 // pred_fallthru
      _
    %p308 = scmp.le.s32.totalorder 1, %s13
    %p309 = scmp.lt.s32.totalorder %s13, 3
    %p310 = pnand %p308, %p309
    %p311 = pneg %p310
    // Predicated region
    $region45: #{demucs_forward.29} parent=5 // pred_check
      _
    $region46: #{demucs_forward.29} parent=5 // pred_check_branch
      %313 = sbr.rel (%p310) target = $region48
    $region47: #{demucs_forward.29} parent=5 // pred_region
      %s314 = ssub.s32 %s13, 1
      %s315 = smul.u32 32, %s22
      %p316 = scmp.lt.s32.totalorder %s315, 63
      %s317 = scalar_select %p316, %s315, 63
      %s318 = smul.addr %s317, 4
      %s319 = scalar_lea.vmem %s0, %s318
      %p320 = pneg %p51
      %p321 = pneg %p48
      %s322 = smul.u32 32, %s22
      %p323 = scmp.lt.s32.totalorder %s322, 63
      %s324 = scalar_select %p323, %s322, 63
      %s325 = smul.addr %s324, 4
      %s326 = scalar_lea.vmem %s1, %s325
      %p327 = pneg %p77
      %p328 = pneg %p74
      %s329 = smul.u32 32, %s22
      %p330 = scmp.lt.s32.totalorder %s329, 63
      %s331 = scalar_select %p330, %s329, 63
      %s332 = smul.addr %s331, 4
      %s333 = scalar_lea.vmem %s2, %s332
      %p334 = pneg %p103
      %p335 = pneg %p100
      %p336 = scmp.lt.s32.totalorder %s23, 0
      %s337 = scalar_select %p336, %s23, 0
      %s338 = smul.addr %s337, 4
      %s339 = scalar_lea.vmem %s3, %s338
      %p340 = pneg %p129
      %p341 = pneg %p126
      %p342 = scmp.lt.s32.totalorder %s23, 0
      %s343 = scalar_select %p342, %s23, 0
      %s344 = smul.addr %s343, 4
      %s345 = scalar_lea.vmem %s4, %s344
      %p346 = pneg %p155
      %p347 = pneg %p152
      %p348 = scmp.lt.s32.totalorder %s23, 0
      %s349 = scalar_select %p348, %s23, 0
      %s350 = smul.addr %s349, 4
      %s351 = scalar_lea.vmem %s5, %s350
      %p352 = pneg %p181
      %p353 = pneg %p178
      %p354 = scmp.lt.s32.totalorder %s23, 0
      %s355 = scalar_select %p354, %s23, 0
      %s356 = scalar_lea.vmem %s6, %s355
      %p357 = pneg %p207
      %p358 = pneg %p204
      %p359 = pneg %p235
      %p360 = pneg %p232
      %s361 = smul.u32 32, %s22
      %p362 = scmp.lt.s32.totalorder %s361, 63
      %s363 = scalar_select %p362, %s361, 63
      %p364 = scmp.lt.s32.totalorder %s23, 0
      %s365 = scalar_select %p364, %s23, 0
      %s366 = sadd.s32 %s365, %s363
      %s367 = smul.addr %s366, 8
      %s368 = scalar_lea.vmem %s7, %s367
      %s369 = smul.u32 32, %s22
      %p370 = scmp.lt.s32.totalorder %s369, 63
      %s371 = scalar_select %p370, %s369, 63
      %s372 = smul.addr %s371, 4
      %s373 = scalar_lea.vmem %s0, %s372
      %s374 = smul.u32 32, %s22
      %s375 = smul.u32 32, %s22
      %p376 = scmp.lt.s32.totalorder %s375, 63
      %s377 = scalar_select %p376, %s375, 63
      %s378 = smul.addr %s377, 4
      %s379 = scalar_lea.vmem %s1, %s378
      %s380 = smul.u32 32, %s22
      %s381 = smul.u32 32, %s22
      %p382 = scmp.lt.s32.totalorder %s381, 63
      %s383 = scalar_select %p382, %s381, 63
      %s384 = smul.addr %s383, 4
      %s385 = scalar_lea.vmem %s2, %s384
      %s386 = smul.u32 32, %s22
      %p387 = scmp.lt.s32.totalorder %s23, 0
      %s388 = scalar_select %p387, %s23, 0
      %s389 = smul.addr %s388, 4
      %s390 = scalar_lea.vmem %s3, %s389
      %p391 = scmp.lt.s32.totalorder %s23, 0
      %s392 = scalar_select %p391, %s23, 0
      %s393 = smul.addr %s392, 4
      %s394 = scalar_lea.vmem %s4, %s393
      %p395 = scmp.lt.s32.totalorder %s23, 0
      %s396 = scalar_select %p395, %s23, 0
      %s397 = smul.addr %s396, 4
      %s398 = scalar_lea.vmem %s5, %s397
      %p399 = scmp.lt.s32.totalorder %s23, 0
      %s400 = scalar_select %p399, %s23, 0
      %s401 = scalar_lea.vmem %s6, %s400
      %s402 = smul.u32 32, %s22
      %p403 = scmp.lt.s32.totalorder %s402, 63
      %s404 = scalar_select %p403, %s402, 63
      %p405 = scmp.lt.s32.totalorder %s23, 0
      %s406 = scalar_select %p405, %s23, 0
      %s407 = sadd.s32 %s406, %s404
      %s408 = smul.addr %s407, 8
      %s409 = scalar_lea.vmem %s7, %s408
      %s410 = smul.u32 32, %s22
      %v412 = vld [vmem:[%s373] sm:$0xf]
      %v413 = vld [vmem:[%s373 + $0x4] sm:$0xf]
      %v414 = vld [vmem:[%s373 + $0x8] sm:$0xf]
      %v415 = vld [vmem:[%s373 + $0xc] sm:$0xf]
      %v416 = vld [vmem:[%s373 + $0x10] sm:$0xf]
      %v417 = vld [vmem:[%s373 + $0x14] sm:$0xf]
      %v418 = vld [vmem:[%s373 + $0x18] sm:$0xf]
      %v419 = vld [vmem:[%s373 + $0x1c] sm:$0xf]
      %v420 = vld [vmem:[%s373 + $0x20] sm:$0xf]
      %v421 = vld [vmem:[%s373 + $0x24] sm:$0xf]
      %v422 = vld [vmem:[%s373 + $0x28] sm:$0xf]
      %v423 = vld [vmem:[%s373 + $0x2c] sm:$0xf]
      %v424 = vld [vmem:[%s373 + $0x30] sm:$0xf]
      %v425 = vld [vmem:[%s373 + $0x34] sm:$0xf]
      %v426 = vld [vmem:[%s373 + $0x38] sm:$0xf]
      %v427 = vld [vmem:[%s373 + $0x3c] sm:$0xf]
      %v428 = vld [vmem:[%s373 + $0x40] sm:$0xf]
      %v429 = vld [vmem:[%s373 + $0x44] sm:$0xf]
      %v430 = vld [vmem:[%s373 + $0x48] sm:$0xf]
      %v431 = vld [vmem:[%s373 + $0x4c] sm:$0xf]
      %v432 = vld [vmem:[%s373 + $0x50] sm:$0xf]
      %v433 = vld [vmem:[%s373 + $0x54] sm:$0xf]
      %v434 = vld [vmem:[%s373 + $0x58] sm:$0xf]
      %v435 = vld [vmem:[%s373 + $0x5c] sm:$0xf]
      %v436 = vld [vmem:[%s373 + $0x60] sm:$0xf]
      %v437 = vld [vmem:[%s373 + $0x64] sm:$0xf]
      %v438 = vld [vmem:[%s373 + $0x68] sm:$0xf]
      %v439 = vld [vmem:[%s373 + $0x6c] sm:$0xf]
      %v440 = vld [vmem:[%s373 + $0x70] sm:$0xf]
      %v441 = vld [vmem:[%s373 + $0x74] sm:$0xf]
      %v442 = vld [vmem:[%s373 + $0x78] sm:$0xf]
      %v443 = vld [vmem:[%s373 + $0x7c] sm:$0xf]
      %v444 = vld [vmem:[%s390] sm:$0xf]
      %v445 = vld [vmem:[%s390 + $0x4] sm:$0xf]
      %v446 = vld [vmem:[%s379] sm:$0xf]
      %v447 = vld [vmem:[%s379 + $0x4] sm:$0xf]
      %v448 = vld [vmem:[%s379 + $0x8] sm:$0xf]
      %v449 = vld [vmem:[%s379 + $0xc] sm:$0xf]
      %v450 = vld [vmem:[%s379 + $0x10] sm:$0xf]
      %v451 = vld [vmem:[%s379 + $0x14] sm:$0xf]
      %v452 = vld [vmem:[%s379 + $0x18] sm:$0xf]
      %v453 = vld [vmem:[%s379 + $0x1c] sm:$0xf]
      %v454 = vld [vmem:[%s379 + $0x20] sm:$0xf]
      %v455 = vld [vmem:[%s379 + $0x24] sm:$0xf]
      %v456 = vld [vmem:[%s379 + $0x28] sm:$0xf]
      %v457 = vld [vmem:[%s379 + $0x2c] sm:$0xf]
      %v458 = vld [vmem:[%s379 + $0x30] sm:$0xf]
      %v459 = vld [vmem:[%s379 + $0x34] sm:$0xf]
      %v460 = vld [vmem:[%s379 + $0x38] sm:$0xf]
      %v461 = vld [vmem:[%s379 + $0x3c] sm:$0xf]
      %v462 = vld [vmem:[%s379 + $0x40] sm:$0xf]
      %v463 = vld [vmem:[%s379 + $0x44] sm:$0xf]
      %v464 = vld [vmem:[%s379 + $0x48] sm:$0xf]
      %v465 = vld [vmem:[%s379 + $0x4c] sm:$0xf]
      %v466 = vld [vmem:[%s379 + $0x50] sm:$0xf]
      %v467 = vld [vmem:[%s379 + $0x54] sm:$0xf]
      %v468 = vld [vmem:[%s379 + $0x58] sm:$0xf]
      %v469 = vld [vmem:[%s379 + $0x5c] sm:$0xf]
      %v470 = vld [vmem:[%s379 + $0x60] sm:$0xf]
      %v471 = vld [vmem:[%s379 + $0x64] sm:$0xf]
      %v472 = vld [vmem:[%s379 + $0x68] sm:$0xf]
      %v473 = vld [vmem:[%s379 + $0x6c] sm:$0xf]
      %v474 = vld [vmem:[%s379 + $0x70] sm:$0xf]
      %v475 = vld [vmem:[%s379 + $0x74] sm:$0xf]
      %v476 = vld [vmem:[%s379 + $0x78] sm:$0xf]
      %v477 = vld [vmem:[%s379 + $0x7c] sm:$0xf]
      %v478 = vld [vmem:[%s394] sm:$0xf]
      %v479 = vld [vmem:[%s394 + $0x4] sm:$0xf]
      %v512 = vunpack.c.l.b16 %v446
      %v513 = vunpack.c.l.b16 %v447
      %v514 = vunpack.c.l.b16 %v448
      %v515 = vunpack.c.l.b16 %v449
      %v516 = vunpack.c.l.b16 %v450
      %v517 = vunpack.c.l.b16 %v451
      %v518 = vunpack.c.l.b16 %v452
      %v519 = vunpack.c.l.b16 %v453
      %v520 = vunpack.c.l.b16 %v454
      %v521 = vunpack.c.l.b16 %v455
      %v522 = vunpack.c.l.b16 %v456
      %v523 = vunpack.c.l.b16 %v457
      %v524 = vunpack.c.l.b16 %v458
      %v525 = vunpack.c.l.b16 %v459
      %v526 = vunpack.c.l.b16 %v460
      %v527 = vunpack.c.l.b16 %v461
      %v528 = vunpack.c.l.b16 %v462
      %v529 = vunpack.c.l.b16 %v463
      %v530 = vunpack.c.l.b16 %v464
      %v531 = vunpack.c.l.b16 %v465
      %v532 = vunpack.c.l.b16 %v466
      %v533 = vunpack.c.l.b16 %v467
      %v534 = vunpack.c.l.b16 %v468
      %v535 = vunpack.c.l.b16 %v469
      %v536 = vunpack.c.l.b16 %v470
      %v537 = vunpack.c.l.b16 %v471
      %v538 = vunpack.c.l.b16 %v472
      %v539 = vunpack.c.l.b16 %v473
      %v540 = vunpack.c.l.b16 %v474
      %v541 = vunpack.c.l.b16 %v475
      %v542 = vunpack.c.l.b16 %v476
      %v543 = vunpack.c.l.b16 %v477
      %v544 = vpack.c.b16 %v513, %v512
      %v545 = vpack.c.b16 %v515, %v514
      %v546 = vpack.c.b16 %v517, %v516
      %v547 = vpack.c.b16 %v519, %v518
      %v548 = vpack.c.b16 %v521, %v520
      %v549 = vpack.c.b16 %v523, %v522
      %v550 = vpack.c.b16 %v525, %v524
      %v551 = vpack.c.b16 %v527, %v526
      %v552 = vpack.c.b16 %v529, %v528
      %v553 = vpack.c.b16 %v531, %v530
      %v554 = vpack.c.b16 %v533, %v532
      %v555 = vpack.c.b16 %v535, %v534
      %v556 = vpack.c.b16 %v537, %v536
      %v557 = vpack.c.b16 %v539, %v538
      %v558 = vpack.c.b16 %v541, %v540
      %v559 = vpack.c.b16 %v543, %v542
      %v562 = vunpack.c.l.b16 %v478
      %v563 = vunpack.c.l.b16 %v479
      %v564 = vpack.c.b16 %v563, %v562
      %vm566 = vcmask 130048
      %v568 = vsel %vm566, %v544, 0
      %v571 = vsel %vm566, %v545, 0
      %v574 = vsel %vm566, %v546, 0
      %v577 = vsel %vm566, %v547, 0
      %v580 = vsel %vm566, %v548, 0
      %v583 = vsel %vm566, %v549, 0
      %v586 = vsel %vm566, %v550, 0
      %v589 = vsel %vm566, %v551, 0
      %v592 = vsel %vm566, %v552, 0
      %v595 = vsel %vm566, %v553, 0
      %v598 = vsel %vm566, %v554, 0
      %v601 = vsel %vm566, %v555, 0
      %v604 = vsel %vm566, %v556, 0
      %v607 = vsel %vm566, %v557, 0
      %v610 = vsel %vm566, %v558, 0
      %v613 = vsel %vm566, %v559, 0
      %615 = vmatprep.subr.bf16.mxu0 0
      %616 = vmatpush1.bf16.msra.mxu0 %v564
      %617 = vmatprep.subr.bf16.mxu0 0
      %618 = vmatpush1.bf16.msra.mxu0 0
      %619 = vmatprep.subr.bf16.mxu0 0
      %620 = vmatpush1.bf16.msra.mxu0 0
      %621 = vmatprep.subr.bf16.mxu0 0
      %622 = vmatpush1.bf16.msra.mxu0 0
      %623 = vmatprep.subr.bf16.mxu0 0
      %624 = vmatpush1.bf16.msra.mxu0 0
      %625 = vmatprep.subr.bf16.mxu0 0
      %626 = vmatpush1.bf16.msra.mxu0 0
      %627 = vmatprep.subr.bf16.mxu0 0
      %628 = vmatpush1.bf16.msra.mxu0 0
      %629 = vmatprep.subr.bf16.mxu0 0
      %630 = vmatpush1.bf16.msra.mxu0 0
      %631 = vmatprep.subr.bf16.mxu0 0
      %632 = vmatpush1.bf16.msra.mxu0 0
      %633 = vmatprep.subr.bf16.mxu0 0
      %634 = vmatpush1.bf16.msra.mxu0 0
      %635 = vmatprep.subr.bf16.mxu0 0
      %636 = vmatpush1.bf16.msra.mxu0 0
      %637 = vmatprep.subr.bf16.mxu0 0
      %638 = vmatpush1.bf16.msra.mxu0 0
      %639 = vmatprep.subr.bf16.mxu0 0
      %640 = vmatpush1.bf16.msra.mxu0 0
      %641 = vmatprep.subr.bf16.mxu0 0
      %642 = vmatpush1.bf16.msra.mxu0 0
      %643 = vmatprep.subr.bf16.mxu0 0
      %644 = vmatpush1.bf16.msra.mxu0 0
      %645 = vmatprep.subr.bf16.mxu0 0
      %646 = vmatpush1.bf16.msra.mxu0 0
      %647 = vmatprep.mubr.bf16.mxu0 0
      %648 = vmatmul.mubr.bf16.gmra.mrb[0].mxu0 %v568
      %v649 = vpop.f32.mrb[0].mxu0
      %v650 = vadd.f32 0.0, %v649
      %v651 = vpop.f32.mrb[0].mxu0
      %v652 = vpop.f32.mrb[0].mxu0
      %v653 = vadd.f32 0.0, %v652
      %v654 = vpop.f32.mrb[0].mxu0
      %655 = vmatprep.mubr.bf16.mxu0 0
      %656 = vmatmul.mubr.bf16.gmra.mrb[0].mxu0 %v571
      %v657 = vpop.f32.mrb[0].mxu0
      %v658 = vadd.f32 0.0, %v657
      %v659 = vpop.f32.mrb[0].mxu0
      %v660 = vpop.f32.mrb[0].mxu0
      %v661 = vadd.f32 0.0, %v660
      %v662 = vpop.f32.mrb[0].mxu0
      %663 = vmatprep.mubr.bf16.mxu0 0
      %664 = vmatmul.mubr.bf16.gmra.mrb[0].mxu0 %v574
      %v665 = vpop.f32.mrb[0].mxu0
      %v666 = vadd.f32 0.0, %v665
      %v667 = vpop.f32.mrb[0].mxu0
      %v668 = vpop.f32.mrb[0].mxu0
      %v669 = vadd.f32 0.0, %v668
      %v670 = vpop.f32.mrb[0].mxu0
      %671 = vmatprep.mubr.bf16.mxu0 0
      %672 = vmatmul.mubr.bf16.gmra.mrb[0].mxu0 %v577
      %v673 = vpop.f32.mrb[0].mxu0
      %v674 = vadd.f32 0.0, %v673
      %v675 = vpop.f32.mrb[0].mxu0
      %v676 = vpop.f32.mrb[0].mxu0
      %v677 = vadd.f32 0.0, %v676
      %v678 = vpop.f32.mrb[0].mxu0
      %679 = vmatprep.mubr.bf16.mxu0 0
      %680 = vmatmul.mubr.bf16.gmra.mrb[0].mxu0 %v580
      %v681 = vpop.f32.mrb[0].mxu0
      %v682 = vadd.f32 0.0, %v681
      %v683 = vpop.f32.mrb[0].mxu0
      %v684 = vpop.f32.mrb[0].mxu0
      %v685 = vadd.f32 0.0, %v684
      %v686 = vpop.f32.mrb[0].mxu0
      %687 = vmatprep.mubr.bf16.mxu0 0
      %688 = vmatmul.mubr.bf16.gmra.mrb[0].mxu0 %v583
      %v689 = vpop.f32.mrb[0].mxu0
      %v690 = vadd.f32 0.0, %v689
      %v691 = vpop.f32.mrb[0].mxu0
      %v692 = vpop.f32.mrb[0].mxu0
      %v693 = vadd.f32 0.0, %v692
      %v694 = vpop.f32.mrb[0].mxu0
      %695 = vmatprep.mubr.bf16.mxu0 0
      %696 = vmatmul.mubr.bf16.gmra.mrb[0].mxu0 %v586
      %v697 = vpop.f32.mrb[0].mxu0
      %v698 = vadd.f32 0.0, %v697
      %v699 = vpop.f32.mrb[0].mxu0
      %v700 = vpop.f32.mrb[0].mxu0
      %v701 = vadd.f32 0.0, %v700
      %v702 = vpop.f32.mrb[0].mxu0
      %703 = vmatprep.mubr.bf16.mxu0 0
      %704 = vmatmul.mubr.bf16.gmra.mrb[0].mxu0 %v589
      %v705 = vpop.f32.mrb[0].mxu0
      %v706 = vadd.f32 0.0, %v705
      %v707 = vpop.f32.mrb[0].mxu0
      %v708 = vpop.f32.mrb[0].mxu0
      %v709 = vadd.f32 0.0, %v708
      %v710 = vpop.f32.mrb[0].mxu0
      %711 = vmatprep.mubr.bf16.mxu0 0
      %712 = vmatmul.mubr.bf16.gmra.mrb[0].mxu0 %v592
      %v713 = vpop.f32.mrb[0].mxu0
      %v714 = vadd.f32 0.0, %v713
      %v715 = vpop.f32.mrb[0].mxu0
      %v716 = vpop.f32.mrb[0].mxu0
      %v717 = vadd.f32 0.0, %v716
      %v718 = vpop.f32.mrb[0].mxu0
      %719 = vmatprep.mubr.bf16.mxu0 0
      %720 = vmatmul.mubr.bf16.gmra.mrb[0].mxu0 %v595
      %v721 = vpop.f32.mrb[0].mxu0
      %v722 = vadd.f32 0.0, %v721
      %v723 = vpop.f32.mrb[0].mxu0
      %v724 = vpop.f32.mrb[0].mxu0
      %v725 = vadd.f32 0.0, %v724
      %v726 = vpop.f32.mrb[0].mxu0
      %727 = vmatprep.mubr.bf16.mxu0 0
      %728 = vmatmul.mubr.bf16.gmra.mrb[0].mxu0 %v598
      %v729 = vpop.f32.mrb[0].mxu0
      %v730 = vadd.f32 0.0, %v729
      %v731 = vpop.f32.mrb[0].mxu0
      %v732 = vpop.f32.mrb[0].mxu0
      %v733 = vadd.f32 0.0, %v732
      %v734 = vpop.f32.mrb[0].mxu0
      %735 = vmatprep.mubr.bf16.mxu0 0
      %736 = vmatmul.mubr.bf16.gmra.mrb[0].mxu0 %v601
      %v737 = vpop.f32.mrb[0].mxu0
      %v738 = vadd.f32 0.0, %v737
      %v739 = vpop.f32.mrb[0].mxu0
      %v740 = vpop.f32.mrb[0].mxu0
      %v741 = vadd.f32 0.0, %v740
      %v742 = vpop.f32.mrb[0].mxu0
      %743 = vmatprep.mubr.bf16.mxu0 0
      %744 = vmatmul.mubr.bf16.gmra.mrb[0].mxu0 %v604
      %v745 = vpop.f32.mrb[0].mxu0
      %v746 = vadd.f32 0.0, %v745
      %v747 = vpop.f32.mrb[0].mxu0
      %v748 = vpop.f32.mrb[0].mxu0
      %v749 = vadd.f32 0.0, %v748
      %v750 = vpop.f32.mrb[0].mxu0
      %751 = vmatprep.mubr.bf16.mxu0 0
      %752 = vmatmul.mubr.bf16.gmra.mrb[0].mxu0 %v607
      %v753 = vpop.f32.mrb[0].mxu0
      %v754 = vadd.f32 0.0, %v753
      %v755 = vpop.f32.mrb[0].mxu0
      %v756 = vpop.f32.mrb[0].mxu0
      %v757 = vadd.f32 0.0, %v756
      %v758 = vpop.f32.mrb[0].mxu0
      %759 = vmatprep.mubr.bf16.mxu0 0
      %760 = vmatmul.mubr.bf16.gmra.mrb[0].mxu0 %v610
      %v761 = vpop.f32.mrb[0].mxu0
      %v762 = vadd.f32 0.0, %v761
      %v763 = vpop.f32.mrb[0].mxu0
      %v764 = vpop.f32.mrb[0].mxu0
      %v765 = vadd.f32 0.0, %v764
      %v766 = vpop.f32.mrb[0].mxu0
      %767 = vmatprep.mubr.bf16.mxu0 0
      %768 = vmatmul.mubr.bf16.gmra.mrb[0].mxu0 %v613
      %v769 = vpop.f32.mrb[0].mxu0
      %v770 = vadd.f32 0.0, %v769
      %v771 = vpop.f32.mrb[0].mxu0
      %v772 = vpop.f32.mrb[0].mxu0
      %v773 = vadd.f32 0.0, %v772
      %v774 = vpop.f32.mrb[0].mxu0
      %775 = vdwg.mxu0
      %v808 = vunpack.c.l.b16 %v412
      %v809 = vunpack.c.l.b16 %v413
      %v810 = vunpack.c.l.b16 %v414
      %v811 = vunpack.c.l.b16 %v415
      %v812 = vunpack.c.l.b16 %v416
      %v813 = vunpack.c.l.b16 %v417
      %v814 = vunpack.c.l.b16 %v418
      %v815 = vunpack.c.l.b16 %v419
      %v816 = vunpack.c.l.b16 %v420
      %v817 = vunpack.c.l.b16 %v421
      %v818 = vunpack.c.l.b16 %v422
      %v819 = vunpack.c.l.b16 %v423
      %v820 = vunpack.c.l.b16 %v424
      %v821 = vunpack.c.l.b16 %v425
      %v822 = vunpack.c.l.b16 %v426
      %v823 = vunpack.c.l.b16 %v427
      %v824 = vunpack.c.l.b16 %v428
      %v825 = vunpack.c.l.b16 %v429
      %v826 = vunpack.c.l.b16 %v430
      %v827 = vunpack.c.l.b16 %v431
      %v828 = vunpack.c.l.b16 %v432
      %v829 = vunpack.c.l.b16 %v433
      %v830 = vunpack.c.l.b16 %v434
      %v831 = vunpack.c.l.b16 %v435
      %v832 = vunpack.c.l.b16 %v436
      %v833 = vunpack.c.l.b16 %v437
      %v834 = vunpack.c.l.b16 %v438
      %v835 = vunpack.c.l.b16 %v439
      %v836 = vunpack.c.l.b16 %v440
      %v837 = vunpack.c.l.b16 %v441
      %v838 = vunpack.c.l.b16 %v442
      %v839 = vunpack.c.l.b16 %v443
      %v840 = vpack.c.b16 %v809, %v808
      %v841 = vpack.c.b16 %v811, %v810
      %v842 = vpack.c.b16 %v813, %v812
      %v843 = vpack.c.b16 %v815, %v814
      %v844 = vpack.c.b16 %v817, %v816
      %v845 = vpack.c.b16 %v819, %v818
      %v846 = vpack.c.b16 %v821, %v820
      %v847 = vpack.c.b16 %v823, %v822
      %v848 = vpack.c.b16 %v825, %v824
      %v849 = vpack.c.b16 %v827, %v826
      %v850 = vpack.c.b16 %v829, %v828
      %v851 = vpack.c.b16 %v831, %v830
      %v852 = vpack.c.b16 %v833, %v832
      %v853 = vpack.c.b16 %v835, %v834
      %v854 = vpack.c.b16 %v837, %v836
      %v855 = vpack.c.b16 %v839, %v838
      %v858 = vunpack.c.l.b16 %v444
      %v859 = vunpack.c.l.b16 %v445
      %v860 = vpack.c.b16 %v859, %v858
      %v863 = vsel %vm566, %v840, 0
      %v866 = vsel %vm566, %v841, 0
      %v869 = vsel %vm566, %v842, 0
      %v872 = vsel %vm566, %v843, 0
      %v875 = vsel %vm566, %v844, 0
      %v878 = vsel %vm566, %v845, 0
      %v881 = vsel %vm566, %v846, 0
      %v884 = vsel %vm566, %v847, 0
      %v887 = vsel %vm566, %v848, 0
      %v890 = vsel %vm566, %v849, 0
      %v893 = vsel %vm566, %v850, 0
      %v896 = vsel %vm566, %v851, 0
      %v899 = vsel %vm566, %v852, 0
      %v902 = vsel %vm566, %v853, 0
      %v905 = vsel %vm566, %v854, 0
      %v908 = vsel %vm566, %v855, 0
      %910 = vmatprep.subr.bf16.mxu0 0
      %911 = vmatpush1.bf16.msra.mxu0 %v860
      %912 = vmatprep.subr.bf16.mxu0 0
      %913 = vmatpush1.bf16.msra.mxu0 0
      %914 = vmatprep.subr.bf16.mxu0 0
      %915 = vmatpush1.bf16.msra.mxu0 0
      %916 = vmatprep.subr.bf16.mxu0 0
      %917 = vmatpush1.bf16.msra.mxu0 0
      %918 = vmatprep.subr.bf16.mxu0 0
      %919 = vmatpush1.bf16.msra.mxu0 0
      %920 = vmatprep.subr.bf16.mxu0 0
      %921 = vmatpush1.bf16.msra.mxu0 0
      %922 = vmatprep.subr.bf16.mxu0 0
      %923 = vmatpush1.bf16.msra.mxu0 0
      %924 = vmatprep.subr.bf16.mxu0 0
      %925 = vmatpush1.bf16.msra.mxu0 0
      %926 = vmatprep.subr.bf16.mxu0 0
      %927 = vmatpush1.bf16.msra.mxu0 0
      %928 = vmatprep.subr.bf16.mxu0 0
      %929 = vmatpush1.bf16.msra.mxu0 0
      %930 = vmatprep.subr.bf16.mxu0 0
      %931 = vmatpush1.bf16.msra.mxu0 0
      %932 = vmatprep.subr.bf16.mxu0 0
      %933 = vmatpush1.bf16.msra.mxu0 0
      %934 = vmatprep.subr.bf16.mxu0 0
      %935 = vmatpush1.bf16.msra.mxu0 0
      %936 = vmatprep.subr.bf16.mxu0 0
      %937 = vmatpush1.bf16.msra.mxu0 0
      %938 = vmatprep.subr.bf16.mxu0 0
      %939 = vmatpush1.bf16.msra.mxu0 0
      %940 = vmatprep.subr.bf16.mxu0 0
      %941 = vmatpush1.bf16.msra.mxu0 0
      %942 = vmatprep.mubr.bf16.mxu0 0
      %943 = vmatmul.mubr.bf16.gmra.mrb[0].mxu0 %v863
      %v944 = vpop.f32.mrb[0].mxu0
      %v945 = vadd.f32 %v650, %v944
      %v946 = vpop.f32.mrb[0].mxu0
      %v947 = vpop.f32.mrb[0].mxu0
      %v948 = vadd.f32 %v653, %v947
      %v949 = vpop.f32.mrb[0].mxu0
      %950 = vmatprep.mubr.bf16.mxu0 0
      %951 = vmatmul.mubr.bf16.gmra.mrb[0].mxu0 %v866
      %v952 = vpop.f32.mrb[0].mxu0
      %v953 = vadd.f32 %v658, %v952
      %v954 = vpop.f32.mrb[0].mxu0
      %v955 = vpop.f32.mrb[0].mxu0
      %v956 = vadd.f32 %v661, %v955
      %v957 = vpop.f32.mrb[0].mxu0
      %958 = vmatprep.mubr.bf16.mxu0 0
      %959 = vmatmul.mubr.bf16.gmra.mrb[0].mxu0 %v869
      %v960 = vpop.f32.mrb[0].mxu0
      %v961 = vadd.f32 %v666, %v960
      %v962 = vpop.f32.mrb[0].mxu0
      %v963 = vpop.f32.mrb[0].mxu0
      %v964 = vadd.f32 %v669, %v963
      %v965 = vpop.f32.mrb[0].mxu0
      %966 = vmatprep.mubr.bf16.mxu0 0
      %967 = vmatmul.mubr.bf16.gmra.mrb[0].mxu0 %v872
      %v968 = vpop.f32.mrb[0].mxu0
      %v969 = vadd.f32 %v674, %v968
      %v970 = vpop.f32.mrb[0].mxu0
      %v971 = vpop.f32.mrb[0].mxu0
      %v972 = vadd.f32 %v677, %v971
      %v973 = vpop.f32.mrb[0].mxu0
      %974 = vmatprep.mubr.bf16.mxu0 0
      %975 = vmatmul.mubr.bf16.gmra.mrb[0].mxu0 %v875
      %v976 = vpop.f32.mrb[0].mxu0
      %v977 = vadd.f32 %v682, %v976
      %v978 = vpop.f32.mrb[0].mxu0
      %v979 = vpop.f32.mrb[0].mxu0
      %v980 = vadd.f32 %v685, %v979
      %v981 = vpop.f32.mrb[0].mxu0
      %982 = vmatprep.mubr.bf16.mxu0 0
      %983 = vmatmul.mubr.bf16.gmra.mrb[0].mxu0 %v878
      %v984 = vpop.f32.mrb[0].mxu0
      %v985 = vadd.f32 %v690, %v984
      %v986 = vpop.f32.mrb[0].mxu0
      %v987 = vpop.f32.mrb[0].mxu0
      %v988 = vadd.f32 %v693, %v987
      %v989 = vpop.f32.mrb[0].mxu0
      %990 = vmatprep.mubr.bf16.mxu0 0
      %991 = vmatmul.mubr.bf16.gmra.mrb[0].mxu0 %v881
      %v992 = vpop.f32.mrb[0].mxu0
      %v993 = vadd.f32 %v698, %v992
      %v994 = vpop.f32.mrb[0].mxu0
      %v995 = vpop.f32.mrb[0].mxu0
      %v996 = vadd.f32 %v701, %v995
      %v997 = vpop.f32.mrb[0].mxu0
      %998 = vmatprep.mubr.bf16.mxu0 0
      %999 = vmatmul.mubr.bf16.gmra.mrb[0].mxu0 %v884
      %v1000 = vpop.f32.mrb[0].mxu0
      %v1001 = vadd.f32 %v706, %v1000
      %v1002 = vpop.f32.mrb[0].mxu0
      %v1003 = vpop.f32.mrb[0].mxu0
      %v1004 = vadd.f32 %v709, %v1003
      %v1005 = vpop.f32.mrb[0].mxu0
      %1006 = vmatprep.mubr.bf16.mxu0 0
      %1007 = vmatmul.mubr.bf16.gmra.mrb[0].mxu0 %v887
      %v1008 = vpop.f32.mrb[0].mxu0
      %v1009 = vadd.f32 %v714, %v1008
      %v1010 = vpop.f32.mrb[0].mxu0
      %v1011 = vpop.f32.mrb[0].mxu0
      %v1012 = vadd.f32 %v717, %v1011
      %v1013 = vpop.f32.mrb[0].mxu0
      %1014 = vmatprep.mubr.bf16.mxu0 0
      %1015 = vmatmul.mubr.bf16.gmra.mrb[0].mxu0 %v890
      %v1016 = vpop.f32.mrb[0].mxu0
      %v1017 = vadd.f32 %v722, %v1016
      %v1018 = vpop.f32.mrb[0].mxu0
      %v1019 = vpop.f32.mrb[0].mxu0
      %v1020 = vadd.f32 %v725, %v1019
      %v1021 = vpop.f32.mrb[0].mxu0
      %1022 = vmatprep.mubr.bf16.mxu0 0
      %1023 = vmatmul.mubr.bf16.gmra.mrb[0].mxu0 %v893
      %v1024 = vpop.f32.mrb[0].mxu0
      %v1025 = vadd.f32 %v730, %v1024
      %v1026 = vpop.f32.mrb[0].mxu0
      %v1027 = vpop.f32.mrb[0].mxu0
      %v1028 = vadd.f32 %v733, %v1027
      %v1029 = vpop.f32.mrb[0].mxu0
      %1030 = vmatprep.mubr.bf16.mxu0 0
      %1031 = vmatmul.mubr.bf16.gmra.mrb[0].mxu0 %v896
      %v1032 = vpop.f32.mrb[0].mxu0
      %v1033 = vadd.f32 %v738, %v1032
      %v1034 = vpop.f32.mrb[0].mxu0
      %v1035 = vpop.f32.mrb[0].mxu0
      %v1036 = vadd.f32 %v741, %v1035
      %v1037 = vpop.f32.mrb[0].mxu0
      %1038 = vmatprep.mubr.bf16.mxu0 0
      %1039 = vmatmul.mubr.bf16.gmra.mrb[0].mxu0 %v899
      %v1040 = vpop.f32.mrb[0].mxu0
      %v1041 = vadd.f32 %v746, %v1040
      %v1042 = vpop.f32.mrb[0].mxu0
      %v1043 = vpop.f32.mrb[0].mxu0
      %v1044 = vadd.f32 %v749, %v1043
      %v1045 = vpop.f32.mrb[0].mxu0
      %1046 = vmatprep.mubr.bf16.mxu0 0
      %1047 = vmatmul.mubr.bf16.gmra.mrb[0].mxu0 %v902
      %v1048 = vpop.f32.mrb[0].mxu0
      %v1049 = vadd.f32 %v754, %v1048
      %v1050 = vpop.f32.mrb[0].mxu0
      %v1051 = vpop.f32.mrb[0].mxu0
      %v1052 = vadd.f32 %v757, %v1051
      %v1053 = vpop.f32.mrb[0].mxu0
      %1054 = vmatprep.mubr.bf16.mxu0 0
      %1055 = vmatmul.mubr.bf16.gmra.mrb[0].mxu0 %v905
      %v1056 = vpop.f32.mrb[0].mxu0
      %v1057 = vadd.f32 %v762, %v1056
      %v1058 = vpop.f32.mrb[0].mxu0
      %v1059 = vpop.f32.mrb[0].mxu0
      %v1060 = vadd.f32 %v765, %v1059
      %v1061 = vpop.f32.mrb[0].mxu0
      %1062 = vmatprep.mubr.bf16.mxu0 0
      %1063 = vmatmul.mubr.bf16.gmra.mrb[0].mxu0 %v908
      %v1064 = vpop.f32.mrb[0].mxu0
      %v1065 = vadd.f32 %v770, %v1064
      %v1066 = vpop.f32.mrb[0].mxu0
      %v1067 = vpop.f32.mrb[0].mxu0
      %v1068 = vadd.f32 %v773, %v1067
      %v1069 = vpop.f32.mrb[0].mxu0
      %1070 = vdwg.mxu0
      %v1071 = vld [vmem:[%s385] sm:$0xf]
      %v1072 = vld [vmem:[%s385 + $0x4] sm:$0xf]
      %v1073 = vld [vmem:[%s385 + $0x8] sm:$0xf]
      %v1074 = vld [vmem:[%s385 + $0xc] sm:$0xf]
      %v1075 = vld [vmem:[%s385 + $0x10] sm:$0xf]
      %v1076 = vld [vmem:[%s385 + $0x14] sm:$0xf]
      %v1077 = vld [vmem:[%s385 + $0x18] sm:$0xf]
      %v1078 = vld [vmem:[%s385 + $0x1c] sm:$0xf]
      %v1079 = vld [vmem:[%s385 + $0x20] sm:$0xf]
      %v1080 = vld [vmem:[%s385 + $0x24] sm:$0xf]
      %v1081 = vld [vmem:[%s385 + $0x28] sm:$0xf]
      %v1082 = vld [vmem:[%s385 + $0x2c] sm:$0xf]
      %v1083 = vld [vmem:[%s385 + $0x30] sm:$0xf]
      %v1084 = vld [vmem:[%s385 + $0x34] sm:$0xf]
      %v1085 = vld [vmem:[%s385 + $0x38] sm:$0xf]
      %v1086 = vld [vmem:[%s385 + $0x3c] sm:$0xf]
      %v1087 = vld [vmem:[%s385 + $0x40] sm:$0xf]
      %v1088 = vld [vmem:[%s385 + $0x44] sm:$0xf]
      %v1089 = vld [vmem:[%s385 + $0x48] sm:$0xf]
      %v1090 = vld [vmem:[%s385 + $0x4c] sm:$0xf]
      %v1091 = vld [vmem:[%s385 + $0x50] sm:$0xf]
      %v1092 = vld [vmem:[%s385 + $0x54] sm:$0xf]
      %v1093 = vld [vmem:[%s385 + $0x58] sm:$0xf]
      %v1094 = vld [vmem:[%s385 + $0x5c] sm:$0xf]
      %v1095 = vld [vmem:[%s385 + $0x60] sm:$0xf]
      %v1096 = vld [vmem:[%s385 + $0x64] sm:$0xf]
      %v1097 = vld [vmem:[%s385 + $0x68] sm:$0xf]
      %v1098 = vld [vmem:[%s385 + $0x6c] sm:$0xf]
      %v1099 = vld [vmem:[%s385 + $0x70] sm:$0xf]
      %v1100 = vld [vmem:[%s385 + $0x74] sm:$0xf]
      %v1101 = vld [vmem:[%s385 + $0x78] sm:$0xf]
      %v1102 = vld [vmem:[%s385 + $0x7c] sm:$0xf]
      %v1103 = vld [vmem:[%s398] sm:$0xf]
      %v1104 = vld [vmem:[%s398 + $0x4] sm:$0xf]
      %v1137 = vunpack.c.l.b16 %v1071
      %v1138 = vunpack.c.l.b16 %v1072
      %v1139 = vunpack.c.l.b16 %v1073
      %v1140 = vunpack.c.l.b16 %v1074
      %v1141 = vunpack.c.l.b16 %v1075
      %v1142 = vunpack.c.l.b16 %v1076
      %v1143 = vunpack.c.l.b16 %v1077
      %v1144 = vunpack.c.l.b16 %v1078
      %v1145 = vunpack.c.l.b16 %v1079
      %v1146 = vunpack.c.l.b16 %v1080
      %v1147 = vunpack.c.l.b16 %v1081
      %v1148 = vunpack.c.l.b16 %v1082
      %v1149 = vunpack.c.l.b16 %v1083
      %v1150 = vunpack.c.l.b16 %v1084
      %v1151 = vunpack.c.l.b16 %v1085
      %v1152 = vunpack.c.l.b16 %v1086
      %v1153 = vunpack.c.l.b16 %v1087
      %v1154 = vunpack.c.l.b16 %v1088
      %v1155 = vunpack.c.l.b16 %v1089
      %v1156 = vunpack.c.l.b16 %v1090
      %v1157 = vunpack.c.l.b16 %v1091
      %v1158 = vunpack.c.l.b16 %v1092
      %v1159 = vunpack.c.l.b16 %v1093
      %v1160 = vunpack.c.l.b16 %v1094
      %v1161 = vunpack.c.l.b16 %v1095
      %v1162 = vunpack.c.l.b16 %v1096
      %v1163 = vunpack.c.l.b16 %v1097
      %v1164 = vunpack.c.l.b16 %v1098
      %v1165 = vunpack.c.l.b16 %v1099
      %v1166 = vunpack.c.l.b16 %v1100
      %v1167 = vunpack.c.l.b16 %v1101
      %v1168 = vunpack.c.l.b16 %v1102
      %v1169 = vpack.c.b16 %v1138, %v1137
      %v1170 = vpack.c.b16 %v1140, %v1139
      %v1171 = vpack.c.b16 %v1142, %v1141
      %v1172 = vpack.c.b16 %v1144, %v1143
      %v1173 = vpack.c.b16 %v1146, %v1145
      %v1174 = vpack.c.b16 %v1148, %v1147
      %v1175 = vpack.c.b16 %v1150, %v1149
      %v1176 = vpack.c.b16 %v1152, %v1151
      %v1177 = vpack.c.b16 %v1154, %v1153
      %v1178 = vpack.c.b16 %v1156, %v1155
      %v1179 = vpack.c.b16 %v1158, %v1157
      %v1180 = vpack.c.b16 %v1160, %v1159
      %v1181 = vpack.c.b16 %v1162, %v1161
      %v1182 = vpack.c.b16 %v1164, %v1163
      %v1183 = vpack.c.b16 %v1166, %v1165
      %v1184 = vpack.c.b16 %v1168, %v1167
      %v1187 = vunpack.c.l.b16 %v1103
      %v1188 = vunpack.c.l.b16 %v1104
      %v1189 = vpack.c.b16 %v1188, %v1187
      %v1192 = vsel %vm566, %v1169, 0
      %v1195 = vsel %vm566, %v1170, 0
      %v1198 = vsel %vm566, %v1171, 0
      %v1201 = vsel %vm566, %v1172, 0
      %v1204 = vsel %vm566, %v1173, 0
      %v1207 = vsel %vm566, %v1174, 0
      %v1210 = vsel %vm566, %v1175, 0
      %v1213 = vsel %vm566, %v1176, 0
      %v1216 = vsel %vm566, %v1177, 0
      %v1219 = vsel %vm566, %v1178, 0
      %v1222 = vsel %vm566, %v1179, 0
      %v1225 = vsel %vm566, %v1180, 0
      %v1228 = vsel %vm566, %v1181, 0
      %v1231 = vsel %vm566, %v1182, 0
      %v1234 = vsel %vm566, %v1183, 0
      %v1237 = vsel %vm566, %v1184, 0
      %1239 = vmatprep.subr.bf16.mxu0 0
      %1240 = vmatpush1.bf16.msra.mxu0 %v1189
      %1241 = vmatprep.subr.bf16.mxu0 0
      %1242 = vmatpush1.bf16.msra.mxu0 0
      %1243 = vmatprep.subr.bf16.mxu0 0
      %1244 = vmatpush1.bf16.msra.mxu0 0
      %1245 = vmatprep.subr.bf16.mxu0 0
      %1246 = vmatpush1.bf16.msra.mxu0 0
      %1247 = vmatprep.subr.bf16.mxu0 0
      %1248 = vmatpush1.bf16.msra.mxu0 0
      %1249 = vmatprep.subr.bf16.mxu0 0
      %1250 = vmatpush1.bf16.msra.mxu0 0
      %1251 = vmatprep.subr.bf16.mxu0 0
      %1252 = vmatpush1.bf16.msra.mxu0 0
      %1253 = vmatprep.subr.bf16.mxu0 0
      %1254 = vmatpush1.bf16.msra.mxu0 0
      %1255 = vmatprep.subr.bf16.mxu0 0
      %1256 = vmatpush1.bf16.msra.mxu0 0
      %1257 = vmatprep.subr.bf16.mxu0 0
      %1258 = vmatpush1.bf16.msra.mxu0 0
      %1259 = vmatprep.subr.bf16.mxu0 0
      %1260 = vmatpush1.bf16.msra.mxu0 0
      %1261 = vmatprep.subr.bf16.mxu0 0
      %1262 = vmatpush1.bf16.msra.mxu0 0
      %1263 = vmatprep.subr.bf16.mxu0 0
      %1264 = vmatpush1.bf16.msra.mxu0 0
      %1265 = vmatprep.subr.bf16.mxu0 0
      %1266 = vmatpush1.bf16.msra.mxu0 0
      %1267 = vmatprep.subr.bf16.mxu0 0
      %1268 = vmatpush1.bf16.msra.mxu0 0
      %1269 = vmatprep.subr.bf16.mxu0 0
      %1270 = vmatpush1.bf16.msra.mxu0 0
      %1271 = vmatprep.mubr.bf16.mxu0 0
      %1272 = vmatmul.mubr.bf16.gmra.mrb[0].mxu0 %v1192
      %v1273 = vpop.f32.mrb[0].mxu0
      %v1274 = vadd.f32 0.0, %v1273
      %v1275 = vpop.f32.mrb[0].mxu0
      %v1276 = vpop.f32.mrb[0].mxu0
      %v1277 = vadd.f32 0.0, %v1276
      %v1278 = vpop.f32.mrb[0].mxu0
      %1279 = vmatprep.mubr.bf16.mxu0 0
      %1280 = vmatmul.mubr.bf16.gmra.mrb[0].mxu0 %v1195
      %v1281 = vpop.f32.mrb[0].mxu0
      %v1282 = vadd.f32 0.0, %v1281
      %v1283 = vpop.f32.mrb[0].mxu0
      %v1284 = vpop.f32.mrb[0].mxu0
      %v1285 = vadd.f32 0.0, %v1284
      %v1286 = vpop.f32.mrb[0].mxu0
      %1287 = vmatprep.mubr.bf16.mxu0 0
      %1288 = vmatmul.mubr.bf16.gmra.mrb[0].mxu0 %v1198
      %v1289 = vpop.f32.mrb[0].mxu0
      %v1290 = vadd.f32 0.0, %v1289
      %v1291 = vpop.f32.mrb[0].mxu0
      %v1292 = vpop.f32.mrb[0].mxu0
      %v1293 = vadd.f32 0.0, %v1292
      %v1294 = vpop.f32.mrb[0].mxu0
      %1295 = vmatprep.mubr.bf16.mxu0 0
      %1296 = vmatmul.mubr.bf16.gmra.mrb[0].mxu0 %v1201
      %v1297 = vpop.f32.mrb[0].mxu0
      %v1298 = vadd.f32 0.0, %v1297
      %v1299 = vpop.f32.mrb[0].mxu0
      %v1300 = vpop.f32.mrb[0].mxu0
      %v1301 = vadd.f32 0.0, %v1300
      %v1302 = vpop.f32.mrb[0].mxu0
      %1303 = vmatprep.mubr.bf16.mxu0 0
      %1304 = vmatmul.mubr.bf16.gmra.mrb[0].mxu0 %v1204
      %v1305 = vpop.f32.mrb[0].mxu0
      %v1306 = vadd.f32 0.0, %v1305
      %v1307 = vpop.f32.mrb[0].mxu0
      %v1308 = vpop.f32.mrb[0].mxu0
      %v1309 = vadd.f32 0.0, %v1308
      %v1310 = vpop.f32.mrb[0].mxu0
      %1311 = vmatprep.mubr.bf16.mxu0 0
      %1312 = vmatmul.mubr.bf16.gmra.mrb[0].mxu0 %v1207
      %v1313 = vpop.f32.mrb[0].mxu0
      %v1314 = vadd.f32 0.0, %v1313
      %v1315 = vpop.f32.mrb[0].mxu0
      %v1316 = vpop.f32.mrb[0].mxu0
      %v1317 = vadd.f32 0.0, %v1316
      %v1318 = vpop.f32.mrb[0].mxu0
      %1319 = vmatprep.mubr.bf16.mxu0 0
      %1320 = vmatmul.mubr.bf16.gmra.mrb[0].mxu0 %v1210
      %v1321 = vpop.f32.mrb[0].mxu0
      %v1322 = vadd.f32 0.0, %v1321
      %v1323 = vpop.f32.mrb[0].mxu0
      %v1324 = vpop.f32.mrb[0].mxu0
      %v1325 = vadd.f32 0.0, %v1324
      %v1326 = vpop.f32.mrb[0].mxu0
      %1327 = vmatprep.mubr.bf16.mxu0 0
      %1328 = vmatmul.mubr.bf16.gmra.mrb[0].mxu0 %v1213
      %v1329 = vpop.f32.mrb[0].mxu0
      %v1330 = vadd.f32 0.0, %v1329
      %v1331 = vpop.f32.mrb[0].mxu0
      %v1332 = vpop.f32.mrb[0].mxu0
      %v1333 = vadd.f32 0.0, %v1332
      %v1334 = vpop.f32.mrb[0].mxu0
      %1335 = vmatprep.mubr.bf16.mxu0 0
      %1336 = vmatmul.mubr.bf16.gmra.mrb[0].mxu0 %v1216
      %v1337 = vpop.f32.mrb[0].mxu0
      %v1338 = vadd.f32 0.0, %v1337
      %v1339 = vpop.f32.mrb[0].mxu0
      %v1340 = vpop.f32.mrb[0].mxu0
      %v1341 = vadd.f32 0.0, %v1340
      %v1342 = vpop.f32.mrb[0].mxu0
      %1343 = vmatprep.mubr.bf16.mxu0 0
      %1344 = vmatmul.mubr.bf16.gmra.mrb[0].mxu0 %v1219
      %v1345 = vpop.f32.mrb[0].mxu0
      %v1346 = vadd.f32 0.0, %v1345
      %v1347 = vpop.f32.mrb[0].mxu0
      %v1348 = vpop.f32.mrb[0].mxu0
      %v1349 = vadd.f32 0.0, %v1348
      %v1350 = vpop.f32.mrb[0].mxu0
      %1351 = vmatprep.mubr.bf16.mxu0 0
      %1352 = vmatmul.mubr.bf16.gmra.mrb[0].mxu0 %v1222
      %v1353 = vpop.f32.mrb[0].mxu0
      %v1354 = vadd.f32 0.0, %v1353
      %v1355 = vpop.f32.mrb[0].mxu0
      %v1356 = vpop.f32.mrb[0].mxu0
      %v1357 = vadd.f32 0.0, %v1356
      %v1358 = vpop.f32.mrb[0].mxu0
      %1359 = vmatprep.mubr.bf16.mxu0 0
      %1360 = vmatmul.mubr.bf16.gmra.mrb[0].mxu0 %v1225
      %v1361 = vpop.f32.mrb[0].mxu0
      %v1362 = vadd.f32 0.0, %v1361
      %v1363 = vpop.f32.mrb[0].mxu0
      %v1364 = vpop.f32.mrb[0].mxu0
      %v1365 = vadd.f32 0.0, %v1364
      %v1366 = vpop.f32.mrb[0].mxu0
      %1367 = vmatprep.mubr.bf16.mxu0 0
      %1368 = vmatmul.mubr.bf16.gmra.mrb[0].mxu0 %v1228
      %v1369 = vpop.f32.mrb[0].mxu0
      %v1370 = vadd.f32 0.0, %v1369
      %v1371 = vpop.f32.mrb[0].mxu0
      %v1372 = vpop.f32.mrb[0].mxu0
      %v1373 = vadd.f32 0.0, %v1372
      %v1374 = vpop.f32.mrb[0].mxu0
      %1375 = vmatprep.mubr.bf16.mxu0 0
      %1376 = vmatmul.mubr.bf16.gmra.mrb[0].mxu0 %v1231
      %v1377 = vpop.f32.mrb[0].mxu0
      %v1378 = vadd.f32 0.0, %v1377
      %v1379 = vpop.f32.mrb[0].mxu0
      %v1380 = vpop.f32.mrb[0].mxu0
      %v1381 = vadd.f32 0.0, %v1380
      %v1382 = vpop.f32.mrb[0].mxu0
      %1383 = vmatprep.mubr.bf16.mxu0 0
      %1384 = vmatmul.mubr.bf16.gmra.mrb[0].mxu0 %v1234
      %v1385 = vpop.f32.mrb[0].mxu0
      %v1386 = vadd.f32 0.0, %v1385
      %v1387 = vpop.f32.mrb[0].mxu0
      %v1388 = vpop.f32.mrb[0].mxu0
      %v1389 = vadd.f32 0.0, %v1388
      %v1390 = vpop.f32.mrb[0].mxu0
      %1391 = vmatprep.mubr.bf16.mxu0 0
      %1392 = vmatmul.mubr.bf16.gmra.mrb[0].mxu0 %v1237
      %v1393 = vpop.f32.mrb[0].mxu0
      %v1394 = vadd.f32 0.0, %v1393
      %v1395 = vpop.f32.mrb[0].mxu0
      %v1396 = vpop.f32.mrb[0].mxu0
      %v1397 = vadd.f32 0.0, %v1396
      %v1398 = vpop.f32.mrb[0].mxu0
      %1399 = vdwg.mxu0
      %v1400 = vadd.f32 %v945, %v1274
      %v1401 = vadd.f32 %v948, %v1277
      %v1402 = vadd.f32 %v953, %v1282
      %v1403 = vadd.f32 %v956, %v1285
      %v1404 = vadd.f32 %v961, %v1290
      %v1405 = vadd.f32 %v964, %v1293
      %v1406 = vadd.f32 %v969, %v1298
      %v1407 = vadd.f32 %v972, %v1301
      %v1408 = vadd.f32 %v977, %v1306
      %v1409 = vadd.f32 %v980, %v1309
      %v1410 = vadd.f32 %v985, %v1314
      %v1411 = vadd.f32 %v988, %v1317
      %v1412 = vadd.f32 %v993, %v1322
      %v1413 = vadd.f32 %v996, %v1325
      %v1414 = vadd.f32 %v1001, %v1330
      %v1415 = vadd.f32 %v1004, %v1333
      %v1416 = vadd.f32 %v1009, %v1338
      %v1417 = vadd.f32 %v1012, %v1341
      %v1418 = vadd.f32 %v1017, %v1346
      %v1419 = vadd.f32 %v1020, %v1349
      %v1420 = vadd.f32 %v1025, %v1354
      %v1421 = vadd.f32 %v1028, %v1357
      %v1422 = vadd.f32 %v1033, %v1362
      %v1423 = vadd.f32 %v1036, %v1365
      %v1424 = vadd.f32 %v1041, %v1370
      %v1425 = vadd.f32 %v1044, %v1373
      %v1426 = vadd.f32 %v1049, %v1378
      %v1427 = vadd.f32 %v1052, %v1381
      %v1428 = vadd.f32 %v1057, %v1386
      %v1429 = vadd.f32 %v1060, %v1389
      %v1430 = vadd.f32 %v1065, %v1394
      %v1431 = vadd.f32 %v1068, %v1397
      %v1432 = vld [vmem:[%s401] sm:$0x1]
      %v1434 = vlaneseq
      %v1435 = vshrl.u32 %v1434, 7
      %v1436 = vsub.s32 0, %v1435
      %v1437 = vrot.slane %v1432, %v1436
      %v1439 = vadd.f32 %v1400, %v1437
      %v1440 = vadd.f32 %v1401, %v1437
      %v1441 = vadd.f32 %v1402, %v1437
      %v1442 = vadd.f32 %v1403, %v1437
      %v1443 = vadd.f32 %v1404, %v1437
      %v1444 = vadd.f32 %v1405, %v1437
      %v1445 = vadd.f32 %v1406, %v1437
      %v1446 = vadd.f32 %v1407, %v1437
      %v1447 = vadd.f32 %v1408, %v1437
      %v1448 = vadd.f32 %v1409, %v1437
      %v1449 = vadd.f32 %v1410, %v1437
      %v1450 = vadd.f32 %v1411, %v1437
      %v1451 = vadd.f32 %v1412, %v1437
      %v1452 = vadd.f32 %v1413, %v1437
      %v1453 = vadd.f32 %v1414, %v1437
      %v1454 = vadd.f32 %v1415, %v1437
      %v1455 = vadd.f32 %v1416, %v1437
      %v1456 = vadd.f32 %v1417, %v1437
      %v1457 = vadd.f32 %v1418, %v1437
      %v1458 = vadd.f32 %v1419, %v1437
      %v1459 = vadd.f32 %v1420, %v1437
      %v1460 = vadd.f32 %v1421, %v1437
      %v1461 = vadd.f32 %v1422, %v1437
      %v1462 = vadd.f32 %v1423, %v1437
      %v1463 = vadd.f32 %v1424, %v1437
      %v1464 = vadd.f32 %v1425, %v1437
      %v1465 = vadd.f32 %v1426, %v1437
      %v1466 = vadd.f32 %v1427, %v1437
      %v1467 = vadd.f32 %v1428, %v1437
      %v1468 = vadd.f32 %v1429, %v1437
      %v1469 = vadd.f32 %v1430, %v1437
      %v1470 = vadd.f32 %v1431, %v1437
      %1471 = vst.msk [vmem:[%s409] sm:$0xff] %vm566, %v1439
      %1472 = vst.msk [vmem:[%s409 + $0x8] sm:$0xff] %vm566, %v1440
      %1473 = vst.msk [vmem:[%s409 + $0x10] sm:$0xff] %vm566, %v1441
      %1474 = vst.msk [vmem:[%s409 + $0x18] sm:$0xff] %vm566, %v1442
      %1475 = vst.msk [vmem:[%s409 + $0x20] sm:$0xff] %vm566, %v1443
      %1476 = vst.msk [vmem:[%s409 + $0x28] sm:$0xff] %vm566, %v1444
      %1477 = vst.msk [vmem:[%s409 + $0x30] sm:$0xff] %vm566, %v1445
      %1478 = vst.msk [vmem:[%s409 + $0x38] sm:$0xff] %vm566, %v1446
      %1479 = vst.msk [vmem:[%s409 + $0x40] sm:$0xff] %vm566, %v1447
      %1480 = vst.msk [vmem:[%s409 + $0x48] sm:$0xff] %vm566, %v1448
      %1481 = vst.msk [vmem:[%s409 + $0x50] sm:$0xff] %vm566, %v1449
      %1482 = vst.msk [vmem:[%s409 + $0x58] sm:$0xff] %vm566, %v1450
      %1483 = vst.msk [vmem:[%s409 + $0x60] sm:$0xff] %vm566, %v1451
      %1484 = vst.msk [vmem:[%s409 + $0x68] sm:$0xff] %vm566, %v1452
      %1485 = vst.msk [vmem:[%s409 + $0x70] sm:$0xff] %vm566, %v1453
      %1486 = vst.msk [vmem:[%s409 + $0x78] sm:$0xff] %vm566, %v1454
      %1487 = vst.msk [vmem:[%s409 + $0x80] sm:$0xff] %vm566, %v1455
      %1488 = vst.msk [vmem:[%s409 + $0x88] sm:$0xff] %vm566, %v1456
      %1489 = vst.msk [vmem:[%s409 + $0x90] sm:$0xff] %vm566, %v1457
      %1490 = vst.msk [vmem:[%s409 + $0x98] sm:$0xff] %vm566, %v1458
      %1491 = vst.msk [vmem:[%s409 + $0xa0] sm:$0xff] %vm566, %v1459
      %1492 = vst.msk [vmem:[%s409 + $0xa8] sm:$0xff] %vm566, %v1460
      %1493 = vst.msk [vmem:[%s409 + $0xb0] sm:$0xff] %vm566, %v1461
      %1494 = vst.msk [vmem:[%s409 + $0xb8] sm:$0xff] %vm566, %v1462
      %1495 = vst.msk [vmem:[%s409 + $0xc0] sm:$0xff] %vm566, %v1463
      %1496 = vst.msk [vmem:[%s409 + $0xc8] sm:$0xff] %vm566, %v1464
      %1497 = vst.msk [vmem:[%s409 + $0xd0] sm:$0xff] %vm566, %v1465
      %1498 = vst.msk [vmem:[%s409 + $0xd8] sm:$0xff] %vm566, %v1466
      %1499 = vst.msk [vmem:[%s409 + $0xe0] sm:$0xff] %vm566, %v1467
      %1500 = vst.msk [vmem:[%s409 + $0xe8] sm:$0xff] %vm566, %v1468
      %1501 = vst.msk [vmem:[%s409 + $0xf0] sm:$0xff] %vm566, %v1469
      %1502 = vst.msk [vmem:[%s409 + $0xf8] sm:$0xff] %vm566, %v1470
      %s1503 = smul.u32 32, %s22
      %p1504 = scmp.lt.s32.totalorder %s1503, 63
      %s1505 = scalar_select %p1504, %s1503, 63
      %p1506 = scmp.lt.s32.totalorder %s23, 0
      %s1507 = scalar_select %p1506, %s23, 0
      %s1508 = sadd.s32 %s1507, %s1505
      %s1509 = smul.addr %s1508, 8
      %s1510 = scalar_lea.vmem %s7, %s1509
      // Predicated region
      $region49: #{demucs_forward.29} parent=47 // pred_check
        %p1511 = pneg %p232
      $region50: #{demucs_forward.29} parent=47 // pred_check_branch
        %1513 = sbr.rel (%p1511) target = $region52
      $region51: #{demucs_forward.29} parent=47 // pred_region
        %s1514 = smul.u32 32, %s22
      $region52: #{demucs_forward.29} parent=47 // pred_fallthru
        _
    $region48: #{demucs_forward.29} parent=5 // pred_fallthru
      _
    %p1515 = scmp.le.s32.totalorder 2, %s13
    // Predicated region
    $region53: #{demucs_forward.29} parent=5 // pred_check
      %p1516 = pneg %p1515
    $region54: #{demucs_forward.29} parent=5 // pred_check_branch
      %1518 = sbr.rel (%p1516) target = $region56
    $region55: #{demucs_forward.29} parent=5 // pred_region
      %s1519 = ssub.s32 %s13, 2
      // Predicated region
      $region57: #{demucs_forward.29} parent=55 // pred_check
        %p1520 = pneg %p238
      $region58: #{demucs_forward.29} parent=55 // pred_check_branch
        %1522 = sbr.rel (%p1520) target = $region60
      $region59: #{demucs_forward.29} parent=55 // pred_region
        %s1523 = smul.u32 32, %s24
        %p1524 = scmp.lt.s32.totalorder %s1523, 63
        %s1525 = scalar_select %p1524, %s1523, 63
        %p1526 = scmp.lt.s32.totalorder %s25, 0
        %s1527 = scalar_select %p1526, %s25, 0
        %s1528 = sadd.s32 %s1527, %s1525
        %s1529 = smul.addr %s1528, 8
        %s1530 = scalar_lea.vmem %s7, %s1529
      $region60: #{demucs_forward.29} parent=55 // pred_fallthru
        _
    $region56: #{demucs_forward.29} parent=5 // pred_fallthru
      _
  $region6: #{demucs_forward.29} parent=0 // loop_footer
    %s17 = sadd.s32 1, %s13
  $region7: #{demucs_forward.29} parent=0 // loop_footer_branch
    %12 = sbr.rel target = $region3
  $region8: #{demucs_forward.29} parent=0 // loop_exit
    _

</llo_original>
